<compile_context>
chip_gen: v7x
topology: tpu7x:2x2x1
jax: 0.10.0
libtpu: 0.0.40
codegen_flags: <defaults>
</compile_context>

<pallas_src>
import jax
import jax.numpy as jnp
from jax import lax
from jax.experimental import pallas as pl
from jax.experimental.pallas import tpu as pltpu

_EPS = 1e-5
_VMEM = pl.BlockSpec(memory_space=pltpu.MemorySpace.VMEM)


# ----------------------------------------------------------------------------
# Kernels
# ----------------------------------------------------------------------------
def _make_trunk_kernel(n, h, w, c_hidden, num_blocks):
    """Fused: start conv + residual blocks + policy/value head convs.

    Every Conv2d(3x3, pad=1) is one im2col matmul (K = 9*Cin) followed by
    training-mode BatchNorm (+ residual) (+ ReLU).  Activations stay in VMEM
    for the whole trunk; only the two head-conv activations are written out,
    already flattened to (N*H*W, Cout) so the wrapper reshape yields the
    HWC-ordered flatten the fully-connected heads expect.
    """
    nhw = n * h * w
    n_in = 4 + 6 * num_blocks + 6   # xpad + start(3) + blocks(6 each) + heads(6)

    def kernel(*refs):
        in_refs = refs[:n_in]
        ph_ref, vh_ref = refs[n_in], refs[n_in + 1]
        pad_ref, patch_ref = refs[n_in + 2], refs[n_in + 3]

        def conv_bn(xp, w_ref, g_ref, b_ref, cin, relu=True, residual=None):
            # xp: (n, h+2, w+2, cin) f32 value, already zero-padded.
            # im2col: write the 9 shifted taps into one (nhw, 9*cin) VMEM slab
            # and do a single MXU matmul against the (9*cin, cout) weight.
            t = 0
            for dh in range(3):
                for dw in range(3):
                    patch_ref[:, t * cin:(t + 1) * cin] = (
                        xp[:, dh:dh + h, dw:dw + w, :].reshape(nhw, cin))
                    t += 1
            patches = patch_ref[:, 0:9 * cin].astype(jnp.bfloat16)
            acc = jnp.dot(patches, w_ref[...],
                          preferred_element_type=jnp.float32)   # (nhw, cout)

            # BatchNorm2d, training-mode semantics (biased variance over
            # N*H*W), computed in a single pass.  (The conv bias was dropped
            # at init: it is cancelled exactly by the mean subtraction.)
            mean = jnp.mean(acc, axis=0, keepdims=True)
            var = jnp.maximum(
                jnp.mean(acc * acc, axis=0, keepdims=True) - mean * mean, 0.0)
            scale = g_ref[...] * lax.rsqrt(var + _EPS)
            y = acc * scale + (b_ref[...] - mean * scale)
            if residual is not None:
                y = y + residual
            if relu:
                y = jnp.maximum(y, 0.0)
            return y                                             # (nhw, cout)

        def repad(x2d):
            # Write the interior of the persistent padded buffer; the halo was
            # zeroed once at kernel start and is never touched again.
            pad_ref[:, 1:h + 1, 1:w + 1, :] = x2d.reshape(n, h, w, c_hidden)
            return pad_ref[...]

        pad_ref[...] = jnp.zeros_like(pad_ref)    # zero the halo exactly once

        idx = 0
        xpad_in = in_refs[idx][...]               # (n, h+2, w+2, 4) pre-padded
        idx += 1
        x = conv_bn(xpad_in, in_refs[idx], in_refs[idx + 1], in_refs[idx + 2],
                    cin=4)
        idx += 3

        for _ in range(num_blocks):
            residual = x
            x = conv_bn(repad(x), in_refs[idx], in_refs[idx + 1],
                        in_refs[idx + 2], cin=c_hidden)
            idx += 3
            # conv -> bn -> (+= residual) -> relu
            x = conv_bn(repad(x), in_refs[idx], in_refs[idx + 1],
                        in_refs[idx + 2], cin=c_hidden, residual=residual)
            idx += 3

        xp = repad(x)                             # shared by both head convs
        ph = conv_bn(xp, in_refs[idx], in_refs[idx + 1], in_refs[idx + 2],
                     cin=c_hidden)
        idx += 3
        vh = conv_bn(xp, in_refs[idx], in_refs[idx + 1], in_refs[idx + 2],
                     cin=c_hidden)

        ph_ref[...] = ph.astype(ph_ref.dtype)
        vh_ref[...] = vh.astype(vh_ref.dtype)

    return kernel


def _heads_kernel(ph_ref, pw_ref, pb_ref, vh_ref, vw_ref, vb_ref, a_ref,
                  pol_ref, val_ref):
    """Both fully-connected heads (+ PReLU on the value head) in one kernel."""
    pol = jnp.dot(ph_ref[...], pw_ref[...], preferred_element_type=jnp.float32)
    pol_ref[...] = (pol + pb_ref[...]).astype(pol_ref.dtype)

    v = jnp.dot(vh_ref[...], vw_ref[...], preferred_element_type=jnp.float32)
    v = v + vb_ref[...]
    a = a_ref[...]                                # (1, 1) PReLU slope
    val_ref[...] = (jnp.maximum(v, 0.0) + a * jnp.minimum(v, 0.0)).astype(
        val_ref.dtype)


# ----------------------------------------------------------------------------
# Forward pass (2 pallas_calls total)
# ----------------------------------------------------------------------------
def resnet_forward(params, x_nchw):
    N = x_nchw.shape[0]
    # PyTorch NCHW -> NHWC; pad the (tiny) network input once for the 1st conv.
    x = jnp.transpose(x_nchw, (0, 2, 3, 1)).astype(jnp.float32)
    _, H, W, _ = x.shape
    xpad = jnp.pad(x, ((0, 0), (1, 1), (1, 1), (0, 0)))

    c_hidden = params["start"]["g"].shape[-1]
    num_blocks = len(params["blocks"])
    nhw = N * H * W

    inputs = [xpad, params["start"]["w"], params["start"]["g"],
              params["start"]["b"]]
    for blk in params["blocks"]:
        for name in ("conv1", "conv2"):
            c = blk[name]
            inputs += [c["w"], c["g"], c["b"]]
    for name in ("policy_conv", "value_conv"):
        c = params[name]
        inputs += [c["w"], c["g"], c["b"]]

    ph, vh = pl.pallas_call(
        _make_trunk_kernel(N, H, W, c_hidden, num_blocks),
        out_shape=(jax.ShapeDtypeStruct((nhw, 32), jnp.float32),
                   jax.ShapeDtypeStruct((nhw, 3), jnp.float32)),
        in_specs=[_VMEM] * len(inputs),
        out_specs=(_VMEM, _VMEM),
        scratch_shapes=[
            pltpu.VMEM((N, H + 2, W + 2, c_hidden), jnp.float32),  # halo buf
            pltpu.VMEM((nhw, 9 * c_hidden), jnp.float32),          # im2col buf
        ],
    )(*inputs)

    # HWC-order flatten; FC weight rows are stored in matching HWC order.
    ph_flat = ph.reshape(N, H * W * 32)
    vh_flat = vh.reshape(N, H * W * 3)

    n_policy = params["policy_fc"]["w"].shape[-1]
    policy, value = pl.pallas_call(
        _heads_kernel,
        out_shape=(jax.ShapeDtypeStruct((N, n_policy), jnp.float32),
                   jax.ShapeDtypeStruct((N, 1), jnp.float32)),
        in_specs=[_VMEM] * 7,
        out_specs=(_VMEM, _VMEM),
    )(ph_flat, params["policy_fc"]["w"], params["policy_fc"]["b"],
      vh_flat, params["value_fc"]["w"], params["value_fc"]["b"],
      params["value_prelu"])
    return policy, value


# ----------------------------------------------------------------------------
# Parameter construction (deterministic, synthetic)
# ----------------------------------------------------------------------------
def _conv_params(key, cin, cout):
    # Conv weight pre-reshaped for im2col: (3,3,cin,cout) -> (9*cin, cout),
    # stored bf16 (MXU-native).  The Conv2d bias is dropped: it is a no-op
    # under the training-mode BatchNorm that always follows it.
    w = 0.1 * jax.random.normal(key, (3, 3, cin, cout), jnp.float32)
    return {"w": w.reshape(9 * cin, cout).astype(jnp.bfloat16),
            "g": jnp.ones((1, cout), jnp.float32),      # BN gamma
            "b": jnp.zeros((1, cout), jnp.float32)}     # BN beta


def _linear_params(key, fin, fout):
    kw, kb = jax.random.split(key)
    # Rows are in HWC order (matches the kernel's NHWC flatten).  When
    # importing PyTorch weights (CHW-ordered rows), permute rows once at load.
    return {"w": 0.05 * jax.random.normal(kw, (fin, fout), jnp.float32),
            "b": 0.01 * jax.random.normal(kb, (1, fout), jnp.float32)}


def init_resnet_params(key, *, num_hidden, num_res_blocks, max_length,
                       alphabet_plus1, nbr_sequences):
    keys = jax.random.split(key, 5 + 2 * num_res_blocks)
    params = {"start": _conv_params(keys[0], 4, num_hidden), "blocks": []}
    for i in range(num_res_blocks):
        params["blocks"].append({
            "conv1": _conv_params(keys[1 + 2 * i], num_hidden, num_hidden),
            "conv2": _conv_params(keys[2 + 2 * i], num_hidden, num_hidden),
        })
    hw = max_length * alphabet_plus1
    params["policy_conv"] = _conv_params(keys[-3], num_hidden, 32)
    params["policy_fc"] = _linear_params(keys[-2], 32 * hw,
                                         nbr_sequences * max_length)
    params["value_conv"] = _conv_params(jax.random.fold_in(keys[-3], 7),
                                        num_hidden, 3)
    params["value_fc"] = _linear_params(keys[-1], 3 * hw, 1)
    params["value_prelu"] = jnp.full((1, 1), 0.25, jnp.float32)  # PReLU init
    return params


# ----------------------------------------------------------------------------
if __name__ == "__main__":
    # Synthetic "MSA" configuration (small):
    max_length = 8              # MSA.max_length
    alphabet_plus1 = 8          # len(MSA.sequence_constructor.alphabet) + 1
    nbr_sequences = 4           # MSA.nbr_sequences
    num_hidden = 16
    num_res_blocks = 2
    batch = 2

    key = jax.random.PRNGKey(0)
    k_params, k_x = jax.random.split(key)

    params = init_resnet_params(
        k_params, num_hidden=num_hidden, num_res_blocks=num_res_blocks,
        max_length=max_length, alphabet_plus1=alphabet_plus1,
        nbr_sequences=nbr_sequences)

    # Input in PyTorch NCHW convention: (N, 4, max_length, alphabet+1)
    x = jax.random.normal(k_x, (batch, 4, max_length, alphabet_plus1),
                          jnp.float32)

    policy, value = jax.jit(resnet_forward)(params, x)
    jax.block_until_ready((policy, value))

    assert policy.shape == (batch, nbr_sequences * max_length), policy.shape
    assert value.shape == (batch, 1), value.shape
    print("KERNEL_OK")
</pallas_src>

<mosaic_0001>
module attributes {stable_mosaic.version = 11 : i64} {
  func.func @kernel(%arg0: memref<2x10x10x4xf32, #tpu.memory_space<vmem>>, %arg1: memref<36x16xbf16, #tpu.memory_space<vmem>>, %arg2: memref<1x16xf32, #tpu.memory_space<vmem>>, %arg3: memref<1x16xf32, #tpu.memory_space<vmem>>, %arg4: memref<144x16xbf16, #tpu.memory_space<vmem>>, %arg5: memref<1x16xf32, #tpu.memory_space<vmem>>, %arg6: memref<1x16xf32, #tpu.memory_space<vmem>>, %arg7: memref<144x16xbf16, #tpu.memory_space<vmem>>, %arg8: memref<1x16xf32, #tpu.memory_space<vmem>>, %arg9: memref<1x16xf32, #tpu.memory_space<vmem>>, %arg10: memref<144x16xbf16, #tpu.memory_space<vmem>>, %arg11: memref<1x16xf32, #tpu.memory_space<vmem>>, %arg12: memref<1x16xf32, #tpu.memory_space<vmem>>, %arg13: memref<144x16xbf16, #tpu.memory_space<vmem>>, %arg14: memref<1x16xf32, #tpu.memory_space<vmem>>, %arg15: memref<1x16xf32, #tpu.memory_space<vmem>>, %arg16: memref<144x32xbf16, #tpu.memory_space<vmem>>, %arg17: memref<1x32xf32, #tpu.memory_space<vmem>>, %arg18: memref<1x32xf32, #tpu.memory_space<vmem>>, %arg19: memref<144x3xbf16, #tpu.memory_space<vmem>>, %arg20: memref<1x3xf32, #tpu.memory_space<vmem>>, %arg21: memref<1x3xf32, #tpu.memory_space<vmem>>, %arg22: memref<128x32xf32, #tpu.memory_space<vmem>>, %arg23: memref<128x3xf32, #tpu.memory_space<vmem>>, %arg24: memref<2x10x10x16xf32, #tpu.memory_space<vmem>>, %arg25: memref<128x144xf32, #tpu.memory_space<vmem>>) attributes {dimension_semantics = [], scalar_prefetch = 0 : i64, scratch_operands = 2 : i64, tpu.core_type = #tpu.core_type<tc>} {
    %cst = arith.constant 0.000000e+00 : f32
    %0 = vector.broadcast %cst : f32 to vector<2x10x10x16xf32>
    %c0 = arith.constant 0 : index
    %c0_0 = arith.constant 0 : index
    %c0_1 = arith.constant 0 : index
    %c0_2 = arith.constant 0 : index
    %1 = vector.load %arg24[%c0, %c0_0, %c0_1, %c0_2] : memref<2x10x10x16xf32, #tpu.memory_space<vmem>>, vector<2x10x10x16xf32>
    tpu.vector_store %arg24[%c0, %c0_0, %c0_1, %c0_2], %0 {strides = array<i32>} : memref<2x10x10x16xf32, #tpu.memory_space<vmem>>, vector<2x10x10x16xf32>,
    %c0_3 = arith.constant 0 : index
    %c0_4 = arith.constant 0 : index
    %c0_5 = arith.constant 0 : index
    %c0_6 = arith.constant 0 : index
    %2 = vector.load %arg0[%c0_3, %c0_4, %c0_5, %c0_6] : memref<2x10x10x4xf32, #tpu.memory_space<vmem>>, vector<2x10x10x4xf32>
    %3 = vector.extract_strided_slice %2 {offsets = [0, 0, 0, 0], sizes = [2, 8, 8, 4], strides = [1, 1, 1, 1]} : vector<2x10x10x4xf32> to vector<2x8x8x4xf32>
    %4 = vector.shape_cast %3 : vector<2x8x8x4xf32> to vector<128x4xf32>
    %c0_7 = arith.constant 0 : index
    %c0_8 = arith.constant 0 : index
    %5 = vector.load %arg25[%c0_7, %c0_8] : memref<128x144xf32, #tpu.memory_space<vmem>>, vector<128x4xf32>
    tpu.vector_store %arg25[%c0_7, %c0_8], %4 {strides = array<i32>} : memref<128x144xf32, #tpu.memory_space<vmem>>, vector<128x4xf32>,
    %6 = vector.extract_strided_slice %2 {offsets = [0, 0, 1, 0], sizes = [2, 8, 8, 4], strides = [1, 1, 1, 1]} : vector<2x10x10x4xf32> to vector<2x8x8x4xf32>
    %7 = vector.shape_cast %6 : vector<2x8x8x4xf32> to vector<128x4xf32>
    %c0_9 = arith.constant 0 : index
    %c4 = arith.constant 4 : index
    %8 = vector.load %arg25[%c0_9, %c4] : memref<128x144xf32, #tpu.memory_space<vmem>>, vector<128x4xf32>
    tpu.vector_store %arg25[%c0_9, %c4], %7 {strides = array<i32>} : memref<128x144xf32, #tpu.memory_space<vmem>>, vector<128x4xf32>,
    %9 = vector.extract_strided_slice %2 {offsets = [0, 0, 2, 0], sizes = [2, 8, 8, 4], strides = [1, 1, 1, 1]} : vector<2x10x10x4xf32> to vector<2x8x8x4xf32>
    %10 = vector.shape_cast %9 : vector<2x8x8x4xf32> to vector<128x4xf32>
    %c0_10 = arith.constant 0 : index
    %c8 = arith.constant 8 : index
    %11 = vector.load %arg25[%c0_10, %c8] : memref<128x144xf32, #tpu.memory_space<vmem>>, vector<128x4xf32>
    tpu.vector_store %arg25[%c0_10, %c8], %10 {strides = array<i32>} : memref<128x144xf32, #tpu.memory_space<vmem>>, vector<128x4xf32>,
    %12 = vector.extract_strided_slice %2 {offsets = [0, 1, 0, 0], sizes = [2, 8, 8, 4], strides = [1, 1, 1, 1]} : vector<2x10x10x4xf32> to vector<2x8x8x4xf32>
    %13 = vector.shape_cast %12 : vector<2x8x8x4xf32> to vector<128x4xf32>
    %c0_11 = arith.constant 0 : index
    %c12 = arith.constant 12 : index
    %14 = vector.load %arg25[%c0_11, %c12] : memref<128x144xf32, #tpu.memory_space<vmem>>, vector<128x4xf32>
    tpu.vector_store %arg25[%c0_11, %c12], %13 {strides = array<i32>} : memref<128x144xf32, #tpu.memory_space<vmem>>, vector<128x4xf32>,
    %15 = vector.extract_strided_slice %2 {offsets = [0, 1, 1, 0], sizes = [2, 8, 8, 4], strides = [1, 1, 1, 1]} : vector<2x10x10x4xf32> to vector<2x8x8x4xf32>
    %16 = vector.shape_cast %15 : vector<2x8x8x4xf32> to vector<128x4xf32>
    %c0_12 = arith.constant 0 : index
    %c16 = arith.constant 16 : index
    %17 = vector.load %arg25[%c0_12, %c16] : memref<128x144xf32, #tpu.memory_space<vmem>>, vector<128x4xf32>
    tpu.vector_store %arg25[%c0_12, %c16], %16 {strides = array<i32>} : memref<128x144xf32, #tpu.memory_space<vmem>>, vector<128x4xf32>,
    %18 = vector.extract_strided_slice %2 {offsets = [0, 1, 2, 0], sizes = [2, 8, 8, 4], strides = [1, 1, 1, 1]} : vector<2x10x10x4xf32> to vector<2x8x8x4xf32>
    %19 = vector.shape_cast %18 : vector<2x8x8x4xf32> to vector<128x4xf32>
    %c0_13 = arith.constant 0 : index
    %c20 = arith.constant 20 : index
    %20 = vector.load %arg25[%c0_13, %c20] : memref<128x144xf32, #tpu.memory_space<vmem>>, vector<128x4xf32>
    tpu.vector_store %arg25[%c0_13, %c20], %19 {strides = array<i32>} : memref<128x144xf32, #tpu.memory_space<vmem>>, vector<128x4xf32>,
    %21 = vector.extract_strided_slice %2 {offsets = [0, 2, 0, 0], sizes = [2, 8, 8, 4], strides = [1, 1, 1, 1]} : vector<2x10x10x4xf32> to vector<2x8x8x4xf32>
    %22 = vector.shape_cast %21 : vector<2x8x8x4xf32> to vector<128x4xf32>
    %c0_14 = arith.constant 0 : index
    %c24 = arith.constant 24 : index
    %23 = vector.load %arg25[%c0_14, %c24] : memref<128x144xf32, #tpu.memory_space<vmem>>, vector<128x4xf32>
    tpu.vector_store %arg25[%c0_14, %c24], %22 {strides = array<i32>} : memref<128x144xf32, #tpu.memory_space<vmem>>, vector<128x4xf32>,
    %24 = vector.extract_strided_slice %2 {offsets = [0, 2, 1, 0], sizes = [2, 8, 8, 4], strides = [1, 1, 1, 1]} : vector<2x10x10x4xf32> to vector<2x8x8x4xf32>
    %25 = vector.shape_cast %24 : vector<2x8x8x4xf32> to vector<128x4xf32>
    %c0_15 = arith.constant 0 : index
    %c28 = arith.constant 28 : index
    %26 = vector.load %arg25[%c0_15, %c28] : memref<128x144xf32, #tpu.memory_space<vmem>>, vector<128x4xf32>
    tpu.vector_store %arg25[%c0_15, %c28], %25 {strides = array<i32>} : memref<128x144xf32, #tpu.memory_space<vmem>>, vector<128x4xf32>,
    %27 = vector.extract_strided_slice %2 {offsets = [0, 2, 2, 0], sizes = [2, 8, 8, 4], strides = [1, 1, 1, 1]} : vector<2x10x10x4xf32> to vector<2x8x8x4xf32>
    %28 = vector.shape_cast %27 : vector<2x8x8x4xf32> to vector<128x4xf32>
    %c0_16 = arith.constant 0 : index
    %c32 = arith.constant 32 : index
    %29 = vector.load %arg25[%c0_16, %c32] : memref<128x144xf32, #tpu.memory_space<vmem>>, vector<128x4xf32>
    tpu.vector_store %arg25[%c0_16, %c32], %28 {strides = array<i32>} : memref<128x144xf32, #tpu.memory_space<vmem>>, vector<128x4xf32>,
    %c0_17 = arith.constant 0 : index
    %c0_18 = arith.constant 0 : index
    %30 = vector.load %arg25[%c0_17, %c0_18] : memref<128x144xf32, #tpu.memory_space<vmem>>, vector<128x36xf32>
    %31 = arith.truncf %30 : vector<128x36xf32> to vector<128x36xbf16>
    %c0_19 = arith.constant 0 : index
    %c0_20 = arith.constant 0 : index
    %32 = vector.load %arg1[%c0_19, %c0_20] : memref<36x16xbf16, #tpu.memory_space<vmem>>, vector<36x16xbf16>
    %cst_21 = arith.constant dense<0.000000e+00> : vector<128x16xf32>
    %33 = tpu.matmul %31, %32, %cst_21 {dimension_numbers = #tpu.dot_dimension_numbers<[1], [0], [0], [1], [0, 0, 1, 1], [], []>} : vector<128x36xbf16>, vector<36x16xbf16>, vector<128x16xf32> -> vector<128x16xf32>
    %cst_22 = arith.constant dense<0.000000e+00> : vector<16xf32>
    %34 = vector.multi_reduction <add>, %33, %cst_22 [0] : vector<128x16xf32> to vector<16xf32>
    %35 = vector.shape_cast %34 : vector<16xf32> to vector<1x16xf32>
    %cst_23 = arith.constant 1.280000e+02 : f32
    %36 = vector.broadcast %cst_23 : f32 to vector<1x16xf32>
    %37 = arith.divf %35, %36 : vector<1x16xf32>
    %38 = arith.mulf %33, %33 : vector<128x16xf32>
    %cst_24 = arith.constant dense<0.000000e+00> : vector<16xf32>
    %39 = vector.multi_reduction <add>, %38, %cst_24 [0] : vector<128x16xf32> to vector<16xf32>
    %40 = vector.shape_cast %39 : vector<16xf32> to vector<1x16xf32>
    %cst_25 = arith.constant 1.280000e+02 : f32
    %41 = vector.broadcast %cst_25 : f32 to vector<1x16xf32>
    %42 = arith.divf %40, %41 : vector<1x16xf32>
    %43 = arith.mulf %37, %37 : vector<1x16xf32>
    %44 = arith.subf %42, %43 : vector<1x16xf32>
    %cst_26 = arith.constant 0.000000e+00 : f32
    %45 = vector.broadcast %cst_26 : f32 to vector<1x16xf32>
    %46 = arith.maximumf %44, %45 : vector<1x16xf32>
    %c0_27 = arith.constant 0 : index
    %c0_28 = arith.constant 0 : index
    %47 = vector.load %arg2[%c0_27, %c0_28] : memref<1x16xf32, #tpu.memory_space<vmem>>, vector<1x16xf32>
    %cst_29 = arith.constant 9.99999974E-6 : f32
    %48 = vector.broadcast %cst_29 : f32 to vector<1x16xf32>
    %49 = arith.addf %46, %48 : vector<1x16xf32>
    %50 = math.rsqrt %49 : vector<1x16xf32>
    %51 = arith.mulf %47, %50 : vector<1x16xf32>
    %52 = vector.broadcast %51 : vector<1x16xf32> to vector<128x16xf32>
    %53 = arith.mulf %33, %52 : vector<128x16xf32>
    %c0_30 = arith.constant 0 : index
    %c0_31 = arith.constant 0 : index
    %54 = vector.load %arg3[%c0_30, %c0_31] : memref<1x16xf32, #tpu.memory_space<vmem>>, vector<1x16xf32>
    %55 = arith.mulf %37, %51 : vector<1x16xf32>
    %56 = arith.subf %54, %55 : vector<1x16xf32>
    %57 = vector.broadcast %56 : vector<1x16xf32> to vector<128x16xf32>
    %58 = arith.addf %53, %57 : vector<128x16xf32>
    %cst_32 = arith.constant 0.000000e+00 : f32
    %59 = vector.broadcast %cst_32 : f32 to vector<128x16xf32>
    %60 = arith.maximumf %58, %59 : vector<128x16xf32>
    %61 = vector.shape_cast %60 : vector<128x16xf32> to vector<2x8x8x16xf32>
    %c0_33 = arith.constant 0 : index
    %c1 = arith.constant 1 : index
    %c1_34 = arith.constant 1 : index
    %c0_35 = arith.constant 0 : index
    %62 = vector.load %arg24[%c0_33, %c1, %c1_34, %c0_35] : memref<2x10x10x16xf32, #tpu.memory_space<vmem>>, vector<2x8x8x16xf32>
    tpu.vector_store %arg24[%c0_33, %c1, %c1_34, %c0_35], %61 {strides = array<i32>} : memref<2x10x10x16xf32, #tpu.memory_space<vmem>>, vector<2x8x8x16xf32>,
    %c0_36 = arith.constant 0 : index
    %c0_37 = arith.constant 0 : index
    %c0_38 = arith.constant 0 : index
    %c0_39 = arith.constant 0 : index
    %63 = vector.load %arg24[%c0_36, %c0_37, %c0_38, %c0_39] : memref<2x10x10x16xf32, #tpu.memory_space<vmem>>, vector<2x10x10x16xf32>
    %64 = vector.extract_strided_slice %63 {offsets = [0, 0, 0, 0], sizes = [2, 8, 8, 16], strides = [1, 1, 1, 1]} : vector<2x10x10x16xf32> to vector<2x8x8x16xf32>
    %65 = vector.shape_cast %64 : vector<2x8x8x16xf32> to vector<128x16xf32>
    %c0_40 = arith.constant 0 : index
    %c0_41 = arith.constant 0 : index
    %66 = vector.load %arg25[%c0_40, %c0_41] : memref<128x144xf32, #tpu.memory_space<vmem>>, vector<128x16xf32>
    tpu.vector_store %arg25[%c0_40, %c0_41], %65 {strides = array<i32>} : memref<128x144xf32, #tpu.memory_space<vmem>>, vector<128x16xf32>,
    %67 = vector.extract_strided_slice %63 {offsets = [0, 0, 1, 0], sizes = [2, 8, 8, 16], strides = [1, 1, 1, 1]} : vector<2x10x10x16xf32> to vector<2x8x8x16xf32>
    %68 = vector.shape_cast %67 : vector<2x8x8x16xf32> to vector<128x16xf32>
    %c0_42 = arith.constant 0 : index
    %c16_43 = arith.constant 16 : index
    %69 = vector.load %arg25[%c0_42, %c16_43] : memref<128x144xf32, #tpu.memory_space<vmem>>, vector<128x16xf32>
    tpu.vector_store %arg25[%c0_42, %c16_43], %68 {strides = array<i32>} : memref<128x144xf32, #tpu.memory_space<vmem>>, vector<128x16xf32>,
    %70 = vector.extract_strided_slice %63 {offsets = [0, 0, 2, 0], sizes = [2, 8, 8, 16], strides = [1, 1, 1, 1]} : vector<2x10x10x16xf32> to vector<2x8x8x16xf32>
    %71 = vector.shape_cast %70 : vector<2x8x8x16xf32> to vector<128x16xf32>
    %c0_44 = arith.constant 0 : index
    %c32_45 = arith.constant 32 : index
    %72 = vector.load %arg25[%c0_44, %c32_45] : memref<128x144xf32, #tpu.memory_space<vmem>>, vector<128x16xf32>
    tpu.vector_store %arg25[%c0_44, %c32_45], %71 {strides = array<i32>} : memref<128x144xf32, #tpu.memory_space<vmem>>, vector<128x16xf32>,
    %73 = vector.extract_strided_slice %63 {offsets = [0, 1, 0, 0], sizes = [2, 8, 8, 16], strides = [1, 1, 1, 1]} : vector<2x10x10x16xf32> to vector<2x8x8x16xf32>
    %74 = vector.shape_cast %73 : vector<2x8x8x16xf32> to vector<128x16xf32>
    %c0_46 = arith.constant 0 : index
    %c48 = arith.constant 48 : index
    %75 = vector.load %arg25[%c0_46, %c48] : memref<128x144xf32, #tpu.memory_space<vmem>>, vector<128x16xf32>
    tpu.vector_store %arg25[%c0_46, %c48], %74 {strides = array<i32>} : memref<128x144xf32, #tpu.memory_space<vmem>>, vector<128x16xf32>,
    %76 = vector.extract_strided_slice %63 {offsets = [0, 1, 1, 0], sizes = [2, 8, 8, 16], strides = [1, 1, 1, 1]} : vector<2x10x10x16xf32> to vector<2x8x8x16xf32>
    %77 = vector.shape_cast %76 : vector<2x8x8x16xf32> to vector<128x16xf32>
    %c0_47 = arith.constant 0 : index
    %c64 = arith.constant 64 : index
    %78 = vector.load %arg25[%c0_47, %c64] : memref<128x144xf32, #tpu.memory_space<vmem>>, vector<128x16xf32>
    tpu.vector_store %arg25[%c0_47, %c64], %77 {strides = array<i32>} : memref<128x144xf32, #tpu.memory_space<vmem>>, vector<128x16xf32>,
    %79 = vector.extract_strided_slice %63 {offsets = [0, 1, 2, 0], sizes = [2, 8, 8, 16], strides = [1, 1, 1, 1]} : vector<2x10x10x16xf32> to vector<2x8x8x16xf32>
    %80 = vector.shape_cast %79 : vector<2x8x8x16xf32> to vector<128x16xf32>
    %c0_48 = arith.constant 0 : index
    %c80 = arith.constant 80 : index
    %81 = vector.load %arg25[%c0_48, %c80] : memref<128x144xf32, #tpu.memory_space<vmem>>, vector<128x16xf32>
    tpu.vector_store %arg25[%c0_48, %c80], %80 {strides = array<i32>} : memref<128x144xf32, #tpu.memory_space<vmem>>, vector<128x16xf32>,
    %82 = vector.extract_strided_slice %63 {offsets = [0, 2, 0, 0], sizes = [2, 8, 8, 16], strides = [1, 1, 1, 1]} : vector<2x10x10x16xf32> to vector<2x8x8x16xf32>
    %83 = vector.shape_cast %82 : vector<2x8x8x16xf32> to vector<128x16xf32>
    %c0_49 = arith.constant 0 : index
    %c96 = arith.constant 96 : index
    %84 = vector.load %arg25[%c0_49, %c96] : memref<128x144xf32, #tpu.memory_space<vmem>>, vector<128x16xf32>
    tpu.vector_store %arg25[%c0_49, %c96], %83 {strides = array<i32>} : memref<128x144xf32, #tpu.memory_space<vmem>>, vector<128x16xf32>,
    %85 = vector.extract_strided_slice %63 {offsets = [0, 2, 1, 0], sizes = [2, 8, 8, 16], strides = [1, 1, 1, 1]} : vector<2x10x10x16xf32> to vector<2x8x8x16xf32>
    %86 = vector.shape_cast %85 : vector<2x8x8x16xf32> to vector<128x16xf32>
    %c0_50 = arith.constant 0 : index
    %c112 = arith.constant 112 : index
    %87 = vector.load %arg25[%c0_50, %c112] : memref<128x144xf32, #tpu.memory_space<vmem>>, vector<128x16xf32>
    tpu.vector_store %arg25[%c0_50, %c112], %86 {strides = array<i32>} : memref<128x144xf32, #tpu.memory_space<vmem>>, vector<128x16xf32>,
    %88 = vector.extract_strided_slice %63 {offsets = [0, 2, 2, 0], sizes = [2, 8, 8, 16], strides = [1, 1, 1, 1]} : vector<2x10x10x16xf32> to vector<2x8x8x16xf32>
    %89 = vector.shape_cast %88 : vector<2x8x8x16xf32> to vector<128x16xf32>
    %c0_51 = arith.constant 0 : index
    %c128 = arith.constant 128 : index
    %90 = vector.load %arg25[%c0_51, %c128] : memref<128x144xf32, #tpu.memory_space<vmem>>, vector<128x16xf32>
    tpu.vector_store %arg25[%c0_51, %c128], %89 {strides = array<i32>} : memref<128x144xf32, #tpu.memory_space<vmem>>, vector<128x16xf32>,
    %c0_52 = arith.constant 0 : index
    %c0_53 = arith.constant 0 : index
    %91 = vector.load %arg25[%c0_52, %c0_53] : memref<128x144xf32, #tpu.memory_space<vmem>>, vector<128x144xf32>
    %92 = arith.truncf %91 : vector<128x144xf32> to vector<128x144xbf16>
    %c0_54 = arith.constant 0 : index
    %c0_55 = arith.constant 0 : index
    %93 = vector.load %arg4[%c0_54, %c0_55] : memref<144x16xbf16, #tpu.memory_space<vmem>>, vector<144x16xbf16>
    %cst_56 = arith.constant dense<0.000000e+00> : vector<128x16xf32>
    %94 = tpu.matmul %92, %93, %cst_56 {dimension_numbers = #tpu.dot_dimension_numbers<[1], [0], [0], [1], [0, 0, 1, 1], [], []>} : vector<128x144xbf16>, vector<144x16xbf16>, vector<128x16xf32> -> vector<128x16xf32>
    %cst_57 = arith.constant dense<0.000000e+00> : vector<16xf32>
    %95 = vector.multi_reduction <add>, %94, %cst_57 [0] : vector<128x16xf32> to vector<16xf32>
    %96 = vector.shape_cast %95 : vector<16xf32> to vector<1x16xf32>
    %cst_58 = arith.constant 1.280000e+02 : f32
    %97 = vector.broadcast %cst_58 : f32 to vector<1x16xf32>
    %98 = arith.divf %96, %97 : vector<1x16xf32>
    %99 = arith.mulf %94, %94 : vector<128x16xf32>
    %cst_59 = arith.constant dense<0.000000e+00> : vector<16xf32>
    %100 = vector.multi_reduction <add>, %99, %cst_59 [0] : vector<128x16xf32> to vector<16xf32>
    %101 = vector.shape_cast %100 : vector<16xf32> to vector<1x16xf32>
    %cst_60 = arith.constant 1.280000e+02 : f32
    %102 = vector.broadcast %cst_60 : f32 to vector<1x16xf32>
    %103 = arith.divf %101, %102 : vector<1x16xf32>
    %104 = arith.mulf %98, %98 : vector<1x16xf32>
    %105 = arith.subf %103, %104 : vector<1x16xf32>
    %cst_61 = arith.constant 0.000000e+00 : f32
    %106 = vector.broadcast %cst_61 : f32 to vector<1x16xf32>
    %107 = arith.maximumf %105, %106 : vector<1x16xf32>
    %c0_62 = arith.constant 0 : index
    %c0_63 = arith.constant 0 : index
    %108 = vector.load %arg5[%c0_62, %c0_63] : memref<1x16xf32, #tpu.memory_space<vmem>>, vector<1x16xf32>
    %cst_64 = arith.constant 9.99999974E-6 : f32
    %109 = vector.broadcast %cst_64 : f32 to vector<1x16xf32>
    %110 = arith.addf %107, %109 : vector<1x16xf32>
    %111 = math.rsqrt %110 : vector<1x16xf32>
    %112 = arith.mulf %108, %111 : vector<1x16xf32>
    %113 = vector.broadcast %112 : vector<1x16xf32> to vector<128x16xf32>
    %114 = arith.mulf %94, %113 : vector<128x16xf32>
    %c0_65 = arith.constant 0 : index
    %c0_66 = arith.constant 0 : index
    %115 = vector.load %arg6[%c0_65, %c0_66] : memref<1x16xf32, #tpu.memory_space<vmem>>, vector<1x16xf32>
    %116 = arith.mulf %98, %112 : vector<1x16xf32>
    %117 = arith.subf %115, %116 : vector<1x16xf32>
    %118 = vector.broadcast %117 : vector<1x16xf32> to vector<128x16xf32>
    %119 = arith.addf %114, %118 : vector<128x16xf32>
    %cst_67 = arith.constant 0.000000e+00 : f32
    %120 = vector.broadcast %cst_67 : f32 to vector<128x16xf32>
    %121 = arith.maximumf %119, %120 : vector<128x16xf32>
    %122 = vector.shape_cast %121 : vector<128x16xf32> to vector<2x8x8x16xf32>
    %c0_68 = arith.constant 0 : index
    %c1_69 = arith.constant 1 : index
    %c1_70 = arith.constant 1 : index
    %c0_71 = arith.constant 0 : index
    %123 = vector.load %arg24[%c0_68, %c1_69, %c1_70, %c0_71] : memref<2x10x10x16xf32, #tpu.memory_space<vmem>>, vector<2x8x8x16xf32>
    tpu.vector_store %arg24[%c0_68, %c1_69, %c1_70, %c0_71], %122 {strides = array<i32>} : memref<2x10x10x16xf32, #tpu.memory_space<vmem>>, vector<2x8x8x16xf32>,
    %c0_72 = arith.constant 0 : index
    %c0_73 = arith.constant 0 : index
    %c0_74 = arith.constant 0 : index
    %c0_75 = arith.constant 0 : index
    %124 = vector.load %arg24[%c0_72, %c0_73, %c0_74, %c0_75] : memref<2x10x10x16xf32, #tpu.memory_space<vmem>>, vector<2x10x10x16xf32>
    %125 = vector.extract_strided_slice %124 {offsets = [0, 0, 0, 0], sizes = [2, 8, 8, 16], strides = [1, 1, 1, 1]} : vector<2x10x10x16xf32> to vector<2x8x8x16xf32>
    %126 = vector.shape_cast %125 : vector<2x8x8x16xf32> to vector<128x16xf32>
    %c0_76 = arith.constant 0 : index
    %c0_77 = arith.constant 0 : index
    %127 = vector.load %arg25[%c0_76, %c0_77] : memref<128x144xf32, #tpu.memory_space<vmem>>, vector<128x16xf32>
    tpu.vector_store %arg25[%c0_76, %c0_77], %126 {strides = array<i32>} : memref<128x144xf32, #tpu.memory_space<vmem>>, vector<128x16xf32>,
    %128 = vector.extract_strided_slice %124 {offsets = [0, 0, 1, 0], sizes = [2, 8, 8, 16], strides = [1, 1, 1, 1]} : vector<2x10x10x16xf32> to vector<2x8x8x16xf32>
    %129 = vector.shape_cast %128 : vector<2x8x8x16xf32> to vector<128x16xf32>
    %c0_78 = arith.constant 0 : index
    %c16_79 = arith.constant 16 : index
    %130 = vector.load %arg25[%c0_78, %c16_79] : memref<128x144xf32, #tpu.memory_space<vmem>>, vector<128x16xf32>
    tpu.vector_store %arg25[%c0_78, %c16_79], %129 {strides = array<i32>} : memref<128x144xf32, #tpu.memory_space<vmem>>, vector<128x16xf32>,
    %131 = vector.extract_strided_slice %124 {offsets = [0, 0, 2, 0], sizes = [2, 8, 8, 16], strides = [1, 1, 1, 1]} : vector<2x10x10x16xf32> to vector<2x8x8x16xf32>
    %132 = vector.shape_cast %131 : vector<2x8x8x16xf32> to vector<128x16xf32>
    %c0_80 = arith.constant 0 : index
    %c32_81 = arith.constant 32 : index
    %133 = vector.load %arg25[%c0_80, %c32_81] : memref<128x144xf32, #tpu.memory_space<vmem>>, vector<128x16xf32>
    tpu.vector_store %arg25[%c0_80, %c32_81], %132 {strides = array<i32>} : memref<128x144xf32, #tpu.memory_space<vmem>>, vector<128x16xf32>,
    %134 = vector.extract_strided_slice %124 {offsets = [0, 1, 0, 0], sizes = [2, 8, 8, 16], strides = [1, 1, 1, 1]} : vector<2x10x10x16xf32> to vector<2x8x8x16xf32>
    %135 = vector.shape_cast %134 : vector<2x8x8x16xf32> to vector<128x16xf32>
    %c0_82 = arith.constant 0 : index
    %c48_83 = arith.constant 48 : index
    %136 = vector.load %arg25[%c0_82, %c48_83] : memref<128x144xf32, #tpu.memory_space<vmem>>, vector<128x16xf32>
    tpu.vector_store %arg25[%c0_82, %c48_83], %135 {strides = array<i32>} : memref<128x144xf32, #tpu.memory_space<vmem>>, vector<128x16xf32>,
    %137 = vector.extract_strided_slice %124 {offsets = [0, 1, 1, 0], sizes = [2, 8, 8, 16], strides = [1, 1, 1, 1]} : vector<2x10x10x16xf32> to vector<2x8x8x16xf32>
    %138 = vector.shape_cast %137 : vector<2x8x8x16xf32> to vector<128x16xf32>
    %c0_84 = arith.constant 0 : index
    %c64_85 = arith.constant 64 : index
    %139 = vector.load %arg25[%c0_84, %c64_85] : memref<128x144xf32, #tpu.memory_space<vmem>>, vector<128x16xf32>
    tpu.vector_store %arg25[%c0_84, %c64_85], %138 {strides = array<i32>} : memref<128x144xf32, #tpu.memory_space<vmem>>, vector<128x16xf32>,
    %140 = vector.extract_strided_slice %124 {offsets = [0, 1, 2, 0], sizes = [2, 8, 8, 16], strides = [1, 1, 1, 1]} : vector<2x10x10x16xf32> to vector<2x8x8x16xf32>
    %141 = vector.shape_cast %140 : vector<2x8x8x16xf32> to vector<128x16xf32>
    %c0_86 = arith.constant 0 : index
    %c80_87 = arith.constant 80 : index
    %142 = vector.load %arg25[%c0_86, %c80_87] : memref<128x144xf32, #tpu.memory_space<vmem>>, vector<128x16xf32>
    tpu.vector_store %arg25[%c0_86, %c80_87], %141 {strides = array<i32>} : memref<128x144xf32, #tpu.memory_space<vmem>>, vector<128x16xf32>,
    %143 = vector.extract_strided_slice %124 {offsets = [0, 2, 0, 0], sizes = [2, 8, 8, 16], strides = [1, 1, 1, 1]} : vector<2x10x10x16xf32> to vector<2x8x8x16xf32>
    %144 = vector.shape_cast %143 : vector<2x8x8x16xf32> to vector<128x16xf32>
    %c0_88 = arith.constant 0 : index
    %c96_89 = arith.constant 96 : index
    %145 = vector.load %arg25[%c0_88, %c96_89] : memref<128x144xf32, #tpu.memory_space<vmem>>, vector<128x16xf32>
    tpu.vector_store %arg25[%c0_88, %c96_89], %144 {strides = array<i32>} : memref<128x144xf32, #tpu.memory_space<vmem>>, vector<128x16xf32>,
    %146 = vector.extract_strided_slice %124 {offsets = [0, 2, 1, 0], sizes = [2, 8, 8, 16], strides = [1, 1, 1, 1]} : vector<2x10x10x16xf32> to vector<2x8x8x16xf32>
    %147 = vector.shape_cast %146 : vector<2x8x8x16xf32> to vector<128x16xf32>
    %c0_90 = arith.constant 0 : index
    %c112_91 = arith.constant 112 : index
    %148 = vector.load %arg25[%c0_90, %c112_91] : memref<128x144xf32, #tpu.memory_space<vmem>>, vector<128x16xf32>
    tpu.vector_store %arg25[%c0_90, %c112_91], %147 {strides = array<i32>} : memref<128x144xf32, #tpu.memory_space<vmem>>, vector<128x16xf32>,
    %149 = vector.extract_strided_slice %124 {offsets = [0, 2, 2, 0], sizes = [2, 8, 8, 16], strides = [1, 1, 1, 1]} : vector<2x10x10x16xf32> to vector<2x8x8x16xf32>
    %150 = vector.shape_cast %149 : vector<2x8x8x16xf32> to vector<128x16xf32>
    %c0_92 = arith.constant 0 : index
    %c128_93 = arith.constant 128 : index
    %151 = vector.load %arg25[%c0_92, %c128_93] : memref<128x144xf32, #tpu.memory_space<vmem>>, vector<128x16xf32>
    tpu.vector_store %arg25[%c0_92, %c128_93], %150 {strides = array<i32>} : memref<128x144xf32, #tpu.memory_space<vmem>>, vector<128x16xf32>,
    %c0_94 = arith.constant 0 : index
    %c0_95 = arith.constant 0 : index
    %152 = vector.load %arg25[%c0_94, %c0_95] : memref<128x144xf32, #tpu.memory_space<vmem>>, vector<128x144xf32>
    %153 = arith.truncf %152 : vector<128x144xf32> to vector<128x144xbf16>
    %c0_96 = arith.constant 0 : index
    %c0_97 = arith.constant 0 : index
    %154 = vector.load %arg7[%c0_96, %c0_97] : memref<144x16xbf16, #tpu.memory_space<vmem>>, vector<144x16xbf16>
    %cst_98 = arith.constant dense<0.000000e+00> : vector<128x16xf32>
    %155 = tpu.matmul %153, %154, %cst_98 {dimension_numbers = #tpu.dot_dimension_numbers<[1], [0], [0], [1], [0, 0, 1, 1], [], []>} : vector<128x144xbf16>, vector<144x16xbf16>, vector<128x16xf32> -> vector<128x16xf32>
    %cst_99 = arith.constant dense<0.000000e+00> : vector<16xf32>
    %156 = vector.multi_reduction <add>, %155, %cst_99 [0] : vector<128x16xf32> to vector<16xf32>
    %157 = vector.shape_cast %156 : vector<16xf32> to vector<1x16xf32>
    %cst_100 = arith.constant 1.280000e+02 : f32
    %158 = vector.broadcast %cst_100 : f32 to vector<1x16xf32>
    %159 = arith.divf %157, %158 : vector<1x16xf32>
    %160 = arith.mulf %155, %155 : vector<128x16xf32>
    %cst_101 = arith.constant dense<0.000000e+00> : vector<16xf32>
    %161 = vector.multi_reduction <add>, %160, %cst_101 [0] : vector<128x16xf32> to vector<16xf32>
    %162 = vector.shape_cast %161 : vector<16xf32> to vector<1x16xf32>
    %cst_102 = arith.constant 1.280000e+02 : f32
    %163 = vector.broadcast %cst_102 : f32 to vector<1x16xf32>
    %164 = arith.divf %162, %163 : vector<1x16xf32>
    %165 = arith.mulf %159, %159 : vector<1x16xf32>
    %166 = arith.subf %164, %165 : vector<1x16xf32>
    %cst_103 = arith.constant 0.000000e+00 : f32
    %167 = vector.broadcast %cst_103 : f32 to vector<1x16xf32>
    %168 = arith.maximumf %166, %167 : vector<1x16xf32>
    %c0_104 = arith.constant 0 : index
    %c0_105 = arith.constant 0 : index
    %169 = vector.load %arg8[%c0_104, %c0_105] : memref<1x16xf32, #tpu.memory_space<vmem>>, vector<1x16xf32>
    %cst_106 = arith.constant 9.99999974E-6 : f32
    %170 = vector.broadcast %cst_106 : f32 to vector<1x16xf32>
    %171 = arith.addf %168, %170 : vector<1x16xf32>
    %172 = math.rsqrt %171 : vector<1x16xf32>
    %173 = arith.mulf %169, %172 : vector<1x16xf32>
    %174 = vector.broadcast %173 : vector<1x16xf32> to vector<128x16xf32>
    %175 = arith.mulf %155, %174 : vector<128x16xf32>
    %c0_107 = arith.constant 0 : index
    %c0_108 = arith.constant 0 : index
    %176 = vector.load %arg9[%c0_107, %c0_108] : memref<1x16xf32, #tpu.memory_space<vmem>>, vector<1x16xf32>
    %177 = arith.mulf %159, %173 : vector<1x16xf32>
    %178 = arith.subf %176, %177 : vector<1x16xf32>
    %179 = vector.broadcast %178 : vector<1x16xf32> to vector<128x16xf32>
    %180 = arith.addf %175, %179 : vector<128x16xf32>
    %181 = arith.addf %180, %60 : vector<128x16xf32>
    %cst_109 = arith.constant 0.000000e+00 : f32
    %182 = vector.broadcast %cst_109 : f32 to vector<128x16xf32>
    %183 = arith.maximumf %181, %182 : vector<128x16xf32>
    %184 = vector.shape_cast %183 : vector<128x16xf32> to vector<2x8x8x16xf32>
    %c0_110 = arith.constant 0 : index
    %c1_111 = arith.constant 1 : index
    %c1_112 = arith.constant 1 : index
    %c0_113 = arith.constant 0 : index
    %185 = vector.load %arg24[%c0_110, %c1_111, %c1_112, %c0_113] : memref<2x10x10x16xf32, #tpu.memory_space<vmem>>, vector<2x8x8x16xf32>
    tpu.vector_store %arg24[%c0_110, %c1_111, %c1_112, %c0_113], %184 {strides = array<i32>} : memref<2x10x10x16xf32, #tpu.memory_space<vmem>>, vector<2x8x8x16xf32>,
    %c0_114 = arith.constant 0 : index
    %c0_115 = arith.constant 0 : index
    %c0_116 = arith.constant 0 : index
    %c0_117 = arith.constant 0 : index
    %186 = vector.load %arg24[%c0_114, %c0_115, %c0_116, %c0_117] : memref<2x10x10x16xf32, #tpu.memory_space<vmem>>, vector<2x10x10x16xf32>
    %187 = vector.extract_strided_slice %186 {offsets = [0, 0, 0, 0], sizes = [2, 8, 8, 16], strides = [1, 1, 1, 1]} : vector<2x10x10x16xf32> to vector<2x8x8x16xf32>
    %188 = vector.shape_cast %187 : vector<2x8x8x16xf32> to vector<128x16xf32>
    %c0_118 = arith.constant 0 : index
    %c0_119 = arith.constant 0 : index
    %189 = vector.load %arg25[%c0_118, %c0_119] : memref<128x144xf32, #tpu.memory_space<vmem>>, vector<128x16xf32>
    tpu.vector_store %arg25[%c0_118, %c0_119], %188 {strides = array<i32>} : memref<128x144xf32, #tpu.memory_space<vmem>>, vector<128x16xf32>,
    %190 = vector.extract_strided_slice %186 {offsets = [0, 0, 1, 0], sizes = [2, 8, 8, 16], strides = [1, 1, 1, 1]} : vector<2x10x10x16xf32> to vector<2x8x8x16xf32>
    %191 = vector.shape_cast %190 : vector<2x8x8x16xf32> to vector<128x16xf32>
    %c0_120 = arith.constant 0 : index
    %c16_121 = arith.constant 16 : index
    %192 = vector.load %arg25[%c0_120, %c16_121] : memref<128x144xf32, #tpu.memory_space<vmem>>, vector<128x16xf32>
    tpu.vector_store %arg25[%c0_120, %c16_121], %191 {strides = array<i32>} : memref<128x144xf32, #tpu.memory_space<vmem>>, vector<128x16xf32>,
    %193 = vector.extract_strided_slice %186 {offsets = [0, 0, 2, 0], sizes = [2, 8, 8, 16], strides = [1, 1, 1, 1]} : vector<2x10x10x16xf32> to vector<2x8x8x16xf32>
    %194 = vector.shape_cast %193 : vector<2x8x8x16xf32> to vector<128x16xf32>
    %c0_122 = arith.constant 0 : index
    %c32_123 = arith.constant 32 : index
    %195 = vector.load %arg25[%c0_122, %c32_123] : memref<128x144xf32, #tpu.memory_space<vmem>>, vector<128x16xf32>
    tpu.vector_store %arg25[%c0_122, %c32_123], %194 {strides = array<i32>} : memref<128x144xf32, #tpu.memory_space<vmem>>, vector<128x16xf32>,
    %196 = vector.extract_strided_slice %186 {offsets = [0, 1, 0, 0], sizes = [2, 8, 8, 16], strides = [1, 1, 1, 1]} : vector<2x10x10x16xf32> to vector<2x8x8x16xf32>
    %197 = vector.shape_cast %196 : vector<2x8x8x16xf32> to vector<128x16xf32>
    %c0_124 = arith.constant 0 : index
    %c48_125 = arith.constant 48 : index
    %198 = vector.load %arg25[%c0_124, %c48_125] : memref<128x144xf32, #tpu.memory_space<vmem>>, vector<128x16xf32>
    tpu.vector_store %arg25[%c0_124, %c48_125], %197 {strides = array<i32>} : memref<128x144xf32, #tpu.memory_space<vmem>>, vector<128x16xf32>,
    %199 = vector.extract_strided_slice %186 {offsets = [0, 1, 1, 0], sizes = [2, 8, 8, 16], strides = [1, 1, 1, 1]} : vector<2x10x10x16xf32> to vector<2x8x8x16xf32>
    %200 = vector.shape_cast %199 : vector<2x8x8x16xf32> to vector<128x16xf32>
    %c0_126 = arith.constant 0 : index
    %c64_127 = arith.constant 64 : index
    %201 = vector.load %arg25[%c0_126, %c64_127] : memref<128x144xf32, #tpu.memory_space<vmem>>, vector<128x16xf32>
    tpu.vector_store %arg25[%c0_126, %c64_127], %200 {strides = array<i32>} : memref<128x144xf32, #tpu.memory_space<vmem>>, vector<128x16xf32>,
    %202 = vector.extract_strided_slice %186 {offsets = [0, 1, 2, 0], sizes = [2, 8, 8, 16], strides = [1, 1, 1, 1]} : vector<2x10x10x16xf32> to vector<2x8x8x16xf32>
    %203 = vector.shape_cast %202 : vector<2x8x8x16xf32> to vector<128x16xf32>
    %c0_128 = arith.constant 0 : index
    %c80_129 = arith.constant 80 : index
    %204 = vector.load %arg25[%c0_128, %c80_129] : memref<128x144xf32, #tpu.memory_space<vmem>>, vector<128x16xf32>
    tpu.vector_store %arg25[%c0_128, %c80_129], %203 {strides = array<i32>} : memref<128x144xf32, #tpu.memory_space<vmem>>, vector<128x16xf32>,
    %205 = vector.extract_strided_slice %186 {offsets = [0, 2, 0, 0], sizes = [2, 8, 8, 16], strides = [1, 1, 1, 1]} : vector<2x10x10x16xf32> to vector<2x8x8x16xf32>
    %206 = vector.shape_cast %205 : vector<2x8x8x16xf32> to vector<128x16xf32>
    %c0_130 = arith.constant 0 : index
    %c96_131 = arith.constant 96 : index
    %207 = vector.load %arg25[%c0_130, %c96_131] : memref<128x144xf32, #tpu.memory_space<vmem>>, vector<128x16xf32>
    tpu.vector_store %arg25[%c0_130, %c96_131], %206 {strides = array<i32>} : memref<128x144xf32, #tpu.memory_space<vmem>>, vector<128x16xf32>,
    %208 = vector.extract_strided_slice %186 {offsets = [0, 2, 1, 0], sizes = [2, 8, 8, 16], strides = [1, 1, 1, 1]} : vector<2x10x10x16xf32> to vector<2x8x8x16xf32>
    %209 = vector.shape_cast %208 : vector<2x8x8x16xf32> to vector<128x16xf32>
    %c0_132 = arith.constant 0 : index
    %c112_133 = arith.constant 112 : index
    %210 = vector.load %arg25[%c0_132, %c112_133] : memref<128x144xf32, #tpu.memory_space<vmem>>, vector<128x16xf32>
    tpu.vector_store %arg25[%c0_132, %c112_133], %209 {strides = array<i32>} : memref<128x144xf32, #tpu.memory_space<vmem>>, vector<128x16xf32>,
    %211 = vector.extract_strided_slice %186 {offsets = [0, 2, 2, 0], sizes = [2, 8, 8, 16], strides = [1, 1, 1, 1]} : vector<2x10x10x16xf32> to vector<2x8x8x16xf32>
    %212 = vector.shape_cast %211 : vector<2x8x8x16xf32> to vector<128x16xf32>
    %c0_134 = arith.constant 0 : index
    %c128_135 = arith.constant 128 : index
    %213 = vector.load %arg25[%c0_134, %c128_135] : memref<128x144xf32, #tpu.memory_space<vmem>>, vector<128x16xf32>
    tpu.vector_store %arg25[%c0_134, %c128_135], %212 {strides = array<i32>} : memref<128x144xf32, #tpu.memory_space<vmem>>, vector<128x16xf32>,
    %c0_136 = arith.constant 0 : index
    %c0_137 = arith.constant 0 : index
    %214 = vector.load %arg25[%c0_136, %c0_137] : memref<128x144xf32, #tpu.memory_space<vmem>>, vector<128x144xf32>
    %215 = arith.truncf %214 : vector<128x144xf32> to vector<128x144xbf16>
    %c0_138 = arith.constant 0 : index
    %c0_139 = arith.constant 0 : index
    %216 = vector.load %arg10[%c0_138, %c0_139] : memref<144x16xbf16, #tpu.memory_space<vmem>>, vector<144x16xbf16>
    %cst_140 = arith.constant dense<0.000000e+00> : vector<128x16xf32>
    %217 = tpu.matmul %215, %216, %cst_140 {dimension_numbers = #tpu.dot_dimension_numbers<[1], [0], [0], [1], [0, 0, 1, 1], [], []>} : vector<128x144xbf16>, vector<144x16xbf16>, vector<128x16xf32> -> vector<128x16xf32>
    %cst_141 = arith.constant dense<0.000000e+00> : vector<16xf32>
    %218 = vector.multi_reduction <add>, %217, %cst_141 [0] : vector<128x16xf32> to vector<16xf32>
    %219 = vector.shape_cast %218 : vector<16xf32> to vector<1x16xf32>
    %cst_142 = arith.constant 1.280000e+02 : f32
    %220 = vector.broadcast %cst_142 : f32 to vector<1x16xf32>
    %221 = arith.divf %219, %220 : vector<1x16xf32>
    %222 = arith.mulf %217, %217 : vector<128x16xf32>
    %cst_143 = arith.constant dense<0.000000e+00> : vector<16xf32>
    %223 = vector.multi_reduction <add>, %222, %cst_143 [0] : vector<128x16xf32> to vector<16xf32>
    %224 = vector.shape_cast %223 : vector<16xf32> to vector<1x16xf32>
    %cst_144 = arith.constant 1.280000e+02 : f32
    %225 = vector.broadcast %cst_144 : f32 to vector<1x16xf32>
    %226 = arith.divf %224, %225 : vector<1x16xf32>
    %227 = arith.mulf %221, %221 : vector<1x16xf32>
    %228 = arith.subf %226, %227 : vector<1x16xf32>
    %cst_145 = arith.constant 0.000000e+00 : f32
    %229 = vector.broadcast %cst_145 : f32 to vector<1x16xf32>
    %230 = arith.maximumf %228, %229 : vector<1x16xf32>
    %c0_146 = arith.constant 0 : index
    %c0_147 = arith.constant 0 : index
    %231 = vector.load %arg11[%c0_146, %c0_147] : memref<1x16xf32, #tpu.memory_space<vmem>>, vector<1x16xf32>
    %cst_148 = arith.constant 9.99999974E-6 : f32
    %232 = vector.broadcast %cst_148 : f32 to vector<1x16xf32>
    %233 = arith.addf %230, %232 : vector<1x16xf32>
    %234 = math.rsqrt %233 : vector<1x16xf32>
    %235 = arith.mulf %231, %234 : vector<1x16xf32>
    %236 = vector.broadcast %235 : vector<1x16xf32> to vector<128x16xf32>
    %237 = arith.mulf %217, %236 : vector<128x16xf32>
    %c0_149 = arith.constant 0 : index
    %c0_150 = arith.constant 0 : index
    %238 = vector.load %arg12[%c0_149, %c0_150] : memref<1x16xf32, #tpu.memory_space<vmem>>, vector<1x16xf32>
    %239 = arith.mulf %221, %235 : vector<1x16xf32>
    %240 = arith.subf %238, %239 : vector<1x16xf32>
    %241 = vector.broadcast %240 : vector<1x16xf32> to vector<128x16xf32>
    %242 = arith.addf %237, %241 : vector<128x16xf32>
    %cst_151 = arith.constant 0.000000e+00 : f32
    %243 = vector.broadcast %cst_151 : f32 to vector<128x16xf32>
    %244 = arith.maximumf %242, %243 : vector<128x16xf32>
    %245 = vector.shape_cast %244 : vector<128x16xf32> to vector<2x8x8x16xf32>
    %c0_152 = arith.constant 0 : index
    %c1_153 = arith.constant 1 : index
    %c1_154 = arith.constant 1 : index
    %c0_155 = arith.constant 0 : index
    %246 = vector.load %arg24[%c0_152, %c1_153, %c1_154, %c0_155] : memref<2x10x10x16xf32, #tpu.memory_space<vmem>>, vector<2x8x8x16xf32>
    tpu.vector_store %arg24[%c0_152, %c1_153, %c1_154, %c0_155], %245 {strides = array<i32>} : memref<2x10x10x16xf32, #tpu.memory_space<vmem>>, vector<2x8x8x16xf32>,
    %c0_156 = arith.constant 0 : index
    %c0_157 = arith.constant 0 : index
    %c0_158 = arith.constant 0 : index
    %c0_159 = arith.constant 0 : index
    %247 = vector.load %arg24[%c0_156, %c0_157, %c0_158, %c0_159] : memref<2x10x10x16xf32, #tpu.memory_space<vmem>>, vector<2x10x10x16xf32>
    %248 = vector.extract_strided_slice %247 {offsets = [0, 0, 0, 0], sizes = [2, 8, 8, 16], strides = [1, 1, 1, 1]} : vector<2x10x10x16xf32> to vector<2x8x8x16xf32>
    %249 = vector.shape_cast %248 : vector<2x8x8x16xf32> to vector<128x16xf32>
    %c0_160 = arith.constant 0 : index
    %c0_161 = arith.constant 0 : index
    %250 = vector.load %arg25[%c0_160, %c0_161] : memref<128x144xf32, #tpu.memory_space<vmem>>, vector<128x16xf32>
    tpu.vector_store %arg25[%c0_160, %c0_161], %249 {strides = array<i32>} : memref<128x144xf32, #tpu.memory_space<vmem>>, vector<128x16xf32>,
    %251 = vector.extract_strided_slice %247 {offsets = [0, 0, 1, 0], sizes = [2, 8, 8, 16], strides = [1, 1, 1, 1]} : vector<2x10x10x16xf32> to vector<2x8x8x16xf32>
    %252 = vector.shape_cast %251 : vector<2x8x8x16xf32> to vector<128x16xf32>
    %c0_162 = arith.constant 0 : index
    %c16_163 = arith.constant 16 : index
    %253 = vector.load %arg25[%c0_162, %c16_163] : memref<128x144xf32, #tpu.memory_space<vmem>>, vector<128x16xf32>
    tpu.vector_store %arg25[%c0_162, %c16_163], %252 {strides = array<i32>} : memref<128x144xf32, #tpu.memory_space<vmem>>, vector<128x16xf32>,
    %254 = vector.extract_strided_slice %247 {offsets = [0, 0, 2, 0], sizes = [2, 8, 8, 16], strides = [1, 1, 1, 1]} : vector<2x10x10x16xf32> to vector<2x8x8x16xf32>
    %255 = vector.shape_cast %254 : vector<2x8x8x16xf32> to vector<128x16xf32>
    %c0_164 = arith.constant 0 : index
    %c32_165 = arith.constant 32 : index
    %256 = vector.load %arg25[%c0_164, %c32_165] : memref<128x144xf32, #tpu.memory_space<vmem>>, vector<128x16xf32>
    tpu.vector_store %arg25[%c0_164, %c32_165], %255 {strides = array<i32>} : memref<128x144xf32, #tpu.memory_space<vmem>>, vector<128x16xf32>,
    %257 = vector.extract_strided_slice %247 {offsets = [0, 1, 0, 0], sizes = [2, 8, 8, 16], strides = [1, 1, 1, 1]} : vector<2x10x10x16xf32> to vector<2x8x8x16xf32>
    %258 = vector.shape_cast %257 : vector<2x8x8x16xf32> to vector<128x16xf32>
    %c0_166 = arith.constant 0 : index
    %c48_167 = arith.constant 48 : index
    %259 = vector.load %arg25[%c0_166, %c48_167] : memref<128x144xf32, #tpu.memory_space<vmem>>, vector<128x16xf32>
    tpu.vector_store %arg25[%c0_166, %c48_167], %258 {strides = array<i32>} : memref<128x144xf32, #tpu.memory_space<vmem>>, vector<128x16xf32>,
    %260 = vector.extract_strided_slice %247 {offsets = [0, 1, 1, 0], sizes = [2, 8, 8, 16], strides = [1, 1, 1, 1]} : vector<2x10x10x16xf32> to vector<2x8x8x16xf32>
    %261 = vector.shape_cast %260 : vector<2x8x8x16xf32> to vector<128x16xf32>
    %c0_168 = arith.constant 0 : index
    %c64_169 = arith.constant 64 : index
    %262 = vector.load %arg25[%c0_168, %c64_169] : memref<128x144xf32, #tpu.memory_space<vmem>>, vector<128x16xf32>
    tpu.vector_store %arg25[%c0_168, %c64_169], %261 {strides = array<i32>} : memref<128x144xf32, #tpu.memory_space<vmem>>, vector<128x16xf32>,
    %263 = vector.extract_strided_slice %247 {offsets = [0, 1, 2, 0], sizes = [2, 8, 8, 16], strides = [1, 1, 1, 1]} : vector<2x10x10x16xf32> to vector<2x8x8x16xf32>
    %264 = vector.shape_cast %263 : vector<2x8x8x16xf32> to vector<128x16xf32>
    %c0_170 = arith.constant 0 : index
    %c80_171 = arith.constant 80 : index
    %265 = vector.load %arg25[%c0_170, %c80_171] : memref<128x144xf32, #tpu.memory_space<vmem>>, vector<128x16xf32>
    tpu.vector_store %arg25[%c0_170, %c80_171], %264 {strides = array<i32>} : memref<128x144xf32, #tpu.memory_space<vmem>>, vector<128x16xf32>,
    %266 = vector.extract_strided_slice %247 {offsets = [0, 2, 0, 0], sizes = [2, 8, 8, 16], strides = [1, 1, 1, 1]} : vector<2x10x10x16xf32> to vector<2x8x8x16xf32>
    %267 = vector.shape_cast %266 : vector<2x8x8x16xf32> to vector<128x16xf32>
    %c0_172 = arith.constant 0 : index
    %c96_173 = arith.constant 96 : index
    %268 = vector.load %arg25[%c0_172, %c96_173] : memref<128x144xf32, #tpu.memory_space<vmem>>, vector<128x16xf32>
    tpu.vector_store %arg25[%c0_172, %c96_173], %267 {strides = array<i32>} : memref<128x144xf32, #tpu.memory_space<vmem>>, vector<128x16xf32>,
    %269 = vector.extract_strided_slice %247 {offsets = [0, 2, 1, 0], sizes = [2, 8, 8, 16], strides = [1, 1, 1, 1]} : vector<2x10x10x16xf32> to vector<2x8x8x16xf32>
    %270 = vector.shape_cast %269 : vector<2x8x8x16xf32> to vector<128x16xf32>
    %c0_174 = arith.constant 0 : index
    %c112_175 = arith.constant 112 : index
    %271 = vector.load %arg25[%c0_174, %c112_175] : memref<128x144xf32, #tpu.memory_space<vmem>>, vector<128x16xf32>
    tpu.vector_store %arg25[%c0_174, %c112_175], %270 {strides = array<i32>} : memref<128x144xf32, #tpu.memory_space<vmem>>, vector<128x16xf32>,
    %272 = vector.extract_strided_slice %247 {offsets = [0, 2, 2, 0], sizes = [2, 8, 8, 16], strides = [1, 1, 1, 1]} : vector<2x10x10x16xf32> to vector<2x8x8x16xf32>
    %273 = vector.shape_cast %272 : vector<2x8x8x16xf32> to vector<128x16xf32>
    %c0_176 = arith.constant 0 : index
    %c128_177 = arith.constant 128 : index
    %274 = vector.load %arg25[%c0_176, %c128_177] : memref<128x144xf32, #tpu.memory_space<vmem>>, vector<128x16xf32>
    tpu.vector_store %arg25[%c0_176, %c128_177], %273 {strides = array<i32>} : memref<128x144xf32, #tpu.memory_space<vmem>>, vector<128x16xf32>,
    %c0_178 = arith.constant 0 : index
    %c0_179 = arith.constant 0 : index
    %275 = vector.load %arg25[%c0_178, %c0_179] : memref<128x144xf32, #tpu.memory_space<vmem>>, vector<128x144xf32>
    %276 = arith.truncf %275 : vector<128x144xf32> to vector<128x144xbf16>
    %c0_180 = arith.constant 0 : index
    %c0_181 = arith.constant 0 : index
    %277 = vector.load %arg13[%c0_180, %c0_181] : memref<144x16xbf16, #tpu.memory_space<vmem>>, vector<144x16xbf16>
    %cst_182 = arith.constant dense<0.000000e+00> : vector<128x16xf32>
    %278 = tpu.matmul %276, %277, %cst_182 {dimension_numbers = #tpu.dot_dimension_numbers<[1], [0], [0], [1], [0, 0, 1, 1], [], []>} : vector<128x144xbf16>, vector<144x16xbf16>, vector<128x16xf32> -> vector<128x16xf32>
    %cst_183 = arith.constant dense<0.000000e+00> : vector<16xf32>
    %279 = vector.multi_reduction <add>, %278, %cst_183 [0] : vector<128x16xf32> to vector<16xf32>
    %280 = vector.shape_cast %279 : vector<16xf32> to vector<1x16xf32>
    %cst_184 = arith.constant 1.280000e+02 : f32
    %281 = vector.broadcast %cst_184 : f32 to vector<1x16xf32>
    %282 = arith.divf %280, %281 : vector<1x16xf32>
    %283 = arith.mulf %278, %278 : vector<128x16xf32>
    %cst_185 = arith.constant dense<0.000000e+00> : vector<16xf32>
    %284 = vector.multi_reduction <add>, %283, %cst_185 [0] : vector<128x16xf32> to vector<16xf32>
    %285 = vector.shape_cast %284 : vector<16xf32> to vector<1x16xf32>
    %cst_186 = arith.constant 1.280000e+02 : f32
    %286 = vector.broadcast %cst_186 : f32 to vector<1x16xf32>
    %287 = arith.divf %285, %286 : vector<1x16xf32>
    %288 = arith.mulf %282, %282 : vector<1x16xf32>
    %289 = arith.subf %287, %288 : vector<1x16xf32>
    %cst_187 = arith.constant 0.000000e+00 : f32
    %290 = vector.broadcast %cst_187 : f32 to vector<1x16xf32>
    %291 = arith.maximumf %289, %290 : vector<1x16xf32>
    %c0_188 = arith.constant 0 : index
    %c0_189 = arith.constant 0 : index
    %292 = vector.load %arg14[%c0_188, %c0_189] : memref<1x16xf32, #tpu.memory_space<vmem>>, vector<1x16xf32>
    %cst_190 = arith.constant 9.99999974E-6 : f32
    %293 = vector.broadcast %cst_190 : f32 to vector<1x16xf32>
    %294 = arith.addf %291, %293 : vector<1x16xf32>
    %295 = math.rsqrt %294 : vector<1x16xf32>
    %296 = arith.mulf %292, %295 : vector<1x16xf32>
    %297 = vector.broadcast %296 : vector<1x16xf32> to vector<128x16xf32>
    %298 = arith.mulf %278, %297 : vector<128x16xf32>
    %c0_191 = arith.constant 0 : index
    %c0_192 = arith.constant 0 : index
    %299 = vector.load %arg15[%c0_191, %c0_192] : memref<1x16xf32, #tpu.memory_space<vmem>>, vector<1x16xf32>
    %300 = arith.mulf %282, %296 : vector<1x16xf32>
    %301 = arith.subf %299, %300 : vector<1x16xf32>
    %302 = vector.broadcast %301 : vector<1x16xf32> to vector<128x16xf32>
    %303 = arith.addf %298, %302 : vector<128x16xf32>
    %304 = arith.addf %303, %183 : vector<128x16xf32>
    %cst_193 = arith.constant 0.000000e+00 : f32
    %305 = vector.broadcast %cst_193 : f32 to vector<128x16xf32>
    %306 = arith.maximumf %304, %305 : vector<128x16xf32>
    %307 = vector.shape_cast %306 : vector<128x16xf32> to vector<2x8x8x16xf32>
    %c0_194 = arith.constant 0 : index
    %c1_195 = arith.constant 1 : index
    %c1_196 = arith.constant 1 : index
    %c0_197 = arith.constant 0 : index
    %308 = vector.load %arg24[%c0_194, %c1_195, %c1_196, %c0_197] : memref<2x10x10x16xf32, #tpu.memory_space<vmem>>, vector<2x8x8x16xf32>
    tpu.vector_store %arg24[%c0_194, %c1_195, %c1_196, %c0_197], %307 {strides = array<i32>} : memref<2x10x10x16xf32, #tpu.memory_space<vmem>>, vector<2x8x8x16xf32>,
    %c0_198 = arith.constant 0 : index
    %c0_199 = arith.constant 0 : index
    %c0_200 = arith.constant 0 : index
    %c0_201 = arith.constant 0 : index
    %309 = vector.load %arg24[%c0_198, %c0_199, %c0_200, %c0_201] : memref<2x10x10x16xf32, #tpu.memory_space<vmem>>, vector<2x10x10x16xf32>
    %310 = vector.extract_strided_slice %309 {offsets = [0, 0, 0, 0], sizes = [2, 8, 8, 16], strides = [1, 1, 1, 1]} : vector<2x10x10x16xf32> to vector<2x8x8x16xf32>
    %311 = vector.shape_cast %310 : vector<2x8x8x16xf32> to vector<128x16xf32>
    %c0_202 = arith.constant 0 : index
    %c0_203 = arith.constant 0 : index
    %312 = vector.load %arg25[%c0_202, %c0_203] : memref<128x144xf32, #tpu.memory_space<vmem>>, vector<128x16xf32>
    tpu.vector_store %arg25[%c0_202, %c0_203], %311 {strides = array<i32>} : memref<128x144xf32, #tpu.memory_space<vmem>>, vector<128x16xf32>,
    %313 = vector.extract_strided_slice %309 {offsets = [0, 0, 1, 0], sizes = [2, 8, 8, 16], strides = [1, 1, 1, 1]} : vector<2x10x10x16xf32> to vector<2x8x8x16xf32>
    %314 = vector.shape_cast %313 : vector<2x8x8x16xf32> to vector<128x16xf32>
    %c0_204 = arith.constant 0 : index
    %c16_205 = arith.constant 16 : index
    %315 = vector.load %arg25[%c0_204, %c16_205] : memref<128x144xf32, #tpu.memory_space<vmem>>, vector<128x16xf32>
    tpu.vector_store %arg25[%c0_204, %c16_205], %314 {strides = array<i32>} : memref<128x144xf32, #tpu.memory_space<vmem>>, vector<128x16xf32>,
    %316 = vector.extract_strided_slice %309 {offsets = [0, 0, 2, 0], sizes = [2, 8, 8, 16], strides = [1, 1, 1, 1]} : vector<2x10x10x16xf32> to vector<2x8x8x16xf32>
    %317 = vector.shape_cast %316 : vector<2x8x8x16xf32> to vector<128x16xf32>
    %c0_206 = arith.constant 0 : index
    %c32_207 = arith.constant 32 : index
    %318 = vector.load %arg25[%c0_206, %c32_207] : memref<128x144xf32, #tpu.memory_space<vmem>>, vector<128x16xf32>
    tpu.vector_store %arg25[%c0_206, %c32_207], %317 {strides = array<i32>} : memref<128x144xf32, #tpu.memory_space<vmem>>, vector<128x16xf32>,
    %319 = vector.extract_strided_slice %309 {offsets = [0, 1, 0, 0], sizes = [2, 8, 8, 16], strides = [1, 1, 1, 1]} : vector<2x10x10x16xf32> to vector<2x8x8x16xf32>
    %320 = vector.shape_cast %319 : vector<2x8x8x16xf32> to vector<128x16xf32>
    %c0_208 = arith.constant 0 : index
    %c48_209 = arith.constant 48 : index
    %321 = vector.load %arg25[%c0_208, %c48_209] : memref<128x144xf32, #tpu.memory_space<vmem>>, vector<128x16xf32>
    tpu.vector_store %arg25[%c0_208, %c48_209], %320 {strides = array<i32>} : memref<128x144xf32, #tpu.memory_space<vmem>>, vector<128x16xf32>,
    %322 = vector.extract_strided_slice %309 {offsets = [0, 1, 1, 0], sizes = [2, 8, 8, 16], strides = [1, 1, 1, 1]} : vector<2x10x10x16xf32> to vector<2x8x8x16xf32>
    %323 = vector.shape_cast %322 : vector<2x8x8x16xf32> to vector<128x16xf32>
    %c0_210 = arith.constant 0 : index
    %c64_211 = arith.constant 64 : index
    %324 = vector.load %arg25[%c0_210, %c64_211] : memref<128x144xf32, #tpu.memory_space<vmem>>, vector<128x16xf32>
    tpu.vector_store %arg25[%c0_210, %c64_211], %323 {strides = array<i32>} : memref<128x144xf32, #tpu.memory_space<vmem>>, vector<128x16xf32>,
    %325 = vector.extract_strided_slice %309 {offsets = [0, 1, 2, 0], sizes = [2, 8, 8, 16], strides = [1, 1, 1, 1]} : vector<2x10x10x16xf32> to vector<2x8x8x16xf32>
    %326 = vector.shape_cast %325 : vector<2x8x8x16xf32> to vector<128x16xf32>
    %c0_212 = arith.constant 0 : index
    %c80_213 = arith.constant 80 : index
    %327 = vector.load %arg25[%c0_212, %c80_213] : memref<128x144xf32, #tpu.memory_space<vmem>>, vector<128x16xf32>
    tpu.vector_store %arg25[%c0_212, %c80_213], %326 {strides = array<i32>} : memref<128x144xf32, #tpu.memory_space<vmem>>, vector<128x16xf32>,
    %328 = vector.extract_strided_slice %309 {offsets = [0, 2, 0, 0], sizes = [2, 8, 8, 16], strides = [1, 1, 1, 1]} : vector<2x10x10x16xf32> to vector<2x8x8x16xf32>
    %329 = vector.shape_cast %328 : vector<2x8x8x16xf32> to vector<128x16xf32>
    %c0_214 = arith.constant 0 : index
    %c96_215 = arith.constant 96 : index
    %330 = vector.load %arg25[%c0_214, %c96_215] : memref<128x144xf32, #tpu.memory_space<vmem>>, vector<128x16xf32>
    tpu.vector_store %arg25[%c0_214, %c96_215], %329 {strides = array<i32>} : memref<128x144xf32, #tpu.memory_space<vmem>>, vector<128x16xf32>,
    %331 = vector.extract_strided_slice %309 {offsets = [0, 2, 1, 0], sizes = [2, 8, 8, 16], strides = [1, 1, 1, 1]} : vector<2x10x10x16xf32> to vector<2x8x8x16xf32>
    %332 = vector.shape_cast %331 : vector<2x8x8x16xf32> to vector<128x16xf32>
    %c0_216 = arith.constant 0 : index
    %c112_217 = arith.constant 112 : index
    %333 = vector.load %arg25[%c0_216, %c112_217] : memref<128x144xf32, #tpu.memory_space<vmem>>, vector<128x16xf32>
    tpu.vector_store %arg25[%c0_216, %c112_217], %332 {strides = array<i32>} : memref<128x144xf32, #tpu.memory_space<vmem>>, vector<128x16xf32>,
    %334 = vector.extract_strided_slice %309 {offsets = [0, 2, 2, 0], sizes = [2, 8, 8, 16], strides = [1, 1, 1, 1]} : vector<2x10x10x16xf32> to vector<2x8x8x16xf32>
    %335 = vector.shape_cast %334 : vector<2x8x8x16xf32> to vector<128x16xf32>
    %c0_218 = arith.constant 0 : index
    %c128_219 = arith.constant 128 : index
    %336 = vector.load %arg25[%c0_218, %c128_219] : memref<128x144xf32, #tpu.memory_space<vmem>>, vector<128x16xf32>
    tpu.vector_store %arg25[%c0_218, %c128_219], %335 {strides = array<i32>} : memref<128x144xf32, #tpu.memory_space<vmem>>, vector<128x16xf32>,
    %c0_220 = arith.constant 0 : index
    %c0_221 = arith.constant 0 : index
    %337 = vector.load %arg25[%c0_220, %c0_221] : memref<128x144xf32, #tpu.memory_space<vmem>>, vector<128x144xf32>
    %338 = arith.truncf %337 : vector<128x144xf32> to vector<128x144xbf16>
    %c0_222 = arith.constant 0 : index
    %c0_223 = arith.constant 0 : index
    %339 = vector.load %arg16[%c0_222, %c0_223] : memref<144x32xbf16, #tpu.memory_space<vmem>>, vector<144x32xbf16>
    %cst_224 = arith.constant dense<0.000000e+00> : vector<128x32xf32>
    %340 = tpu.matmul %338, %339, %cst_224 {dimension_numbers = #tpu.dot_dimension_numbers<[1], [0], [0], [1], [0, 0, 1, 1], [], []>} : vector<128x144xbf16>, vector<144x32xbf16>, vector<128x32xf32> -> vector<128x32xf32>
    %cst_225 = arith.constant dense<0.000000e+00> : vector<32xf32>
    %341 = vector.multi_reduction <add>, %340, %cst_225 [0] : vector<128x32xf32> to vector<32xf32>
    %342 = vector.shape_cast %341 : vector<32xf32> to vector<1x32xf32>
    %cst_226 = arith.constant 1.280000e+02 : f32
    %343 = vector.broadcast %cst_226 : f32 to vector<1x32xf32>
    %344 = arith.divf %342, %343 : vector<1x32xf32>
    %345 = arith.mulf %340, %340 : vector<128x32xf32>
    %cst_227 = arith.constant dense<0.000000e+00> : vector<32xf32>
    %346 = vector.multi_reduction <add>, %345, %cst_227 [0] : vector<128x32xf32> to vector<32xf32>
    %347 = vector.shape_cast %346 : vector<32xf32> to vector<1x32xf32>
    %cst_228 = arith.constant 1.280000e+02 : f32
    %348 = vector.broadcast %cst_228 : f32 to vector<1x32xf32>
    %349 = arith.divf %347, %348 : vector<1x32xf32>
    %350 = arith.mulf %344, %344 : vector<1x32xf32>
    %351 = arith.subf %349, %350 : vector<1x32xf32>
    %cst_229 = arith.constant 0.000000e+00 : f32
    %352 = vector.broadcast %cst_229 : f32 to vector<1x32xf32>
    %353 = arith.maximumf %351, %352 : vector<1x32xf32>
    %c0_230 = arith.constant 0 : index
    %c0_231 = arith.constant 0 : index
    %354 = vector.load %arg17[%c0_230, %c0_231] : memref<1x32xf32, #tpu.memory_space<vmem>>, vector<1x32xf32>
    %cst_232 = arith.constant 9.99999974E-6 : f32
    %355 = vector.broadcast %cst_232 : f32 to vector<1x32xf32>
    %356 = arith.addf %353, %355 : vector<1x32xf32>
    %357 = math.rsqrt %356 : vector<1x32xf32>
    %358 = arith.mulf %354, %357 : vector<1x32xf32>
    %359 = vector.broadcast %358 : vector<1x32xf32> to vector<128x32xf32>
    %360 = arith.mulf %340, %359 : vector<128x32xf32>
    %c0_233 = arith.constant 0 : index
    %c0_234 = arith.constant 0 : index
    %361 = vector.load %arg18[%c0_233, %c0_234] : memref<1x32xf32, #tpu.memory_space<vmem>>, vector<1x32xf32>
    %362 = arith.mulf %344, %358 : vector<1x32xf32>
    %363 = arith.subf %361, %362 : vector<1x32xf32>
    %364 = vector.broadcast %363 : vector<1x32xf32> to vector<128x32xf32>
    %365 = arith.addf %360, %364 : vector<128x32xf32>
    %cst_235 = arith.constant 0.000000e+00 : f32
    %366 = vector.broadcast %cst_235 : f32 to vector<128x32xf32>
    %367 = arith.maximumf %365, %366 : vector<128x32xf32>
    %368 = vector.extract_strided_slice %309 {offsets = [0, 0, 0, 0], sizes = [2, 8, 8, 16], strides = [1, 1, 1, 1]} : vector<2x10x10x16xf32> to vector<2x8x8x16xf32>
    %369 = vector.shape_cast %368 : vector<2x8x8x16xf32> to vector<128x16xf32>
    %c0_236 = arith.constant 0 : index
    %c0_237 = arith.constant 0 : index
    %370 = vector.load %arg25[%c0_236, %c0_237] : memref<128x144xf32, #tpu.memory_space<vmem>>, vector<128x16xf32>
    tpu.vector_store %arg25[%c0_236, %c0_237], %369 {strides = array<i32>} : memref<128x144xf32, #tpu.memory_space<vmem>>, vector<128x16xf32>,
    %371 = vector.extract_strided_slice %309 {offsets = [0, 0, 1, 0], sizes = [2, 8, 8, 16], strides = [1, 1, 1, 1]} : vector<2x10x10x16xf32> to vector<2x8x8x16xf32>
    %372 = vector.shape_cast %371 : vector<2x8x8x16xf32> to vector<128x16xf32>
    %c0_238 = arith.constant 0 : index
    %c16_239 = arith.constant 16 : index
    %373 = vector.load %arg25[%c0_238, %c16_239] : memref<128x144xf32, #tpu.memory_space<vmem>>, vector<128x16xf32>
    tpu.vector_store %arg25[%c0_238, %c16_239], %372 {strides = array<i32>} : memref<128x144xf32, #tpu.memory_space<vmem>>, vector<128x16xf32>,
    %374 = vector.extract_strided_slice %309 {offsets = [0, 0, 2, 0], sizes = [2, 8, 8, 16], strides = [1, 1, 1, 1]} : vector<2x10x10x16xf32> to vector<2x8x8x16xf32>
    %375 = vector.shape_cast %374 : vector<2x8x8x16xf32> to vector<128x16xf32>
    %c0_240 = arith.constant 0 : index
    %c32_241 = arith.constant 32 : index
    %376 = vector.load %arg25[%c0_240, %c32_241] : memref<128x144xf32, #tpu.memory_space<vmem>>, vector<128x16xf32>
    tpu.vector_store %arg25[%c0_240, %c32_241], %375 {strides = array<i32>} : memref<128x144xf32, #tpu.memory_space<vmem>>, vector<128x16xf32>,
    %377 = vector.extract_strided_slice %309 {offsets = [0, 1, 0, 0], sizes = [2, 8, 8, 16], strides = [1, 1, 1, 1]} : vector<2x10x10x16xf32> to vector<2x8x8x16xf32>
    %378 = vector.shape_cast %377 : vector<2x8x8x16xf32> to vector<128x16xf32>
    %c0_242 = arith.constant 0 : index
    %c48_243 = arith.constant 48 : index
    %379 = vector.load %arg25[%c0_242, %c48_243] : memref<128x144xf32, #tpu.memory_space<vmem>>, vector<128x16xf32>
    tpu.vector_store %arg25[%c0_242, %c48_243], %378 {strides = array<i32>} : memref<128x144xf32, #tpu.memory_space<vmem>>, vector<128x16xf32>,
    %380 = vector.extract_strided_slice %309 {offsets = [0, 1, 1, 0], sizes = [2, 8, 8, 16], strides = [1, 1, 1, 1]} : vector<2x10x10x16xf32> to vector<2x8x8x16xf32>
    %381 = vector.shape_cast %380 : vector<2x8x8x16xf32> to vector<128x16xf32>
    %c0_244 = arith.constant 0 : index
    %c64_245 = arith.constant 64 : index
    %382 = vector.load %arg25[%c0_244, %c64_245] : memref<128x144xf32, #tpu.memory_space<vmem>>, vector<128x16xf32>
    tpu.vector_store %arg25[%c0_244, %c64_245], %381 {strides = array<i32>} : memref<128x144xf32, #tpu.memory_space<vmem>>, vector<128x16xf32>,
    %383 = vector.extract_strided_slice %309 {offsets = [0, 1, 2, 0], sizes = [2, 8, 8, 16], strides = [1, 1, 1, 1]} : vector<2x10x10x16xf32> to vector<2x8x8x16xf32>
    %384 = vector.shape_cast %383 : vector<2x8x8x16xf32> to vector<128x16xf32>
    %c0_246 = arith.constant 0 : index
    %c80_247 = arith.constant 80 : index
    %385 = vector.load %arg25[%c0_246, %c80_247] : memref<128x144xf32, #tpu.memory_space<vmem>>, vector<128x16xf32>
    tpu.vector_store %arg25[%c0_246, %c80_247], %384 {strides = array<i32>} : memref<128x144xf32, #tpu.memory_space<vmem>>, vector<128x16xf32>,
    %386 = vector.extract_strided_slice %309 {offsets = [0, 2, 0, 0], sizes = [2, 8, 8, 16], strides = [1, 1, 1, 1]} : vector<2x10x10x16xf32> to vector<2x8x8x16xf32>
    %387 = vector.shape_cast %386 : vector<2x8x8x16xf32> to vector<128x16xf32>
    %c0_248 = arith.constant 0 : index
    %c96_249 = arith.constant 96 : index
    %388 = vector.load %arg25[%c0_248, %c96_249] : memref<128x144xf32, #tpu.memory_space<vmem>>, vector<128x16xf32>
    tpu.vector_store %arg25[%c0_248, %c96_249], %387 {strides = array<i32>} : memref<128x144xf32, #tpu.memory_space<vmem>>, vector<128x16xf32>,
    %389 = vector.extract_strided_slice %309 {offsets = [0, 2, 1, 0], sizes = [2, 8, 8, 16], strides = [1, 1, 1, 1]} : vector<2x10x10x16xf32> to vector<2x8x8x16xf32>
    %390 = vector.shape_cast %389 : vector<2x8x8x16xf32> to vector<128x16xf32>
    %c0_250 = arith.constant 0 : index
    %c112_251 = arith.constant 112 : index
    %391 = vector.load %arg25[%c0_250, %c112_251] : memref<128x144xf32, #tpu.memory_space<vmem>>, vector<128x16xf32>
    tpu.vector_store %arg25[%c0_250, %c112_251], %390 {strides = array<i32>} : memref<128x144xf32, #tpu.memory_space<vmem>>, vector<128x16xf32>,
    %392 = vector.extract_strided_slice %309 {offsets = [0, 2, 2, 0], sizes = [2, 8, 8, 16], strides = [1, 1, 1, 1]} : vector<2x10x10x16xf32> to vector<2x8x8x16xf32>
    %393 = vector.shape_cast %392 : vector<2x8x8x16xf32> to vector<128x16xf32>
    %c0_252 = arith.constant 0 : index
    %c128_253 = arith.constant 128 : index
    %394 = vector.load %arg25[%c0_252, %c128_253] : memref<128x144xf32, #tpu.memory_space<vmem>>, vector<128x16xf32>
    tpu.vector_store %arg25[%c0_252, %c128_253], %393 {strides = array<i32>} : memref<128x144xf32, #tpu.memory_space<vmem>>, vector<128x16xf32>,
    %c0_254 = arith.constant 0 : index
    %c0_255 = arith.constant 0 : index
    %395 = vector.load %arg25[%c0_254, %c0_255] : memref<128x144xf32, #tpu.memory_space<vmem>>, vector<128x144xf32>
    %396 = arith.truncf %395 : vector<128x144xf32> to vector<128x144xbf16>
    %c0_256 = arith.constant 0 : index
    %c0_257 = arith.constant 0 : index
    %397 = vector.load %arg19[%c0_256, %c0_257] : memref<144x3xbf16, #tpu.memory_space<vmem>>, vector<144x3xbf16>
    %cst_258 = arith.constant dense<0.000000e+00> : vector<128x3xf32>
    %398 = tpu.matmul %396, %397, %cst_258 {dimension_numbers = #tpu.dot_dimension_numbers<[1], [0], [0], [1], [0, 0, 1, 1], [], []>} : vector<128x144xbf16>, vector<144x3xbf16>, vector<128x3xf32> -> vector<128x3xf32>
    %cst_259 = arith.constant dense<0.000000e+00> : vector<3xf32>
    %399 = vector.multi_reduction <add>, %398, %cst_259 [0] : vector<128x3xf32> to vector<3xf32>
    %400 = vector.shape_cast %399 : vector<3xf32> to vector<1x3xf32>
    %cst_260 = arith.constant 1.280000e+02 : f32
    %401 = vector.broadcast %cst_260 : f32 to vector<1x3xf32>
    %402 = arith.divf %400, %401 : vector<1x3xf32>
    %403 = arith.mulf %398, %398 : vector<128x3xf32>
    %cst_261 = arith.constant dense<0.000000e+00> : vector<3xf32>
    %404 = vector.multi_reduction <add>, %403, %cst_261 [0] : vector<128x3xf32> to vector<3xf32>
    %405 = vector.shape_cast %404 : vector<3xf32> to vector<1x3xf32>
    %cst_262 = arith.constant 1.280000e+02 : f32
    %406 = vector.broadcast %cst_262 : f32 to vector<1x3xf32>
    %407 = arith.divf %405, %406 : vector<1x3xf32>
    %408 = arith.mulf %402, %402 : vector<1x3xf32>
    %409 = arith.subf %407, %408 : vector<1x3xf32>
    %cst_263 = arith.constant 0.000000e+00 : f32
    %410 = vector.broadcast %cst_263 : f32 to vector<1x3xf32>
    %411 = arith.maximumf %409, %410 : vector<1x3xf32>
    %c0_264 = arith.constant 0 : index
    %c0_265 = arith.constant 0 : index
    %412 = vector.load %arg20[%c0_264, %c0_265] : memref<1x3xf32, #tpu.memory_space<vmem>>, vector<1x3xf32>
    %cst_266 = arith.constant 9.99999974E-6 : f32
    %413 = vector.broadcast %cst_266 : f32 to vector<1x3xf32>
    %414 = arith.addf %411, %413 : vector<1x3xf32>
    %415 = math.rsqrt %414 : vector<1x3xf32>
    %416 = arith.mulf %412, %415 : vector<1x3xf32>
    %417 = vector.broadcast %416 : vector<1x3xf32> to vector<128x3xf32>
    %418 = arith.mulf %398, %417 : vector<128x3xf32>
    %c0_267 = arith.constant 0 : index
    %c0_268 = arith.constant 0 : index
    %419 = vector.load %arg21[%c0_267, %c0_268] : memref<1x3xf32, #tpu.memory_space<vmem>>, vector<1x3xf32>
    %420 = arith.mulf %402, %416 : vector<1x3xf32>
    %421 = arith.subf %419, %420 : vector<1x3xf32>
    %422 = vector.broadcast %421 : vector<1x3xf32> to vector<128x3xf32>
    %423 = arith.addf %418, %422 : vector<128x3xf32>
    %cst_269 = arith.constant 0.000000e+00 : f32
    %424 = vector.broadcast %cst_269 : f32 to vector<128x3xf32>
    %425 = arith.maximumf %423, %424 : vector<128x3xf32>
    %c0_270 = arith.constant 0 : index
    %c0_271 = arith.constant 0 : index
    %426 = vector.load %arg22[%c0_270, %c0_271] : memref<128x32xf32, #tpu.memory_space<vmem>>, vector<128x32xf32>
    tpu.vector_store %arg22[%c0_270, %c0_271], %367 {strides = array<i32>} : memref<128x32xf32, #tpu.memory_space<vmem>>, vector<128x32xf32>,
    %c0_272 = arith.constant 0 : index
    %c0_273 = arith.constant 0 : index
    %427 = vector.load %arg23[%c0_272, %c0_273] : memref<128x3xf32, #tpu.memory_space<vmem>>, vector<128x3xf32>
    tpu.vector_store %arg23[%c0_272, %c0_273], %425 {strides = array<i32>} : memref<128x3xf32, #tpu.memory_space<vmem>>, vector<128x3xf32>,
    return
  }
}

module attributes {stable_mosaic.version = 11 : i64} {
  func.func @_heads_kernel(%arg0: memref<2x2048xf32, #tpu.memory_space<vmem>>, %arg1: memref<2048x32xf32, #tpu.memory_space<vmem>>, %arg2: memref<1x32xf32, #tpu.memory_space<vmem>>, %arg3: memref<2x192xf32, #tpu.memory_space<vmem>>, %arg4: memref<192x1xf32, #tpu.memory_space<vmem>>, %arg5: memref<1x1xf32, #tpu.memory_space<vmem>>, %arg6: memref<1x1xf32, #tpu.memory_space<vmem>>, %arg7: memref<2x32xf32, #tpu.memory_space<vmem>>, %arg8: memref<2x1xf32, #tpu.memory_space<vmem>>) attributes {dimension_semantics = [], scalar_prefetch = 0 : i64, scratch_operands = 0 : i64, tpu.core_type = #tpu.core_type<tc>} {
    %c0 = arith.constant 0 : index
    %c0_0 = arith.constant 0 : index
    %0 = vector.load %arg0[%c0, %c0_0] : memref<2x2048xf32, #tpu.memory_space<vmem>>, vector<2x2048xf32>
    %c0_1 = arith.constant 0 : index
    %c0_2 = arith.constant 0 : index
    %1 = vector.load %arg1[%c0_1, %c0_2] : memref<2048x32xf32, #tpu.memory_space<vmem>>, vector<2048x32xf32>
    %cst = arith.constant dense<0.000000e+00> : vector<2x32xf32>
    %2 = tpu.matmul %0, %1, %cst {dimension_numbers = #tpu.dot_dimension_numbers<[1], [0], [0], [1], [0, 0, 1, 1], [], []>} : vector<2x2048xf32>, vector<2048x32xf32>, vector<2x32xf32> -> vector<2x32xf32>
    %c0_3 = arith.constant 0 : index
    %c0_4 = arith.constant 0 : index
    %3 = vector.load %arg2[%c0_3, %c0_4] : memref<1x32xf32, #tpu.memory_space<vmem>>, vector<1x32xf32>
    %4 = vector.broadcast %3 : vector<1x32xf32> to vector<2x32xf32>
    %5 = arith.addf %2, %4 : vector<2x32xf32>
    %c0_5 = arith.constant 0 : index
    %c0_6 = arith.constant 0 : index
    %6 = vector.load %arg7[%c0_5, %c0_6] : memref<2x32xf32, #tpu.memory_space<vmem>>, vector<2x32xf32>
    tpu.vector_store %arg7[%c0_5, %c0_6], %5 {strides = array<i32>} : memref<2x32xf32, #tpu.memory_space<vmem>>, vector<2x32xf32>,
    %c0_7 = arith.constant 0 : index
    %c0_8 = arith.constant 0 : index
    %7 = vector.load %arg3[%c0_7, %c0_8] : memref<2x192xf32, #tpu.memory_space<vmem>>, vector<2x192xf32>
    %c0_9 = arith.constant 0 : index
    %c0_10 = arith.constant 0 : index
    %8 = vector.load %arg4[%c0_9, %c0_10] : memref<192x1xf32, #tpu.memory_space<vmem>>, vector<192x1xf32>
    %cst_11 = arith.constant dense<0.000000e+00> : vector<2x1xf32>
    %9 = tpu.matmul %7, %8, %cst_11 {dimension_numbers = #tpu.dot_dimension_numbers<[1], [0], [0], [1], [0, 0, 1, 1], [], []>} : vector<2x192xf32>, vector<192x1xf32>, vector<2x1xf32> -> vector<2x1xf32>
    %c0_12 = arith.constant 0 : index
    %c0_13 = arith.constant 0 : index
    %10 = vector.load %arg5[%c0_12, %c0_13] : memref<1x1xf32, #tpu.memory_space<vmem>>, vector<1x1xf32>
    %11 = vector.broadcast %10 : vector<1x1xf32> to vector<2x1xf32>
    %12 = arith.addf %9, %11 : vector<2x1xf32>
    %c0_14 = arith.constant 0 : index
    %c0_15 = arith.constant 0 : index
    %13 = vector.load %arg6[%c0_14, %c0_15] : memref<1x1xf32, #tpu.memory_space<vmem>>, vector<1x1xf32>
    %cst_16 = arith.constant 0.000000e+00 : f32
    %14 = vector.broadcast %cst_16 : f32 to vector<2x1xf32>
    %15 = arith.maximumf %12, %14 : vector<2x1xf32>
    %cst_17 = arith.constant 0.000000e+00 : f32
    %16 = vector.broadcast %cst_17 : f32 to vector<2x1xf32>
    %17 = arith.minimumf %12, %16 : vector<2x1xf32>
    %18 = vector.broadcast %13 : vector<1x1xf32> to vector<2x1xf32>
    %19 = arith.mulf %18, %17 : vector<2x1xf32>
    %20 = arith.addf %15, %19 : vector<2x1xf32>
    %c0_18 = arith.constant 0 : index
    %c0_19 = arith.constant 0 : index
    %21 = vector.load %arg8[%c0_18, %c0_19] : memref<2x1xf32, #tpu.memory_space<vmem>>, vector<2x1xf32>
    tpu.vector_store %arg8[%c0_18, %c0_19], %20 {strides = array<i32>} : memref<2x1xf32, #tpu.memory_space<vmem>>, vector<2x1xf32>,
    return
  }
}

</mosaic_0001>

<llo_original>
// kernel: resnet_forward.3
$region0: #{resnet_forward.3}
  #allocation0 [shape = 'u32[]', space=smem, size = 0x4, offset = 0x4, fixed_abs, tag = 'smem constant byte address 0x4 - core index']
  #allocation1 [shape = 'u32[144,128]{1,0:T(1,128)}', space=vmem, size = 0x12000, scoped, tag = 'internal scratch']
  #allocation2 [shape = 'f32[1,1]{1,0:T(1,128)S(1)}', space=vmem, size = 0x200, scoped, tag = 'scoped memory for resnet_forward.3']
  #allocation3 [shape = 'f32[1,1]{1,0:T(1,128)S(1)}', space=vmem, size = 0x200, scoped, tag = 'scoped memory for resnet_forward.3']
  %s0 = inlined_call_operand.vmem [shape: f32[2,2048], index: 0, kind: input, shape index: {}]
  %s1 = inlined_call_operand.vmem [shape: f32[2048,32], index: 1, kind: input, shape index: {}]
  %s2 = inlined_call_operand.vmem [shape: f32[1,32], index: 2, kind: input, shape index: {}]
  %s3 = inlined_call_operand.vmem [shape: f32[2,192], index: 3, kind: input, shape index: {}]
  %s4 = inlined_call_operand.vmem [shape: f32[192,1], index: 4, kind: input, shape index: {}]
  %s5 = inlined_call_operand.<no memory space> [shape: f32[1,1], index: 5, kind: input, shape index: {}]
  %s6 = inlined_call_operand.<no memory space> [shape: f32[1,1], index: 6, kind: input, shape index: {}]
  %s7 = inlined_call_operand.hbm [shape: f32[2,32], index: 7, kind: output, shape index: {0}]
  %s8 = inlined_call_operand.vmem [shape: f32[2,1], index: 8, kind: output, shape index: {1}]
  %9 = xla_tuple %s7, %s8
  %s10 = sld [smem:[#allocation0]]
  $region46: #{resnet_forward.3} parent=0
    _
  %s12 = ssub.s32 1, %s10
  %s13 = scalar_select 0, %s12, %s10
  %v14 = vstv %s5
  %15 = vst [vmem:[#allocation2] sm:$0x1] %v14
  %v16 = vstv %s6
  %17 = vst [vmem:[#allocation3] sm:$0x1] %v16
  $region1: #{resnet_forward.3} parent=0
    #allocation4 [shape = 'u8[1024]{0}', space=vmem, size = 0x400, scoped, tag = 'output window, operand 0, single buffered']
    #allocation5 [shape = 's32[1]{0}', space=sflag, size = 0x4, scoped, tag = 'scoped memory for resnet_forward.3']
    %18 = vsyncpa [#allocation5], 0
    // Predicated region
    $region2: #{resnet_forward.3} parent=1 // pred_check
      _
    $region3: #{resnet_forward.3} parent=1 // pred_check_branch
      %20 = sbr.rel (0) target = $region5
    $region4: #{resnet_forward.3} parent=1 // pred_region
      _
    $region5: #{resnet_forward.3} parent=1 // pred_fallthru
      _
    // Predicated region
    $region6: #{resnet_forward.3} parent=1 // pred_check
      _
    $region7: #{resnet_forward.3} parent=1 // pred_check_branch
      %22 = sbr.rel (0) target = $region9
    $region8: #{resnet_forward.3} parent=1 // pred_region
      _
    $region9: #{resnet_forward.3} parent=1 // pred_fallthru
      _
    // Predicated region
    $region10: #{resnet_forward.3} parent=1 // pred_check
      _
    $region11: #{resnet_forward.3} parent=1 // pred_check_branch
      %24 = sbr.rel (0) target = $region13
    $region12: #{resnet_forward.3} parent=1 // pred_region
      _
    $region13: #{resnet_forward.3} parent=1 // pred_fallthru
      _
    // Predicated region
    $region14: #{resnet_forward.3} parent=1 // pred_check
      _
    $region15: #{resnet_forward.3} parent=1 // pred_check_branch
      %26 = sbr.rel (0) target = $region17
    $region16: #{resnet_forward.3} parent=1 // pred_region
      _
    $region17: #{resnet_forward.3} parent=1 // pred_fallthru
      _
    // Predicated region
    $region18: #{resnet_forward.3} parent=1 // pred_check
      _
    $region19: #{resnet_forward.3} parent=1 // pred_check_branch
      %28 = sbr.rel (0) target = $region21
    $region20: #{resnet_forward.3} parent=1 // pred_region
      _
    $region21: #{resnet_forward.3} parent=1 // pred_fallthru
      _
    // Predicated region
    $region22: #{resnet_forward.3} parent=1 // pred_check
      _
    $region23: #{resnet_forward.3} parent=1 // pred_check_branch
      %30 = sbr.rel (0) target = $region25
    $region24: #{resnet_forward.3} parent=1 // pred_region
      _
    $region25: #{resnet_forward.3} parent=1 // pred_fallthru
      _
    // Predicated region
    $region26: #{resnet_forward.3} parent=1 // pred_check
      _
    $region27: #{resnet_forward.3} parent=1 // pred_check_branch
      %32 = sbr.rel (0) target = $region29
    $region28: #{resnet_forward.3} parent=1 // pred_region
      _
    $region29: #{resnet_forward.3} parent=1 // pred_fallthru
      _
    %v33 = vld [vmem:[%s0] sm:$0xff]
    %v34 = vld [vmem:[%s0 + $0x8] sm:$0xff]
    %v35 = vld [vmem:[%s0 + $0x10] sm:$0xff]
    %v36 = vld [vmem:[%s0 + $0x18] sm:$0xff]
    %v37 = vld [vmem:[%s1] sm:$0xff]
    %v38 = vld [vmem:[%s1 + $0x8] sm:$0xff]
    %v39 = vld [vmem:[%s1 + $0x10] sm:$0xff]
    %v40 = vld [vmem:[%s1 + $0x18] sm:$0xff]
    %v41 = vld [vmem:[%s1 + $0x20] sm:$0xff]
    %v42 = vld [vmem:[%s1 + $0x28] sm:$0xff]
    %v43 = vld [vmem:[%s1 + $0x30] sm:$0xff]
    %v44 = vld [vmem:[%s1 + $0x38] sm:$0xff]
    %v45 = vld [vmem:[%s1 + $0x40] sm:$0xff]
    %v46 = vld [vmem:[%s1 + $0x48] sm:$0xff]
    %v47 = vld [vmem:[%s1 + $0x50] sm:$0xff]
    %v48 = vld [vmem:[%s1 + $0x58] sm:$0xff]
    %v49 = vld [vmem:[%s1 + $0x60] sm:$0xff]
    %v50 = vld [vmem:[%s1 + $0x68] sm:$0xff]
    %v51 = vld [vmem:[%s1 + $0x70] sm:$0xff]
    %v52 = vld [vmem:[%s1 + $0x78] sm:$0xff]
    %v53 = vld [vmem:[%s1 + $0x80] sm:$0xff]
    %v54 = vld [vmem:[%s1 + $0x88] sm:$0xff]
    %v55 = vld [vmem:[%s1 + $0x90] sm:$0xff]
    %v56 = vld [vmem:[%s1 + $0x98] sm:$0xff]
    %v57 = vld [vmem:[%s1 + $0xa0] sm:$0xff]
    %v58 = vld [vmem:[%s1 + $0xa8] sm:$0xff]
    %v59 = vld [vmem:[%s1 + $0xb0] sm:$0xff]
    %v60 = vld [vmem:[%s1 + $0xb8] sm:$0xff]
    %v61 = vld [vmem:[%s1 + $0xc0] sm:$0xff]
    %v62 = vld [vmem:[%s1 + $0xc8] sm:$0xff]
    %v63 = vld [vmem:[%s1 + $0xd0] sm:$0xff]
    %v64 = vld [vmem:[%s1 + $0xd8] sm:$0xff]
    %v65 = vld [vmem:[%s1 + $0xe0] sm:$0xff]
    %v66 = vld [vmem:[%s1 + $0xe8] sm:$0xff]
    %v67 = vld [vmem:[%s1 + $0xf0] sm:$0xff]
    %v68 = vld [vmem:[%s1 + $0xf8] sm:$0xff]
    %v69 = vld [vmem:[%s1 + $0x100] sm:$0xff]
    %v70 = vld [vmem:[%s1 + $0x108] sm:$0xff]
    %v71 = vld [vmem:[%s1 + $0x110] sm:$0xff]
    %v72 = vld [vmem:[%s1 + $0x118] sm:$0xff]
    %v73 = vld [vmem:[%s1 + $0x120] sm:$0xff]
    %v74 = vld [vmem:[%s1 + $0x128] sm:$0xff]
    %v75 = vld [vmem:[%s1 + $0x130] sm:$0xff]
    %v76 = vld [vmem:[%s1 + $0x138] sm:$0xff]
    %v77 = vld [vmem:[%s1 + $0x140] sm:$0xff]
    %v78 = vld [vmem:[%s1 + $0x148] sm:$0xff]
    %v79 = vld [vmem:[%s1 + $0x150] sm:$0xff]
    %v80 = vld [vmem:[%s1 + $0x158] sm:$0xff]
    %v81 = vld [vmem:[%s1 + $0x160] sm:$0xff]
    %v82 = vld [vmem:[%s1 + $0x168] sm:$0xff]
    %v83 = vld [vmem:[%s1 + $0x170] sm:$0xff]
    %v84 = vld [vmem:[%s1 + $0x178] sm:$0xff]
    %v85 = vld [vmem:[%s1 + $0x180] sm:$0xff]
    %v86 = vld [vmem:[%s1 + $0x188] sm:$0xff]
    %v87 = vld [vmem:[%s1 + $0x190] sm:$0xff]
    %v88 = vld [vmem:[%s1 + $0x198] sm:$0xff]
    %v89 = vld [vmem:[%s1 + $0x1a0] sm:$0xff]
    %v90 = vld [vmem:[%s1 + $0x1a8] sm:$0xff]
    %v91 = vld [vmem:[%s1 + $0x1b0] sm:$0xff]
    %v92 = vld [vmem:[%s1 + $0x1b8] sm:$0xff]
    %v93 = vld [vmem:[%s1 + $0x1c0] sm:$0xff]
    %v94 = vld [vmem:[%s1 + $0x1c8] sm:$0xff]
    %v95 = vld [vmem:[%s1 + $0x1d0] sm:$0xff]
    %v96 = vld [vmem:[%s1 + $0x1d8] sm:$0xff]
    %v97 = vld [vmem:[%s1 + $0x1e0] sm:$0xff]
    %v98 = vld [vmem:[%s1 + $0x1e8] sm:$0xff]
    %v99 = vld [vmem:[%s1 + $0x1f0] sm:$0xff]
    %v100 = vld [vmem:[%s1 + $0x1f8] sm:$0xff]
    %v101 = vld [vmem:[%s1 + $0x200] sm:$0xff]
    %v102 = vld [vmem:[%s1 + $0x208] sm:$0xff]
    %v103 = vld [vmem:[%s1 + $0x210] sm:$0xff]
    %v104 = vld [vmem:[%s1 + $0x218] sm:$0xff]
    %v105 = vld [vmem:[%s1 + $0x220] sm:$0xff]
    %v106 = vld [vmem:[%s1 + $0x228] sm:$0xff]
    %v107 = vld [vmem:[%s1 + $0x230] sm:$0xff]
    %v108 = vld [vmem:[%s1 + $0x238] sm:$0xff]
    %v109 = vld [vmem:[%s1 + $0x240] sm:$0xff]
    %v110 = vld [vmem:[%s1 + $0x248] sm:$0xff]
    %v111 = vld [vmem:[%s1 + $0x250] sm:$0xff]
    %v112 = vld [vmem:[%s1 + $0x258] sm:$0xff]
    %v113 = vld [vmem:[%s1 + $0x260] sm:$0xff]
    %v114 = vld [vmem:[%s1 + $0x268] sm:$0xff]
    %v115 = vld [vmem:[%s1 + $0x270] sm:$0xff]
    %v116 = vld [vmem:[%s1 + $0x278] sm:$0xff]
    %v117 = vld [vmem:[%s1 + $0x280] sm:$0xff]
    %v118 = vld [vmem:[%s1 + $0x288] sm:$0xff]
    %v119 = vld [vmem:[%s1 + $0x290] sm:$0xff]
    %v120 = vld [vmem:[%s1 + $0x298] sm:$0xff]
    %v121 = vld [vmem:[%s1 + $0x2a0] sm:$0xff]
    %v122 = vld [vmem:[%s1 + $0x2a8] sm:$0xff]
    %v123 = vld [vmem:[%s1 + $0x2b0] sm:$0xff]
    %v124 = vld [vmem:[%s1 + $0x2b8] sm:$0xff]
    %v125 = vld [vmem:[%s1 + $0x2c0] sm:$0xff]
    %v126 = vld [vmem:[%s1 + $0x2c8] sm:$0xff]
    %v127 = vld [vmem:[%s1 + $0x2d0] sm:$0xff]
    %v128 = vld [vmem:[%s1 + $0x2d8] sm:$0xff]
    %v129 = vld [vmem:[%s1 + $0x2e0] sm:$0xff]
    %v130 = vld [vmem:[%s1 + $0x2e8] sm:$0xff]
    %v131 = vld [vmem:[%s1 + $0x2f0] sm:$0xff]
    %v132 = vld [vmem:[%s1 + $0x2f8] sm:$0xff]
    %v133 = vld [vmem:[%s1 + $0x300] sm:$0xff]
    %v134 = vld [vmem:[%s1 + $0x308] sm:$0xff]
    %v135 = vld [vmem:[%s1 + $0x310] sm:$0xff]
    %v136 = vld [vmem:[%s1 + $0x318] sm:$0xff]
    %v137 = vld [vmem:[%s1 + $0x320] sm:$0xff]
    %v138 = vld [vmem:[%s1 + $0x328] sm:$0xff]
    %v139 = vld [vmem:[%s1 + $0x330] sm:$0xff]
    %v140 = vld [vmem:[%s1 + $0x338] sm:$0xff]
    %v141 = vld [vmem:[%s1 + $0x340] sm:$0xff]
    %v142 = vld [vmem:[%s1 + $0x348] sm:$0xff]
    %v143 = vld [vmem:[%s1 + $0x350] sm:$0xff]
    %v144 = vld [vmem:[%s1 + $0x358] sm:$0xff]
    %v145 = vld [vmem:[%s1 + $0x360] sm:$0xff]
    %v146 = vld [vmem:[%s1 + $0x368] sm:$0xff]
    %v147 = vld [vmem:[%s1 + $0x370] sm:$0xff]
    %v148 = vld [vmem:[%s1 + $0x378] sm:$0xff]
    %v149 = vld [vmem:[%s1 + $0x380] sm:$0xff]
    %v150 = vld [vmem:[%s1 + $0x388] sm:$0xff]
    %v151 = vld [vmem:[%s1 + $0x390] sm:$0xff]
    %v152 = vld [vmem:[%s1 + $0x398] sm:$0xff]
    %v153 = vld [vmem:[%s1 + $0x3a0] sm:$0xff]
    %v154 = vld [vmem:[%s1 + $0x3a8] sm:$0xff]
    %v155 = vld [vmem:[%s1 + $0x3b0] sm:$0xff]
    %v156 = vld [vmem:[%s1 + $0x3b8] sm:$0xff]
    %v157 = vld [vmem:[%s1 + $0x3c0] sm:$0xff]
    %v158 = vld [vmem:[%s1 + $0x3c8] sm:$0xff]
    %v159 = vld [vmem:[%s1 + $0x3d0] sm:$0xff]
    %v160 = vld [vmem:[%s1 + $0x3d8] sm:$0xff]
    %v161 = vld [vmem:[%s1 + $0x3e0] sm:$0xff]
    %v162 = vld [vmem:[%s1 + $0x3e8] sm:$0xff]
    %v163 = vld [vmem:[%s1 + $0x3f0] sm:$0xff]
    %v164 = vld [vmem:[%s1 + $0x3f8] sm:$0xff]
    %v165 = vld [vmem:[%s1 + $0x400] sm:$0xff]
    %v166 = vld [vmem:[%s1 + $0x408] sm:$0xff]
    %v167 = vld [vmem:[%s1 + $0x410] sm:$0xff]
    %v168 = vld [vmem:[%s1 + $0x418] sm:$0xff]
    %v169 = vld [vmem:[%s1 + $0x420] sm:$0xff]
    %v170 = vld [vmem:[%s1 + $0x428] sm:$0xff]
    %v171 = vld [vmem:[%s1 + $0x430] sm:$0xff]
    %v172 = vld [vmem:[%s1 + $0x438] sm:$0xff]
    %v173 = vld [vmem:[%s1 + $0x440] sm:$0xff]
    %v174 = vld [vmem:[%s1 + $0x448] sm:$0xff]
    %v175 = vld [vmem:[%s1 + $0x450] sm:$0xff]
    %v176 = vld [vmem:[%s1 + $0x458] sm:$0xff]
    %v177 = vld [vmem:[%s1 + $0x460] sm:$0xff]
    %v178 = vld [vmem:[%s1 + $0x468] sm:$0xff]
    %v179 = vld [vmem:[%s1 + $0x470] sm:$0xff]
    %v180 = vld [vmem:[%s1 + $0x478] sm:$0xff]
    %v181 = vld [vmem:[%s1 + $0x480] sm:$0xff]
    %v182 = vld [vmem:[%s1 + $0x488] sm:$0xff]
    %v183 = vld [vmem:[%s1 + $0x490] sm:$0xff]
    %v184 = vld [vmem:[%s1 + $0x498] sm:$0xff]
    %v185 = vld [vmem:[%s1 + $0x4a0] sm:$0xff]
    %v186 = vld [vmem:[%s1 + $0x4a8] sm:$0xff]
    %v187 = vld [vmem:[%s1 + $0x4b0] sm:$0xff]
    %v188 = vld [vmem:[%s1 + $0x4b8] sm:$0xff]
    %v189 = vld [vmem:[%s1 + $0x4c0] sm:$0xff]
    %v190 = vld [vmem:[%s1 + $0x4c8] sm:$0xff]
    %v191 = vld [vmem:[%s1 + $0x4d0] sm:$0xff]
    %v192 = vld [vmem:[%s1 + $0x4d8] sm:$0xff]
    %v193 = vld [vmem:[%s1 + $0x4e0] sm:$0xff]
    %v194 = vld [vmem:[%s1 + $0x4e8] sm:$0xff]
    %v195 = vld [vmem:[%s1 + $0x4f0] sm:$0xff]
    %v196 = vld [vmem:[%s1 + $0x4f8] sm:$0xff]
    %v197 = vld [vmem:[%s1 + $0x500] sm:$0xff]
    %v198 = vld [vmem:[%s1 + $0x508] sm:$0xff]
    %v199 = vld [vmem:[%s1 + $0x510] sm:$0xff]
    %v200 = vld [vmem:[%s1 + $0x518] sm:$0xff]
    %v201 = vld [vmem:[%s1 + $0x520] sm:$0xff]
    %v202 = vld [vmem:[%s1 + $0x528] sm:$0xff]
    %v203 = vld [vmem:[%s1 + $0x530] sm:$0xff]
    %v204 = vld [vmem:[%s1 + $0x538] sm:$0xff]
    %v205 = vld [vmem:[%s1 + $0x540] sm:$0xff]
    %v206 = vld [vmem:[%s1 + $0x548] sm:$0xff]
    %v207 = vld [vmem:[%s1 + $0x550] sm:$0xff]
    %v208 = vld [vmem:[%s1 + $0x558] sm:$0xff]
    %v209 = vld [vmem:[%s1 + $0x560] sm:$0xff]
    %v210 = vld [vmem:[%s1 + $0x568] sm:$0xff]
    %v211 = vld [vmem:[%s1 + $0x570] sm:$0xff]
    %v212 = vld [vmem:[%s1 + $0x578] sm:$0xff]
    %v213 = vld [vmem:[%s1 + $0x580] sm:$0xff]
    %v214 = vld [vmem:[%s1 + $0x588] sm:$0xff]
    %v215 = vld [vmem:[%s1 + $0x590] sm:$0xff]
    %v216 = vld [vmem:[%s1 + $0x598] sm:$0xff]
    %v217 = vld [vmem:[%s1 + $0x5a0] sm:$0xff]
    %v218 = vld [vmem:[%s1 + $0x5a8] sm:$0xff]
    %v219 = vld [vmem:[%s1 + $0x5b0] sm:$0xff]
    %v220 = vld [vmem:[%s1 + $0x5b8] sm:$0xff]
    %v221 = vld [vmem:[%s1 + $0x5c0] sm:$0xff]
    %v222 = vld [vmem:[%s1 + $0x5c8] sm:$0xff]
    %v223 = vld [vmem:[%s1 + $0x5d0] sm:$0xff]
    %v224 = vld [vmem:[%s1 + $0x5d8] sm:$0xff]
    %v225 = vld [vmem:[%s1 + $0x5e0] sm:$0xff]
    %v226 = vld [vmem:[%s1 + $0x5e8] sm:$0xff]
    %v227 = vld [vmem:[%s1 + $0x5f0] sm:$0xff]
    %v228 = vld [vmem:[%s1 + $0x5f8] sm:$0xff]
    %v229 = vld [vmem:[%s1 + $0x600] sm:$0xff]
    %v230 = vld [vmem:[%s1 + $0x608] sm:$0xff]
    %v231 = vld [vmem:[%s1 + $0x610] sm:$0xff]
    %v232 = vld [vmem:[%s1 + $0x618] sm:$0xff]
    %v233 = vld [vmem:[%s1 + $0x620] sm:$0xff]
    %v234 = vld [vmem:[%s1 + $0x628] sm:$0xff]
    %v235 = vld [vmem:[%s1 + $0x630] sm:$0xff]
    %v236 = vld [vmem:[%s1 + $0x638] sm:$0xff]
    %v237 = vld [vmem:[%s1 + $0x640] sm:$0xff]
    %v238 = vld [vmem:[%s1 + $0x648] sm:$0xff]
    %v239 = vld [vmem:[%s1 + $0x650] sm:$0xff]
    %v240 = vld [vmem:[%s1 + $0x658] sm:$0xff]
    %v241 = vld [vmem:[%s1 + $0x660] sm:$0xff]
    %v242 = vld [vmem:[%s1 + $0x668] sm:$0xff]
    %v243 = vld [vmem:[%s1 + $0x670] sm:$0xff]
    %v244 = vld [vmem:[%s1 + $0x678] sm:$0xff]
    %v245 = vld [vmem:[%s1 + $0x680] sm:$0xff]
    %v246 = vld [vmem:[%s1 + $0x688] sm:$0xff]
    %v247 = vld [vmem:[%s1 + $0x690] sm:$0xff]
    %v248 = vld [vmem:[%s1 + $0x698] sm:$0xff]
    %v249 = vld [vmem:[%s1 + $0x6a0] sm:$0xff]
    %v250 = vld [vmem:[%s1 + $0x6a8] sm:$0xff]
    %v251 = vld [vmem:[%s1 + $0x6b0] sm:$0xff]
    %v252 = vld [vmem:[%s1 + $0x6b8] sm:$0xff]
    %v253 = vld [vmem:[%s1 + $0x6c0] sm:$0xff]
    %v254 = vld [vmem:[%s1 + $0x6c8] sm:$0xff]
    %v255 = vld [vmem:[%s1 + $0x6d0] sm:$0xff]
    %v256 = vld [vmem:[%s1 + $0x6d8] sm:$0xff]
    %v257 = vld [vmem:[%s1 + $0x6e0] sm:$0xff]
    %v258 = vld [vmem:[%s1 + $0x6e8] sm:$0xff]
    %v259 = vld [vmem:[%s1 + $0x6f0] sm:$0xff]
    %v260 = vld [vmem:[%s1 + $0x6f8] sm:$0xff]
    %v261 = vld [vmem:[%s1 + $0x700] sm:$0xff]
    %v262 = vld [vmem:[%s1 + $0x708] sm:$0xff]
    %v263 = vld [vmem:[%s1 + $0x710] sm:$0xff]
    %v264 = vld [vmem:[%s1 + $0x718] sm:$0xff]
    %v265 = vld [vmem:[%s1 + $0x720] sm:$0xff]
    %v266 = vld [vmem:[%s1 + $0x728] sm:$0xff]
    %v267 = vld [vmem:[%s1 + $0x730] sm:$0xff]
    %v268 = vld [vmem:[%s1 + $0x738] sm:$0xff]
    %v269 = vld [vmem:[%s1 + $0x740] sm:$0xff]
    %v270 = vld [vmem:[%s1 + $0x748] sm:$0xff]
    %v271 = vld [vmem:[%s1 + $0x750] sm:$0xff]
    %v272 = vld [vmem:[%s1 + $0x758] sm:$0xff]
    %v273 = vld [vmem:[%s1 + $0x760] sm:$0xff]
    %v274 = vld [vmem:[%s1 + $0x768] sm:$0xff]
    %v275 = vld [vmem:[%s1 + $0x770] sm:$0xff]
    %v276 = vld [vmem:[%s1 + $0x778] sm:$0xff]
    %v277 = vld [vmem:[%s1 + $0x780] sm:$0xff]
    %v278 = vld [vmem:[%s1 + $0x788] sm:$0xff]
    %v279 = vld [vmem:[%s1 + $0x790] sm:$0xff]
    %v280 = vld [vmem:[%s1 + $0x798] sm:$0xff]
    %v281 = vld [vmem:[%s1 + $0x7a0] sm:$0xff]
    %v282 = vld [vmem:[%s1 + $0x7a8] sm:$0xff]
    %v283 = vld [vmem:[%s1 + $0x7b0] sm:$0xff]
    %v284 = vld [vmem:[%s1 + $0x7b8] sm:$0xff]
    %v285 = vld [vmem:[%s1 + $0x7c0] sm:$0xff]
    %v286 = vld [vmem:[%s1 + $0x7c8] sm:$0xff]
    %v287 = vld [vmem:[%s1 + $0x7d0] sm:$0xff]
    %v288 = vld [vmem:[%s1 + $0x7d8] sm:$0xff]
    %v289 = vld [vmem:[%s1 + $0x7e0] sm:$0xff]
    %v290 = vld [vmem:[%s1 + $0x7e8] sm:$0xff]
    %v291 = vld [vmem:[%s1 + $0x7f0] sm:$0xff]
    %v292 = vld [vmem:[%s1 + $0x7f8] sm:$0xff]
    %v293 = vld [vmem:[%s2] sm:$0x1]
    %v295 = vlaneseq
    %v296 = vshrl.u32 %v295, 7
    %v297 = vsub.s32 0, %v296
    %v298 = vrot.slane %v293, %v297
    %v304 = vcombine.high %v33, %v33
    %v306 = vunpack.c.l.s4 1983009808
    %v307 = vunpack.c.0.s8 %v306
    %v308 = vlaneseq
    %v309 = vshrl.u32 %v308, 7
    %v310 = vsub.s32 %v307, %v309
    %v311 = vrot.slane %v33, %v310
    %v313 = vunpack.c.l.s4 1983009808
    %v314 = vunpack.c.0.s8 %v313
    %v315 = vlaneseq
    %v316 = vshrl.u32 %v315, 7
    %v317 = vsub.s32 %v314, %v316
    %v318 = vrot.slane %v304, %v317
    %v319 = vcombine.high %v311, %v311
    %v320 = vcombine.high %v318, %v318
    %v321 = vcombine.high %v34, %v34
    %v323 = vunpack.c.l.s4 1983009808
    %v324 = vunpack.c.0.s8 %v323
    %v325 = vlaneseq
    %v326 = vshrl.u32 %v325, 7
    %v327 = vsub.s32 %v324, %v326
    %v328 = vrot.slane %v34, %v327
    %v330 = vunpack.c.l.s4 1983009808
    %v331 = vunpack.c.0.s8 %v330
    %v332 = vlaneseq
    %v333 = vshrl.u32 %v332, 7
    %v334 = vsub.s32 %v331, %v333
    %v335 = vrot.slane %v321, %v334
    %v336 = vcombine.high %v328, %v328
    %v337 = vcombine.high %v335, %v335
    %v338 = vcombine.high %v35, %v35
    %v340 = vunpack.c.l.s4 1983009808
    %v341 = vunpack.c.0.s8 %v340
    %v342 = vlaneseq
    %v343 = vshrl.u32 %v342, 7
    %v344 = vsub.s32 %v341, %v343
    %v345 = vrot.slane %v35, %v344
    %v347 = vunpack.c.l.s4 1983009808
    %v348 = vunpack.c.0.s8 %v347
    %v349 = vlaneseq
    %v350 = vshrl.u32 %v349, 7
    %v351 = vsub.s32 %v348, %v350
    %v352 = vrot.slane %v338, %v351
    %v353 = vcombine.high %v345, %v345
    %v354 = vcombine.high %v352, %v352
    %v355 = vcombine.high %v36, %v36
    %v357 = vunpack.c.l.s4 1983009808
    %v358 = vunpack.c.0.s8 %v357
    %v359 = vlaneseq
    %v360 = vshrl.u32 %v359, 7
    %v361 = vsub.s32 %v358, %v360
    %v362 = vrot.slane %v36, %v361
    %v364 = vunpack.c.l.s4 1983009808
    %v365 = vunpack.c.0.s8 %v364
    %v366 = vlaneseq
    %v367 = vshrl.u32 %v366, 7
    %v368 = vsub.s32 %v365, %v367
    %v369 = vrot.slane %v355, %v368
    %v370 = vcombine.high %v362, %v362
    %v371 = vcombine.high %v369, %v369
    %388 = vmatprep.subr.mxu0 0.0
    %389 = vmatpush1.msra.mxu0 %v37
    %390 = vmatprep.subr.mxu0 0.0
    %391 = vmatpush1.msra.mxu0 %v38
    %392 = vmatprep.subr.mxu0 0.0
    %393 = vmatpush1.msra.mxu0 %v39
    %394 = vmatprep.subr.mxu0 0.0
    %395 = vmatpush1.msra.mxu0 %v40
    %396 = vmatprep.subr.mxu0 0.0
    %397 = vmatpush1.msra.mxu0 %v41
    %398 = vmatprep.subr.mxu0 0.0
    %399 = vmatpush1.msra.mxu0 %v42
    %400 = vmatprep.subr.mxu0 0.0
    %401 = vmatpush1.msra.mxu0 %v43
    %402 = vmatprep.subr.mxu0 0.0
    %403 = vmatpush1.msra.mxu0 %v44
    %404 = vmatprep.subr.mxu0 0.0
    %405 = vmatpush1.msra.mxu0 %v45
    %406 = vmatprep.subr.mxu0 0.0
    %407 = vmatpush1.msra.mxu0 %v46
    %408 = vmatprep.subr.mxu0 0.0
    %409 = vmatpush1.msra.mxu0 %v47
    %410 = vmatprep.subr.mxu0 0.0
    %411 = vmatpush1.msra.mxu0 %v48
    %412 = vmatprep.subr.mxu0 0.0
    %413 = vmatpush1.msra.mxu0 %v49
    %414 = vmatprep.subr.mxu0 0.0
    %415 = vmatpush1.msra.mxu0 %v50
    %416 = vmatprep.subr.mxu0 0.0
    %417 = vmatpush1.msra.mxu0 %v51
    %418 = vmatprep.subr.mxu0 0.0
    %419 = vmatpush1.msra.mxu0 %v52
    %420 = vmatprep.subr.mxu0 0.0
    %421 = vmatpush1.msra.mxu0 %v53
    %422 = vmatprep.subr.mxu0 0.0
    %423 = vmatpush1.msra.mxu0 %v54
    %424 = vmatprep.subr.mxu0 0.0
    %425 = vmatpush1.msra.mxu0 %v55
    %426 = vmatprep.subr.mxu0 0.0
    %427 = vmatpush1.msra.mxu0 %v56
    %428 = vmatprep.subr.mxu0 0.0
    %429 = vmatpush1.msra.mxu0 %v57
    %430 = vmatprep.subr.mxu0 0.0
    %431 = vmatpush1.msra.mxu0 %v58
    %432 = vmatprep.subr.mxu0 0.0
    %433 = vmatpush1.msra.mxu0 %v59
    %434 = vmatprep.subr.mxu0 0.0
    %435 = vmatpush1.msra.mxu0 %v60
    %436 = vmatprep.subr.mxu0 0.0
    %437 = vmatpush1.msra.mxu0 %v61
    %438 = vmatprep.subr.mxu0 0.0
    %439 = vmatpush1.msra.mxu0 %v62
    %440 = vmatprep.subr.mxu0 0.0
    %441 = vmatpush1.msra.mxu0 %v63
    %442 = vmatprep.subr.mxu0 0.0
    %443 = vmatpush1.msra.mxu0 %v64
    %444 = vmatprep.subr.mxu0 0.0
    %445 = vmatpush1.msra.mxu0 %v65
    %446 = vmatprep.subr.mxu0 0.0
    %447 = vmatpush1.msra.mxu0 %v66
    %448 = vmatprep.subr.mxu0 0.0
    %449 = vmatpush1.msra.mxu0 %v67
    %450 = vmatprep.subr.mxu0 0.0
    %451 = vmatpush1.msra.mxu0 %v68
    %452 = vmatprep.mubr.f32.mxu0 %v319
    %453 = vmatmul.mubr.f32.gmra.mrb[0].mxu0 %v311
    %v454 = vpop.f32.mrb[0].mxu0
    %v455 = vadd.f32 %v298, %v454
    %v456 = vpop.f32.mrb[0].mxu0
    %457 = vdwg.mxu0
    %458 = vmatprep.subr.mxu0 0.0
    %459 = vmatpush1.msra.mxu0 %v69
    %460 = vmatprep.subr.mxu0 0.0
    %461 = vmatpush1.msra.mxu0 %v70
    %462 = vmatprep.subr.mxu0 0.0
    %463 = vmatpush1.msra.mxu0 %v71
    %464 = vmatprep.subr.mxu0 0.0
    %465 = vmatpush1.msra.mxu0 %v72
    %466 = vmatprep.subr.mxu0 0.0
    %467 = vmatpush1.msra.mxu0 %v73
    %468 = vmatprep.subr.mxu0 0.0
    %469 = vmatpush1.msra.mxu0 %v74
    %470 = vmatprep.subr.mxu0 0.0
    %471 = vmatpush1.msra.mxu0 %v75
    %472 = vmatprep.subr.mxu0 0.0
    %473 = vmatpush1.msra.mxu0 %v76
    %474 = vmatprep.subr.mxu0 0.0
    %475 = vmatpush1.msra.mxu0 %v77
    %476 = vmatprep.subr.mxu0 0.0
    %477 = vmatpush1.msra.mxu0 %v78
    %478 = vmatprep.subr.mxu0 0.0
    %479 = vmatpush1.msra.mxu0 %v79
    %480 = vmatprep.subr.mxu0 0.0
    %481 = vmatpush1.msra.mxu0 %v80
    %482 = vmatprep.subr.mxu0 0.0
    %483 = vmatpush1.msra.mxu0 %v81
    %484 = vmatprep.subr.mxu0 0.0
    %485 = vmatpush1.msra.mxu0 %v82
    %486 = vmatprep.subr.mxu0 0.0
    %487 = vmatpush1.msra.mxu0 %v83
    %488 = vmatprep.subr.mxu0 0.0
    %489 = vmatpush1.msra.mxu0 %v84
    %490 = vmatprep.subr.mxu0 0.0
    %491 = vmatpush1.msra.mxu0 %v85
    %492 = vmatprep.subr.mxu0 0.0
    %493 = vmatpush1.msra.mxu0 %v86
    %494 = vmatprep.subr.mxu0 0.0
    %495 = vmatpush1.msra.mxu0 %v87
    %496 = vmatprep.subr.mxu0 0.0
    %497 = vmatpush1.msra.mxu0 %v88
    %498 = vmatprep.subr.mxu0 0.0
    %499 = vmatpush1.msra.mxu0 %v89
    %500 = vmatprep.subr.mxu0 0.0
    %501 = vmatpush1.msra.mxu0 %v90
    %502 = vmatprep.subr.mxu0 0.0
    %503 = vmatpush1.msra.mxu0 %v91
    %504 = vmatprep.subr.mxu0 0.0
    %505 = vmatpush1.msra.mxu0 %v92
    %506 = vmatprep.subr.mxu0 0.0
    %507 = vmatpush1.msra.mxu0 %v93
    %508 = vmatprep.subr.mxu0 0.0
    %509 = vmatpush1.msra.mxu0 %v94
    %510 = vmatprep.subr.mxu0 0.0
    %511 = vmatpush1.msra.mxu0 %v95
    %512 = vmatprep.subr.mxu0 0.0
    %513 = vmatpush1.msra.mxu0 %v96
    %514 = vmatprep.subr.mxu0 0.0
    %515 = vmatpush1.msra.mxu0 %v97
    %516 = vmatprep.subr.mxu0 0.0
    %517 = vmatpush1.msra.mxu0 %v98
    %518 = vmatprep.subr.mxu0 0.0
    %519 = vmatpush1.msra.mxu0 %v99
    %520 = vmatprep.subr.mxu0 0.0
    %521 = vmatpush1.msra.mxu0 %v100
    %522 = vmatprep.mubr.f32.mxu0 %v320
    %523 = vmatmul.mubr.f32.gmra.mrb[0].mxu0 %v318
    %v524 = vpop.f32.mrb[0].mxu0
    %v525 = vadd.f32 %v455, %v524
    %v526 = vpop.f32.mrb[0].mxu0
    %527 = vdwg.mxu0
    %528 = vmatprep.subr.mxu0 0.0
    %529 = vmatpush1.msra.mxu0 %v101
    %530 = vmatprep.subr.mxu0 0.0
    %531 = vmatpush1.msra.mxu0 %v102
    %532 = vmatprep.subr.mxu0 0.0
    %533 = vmatpush1.msra.mxu0 %v103
    %534 = vmatprep.subr.mxu0 0.0
    %535 = vmatpush1.msra.mxu0 %v104
    %536 = vmatprep.subr.mxu0 0.0
    %537 = vmatpush1.msra.mxu0 %v105
    %538 = vmatprep.subr.mxu0 0.0
    %539 = vmatpush1.msra.mxu0 %v106
    %540 = vmatprep.subr.mxu0 0.0
    %541 = vmatpush1.msra.mxu0 %v107
    %542 = vmatprep.subr.mxu0 0.0
    %543 = vmatpush1.msra.mxu0 %v108
    %544 = vmatprep.subr.mxu0 0.0
    %545 = vmatpush1.msra.mxu0 %v109
    %546 = vmatprep.subr.mxu0 0.0
    %547 = vmatpush1.msra.mxu0 %v110
    %548 = vmatprep.subr.mxu0 0.0
    %549 = vmatpush1.msra.mxu0 %v111
    %550 = vmatprep.subr.mxu0 0.0
    %551 = vmatpush1.msra.mxu0 %v112
    %552 = vmatprep.subr.mxu0 0.0
    %553 = vmatpush1.msra.mxu0 %v113
    %554 = vmatprep.subr.mxu0 0.0
    %555 = vmatpush1.msra.mxu0 %v114
    %556 = vmatprep.subr.mxu0 0.0
    %557 = vmatpush1.msra.mxu0 %v115
    %558 = vmatprep.subr.mxu0 0.0
    %559 = vmatpush1.msra.mxu0 %v116
    %560 = vmatprep.subr.mxu0 0.0
    %561 = vmatpush1.msra.mxu0 %v117
    %562 = vmatprep.subr.mxu0 0.0
    %563 = vmatpush1.msra.mxu0 %v118
    %564 = vmatprep.subr.mxu0 0.0
    %565 = vmatpush1.msra.mxu0 %v119
    %566 = vmatprep.subr.mxu0 0.0
    %567 = vmatpush1.msra.mxu0 %v120
    %568 = vmatprep.subr.mxu0 0.0
    %569 = vmatpush1.msra.mxu0 %v121
    %570 = vmatprep.subr.mxu0 0.0
    %571 = vmatpush1.msra.mxu0 %v122
    %572 = vmatprep.subr.mxu0 0.0
    %573 = vmatpush1.msra.mxu0 %v123
    %574 = vmatprep.subr.mxu0 0.0
    %575 = vmatpush1.msra.mxu0 %v124
    %576 = vmatprep.subr.mxu0 0.0
    %577 = vmatpush1.msra.mxu0 %v125
    %578 = vmatprep.subr.mxu0 0.0
    %579 = vmatpush1.msra.mxu0 %v126
    %580 = vmatprep.subr.mxu0 0.0
    %581 = vmatpush1.msra.mxu0 %v127
    %582 = vmatprep.subr.mxu0 0.0
    %583 = vmatpush1.msra.mxu0 %v128
    %584 = vmatprep.subr.mxu0 0.0
    %585 = vmatpush1.msra.mxu0 %v129
    %586 = vmatprep.subr.mxu0 0.0
    %587 = vmatpush1.msra.mxu0 %v130
    %588 = vmatprep.subr.mxu0 0.0
    %589 = vmatpush1.msra.mxu0 %v131
    %590 = vmatprep.subr.mxu0 0.0
    %591 = vmatpush1.msra.mxu0 %v132
    %592 = vmatprep.mubr.f32.mxu0 %v336
    %593 = vmatmul.mubr.f32.gmra.mrb[0].mxu0 %v328
    %v594 = vpop.f32.mrb[0].mxu0
    %v595 = vadd.f32 %v525, %v594
    %v596 = vpop.f32.mrb[0].mxu0
    %597 = vdwg.mxu0
    %598 = vmatprep.subr.mxu0 0.0
    %599 = vmatpush1.msra.mxu0 %v133
    %600 = vmatprep.subr.mxu0 0.0
    %601 = vmatpush1.msra.mxu0 %v134
    %602 = vmatprep.subr.mxu0 0.0
    %603 = vmatpush1.msra.mxu0 %v135
    %604 = vmatprep.subr.mxu0 0.0
    %605 = vmatpush1.msra.mxu0 %v136
    %606 = vmatprep.subr.mxu0 0.0
    %607 = vmatpush1.msra.mxu0 %v137
    %608 = vmatprep.subr.mxu0 0.0
    %609 = vmatpush1.msra.mxu0 %v138
    %610 = vmatprep.subr.mxu0 0.0
    %611 = vmatpush1.msra.mxu0 %v139
    %612 = vmatprep.subr.mxu0 0.0
    %613 = vmatpush1.msra.mxu0 %v140
    %614 = vmatprep.subr.mxu0 0.0
    %615 = vmatpush1.msra.mxu0 %v141
    %616 = vmatprep.subr.mxu0 0.0
    %617 = vmatpush1.msra.mxu0 %v142
    %618 = vmatprep.subr.mxu0 0.0
    %619 = vmatpush1.msra.mxu0 %v143
    %620 = vmatprep.subr.mxu0 0.0
    %621 = vmatpush1.msra.mxu0 %v144
    %622 = vmatprep.subr.mxu0 0.0
    %623 = vmatpush1.msra.mxu0 %v145
    %624 = vmatprep.subr.mxu0 0.0
    %625 = vmatpush1.msra.mxu0 %v146
    %626 = vmatprep.subr.mxu0 0.0
    %627 = vmatpush1.msra.mxu0 %v147
    %628 = vmatprep.subr.mxu0 0.0
    %629 = vmatpush1.msra.mxu0 %v148
    %630 = vmatprep.subr.mxu0 0.0
    %631 = vmatpush1.msra.mxu0 %v149
    %632 = vmatprep.subr.mxu0 0.0
    %633 = vmatpush1.msra.mxu0 %v150
    %634 = vmatprep.subr.mxu0 0.0
    %635 = vmatpush1.msra.mxu0 %v151
    %636 = vmatprep.subr.mxu0 0.0
    %637 = vmatpush1.msra.mxu0 %v152
    %638 = vmatprep.subr.mxu0 0.0
    %639 = vmatpush1.msra.mxu0 %v153
    %640 = vmatprep.subr.mxu0 0.0
    %641 = vmatpush1.msra.mxu0 %v154
    %642 = vmatprep.subr.mxu0 0.0
    %643 = vmatpush1.msra.mxu0 %v155
    %644 = vmatprep.subr.mxu0 0.0
    %645 = vmatpush1.msra.mxu0 %v156
    %646 = vmatprep.subr.mxu0 0.0
    %647 = vmatpush1.msra.mxu0 %v157
    %648 = vmatprep.subr.mxu0 0.0
    %649 = vmatpush1.msra.mxu0 %v158
    %650 = vmatprep.subr.mxu0 0.0
    %651 = vmatpush1.msra.mxu0 %v159
    %652 = vmatprep.subr.mxu0 0.0
    %653 = vmatpush1.msra.mxu0 %v160
    %654 = vmatprep.subr.mxu0 0.0
    %655 = vmatpush1.msra.mxu0 %v161
    %656 = vmatprep.subr.mxu0 0.0
    %657 = vmatpush1.msra.mxu0 %v162
    %658 = vmatprep.subr.mxu0 0.0
    %659 = vmatpush1.msra.mxu0 %v163
    %660 = vmatprep.subr.mxu0 0.0
    %661 = vmatpush1.msra.mxu0 %v164
    %662 = vmatprep.mubr.f32.mxu0 %v337
    %663 = vmatmul.mubr.f32.gmra.mrb[0].mxu0 %v335
    %v664 = vpop.f32.mrb[0].mxu0
    %v665 = vadd.f32 %v595, %v664
    %v666 = vpop.f32.mrb[0].mxu0
    %667 = vdwg.mxu0
    %668 = vmatprep.subr.mxu0 0.0
    %669 = vmatpush1.msra.mxu0 %v165
    %670 = vmatprep.subr.mxu0 0.0
    %671 = vmatpush1.msra.mxu0 %v166
    %672 = vmatprep.subr.mxu0 0.0
    %673 = vmatpush1.msra.mxu0 %v167
    %674 = vmatprep.subr.mxu0 0.0
    %675 = vmatpush1.msra.mxu0 %v168
    %676 = vmatprep.subr.mxu0 0.0
    %677 = vmatpush1.msra.mxu0 %v169
    %678 = vmatprep.subr.mxu0 0.0
    %679 = vmatpush1.msra.mxu0 %v170
    %680 = vmatprep.subr.mxu0 0.0
    %681 = vmatpush1.msra.mxu0 %v171
    %682 = vmatprep.subr.mxu0 0.0
    %683 = vmatpush1.msra.mxu0 %v172
    %684 = vmatprep.subr.mxu0 0.0
    %685 = vmatpush1.msra.mxu0 %v173
    %686 = vmatprep.subr.mxu0 0.0
    %687 = vmatpush1.msra.mxu0 %v174
    %688 = vmatprep.subr.mxu0 0.0
    %689 = vmatpush1.msra.mxu0 %v175
    %690 = vmatprep.subr.mxu0 0.0
    %691 = vmatpush1.msra.mxu0 %v176
    %692 = vmatprep.subr.mxu0 0.0
    %693 = vmatpush1.msra.mxu0 %v177
    %694 = vmatprep.subr.mxu0 0.0
    %695 = vmatpush1.msra.mxu0 %v178
    %696 = vmatprep.subr.mxu0 0.0
    %697 = vmatpush1.msra.mxu0 %v179
    %698 = vmatprep.subr.mxu0 0.0
    %699 = vmatpush1.msra.mxu0 %v180
    %700 = vmatprep.subr.mxu0 0.0
    %701 = vmatpush1.msra.mxu0 %v181
    %702 = vmatprep.subr.mxu0 0.0
    %703 = vmatpush1.msra.mxu0 %v182
    %704 = vmatprep.subr.mxu0 0.0
    %705 = vmatpush1.msra.mxu0 %v183
    %706 = vmatprep.subr.mxu0 0.0
    %707 = vmatpush1.msra.mxu0 %v184
    %708 = vmatprep.subr.mxu0 0.0
    %709 = vmatpush1.msra.mxu0 %v185
    %710 = vmatprep.subr.mxu0 0.0
    %711 = vmatpush1.msra.mxu0 %v186
    %712 = vmatprep.subr.mxu0 0.0
    %713 = vmatpush1.msra.mxu0 %v187
    %714 = vmatprep.subr.mxu0 0.0
    %715 = vmatpush1.msra.mxu0 %v188
    %716 = vmatprep.subr.mxu0 0.0
    %717 = vmatpush1.msra.mxu0 %v189
    %718 = vmatprep.subr.mxu0 0.0
    %719 = vmatpush1.msra.mxu0 %v190
    %720 = vmatprep.subr.mxu0 0.0
    %721 = vmatpush1.msra.mxu0 %v191
    %722 = vmatprep.subr.mxu0 0.0
    %723 = vmatpush1.msra.mxu0 %v192
    %724 = vmatprep.subr.mxu0 0.0
    %725 = vmatpush1.msra.mxu0 %v193
    %726 = vmatprep.subr.mxu0 0.0
    %727 = vmatpush1.msra.mxu0 %v194
    %728 = vmatprep.subr.mxu0 0.0
    %729 = vmatpush1.msra.mxu0 %v195
    %730 = vmatprep.subr.mxu0 0.0
    %731 = vmatpush1.msra.mxu0 %v196
    %732 = vmatprep.mubr.f32.mxu0 %v353
    %733 = vmatmul.mubr.f32.gmra.mrb[0].mxu0 %v345
    %v734 = vpop.f32.mrb[0].mxu0
    %v735 = vadd.f32 %v665, %v734
    %v736 = vpop.f32.mrb[0].mxu0
    %737 = vdwg.mxu0
    %738 = vmatprep.subr.mxu0 0.0
    %739 = vmatpush1.msra.mxu0 %v197
    %740 = vmatprep.subr.mxu0 0.0
    %741 = vmatpush1.msra.mxu0 %v198
    %742 = vmatprep.subr.mxu0 0.0
    %743 = vmatpush1.msra.mxu0 %v199
    %744 = vmatprep.subr.mxu0 0.0
    %745 = vmatpush1.msra.mxu0 %v200
    %746 = vmatprep.subr.mxu0 0.0
    %747 = vmatpush1.msra.mxu0 %v201
    %748 = vmatprep.subr.mxu0 0.0
    %749 = vmatpush1.msra.mxu0 %v202
    %750 = vmatprep.subr.mxu0 0.0
    %751 = vmatpush1.msra.mxu0 %v203
    %752 = vmatprep.subr.mxu0 0.0
    %753 = vmatpush1.msra.mxu0 %v204
    %754 = vmatprep.subr.mxu0 0.0
    %755 = vmatpush1.msra.mxu0 %v205
    %756 = vmatprep.subr.mxu0 0.0
    %757 = vmatpush1.msra.mxu0 %v206
    %758 = vmatprep.subr.mxu0 0.0
    %759 = vmatpush1.msra.mxu0 %v207
    %760 = vmatprep.subr.mxu0 0.0
    %761 = vmatpush1.msra.mxu0 %v208
    %762 = vmatprep.subr.mxu0 0.0
    %763 = vmatpush1.msra.mxu0 %v209
    %764 = vmatprep.subr.mxu0 0.0
    %765 = vmatpush1.msra.mxu0 %v210
    %766 = vmatprep.subr.mxu0 0.0
    %767 = vmatpush1.msra.mxu0 %v211
    %768 = vmatprep.subr.mxu0 0.0
    %769 = vmatpush1.msra.mxu0 %v212
    %770 = vmatprep.subr.mxu0 0.0
    %771 = vmatpush1.msra.mxu0 %v213
    %772 = vmatprep.subr.mxu0 0.0
    %773 = vmatpush1.msra.mxu0 %v214
    %774 = vmatprep.subr.mxu0 0.0
    %775 = vmatpush1.msra.mxu0 %v215
    %776 = vmatprep.subr.mxu0 0.0
    %777 = vmatpush1.msra.mxu0 %v216
    %778 = vmatprep.subr.mxu0 0.0
    %779 = vmatpush1.msra.mxu0 %v217
    %780 = vmatprep.subr.mxu0 0.0
    %781 = vmatpush1.msra.mxu0 %v218
    %782 = vmatprep.subr.mxu0 0.0
    %783 = vmatpush1.msra.mxu0 %v219
    %784 = vmatprep.subr.mxu0 0.0
    %785 = vmatpush1.msra.mxu0 %v220
    %786 = vmatprep.subr.mxu0 0.0
    %787 = vmatpush1.msra.mxu0 %v221
    %788 = vmatprep.subr.mxu0 0.0
    %789 = vmatpush1.msra.mxu0 %v222
    %790 = vmatprep.subr.mxu0 0.0
    %791 = vmatpush1.msra.mxu0 %v223
    %792 = vmatprep.subr.mxu0 0.0
    %793 = vmatpush1.msra.mxu0 %v224
    %794 = vmatprep.subr.mxu0 0.0
    %795 = vmatpush1.msra.mxu0 %v225
    %796 = vmatprep.subr.mxu0 0.0
    %797 = vmatpush1.msra.mxu0 %v226
    %798 = vmatprep.subr.mxu0 0.0
    %799 = vmatpush1.msra.mxu0 %v227
    %800 = vmatprep.subr.mxu0 0.0
    %801 = vmatpush1.msra.mxu0 %v228
    %802 = vmatprep.mubr.f32.mxu0 %v354
    %803 = vmatmul.mubr.f32.gmra.mrb[0].mxu0 %v352
    %v804 = vpop.f32.mrb[0].mxu0
    %v805 = vadd.f32 %v735, %v804
    %v806 = vpop.f32.mrb[0].mxu0
    %807 = vdwg.mxu0
    %808 = vmatprep.subr.mxu0 0.0
    %809 = vmatpush1.msra.mxu0 %v229
    %810 = vmatprep.subr.mxu0 0.0
    %811 = vmatpush1.msra.mxu0 %v230
    %812 = vmatprep.subr.mxu0 0.0
    %813 = vmatpush1.msra.mxu0 %v231
    %814 = vmatprep.subr.mxu0 0.0
    %815 = vmatpush1.msra.mxu0 %v232
    %816 = vmatprep.subr.mxu0 0.0
    %817 = vmatpush1.msra.mxu0 %v233
    %818 = vmatprep.subr.mxu0 0.0
    %819 = vmatpush1.msra.mxu0 %v234
    %820 = vmatprep.subr.mxu0 0.0
    %821 = vmatpush1.msra.mxu0 %v235
    %822 = vmatprep.subr.mxu0 0.0
    %823 = vmatpush1.msra.mxu0 %v236
    %824 = vmatprep.subr.mxu0 0.0
    %825 = vmatpush1.msra.mxu0 %v237
    %826 = vmatprep.subr.mxu0 0.0
    %827 = vmatpush1.msra.mxu0 %v238
    %828 = vmatprep.subr.mxu0 0.0
    %829 = vmatpush1.msra.mxu0 %v239
    %830 = vmatprep.subr.mxu0 0.0
    %831 = vmatpush1.msra.mxu0 %v240
    %832 = vmatprep.subr.mxu0 0.0
    %833 = vmatpush1.msra.mxu0 %v241
    %834 = vmatprep.subr.mxu0 0.0
    %835 = vmatpush1.msra.mxu0 %v242
    %836 = vmatprep.subr.mxu0 0.0
    %837 = vmatpush1.msra.mxu0 %v243
    %838 = vmatprep.subr.mxu0 0.0
    %839 = vmatpush1.msra.mxu0 %v244
    %840 = vmatprep.subr.mxu0 0.0
    %841 = vmatpush1.msra.mxu0 %v245
    %842 = vmatprep.subr.mxu0 0.0
    %843 = vmatpush1.msra.mxu0 %v246
    %844 = vmatprep.subr.mxu0 0.0
    %845 = vmatpush1.msra.mxu0 %v247
    %846 = vmatprep.subr.mxu0 0.0
    %847 = vmatpush1.msra.mxu0 %v248
    %848 = vmatprep.subr.mxu0 0.0
    %849 = vmatpush1.msra.mxu0 %v249
    %850 = vmatprep.subr.mxu0 0.0
    %851 = vmatpush1.msra.mxu0 %v250
    %852 = vmatprep.subr.mxu0 0.0
    %853 = vmatpush1.msra.mxu0 %v251
    %854 = vmatprep.subr.mxu0 0.0
    %855 = vmatpush1.msra.mxu0 %v252
    %856 = vmatprep.subr.mxu0 0.0
    %857 = vmatpush1.msra.mxu0 %v253
    %858 = vmatprep.subr.mxu0 0.0
    %859 = vmatpush1.msra.mxu0 %v254
    %860 = vmatprep.subr.mxu0 0.0
    %861 = vmatpush1.msra.mxu0 %v255
    %862 = vmatprep.subr.mxu0 0.0
    %863 = vmatpush1.msra.mxu0 %v256
    %864 = vmatprep.subr.mxu0 0.0
    %865 = vmatpush1.msra.mxu0 %v257
    %866 = vmatprep.subr.mxu0 0.0
    %867 = vmatpush1.msra.mxu0 %v258
    %868 = vmatprep.subr.mxu0 0.0
    %869 = vmatpush1.msra.mxu0 %v259
    %870 = vmatprep.subr.mxu0 0.0
    %871 = vmatpush1.msra.mxu0 %v260
    %872 = vmatprep.mubr.f32.mxu0 %v370
    %873 = vmatmul.mubr.f32.gmra.mrb[0].mxu0 %v362
    %v874 = vpop.f32.mrb[0].mxu0
    %v875 = vadd.f32 %v805, %v874
    %v876 = vpop.f32.mrb[0].mxu0
    %877 = vdwg.mxu0
    %878 = vmatprep.subr.mxu0 0.0
    %879 = vmatpush1.msra.mxu0 %v261
    %880 = vmatprep.subr.mxu0 0.0
    %881 = vmatpush1.msra.mxu0 %v262
    %882 = vmatprep.subr.mxu0 0.0
    %883 = vmatpush1.msra.mxu0 %v263
    %884 = vmatprep.subr.mxu0 0.0
    %885 = vmatpush1.msra.mxu0 %v264
    %886 = vmatprep.subr.mxu0 0.0
    %887 = vmatpush1.msra.mxu0 %v265
    %888 = vmatprep.subr.mxu0 0.0
    %889 = vmatpush1.msra.mxu0 %v266
    %890 = vmatprep.subr.mxu0 0.0
    %891 = vmatpush1.msra.mxu0 %v267
    %892 = vmatprep.subr.mxu0 0.0
    %893 = vmatpush1.msra.mxu0 %v268
    %894 = vmatprep.subr.mxu0 0.0
    %895 = vmatpush1.msra.mxu0 %v269
    %896 = vmatprep.subr.mxu0 0.0
    %897 = vmatpush1.msra.mxu0 %v270
    %898 = vmatprep.subr.mxu0 0.0
    %899 = vmatpush1.msra.mxu0 %v271
    %900 = vmatprep.subr.mxu0 0.0
    %901 = vmatpush1.msra.mxu0 %v272
    %902 = vmatprep.subr.mxu0 0.0
    %903 = vmatpush1.msra.mxu0 %v273
    %904 = vmatprep.subr.mxu0 0.0
    %905 = vmatpush1.msra.mxu0 %v274
    %906 = vmatprep.subr.mxu0 0.0
    %907 = vmatpush1.msra.mxu0 %v275
    %908 = vmatprep.subr.mxu0 0.0
    %909 = vmatpush1.msra.mxu0 %v276
    %910 = vmatprep.subr.mxu0 0.0
    %911 = vmatpush1.msra.mxu0 %v277
    %912 = vmatprep.subr.mxu0 0.0
    %913 = vmatpush1.msra.mxu0 %v278
    %914 = vmatprep.subr.mxu0 0.0
    %915 = vmatpush1.msra.mxu0 %v279
    %916 = vmatprep.subr.mxu0 0.0
    %917 = vmatpush1.msra.mxu0 %v280
    %918 = vmatprep.subr.mxu0 0.0
    %919 = vmatpush1.msra.mxu0 %v281
    %920 = vmatprep.subr.mxu0 0.0
    %921 = vmatpush1.msra.mxu0 %v282
    %922 = vmatprep.subr.mxu0 0.0
    %923 = vmatpush1.msra.mxu0 %v283
    %924 = vmatprep.subr.mxu0 0.0
    %925 = vmatpush1.msra.mxu0 %v284
    %926 = vmatprep.subr.mxu0 0.0
    %927 = vmatpush1.msra.mxu0 %v285
    %928 = vmatprep.subr.mxu0 0.0
    %929 = vmatpush1.msra.mxu0 %v286
    %930 = vmatprep.subr.mxu0 0.0
    %931 = vmatpush1.msra.mxu0 %v287
    %932 = vmatprep.subr.mxu0 0.0
    %933 = vmatpush1.msra.mxu0 %v288
    %934 = vmatprep.subr.mxu0 0.0
    %935 = vmatpush1.msra.mxu0 %v289
    %936 = vmatprep.subr.mxu0 0.0
    %937 = vmatpush1.msra.mxu0 %v290
    %938 = vmatprep.subr.mxu0 0.0
    %939 = vmatpush1.msra.mxu0 %v291
    %940 = vmatprep.subr.mxu0 0.0
    %941 = vmatpush1.msra.mxu0 %v292
    %942 = vmatprep.mubr.f32.mxu0 %v371
    %943 = vmatmul.mubr.f32.gmra.mrb[0].mxu0 %v369
    %v944 = vpop.f32.mrb[0].mxu0
    %v945 = vadd.f32 %v875, %v944
    %v946 = vpop.f32.mrb[0].mxu0
    %947 = vdwg.mxu0
    %vm948 = vcmask 254976
    %949 = vst.msk [vmem:[#allocation4] sm:$0x3] %vm948, %v945
    %v950 = vld [vmem:[%s3] sm:$0xf]
    %v951 = vld [vmem:[%s4] sm:$0xff]
    %v952 = vld [vmem:[%s4 + $0x8] sm:$0xff]
    %v953 = vld [vmem:[%s4 + $0x10] sm:$0xff]
    %v954 = vld [vmem:[%s4 + $0x18] sm:$0xff]
    %v955 = vld [vmem:[%s4 + $0x20] sm:$0xff]
    %v956 = vld [vmem:[%s4 + $0x28] sm:$0xff]
    %v957 = vld [vmem:[%s4 + $0x30] sm:$0xff]
    %v958 = vld [vmem:[%s4 + $0x38] sm:$0xff]
    %v959 = vld [vmem:[%s4 + $0x40] sm:$0xff]
    %v960 = vld [vmem:[%s4 + $0x48] sm:$0xff]
    %v961 = vld [vmem:[%s4 + $0x50] sm:$0xff]
    %v962 = vld [vmem:[%s4 + $0x58] sm:$0xff]
    %v963 = vld [vmem:[%s4 + $0x60] sm:$0xff]
    %v964 = vld [vmem:[%s4 + $0x68] sm:$0xff]
    %v965 = vld [vmem:[%s4 + $0x70] sm:$0xff]
    %v966 = vld [vmem:[%s4 + $0x78] sm:$0xff]
    %v967 = vld [vmem:[%s4 + $0x80] sm:$0xff]
    %v968 = vld [vmem:[%s4 + $0x88] sm:$0xff]
    %v969 = vld [vmem:[%s4 + $0x90] sm:$0xff]
    %v970 = vld [vmem:[%s4 + $0x98] sm:$0xff]
    %v971 = vld [vmem:[%s4 + $0xa0] sm:$0xff]
    %v972 = vld [vmem:[%s4 + $0xa8] sm:$0xff]
    %v973 = vld [vmem:[%s4 + $0xb0] sm:$0xff]
    %v974 = vld [vmem:[%s4 + $0xb8] sm:$0xff]
    %v975 = vld [vmem:[#allocation2] sm:$0x1]
    %v977 = vlaneseq
    %v978 = vshrl.u32 %v977, 7
    %v979 = vsub.s32 0, %v978
    %v980 = vrot.slane %v975, %v979
    %v984 = vunpack.c.l.s4 1983009808
    %v985 = vunpack.c.0.s8 %v984
    %v986 = vlaneseq
    %v987 = vshrl.u32 %v986, 7
    %v988 = vsub.s32 %v985, %v987
    %v989 = vrot.slane %v950, %v988
    %v990 = vcombine.high %v989, %v989
    %vm992 = vcmask 523264
    %v993 = vsel %vm992, %v990, 0
    %995 = vmatprep.subr.mxu0 0.0
    %996 = vmatpush1.msra.mxu0 %v951
    %997 = vmatprep.subr.mxu0 0.0
    %998 = vmatpush1.msra.mxu0 %v952
    %999 = vmatprep.subr.mxu0 0.0
    %1000 = vmatpush1.msra.mxu0 %v953
    %1001 = vmatprep.subr.mxu0 0.0
    %1002 = vmatpush1.msra.mxu0 %v954
    %1003 = vmatprep.subr.mxu0 0.0
    %1004 = vmatpush1.msra.mxu0 %v955
    %1005 = vmatprep.subr.mxu0 0.0
    %1006 = vmatpush1.msra.mxu0 %v956
    %1007 = vmatprep.subr.mxu0 0.0
    %1008 = vmatpush1.msra.mxu0 %v957
    %1009 = vmatprep.subr.mxu0 0.0
    %1010 = vmatpush1.msra.mxu0 %v958
    %1011 = vmatprep.subr.mxu0 0.0
    %1012 = vmatpush1.msra.mxu0 %v959
    %1013 = vmatprep.subr.mxu0 0.0
    %1014 = vmatpush1.msra.mxu0 %v960
    %1015 = vmatprep.subr.mxu0 0.0
    %1016 = vmatpush1.msra.mxu0 %v961
    %1017 = vmatprep.subr.mxu0 0.0
    %1018 = vmatpush1.msra.mxu0 %v962
    %1019 = vmatprep.subr.mxu0 0.0
    %1020 = vmatpush1.msra.mxu0 %v963
    %1021 = vmatprep.subr.mxu0 0.0
    %1022 = vmatpush1.msra.mxu0 %v964
    %1023 = vmatprep.subr.mxu0 0.0
    %1024 = vmatpush1.msra.mxu0 %v965
    %1025 = vmatprep.subr.mxu0 0.0
    %1026 = vmatpush1.msra.mxu0 %v966
    %1027 = vmatprep.subr.mxu0 0.0
    %1028 = vmatpush1.msra.mxu0 %v967
    %1029 = vmatprep.subr.mxu0 0.0
    %1030 = vmatpush1.msra.mxu0 %v968
    %1031 = vmatprep.subr.mxu0 0.0
    %1032 = vmatpush1.msra.mxu0 %v969
    %1033 = vmatprep.subr.mxu0 0.0
    %1034 = vmatpush1.msra.mxu0 %v970
    %1035 = vmatprep.subr.mxu0 0.0
    %1036 = vmatpush1.msra.mxu0 %v971
    %1037 = vmatprep.subr.mxu0 0.0
    %1038 = vmatpush1.msra.mxu0 %v972
    %1039 = vmatprep.subr.mxu0 0.0
    %1040 = vmatpush1.msra.mxu0 %v973
    %1041 = vmatprep.subr.mxu0 0.0
    %1042 = vmatpush1.msra.mxu0 %v974
    %1043 = vmatprep.subr.mxu0 0.0
    %1044 = vmatpush1.msra.mxu0 0.0
    %1045 = vmatprep.subr.mxu0 0.0
    %1046 = vmatpush1.msra.mxu0 0.0
    %1047 = vmatprep.subr.mxu0 0.0
    %1048 = vmatpush1.msra.mxu0 0.0
    %1049 = vmatprep.subr.mxu0 0.0
    %1050 = vmatpush1.msra.mxu0 0.0
    %1051 = vmatprep.subr.mxu0 0.0
    %1052 = vmatpush1.msra.mxu0 0.0
    %1053 = vmatprep.subr.mxu0 0.0
    %1054 = vmatpush1.msra.mxu0 0.0
    %1055 = vmatprep.subr.mxu0 0.0
    %1056 = vmatpush1.msra.mxu0 0.0
    %1057 = vmatprep.subr.mxu0 0.0
    %1058 = vmatpush1.msra.mxu0 0.0
    %1059 = vmatprep.mubr.f32.mxu0 %v993
    %1060 = vmatmul.mubr.f32.gmra.mrb[0].mxu0 %v989
    %v1061 = vpop.f32.mrb[0].mxu0
    %v1062 = vadd.f32 %v980, %v1061
    %v1063 = vpop.f32.mrb[0].mxu0
    %1064 = vdwg.mxu0
    %v1065 = vld [vmem:[#allocation3] sm:$0x1]
    %v1066 = vmax.f32 %v1062, 0.0
    %v1067 = vmin.f32 %v1062, 0.0
    %v1069 = vlaneseq
    %v1070 = vshrl.u32 %v1069, 7
    %v1071 = vsub.s32 0, %v1070
    %v1072 = vrot.slane %v1065, %v1071
    %v1074 = vmul.f32 %v1072, %v1067
    %v1075 = vadd.f32 %v1066, %v1074
    %vm1076 = vcmask 1024
    %1077 = vst.msk [vmem:[%s8] sm:$0x3] %vm1076, %v1075
    // Predicated region
    $region30: #{resnet_forward.3} parent=1 // pred_check
      _
    $region31: #{resnet_forward.3} parent=1 // pred_check_branch
      %1079 = sbr.rel (0) target = $region33
    $region32: #{resnet_forward.3} parent=1 // pred_region
      %s1081 = ssub.s32 32, 32
      %1082 = vsyncadd [#allocation5], %s1081
      %s1084 = sshll.u32 [#allocation4], 4
      %s1085 = int_to_ptr.vmem [resolvable:$true] %s1084
      %1087 = dma.vmem_to_hbm [thread:$0]  %s1085, 32, %s7, [#allocation5]
    $region33: #{resnet_forward.3} parent=1 // pred_fallthru
      _
    // Predicated region
    $region34: #{resnet_forward.3} parent=1 // pred_check
      _
    $region35: #{resnet_forward.3} parent=1 // pred_check_branch
      %1089 = sbr.rel (0) target = $region37
    $region36: #{resnet_forward.3} parent=1 // pred_region
      _
    $region37: #{resnet_forward.3} parent=1 // pred_fallthru
      _
    // Predicated region
    $region38: #{resnet_forward.3} parent=1 // pred_check
      _
    $region39: #{resnet_forward.3} parent=1 // pred_check_branch
      %1091 = sbr.rel (0) target = $region41
    $region40: #{resnet_forward.3} parent=1 // pred_region
      %1092 = dma.done [#allocation5], 32
    $region41: #{resnet_forward.3} parent=1 // pred_fallthru
      _
    // Predicated region
    $region42: #{resnet_forward.3} parent=1 // pred_check
      _
    $region43: #{resnet_forward.3} parent=1 // pred_check_branch
      %1094 = sbr.rel (0) target = $region45
    $region44: #{resnet_forward.3} parent=1 // pred_region
      _
    $region45: #{resnet_forward.3} parent=1 // pred_fallthru
      _
    %1095 = vsyncpa [#allocation5], 1

// kernel: resnet_forward.2
$region0: #{resnet_forward.2}
  #allocation0 [shape = 'u32[]', space=smem, size = 0x4, offset = 0x4, fixed_abs, tag = 'smem constant byte address 0x4 - core index']
  #allocation1 [shape = 'u32[144,128]{1,0:T(1,128)}', space=vmem, size = 0x12000, scoped, tag = 'internal scratch']
  #allocation2 [shape = 'f32[2,10,10,16]{3,2,1,0:T(8,128)}', space=vmem, size = 0x28000, scoped, tag = 'scratch operand']
  #allocation3 [shape = 'f32[128,144]{1,0:T(8,128)}', space=vmem, size = 0x20000, scoped, tag = 'scratch operand']
  %s0 = inlined_call_operand.vmem [shape: f32[2,10,10,4], index: 0, kind: input, shape index: {}]
  %s1 = inlined_call_operand.vmem [shape: bf16[36,16], index: 1, kind: input, shape index: {}]
  %s2 = inlined_call_operand.vmem [shape: f32[1,16], index: 2, kind: input, shape index: {}]
  %s3 = inlined_call_operand.vmem [shape: f32[1,16], index: 3, kind: input, shape index: {}]
  %s4 = inlined_call_operand.vmem [shape: bf16[144,16], index: 4, kind: input, shape index: {}]
  %s5 = inlined_call_operand.vmem [shape: f32[1,16], index: 5, kind: input, shape index: {}]
  %s6 = inlined_call_operand.vmem [shape: f32[1,16], index: 6, kind: input, shape index: {}]
  %s7 = inlined_call_operand.vmem [shape: bf16[144,16], index: 7, kind: input, shape index: {}]
  %s8 = inlined_call_operand.vmem [shape: f32[1,16], index: 8, kind: input, shape index: {}]
  %s9 = inlined_call_operand.vmem [shape: f32[1,16], index: 9, kind: input, shape index: {}]
  %s10 = inlined_call_operand.vmem [shape: bf16[144,16], index: 10, kind: input, shape index: {}]
  %s11 = inlined_call_operand.vmem [shape: f32[1,16], index: 11, kind: input, shape index: {}]
  %s12 = inlined_call_operand.vmem [shape: f32[1,16], index: 12, kind: input, shape index: {}]
  %s13 = inlined_call_operand.vmem [shape: bf16[144,16], index: 13, kind: input, shape index: {}]
  %s14 = inlined_call_operand.vmem [shape: f32[1,16], index: 14, kind: input, shape index: {}]
  %s15 = inlined_call_operand.vmem [shape: f32[1,16], index: 15, kind: input, shape index: {}]
  %s16 = inlined_call_operand.vmem [shape: bf16[144,32], index: 16, kind: input, shape index: {}]
  %s17 = inlined_call_operand.vmem [shape: f32[1,32], index: 17, kind: input, shape index: {}]
  %s18 = inlined_call_operand.vmem [shape: f32[1,32], index: 18, kind: input, shape index: {}]
  %s19 = inlined_call_operand.vmem [shape: bf16[144,3], index: 19, kind: input, shape index: {}]
  %s20 = inlined_call_operand.vmem [shape: f32[1,3], index: 20, kind: input, shape index: {}]
  %s21 = inlined_call_operand.vmem [shape: f32[1,3], index: 21, kind: input, shape index: {}]
  %s22 = inlined_call_operand.vmem [shape: f32[128,32], index: 22, kind: output, shape index: {0}]
  %s23 = inlined_call_operand.vmem [shape: f32[128,3], index: 23, kind: output, shape index: {1}]
  %24 = xla_tuple %s22, %s23
  %s25 = sld [smem:[#allocation0]]
  $region106: #{resnet_forward.2} parent=0
    _
  %s27 = ssub.s32 1, %s25
  %s28 = scalar_select 0, %s27, %s25
  // Predicated region
  $region2: #{resnet_forward.2} parent=0 // pred_check
    _
  $region3: #{resnet_forward.2} parent=0 // pred_check_branch
    %30 = sbr.rel (0) target = $region5
  $region4: #{resnet_forward.2} parent=0 // pred_region
    _
  $region5: #{resnet_forward.2} parent=0 // pred_fallthru
    _
  // Predicated region
  $region6: #{resnet_forward.2} parent=0 // pred_check
    _
  $region7: #{resnet_forward.2} parent=0 // pred_check_branch
    %32 = sbr.rel (0) target = $region9
  $region8: #{resnet_forward.2} parent=0 // pred_region
    _
  $region9: #{resnet_forward.2} parent=0 // pred_fallthru
    _
  // Predicated region
  $region10: #{resnet_forward.2} parent=0 // pred_check
    _
  $region11: #{resnet_forward.2} parent=0 // pred_check_branch
    %34 = sbr.rel (0) target = $region13
  $region12: #{resnet_forward.2} parent=0 // pred_region
    _
  $region13: #{resnet_forward.2} parent=0 // pred_fallthru
    _
  // Predicated region
  $region14: #{resnet_forward.2} parent=0 // pred_check
    _
  $region15: #{resnet_forward.2} parent=0 // pred_check_branch
    %36 = sbr.rel (0) target = $region17
  $region16: #{resnet_forward.2} parent=0 // pred_region
    _
  $region17: #{resnet_forward.2} parent=0 // pred_fallthru
    _
  // Predicated region
  $region18: #{resnet_forward.2} parent=0 // pred_check
    _
  $region19: #{resnet_forward.2} parent=0 // pred_check_branch
    %38 = sbr.rel (0) target = $region21
  $region20: #{resnet_forward.2} parent=0 // pred_region
    _
  $region21: #{resnet_forward.2} parent=0 // pred_fallthru
    _
  // Predicated region
  $region22: #{resnet_forward.2} parent=0 // pred_check
    _
  $region23: #{resnet_forward.2} parent=0 // pred_check_branch
    %40 = sbr.rel (0) target = $region25
  $region24: #{resnet_forward.2} parent=0 // pred_region
    _
  $region25: #{resnet_forward.2} parent=0 // pred_fallthru
    _
  // Predicated region
  $region26: #{resnet_forward.2} parent=0 // pred_check
    _
  $region27: #{resnet_forward.2} parent=0 // pred_check_branch
    %42 = sbr.rel (0) target = $region29
  $region28: #{resnet_forward.2} parent=0 // pred_region
    _
  $region29: #{resnet_forward.2} parent=0 // pred_fallthru
    _
  // Predicated region
  $region30: #{resnet_forward.2} parent=0 // pred_check
    _
  $region31: #{resnet_forward.2} parent=0 // pred_check_branch
    %44 = sbr.rel (0) target = $region33
  $region32: #{resnet_forward.2} parent=0 // pred_region
    _
  $region33: #{resnet_forward.2} parent=0 // pred_fallthru
    _
  // Predicated region
  $region34: #{resnet_forward.2} parent=0 // pred_check
    _
  $region35: #{resnet_forward.2} parent=0 // pred_check_branch
    %46 = sbr.rel (0) target = $region37
  $region36: #{resnet_forward.2} parent=0 // pred_region
    _
  $region37: #{resnet_forward.2} parent=0 // pred_fallthru
    _
  // Predicated region
  $region38: #{resnet_forward.2} parent=0 // pred_check
    _
  $region39: #{resnet_forward.2} parent=0 // pred_check_branch
    %48 = sbr.rel (0) target = $region41
  $region40: #{resnet_forward.2} parent=0 // pred_region
    _
  $region41: #{resnet_forward.2} parent=0 // pred_fallthru
    _
  // Predicated region
  $region42: #{resnet_forward.2} parent=0 // pred_check
    _
  $region43: #{resnet_forward.2} parent=0 // pred_check_branch
    %50 = sbr.rel (0) target = $region45
  $region44: #{resnet_forward.2} parent=0 // pred_region
    _
  $region45: #{resnet_forward.2} parent=0 // pred_fallthru
    _
  // Predicated region
  $region46: #{resnet_forward.2} parent=0 // pred_check
    _
  $region47: #{resnet_forward.2} parent=0 // pred_check_branch
    %52 = sbr.rel (0) target = $region49
  $region48: #{resnet_forward.2} parent=0 // pred_region
    _
  $region49: #{resnet_forward.2} parent=0 // pred_fallthru
    _
  // Predicated region
  $region50: #{resnet_forward.2} parent=0 // pred_check
    _
  $region51: #{resnet_forward.2} parent=0 // pred_check_branch
    %54 = sbr.rel (0) target = $region53
  $region52: #{resnet_forward.2} parent=0 // pred_region
    _
  $region53: #{resnet_forward.2} parent=0 // pred_fallthru
    _
  // Predicated region
  $region54: #{resnet_forward.2} parent=0 // pred_check
    _
  $region55: #{resnet_forward.2} parent=0 // pred_check_branch
    %56 = sbr.rel (0) target = $region57
  $region56: #{resnet_forward.2} parent=0 // pred_region
    _
  $region57: #{resnet_forward.2} parent=0 // pred_fallthru
    _
  // Predicated region
  $region58: #{resnet_forward.2} parent=0 // pred_check
    _
  $region59: #{resnet_forward.2} parent=0 // pred_check_branch
    %58 = sbr.rel (0) target = $region61
  $region60: #{resnet_forward.2} parent=0 // pred_region
    _
  $region61: #{resnet_forward.2} parent=0 // pred_fallthru
    _
  // Predicated region
  $region62: #{resnet_forward.2} parent=0 // pred_check
    _
  $region63: #{resnet_forward.2} parent=0 // pred_check_branch
    %60 = sbr.rel (0) target = $region65
  $region64: #{resnet_forward.2} parent=0 // pred_region
    _
  $region65: #{resnet_forward.2} parent=0 // pred_fallthru
    _
  // Predicated region
  $region66: #{resnet_forward.2} parent=0 // pred_check
    _
  $region67: #{resnet_forward.2} parent=0 // pred_check_branch
    %62 = sbr.rel (0) target = $region69
  $region68: #{resnet_forward.2} parent=0 // pred_region
    _
  $region69: #{resnet_forward.2} parent=0 // pred_fallthru
    _
  // Predicated region
  $region70: #{resnet_forward.2} parent=0 // pred_check
    _
  $region71: #{resnet_forward.2} parent=0 // pred_check_branch
    %64 = sbr.rel (0) target = $region73
  $region72: #{resnet_forward.2} parent=0 // pred_region
    _
  $region73: #{resnet_forward.2} parent=0 // pred_fallthru
    _
  // Predicated region
  $region74: #{resnet_forward.2} parent=0 // pred_check
    _
  $region75: #{resnet_forward.2} parent=0 // pred_check_branch
    %66 = sbr.rel (0) target = $region77
  $region76: #{resnet_forward.2} parent=0 // pred_region
    _
  $region77: #{resnet_forward.2} parent=0 // pred_fallthru
    _
  // Predicated region
  $region78: #{resnet_forward.2} parent=0 // pred_check
    _
  $region79: #{resnet_forward.2} parent=0 // pred_check_branch
    %68 = sbr.rel (0) target = $region81
  $region80: #{resnet_forward.2} parent=0 // pred_region
    _
  $region81: #{resnet_forward.2} parent=0 // pred_fallthru
    _
  // Predicated region
  $region82: #{resnet_forward.2} parent=0 // pred_check
    _
  $region83: #{resnet_forward.2} parent=0 // pred_check_branch
    %70 = sbr.rel (0) target = $region85
  $region84: #{resnet_forward.2} parent=0 // pred_region
    _
  $region85: #{resnet_forward.2} parent=0 // pred_fallthru
    _
  // Predicated region
  $region86: #{resnet_forward.2} parent=0 // pred_check
    _
  $region87: #{resnet_forward.2} parent=0 // pred_check_branch
    %72 = sbr.rel (0) target = $region89
  $region88: #{resnet_forward.2} parent=0 // pred_region
    _
  $region89: #{resnet_forward.2} parent=0 // pred_fallthru
    _
  %vm74 = vcmask 130048
  %75 = vst.msk [vmem:[#allocation2] sm:$0xff] %vm74, 0.0
  %vm76 = vcmask 123904
  %77 = vst.msk [vmem:[#allocation2 + $0x8] sm:$0x3] %vm76, 0.0
  %78 = vst.msk [vmem:[#allocation2 + $0x10] sm:$0xff] %vm74, 0.0
  %79 = vst.msk [vmem:[#allocation2 + $0x18] sm:$0x3] %vm76, 0.0
  %80 = vst.msk [vmem:[#allocation2 + $0x20] sm:$0xff] %vm74, 0.0
  %81 = vst.msk [vmem:[#allocation2 + $0x28] sm:$0x3] %vm76, 0.0
  %82 = vst.msk [vmem:[#allocation2 + $0x30] sm:$0xff] %vm74, 0.0
  %83 = vst.msk [vmem:[#allocation2 + $0x38] sm:$0x3] %vm76, 0.0
  %84 = vst.msk [vmem:[#allocation2 + $0x40] sm:$0xff] %vm74, 0.0
  %85 = vst.msk [vmem:[#allocation2 + $0x48] sm:$0x3] %vm76, 0.0
  %86 = vst.msk [vmem:[#allocation2 + $0x50] sm:$0xff] %vm74, 0.0
  %87 = vst.msk [vmem:[#allocation2 + $0x58] sm:$0x3] %vm76, 0.0
  %88 = vst.msk [vmem:[#allocation2 + $0x60] sm:$0xff] %vm74, 0.0
  %89 = vst.msk [vmem:[#allocation2 + $0x68] sm:$0x3] %vm76, 0.0
  %90 = vst.msk [vmem:[#allocation2 + $0x70] sm:$0xff] %vm74, 0.0
  %91 = vst.msk [vmem:[#allocation2 + $0x78] sm:$0x3] %vm76, 0.0
  %92 = vst.msk [vmem:[#allocation2 + $0x80] sm:$0xff] %vm74, 0.0
  %93 = vst.msk [vmem:[#allocation2 + $0x88] sm:$0x3] %vm76, 0.0
  %94 = vst.msk [vmem:[#allocation2 + $0x90] sm:$0xff] %vm74, 0.0
  %95 = vst.msk [vmem:[#allocation2 + $0x98] sm:$0x3] %vm76, 0.0
  %96 = vst.msk [vmem:[#allocation2 + $0xa0] sm:$0xff] %vm74, 0.0
  %97 = vst.msk [vmem:[#allocation2 + $0xa8] sm:$0x3] %vm76, 0.0
  %98 = vst.msk [vmem:[#allocation2 + $0xb0] sm:$0xff] %vm74, 0.0
  %99 = vst.msk [vmem:[#allocation2 + $0xb8] sm:$0x3] %vm76, 0.0
  %100 = vst.msk [vmem:[#allocation2 + $0xc0] sm:$0xff] %vm74, 0.0
  %101 = vst.msk [vmem:[#allocation2 + $0xc8] sm:$0x3] %vm76, 0.0
  %102 = vst.msk [vmem:[#allocation2 + $0xd0] sm:$0xff] %vm74, 0.0
  %103 = vst.msk [vmem:[#allocation2 + $0xd8] sm:$0x3] %vm76, 0.0
  %104 = vst.msk [vmem:[#allocation2 + $0xe0] sm:$0xff] %vm74, 0.0
  %105 = vst.msk [vmem:[#allocation2 + $0xe8] sm:$0x3] %vm76, 0.0
  %106 = vst.msk [vmem:[#allocation2 + $0xf0] sm:$0xff] %vm74, 0.0
  %107 = vst.msk [vmem:[#allocation2 + $0xf8] sm:$0x3] %vm76, 0.0
  %108 = vst.msk [vmem:[#allocation2 + $0x100] sm:$0xff] %vm74, 0.0
  %109 = vst.msk [vmem:[#allocation2 + $0x108] sm:$0x3] %vm76, 0.0
  %110 = vst.msk [vmem:[#allocation2 + $0x110] sm:$0xff] %vm74, 0.0
  %111 = vst.msk [vmem:[#allocation2 + $0x118] sm:$0x3] %vm76, 0.0
  %112 = vst.msk [vmem:[#allocation2 + $0x120] sm:$0xff] %vm74, 0.0
  %113 = vst.msk [vmem:[#allocation2 + $0x128] sm:$0x3] %vm76, 0.0
  %114 = vst.msk [vmem:[#allocation2 + $0x130] sm:$0xff] %vm74, 0.0
  %115 = vst.msk [vmem:[#allocation2 + $0x138] sm:$0x3] %vm76, 0.0
  %v116 = vld [vmem:[%s0] sm:$0xff]
  %v117 = vld [vmem:[%s0 + $0x8] sm:$0x3]
  %v118 = vld [vmem:[%s0 + $0x10] sm:$0xff]
  %v119 = vld [vmem:[%s0 + $0x18] sm:$0x3]
  %v120 = vld [vmem:[%s0 + $0x20] sm:$0xff]
  %v121 = vld [vmem:[%s0 + $0x28] sm:$0x3]
  %v122 = vld [vmem:[%s0 + $0x30] sm:$0xff]
  %v123 = vld [vmem:[%s0 + $0x38] sm:$0x3]
  %v124 = vld [vmem:[%s0 + $0x40] sm:$0xff]
  %v125 = vld [vmem:[%s0 + $0x48] sm:$0x3]
  %v126 = vld [vmem:[%s0 + $0x50] sm:$0xff]
  %v127 = vld [vmem:[%s0 + $0x58] sm:$0x3]
  %v128 = vld [vmem:[%s0 + $0x60] sm:$0xff]
  %v129 = vld [vmem:[%s0 + $0x68] sm:$0x3]
  %v130 = vld [vmem:[%s0 + $0x70] sm:$0xff]
  %v131 = vld [vmem:[%s0 + $0x78] sm:$0x3]
  %v132 = vld [vmem:[%s0 + $0x80] sm:$0xff]
  %v133 = vld [vmem:[%s0 + $0x88] sm:$0x3]
  %v134 = vld [vmem:[%s0 + $0x90] sm:$0xff]
  %v135 = vld [vmem:[%s0 + $0x98] sm:$0x3]
  %v136 = vld [vmem:[%s0 + $0xa0] sm:$0xff]
  %v137 = vld [vmem:[%s0 + $0xa8] sm:$0x3]
  %v138 = vld [vmem:[%s0 + $0xb0] sm:$0xff]
  %v139 = vld [vmem:[%s0 + $0xb8] sm:$0x3]
  %v140 = vld [vmem:[%s0 + $0xc0] sm:$0xff]
  %v141 = vld [vmem:[%s0 + $0xc8] sm:$0x3]
  %v142 = vld [vmem:[%s0 + $0xd0] sm:$0xff]
  %v143 = vld [vmem:[%s0 + $0xd8] sm:$0x3]
  %v144 = vld [vmem:[%s0 + $0xe0] sm:$0xff]
  %v145 = vld [vmem:[%s0 + $0xe8] sm:$0x3]
  %v146 = vld [vmem:[%s0 + $0xf0] sm:$0xff]
  %v147 = vld [vmem:[%s0 + $0xf8] sm:$0x3]
  %v148 = vld [vmem:[%s0 + $0x100] sm:$0xff]
  %v149 = vld [vmem:[%s0 + $0x108] sm:$0x3]
  %v150 = vld [vmem:[%s0 + $0x110] sm:$0xff]
  %v151 = vld [vmem:[%s0 + $0x118] sm:$0x3]
  %v152 = vld [vmem:[%s0 + $0x120] sm:$0xff]
  %v153 = vld [vmem:[%s0 + $0x128] sm:$0x3]
  %v154 = vld [vmem:[%s0 + $0x130] sm:$0xff]
  %v155 = vld [vmem:[%s0 + $0x138] sm:$0x3]
  %vm156 = vcmask 31744
  %157 = vst.msk [vmem:[#allocation3] sm:$0xff] %vm156, %v116
  %158 = vst.msk [vmem:[#allocation3 + $0x10] sm:$0xff] %vm156, %v118
  %159 = vst.msk [vmem:[#allocation3 + $0x20] sm:$0xff] %vm156, %v120
  %160 = vst.msk [vmem:[#allocation3 + $0x30] sm:$0xff] %vm156, %v122
  %161 = vst.msk [vmem:[#allocation3 + $0x40] sm:$0xff] %vm156, %v124
  %162 = vst.msk [vmem:[#allocation3 + $0x50] sm:$0xff] %vm156, %v126
  %163 = vst.msk [vmem:[#allocation3 + $0x60] sm:$0xff] %vm156, %v128
  %164 = vst.msk [vmem:[#allocation3 + $0x70] sm:$0xff] %vm156, %v130
  %165 = vst.msk [vmem:[#allocation3 + $0x80] sm:$0xff] %vm156, %v136
  %166 = vst.msk [vmem:[#allocation3 + $0x90] sm:$0xff] %vm156, %v138
  %167 = vst.msk [vmem:[#allocation3 + $0xa0] sm:$0xff] %vm156, %v140
  %168 = vst.msk [vmem:[#allocation3 + $0xb0] sm:$0xff] %vm156, %v142
  %169 = vst.msk [vmem:[#allocation3 + $0xc0] sm:$0xff] %vm156, %v144
  %170 = vst.msk [vmem:[#allocation3 + $0xd0] sm:$0xff] %vm156, %v146
  %171 = vst.msk [vmem:[#allocation3 + $0xe0] sm:$0xff] %vm156, %v148
  %172 = vst.msk [vmem:[#allocation3 + $0xf0] sm:$0xff] %vm156, %v150
  %vm205 = vcmask 1046528
  %v206 = vrot.slane %v116, 1
  %v207 = vrot.slane %v117, 1
  %v208 = vsel %vm205, %v206, %v207
  %v209 = vrot.slane %v118, 1
  %v210 = vrot.slane %v119, 1
  %v211 = vsel %vm205, %v209, %v210
  %v212 = vrot.slane %v120, 1
  %v213 = vrot.slane %v121, 1
  %v214 = vsel %vm205, %v212, %v213
  %v215 = vrot.slane %v122, 1
  %v216 = vrot.slane %v123, 1
  %v217 = vsel %vm205, %v215, %v216
  %v218 = vrot.slane %v124, 1
  %v219 = vrot.slane %v125, 1
  %v220 = vsel %vm205, %v218, %v219
  %v221 = vrot.slane %v126, 1
  %v222 = vrot.slane %v127, 1
  %v223 = vsel %vm205, %v221, %v222
  %v224 = vrot.slane %v128, 1
  %v225 = vrot.slane %v129, 1
  %v226 = vsel %vm205, %v224, %v225
  %v227 = vrot.slane %v130, 1
  %v228 = vrot.slane %v131, 1
  %v229 = vsel %vm205, %v227, %v228
  %v230 = vrot.slane %v136, 1
  %v231 = vrot.slane %v137, 1
  %v232 = vsel %vm205, %v230, %v231
  %v233 = vrot.slane %v138, 1
  %v234 = vrot.slane %v139, 1
  %v235 = vsel %vm205, %v233, %v234
  %v236 = vrot.slane %v140, 1
  %v237 = vrot.slane %v141, 1
  %v238 = vsel %vm205, %v236, %v237
  %v239 = vrot.slane %v142, 1
  %v240 = vrot.slane %v143, 1
  %v241 = vsel %vm205, %v239, %v240
  %v242 = vrot.slane %v144, 1
  %v243 = vrot.slane %v145, 1
  %v244 = vsel %vm205, %v242, %v243
  %v245 = vrot.slane %v146, 1
  %v246 = vrot.slane %v147, 1
  %v247 = vsel %vm205, %v245, %v246
  %v248 = vrot.slane %v148, 1
  %v249 = vrot.slane %v149, 1
  %v250 = vsel %vm205, %v248, %v249
  %v251 = vrot.slane %v150, 1
  %v252 = vrot.slane %v151, 1
  %v253 = vsel %vm205, %v251, %v252
  %254 = vrot.lane.b32.xlu0 %v208, 4
  %v255 = vpop.permute.xlu0 %254
  %256 = vrot.lane.b32.xlu0 %v211, 4
  %v257 = vpop.permute.xlu0 %256
  %258 = vrot.lane.b32.xlu0 %v214, 4
  %v259 = vpop.permute.xlu0 %258
  %260 = vrot.lane.b32.xlu0 %v217, 4
  %v261 = vpop.permute.xlu0 %260
  %262 = vrot.lane.b32.xlu0 %v220, 4
  %v263 = vpop.permute.xlu0 %262
  %264 = vrot.lane.b32.xlu0 %v223, 4
  %v265 = vpop.permute.xlu0 %264
  %266 = vrot.lane.b32.xlu0 %v226, 4
  %v267 = vpop.permute.xlu0 %266
  %268 = vrot.lane.b32.xlu0 %v229, 4
  %v269 = vpop.permute.xlu0 %268
  %270 = vrot.lane.b32.xlu0 %v232, 4
  %v271 = vpop.permute.xlu0 %270
  %272 = vrot.lane.b32.xlu0 %v235, 4
  %v273 = vpop.permute.xlu0 %272
  %274 = vrot.lane.b32.xlu0 %v238, 4
  %v275 = vpop.permute.xlu0 %274
  %276 = vrot.lane.b32.xlu0 %v241, 4
  %v277 = vpop.permute.xlu0 %276
  %278 = vrot.lane.b32.xlu0 %v244, 4
  %v279 = vpop.permute.xlu0 %278
  %280 = vrot.lane.b32.xlu0 %v247, 4
  %v281 = vpop.permute.xlu0 %280
  %282 = vrot.lane.b32.xlu0 %v250, 4
  %v283 = vpop.permute.xlu0 %282
  %284 = vrot.lane.b32.xlu0 %v253, 4
  %v285 = vpop.permute.xlu0 %284
  %vm302 = vcmask 64544
  %303 = vst.msk [vmem:[#allocation3] sm:$0xff] %vm302, %v255
  %304 = vst.msk [vmem:[#allocation3 + $0x10] sm:$0xff] %vm302, %v257
  %305 = vst.msk [vmem:[#allocation3 + $0x20] sm:$0xff] %vm302, %v259
  %306 = vst.msk [vmem:[#allocation3 + $0x30] sm:$0xff] %vm302, %v261
  %307 = vst.msk [vmem:[#allocation3 + $0x40] sm:$0xff] %vm302, %v263
  %308 = vst.msk [vmem:[#allocation3 + $0x50] sm:$0xff] %vm302, %v265
  %309 = vst.msk [vmem:[#allocation3 + $0x60] sm:$0xff] %vm302, %v267
  %310 = vst.msk [vmem:[#allocation3 + $0x70] sm:$0xff] %vm302, %v269
  %311 = vst.msk [vmem:[#allocation3 + $0x80] sm:$0xff] %vm302, %v271
  %312 = vst.msk [vmem:[#allocation3 + $0x90] sm:$0xff] %vm302, %v273
  %313 = vst.msk [vmem:[#allocation3 + $0xa0] sm:$0xff] %vm302, %v275
  %314 = vst.msk [vmem:[#allocation3 + $0xb0] sm:$0xff] %vm302, %v277
  %315 = vst.msk [vmem:[#allocation3 + $0xc0] sm:$0xff] %vm302, %v279
  %316 = vst.msk [vmem:[#allocation3 + $0xd0] sm:$0xff] %vm302, %v281
  %317 = vst.msk [vmem:[#allocation3 + $0xe0] sm:$0xff] %vm302, %v283
  %318 = vst.msk [vmem:[#allocation3 + $0xf0] sm:$0xff] %vm302, %v285
  %vm319 = vcmask 1045504
  %v320 = vrot.slane %v116, 2
  %v321 = vrot.slane %v117, 2
  %v322 = vsel %vm319, %v320, %v321
  %v323 = vrot.slane %v118, 2
  %v324 = vrot.slane %v119, 2
  %v325 = vsel %vm319, %v323, %v324
  %v326 = vrot.slane %v120, 2
  %v327 = vrot.slane %v121, 2
  %v328 = vsel %vm319, %v326, %v327
  %v329 = vrot.slane %v122, 2
  %v330 = vrot.slane %v123, 2
  %v331 = vsel %vm319, %v329, %v330
  %v332 = vrot.slane %v124, 2
  %v333 = vrot.slane %v125, 2
  %v334 = vsel %vm319, %v332, %v333
  %v335 = vrot.slane %v126, 2
  %v336 = vrot.slane %v127, 2
  %v337 = vsel %vm319, %v335, %v336
  %v338 = vrot.slane %v128, 2
  %v339 = vrot.slane %v129, 2
  %v340 = vsel %vm319, %v338, %v339
  %v341 = vrot.slane %v130, 2
  %v342 = vrot.slane %v131, 2
  %v343 = vsel %vm319, %v341, %v342
  %v344 = vrot.slane %v136, 2
  %v345 = vrot.slane %v137, 2
  %v346 = vsel %vm319, %v344, %v345
  %v347 = vrot.slane %v138, 2
  %v348 = vrot.slane %v139, 2
  %v349 = vsel %vm319, %v347, %v348
  %v350 = vrot.slane %v140, 2
  %v351 = vrot.slane %v141, 2
  %v352 = vsel %vm319, %v350, %v351
  %v353 = vrot.slane %v142, 2
  %v354 = vrot.slane %v143, 2
  %v355 = vsel %vm319, %v353, %v354
  %v356 = vrot.slane %v144, 2
  %v357 = vrot.slane %v145, 2
  %v358 = vsel %vm319, %v356, %v357
  %v359 = vrot.slane %v146, 2
  %v360 = vrot.slane %v147, 2
  %v361 = vsel %vm319, %v359, %v360
  %v362 = vrot.slane %v148, 2
  %v363 = vrot.slane %v149, 2
  %v364 = vsel %vm319, %v362, %v363
  %v365 = vrot.slane %v150, 2
  %v366 = vrot.slane %v151, 2
  %v367 = vsel %vm319, %v365, %v366
  %368 = vrot.lane.b32.xlu0 %v322, 8
  %v369 = vpop.permute.xlu0 %368
  %370 = vrot.lane.b32.xlu0 %v325, 8
  %v371 = vpop.permute.xlu0 %370
  %372 = vrot.lane.b32.xlu0 %v328, 8
  %v373 = vpop.permute.xlu0 %372
  %374 = vrot.lane.b32.xlu0 %v331, 8
  %v375 = vpop.permute.xlu0 %374
  %376 = vrot.lane.b32.xlu0 %v334, 8
  %v377 = vpop.permute.xlu0 %376
  %378 = vrot.lane.b32.xlu0 %v337, 8
  %v379 = vpop.permute.xlu0 %378
  %380 = vrot.lane.b32.xlu0 %v340, 8
  %v381 = vpop.permute.xlu0 %380
  %382 = vrot.lane.b32.xlu0 %v343, 8
  %v383 = vpop.permute.xlu0 %382
  %384 = vrot.lane.b32.xlu0 %v346, 8
  %v385 = vpop.permute.xlu0 %384
  %386 = vrot.lane.b32.xlu0 %v349, 8
  %v387 = vpop.permute.xlu0 %386
  %388 = vrot.lane.b32.xlu0 %v352, 8
  %v389 = vpop.permute.xlu0 %388
  %390 = vrot.lane.b32.xlu0 %v355, 8
  %v391 = vpop.permute.xlu0 %390
  %392 = vrot.lane.b32.xlu0 %v358, 8
  %v393 = vpop.permute.xlu0 %392
  %394 = vrot.lane.b32.xlu0 %v361, 8
  %v395 = vpop.permute.xlu0 %394
  %396 = vrot.lane.b32.xlu0 %v364, 8
  %v397 = vpop.permute.xlu0 %396
  %398 = vrot.lane.b32.xlu0 %v367, 8
  %v399 = vpop.permute.xlu0 %398
  %vm416 = vcmask 97344
  %417 = vst.msk [vmem:[#allocation3] sm:$0xff] %vm416, %v369
  %418 = vst.msk [vmem:[#allocation3 + $0x10] sm:$0xff] %vm416, %v371
  %419 = vst.msk [vmem:[#allocation3 + $0x20] sm:$0xff] %vm416, %v373
  %420 = vst.msk [vmem:[#allocation3 + $0x30] sm:$0xff] %vm416, %v375
  %421 = vst.msk [vmem:[#allocation3 + $0x40] sm:$0xff] %vm416, %v377
  %422 = vst.msk [vmem:[#allocation3 + $0x50] sm:$0xff] %vm416, %v379
  %423 = vst.msk [vmem:[#allocation3 + $0x60] sm:$0xff] %vm416, %v381
  %424 = vst.msk [vmem:[#allocation3 + $0x70] sm:$0xff] %vm416, %v383
  %425 = vst.msk [vmem:[#allocation3 + $0x80] sm:$0xff] %vm416, %v385
  %426 = vst.msk [vmem:[#allocation3 + $0x90] sm:$0xff] %vm416, %v387
  %427 = vst.msk [vmem:[#allocation3 + $0xa0] sm:$0xff] %vm416, %v389
  %428 = vst.msk [vmem:[#allocation3 + $0xb0] sm:$0xff] %vm416, %v391
  %429 = vst.msk [vmem:[#allocation3 + $0xc0] sm:$0xff] %vm416, %v393
  %430 = vst.msk [vmem:[#allocation3 + $0xd0] sm:$0xff] %vm416, %v395
  %431 = vst.msk [vmem:[#allocation3 + $0xe0] sm:$0xff] %vm416, %v397
  %432 = vst.msk [vmem:[#allocation3 + $0xf0] sm:$0xff] %vm416, %v399
  %435 = vrot.lane.b32.xlu0 %v118, 12
  %v436 = vpop.permute.xlu0 %435
  %437 = vrot.lane.b32.xlu0 %v120, 12
  %v438 = vpop.permute.xlu0 %437
  %439 = vrot.lane.b32.xlu0 %v122, 12
  %v440 = vpop.permute.xlu0 %439
  %441 = vrot.lane.b32.xlu0 %v124, 12
  %v442 = vpop.permute.xlu0 %441
  %443 = vrot.lane.b32.xlu0 %v126, 12
  %v444 = vpop.permute.xlu0 %443
  %445 = vrot.lane.b32.xlu0 %v128, 12
  %v446 = vpop.permute.xlu0 %445
  %447 = vrot.lane.b32.xlu0 %v130, 12
  %v448 = vpop.permute.xlu0 %447
  %449 = vrot.lane.b32.xlu0 %v132, 12
  %v450 = vpop.permute.xlu0 %449
  %451 = vrot.lane.b32.xlu0 %v138, 12
  %v452 = vpop.permute.xlu0 %451
  %453 = vrot.lane.b32.xlu0 %v140, 12
  %v454 = vpop.permute.xlu0 %453
  %455 = vrot.lane.b32.xlu0 %v142, 12
  %v456 = vpop.permute.xlu0 %455
  %457 = vrot.lane.b32.xlu0 %v144, 12
  %v458 = vpop.permute.xlu0 %457
  %459 = vrot.lane.b32.xlu0 %v146, 12
  %v460 = vpop.permute.xlu0 %459
  %461 = vrot.lane.b32.xlu0 %v148, 12
  %v462 = vpop.permute.xlu0 %461
  %463 = vrot.lane.b32.xlu0 %v150, 12
  %v464 = vpop.permute.xlu0 %463
  %465 = vrot.lane.b32.xlu0 %v152, 12
  %v466 = vpop.permute.xlu0 %465
  %vm483 = vcmask 130144
  %484 = vst.msk [vmem:[#allocation3] sm:$0xff] %vm483, %v436
  %485 = vst.msk [vmem:[#allocation3 + $0x10] sm:$0xff] %vm483, %v438
  %486 = vst.msk [vmem:[#allocation3 + $0x20] sm:$0xff] %vm483, %v440
  %487 = vst.msk [vmem:[#allocation3 + $0x30] sm:$0xff] %vm483, %v442
  %488 = vst.msk [vmem:[#allocation3 + $0x40] sm:$0xff] %vm483, %v444
  %489 = vst.msk [vmem:[#allocation3 + $0x50] sm:$0xff] %vm483, %v446
  %490 = vst.msk [vmem:[#allocation3 + $0x60] sm:$0xff] %vm483, %v448
  %491 = vst.msk [vmem:[#allocation3 + $0x70] sm:$0xff] %vm483, %v450
  %492 = vst.msk [vmem:[#allocation3 + $0x80] sm:$0xff] %vm483, %v452
  %493 = vst.msk [vmem:[#allocation3 + $0x90] sm:$0xff] %vm483, %v454
  %494 = vst.msk [vmem:[#allocation3 + $0xa0] sm:$0xff] %vm483, %v456
  %495 = vst.msk [vmem:[#allocation3 + $0xb0] sm:$0xff] %vm483, %v458
  %496 = vst.msk [vmem:[#allocation3 + $0xc0] sm:$0xff] %vm483, %v460
  %497 = vst.msk [vmem:[#allocation3 + $0xd0] sm:$0xff] %vm483, %v462
  %498 = vst.msk [vmem:[#allocation3 + $0xe0] sm:$0xff] %vm483, %v464
  %499 = vst.msk [vmem:[#allocation3 + $0xf0] sm:$0xff] %vm483, %v466
  %v502 = vrot.slane %v132, 1
  %v503 = vrot.slane %v133, 1
  %v504 = vsel %vm205, %v502, %v503
  %v505 = vrot.slane %v152, 1
  %v506 = vrot.slane %v153, 1
  %v507 = vsel %vm205, %v505, %v506
  %508 = vrot.lane.b32.xlu0 %v211, 16
  %v509 = vpop.permute.xlu0 %508
  %510 = vrot.lane.b32.xlu0 %v214, 16
  %v511 = vpop.permute.xlu0 %510
  %512 = vrot.lane.b32.xlu0 %v217, 16
  %v513 = vpop.permute.xlu0 %512
  %514 = vrot.lane.b32.xlu0 %v220, 16
  %v515 = vpop.permute.xlu0 %514
  %516 = vrot.lane.b32.xlu0 %v223, 16
  %v517 = vpop.permute.xlu0 %516
  %518 = vrot.lane.b32.xlu0 %v226, 16
  %v519 = vpop.permute.xlu0 %518
  %520 = vrot.lane.b32.xlu0 %v229, 16
  %v521 = vpop.permute.xlu0 %520
  %522 = vrot.lane.b32.xlu0 %v504, 16
  %v523 = vpop.permute.xlu0 %522
  %524 = vrot.lane.b32.xlu0 %v235, 16
  %v525 = vpop.permute.xlu0 %524
  %526 = vrot.lane.b32.xlu0 %v238, 16
  %v527 = vpop.permute.xlu0 %526
  %528 = vrot.lane.b32.xlu0 %v241, 16
  %v529 = vpop.permute.xlu0 %528
  %530 = vrot.lane.b32.xlu0 %v244, 16
  %v531 = vpop.permute.xlu0 %530
  %532 = vrot.lane.b32.xlu0 %v247, 16
  %v533 = vpop.permute.xlu0 %532
  %534 = vrot.lane.b32.xlu0 %v250, 16
  %v535 = vpop.permute.xlu0 %534
  %536 = vrot.lane.b32.xlu0 %v253, 16
  %v537 = vpop.permute.xlu0 %536
  %538 = vrot.lane.b32.xlu0 %v507, 16
  %v539 = vpop.permute.xlu0 %538
  %vm556 = vcmask 162944
  %557 = vst.msk [vmem:[#allocation3] sm:$0xff] %vm556, %v509
  %558 = vst.msk [vmem:[#allocation3 + $0x10] sm:$0xff] %vm556, %v511
  %559 = vst.msk [vmem:[#allocation3 + $0x20] sm:$0xff] %vm556, %v513
  %560 = vst.msk [vmem:[#allocation3 + $0x30] sm:$0xff] %vm556, %v515
  %561 = vst.msk [vmem:[#allocation3 + $0x40] sm:$0xff] %vm556, %v517
  %562 = vst.msk [vmem:[#allocation3 + $0x50] sm:$0xff] %vm556, %v519
  %563 = vst.msk [vmem:[#allocation3 + $0x60] sm:$0xff] %vm556, %v521
  %564 = vst.msk [vmem:[#allocation3 + $0x70] sm:$0xff] %vm556, %v523
  %565 = vst.msk [vmem:[#allocation3 + $0x80] sm:$0xff] %vm556, %v525
  %566 = vst.msk [vmem:[#allocation3 + $0x90] sm:$0xff] %vm556, %v527
  %567 = vst.msk [vmem:[#allocation3 + $0xa0] sm:$0xff] %vm556, %v529
  %568 = vst.msk [vmem:[#allocation3 + $0xb0] sm:$0xff] %vm556, %v531
  %569 = vst.msk [vmem:[#allocation3 + $0xc0] sm:$0xff] %vm556, %v533
  %570 = vst.msk [vmem:[#allocation3 + $0xd0] sm:$0xff] %vm556, %v535
  %571 = vst.msk [vmem:[#allocation3 + $0xe0] sm:$0xff] %vm556, %v537
  %572 = vst.msk [vmem:[#allocation3 + $0xf0] sm:$0xff] %vm556, %v539
  %v573 = vrot.slane %v132, 2
  %v574 = vrot.slane %v133, 2
  %v575 = vsel %vm319, %v573, %v574
  %v576 = vrot.slane %v152, 2
  %v577 = vrot.slane %v153, 2
  %v578 = vsel %vm319, %v576, %v577
  %579 = vrot.lane.b32.xlu0 %v325, 20
  %v580 = vpop.permute.xlu0 %579
  %581 = vrot.lane.b32.xlu0 %v328, 20
  %v582 = vpop.permute.xlu0 %581
  %583 = vrot.lane.b32.xlu0 %v331, 20
  %v584 = vpop.permute.xlu0 %583
  %585 = vrot.lane.b32.xlu0 %v334, 20
  %v586 = vpop.permute.xlu0 %585
  %587 = vrot.lane.b32.xlu0 %v337, 20
  %v588 = vpop.permute.xlu0 %587
  %589 = vrot.lane.b32.xlu0 %v340, 20
  %v590 = vpop.permute.xlu0 %589
  %591 = vrot.lane.b32.xlu0 %v343, 20
  %v592 = vpop.permute.xlu0 %591
  %593 = vrot.lane.b32.xlu0 %v575, 20
  %v594 = vpop.permute.xlu0 %593
  %595 = vrot.lane.b32.xlu0 %v349, 20
  %v596 = vpop.permute.xlu0 %595
  %597 = vrot.lane.b32.xlu0 %v352, 20
  %v598 = vpop.permute.xlu0 %597
  %599 = vrot.lane.b32.xlu0 %v355, 20
  %v600 = vpop.permute.xlu0 %599
  %601 = vrot.lane.b32.xlu0 %v358, 20
  %v602 = vpop.permute.xlu0 %601
  %603 = vrot.lane.b32.xlu0 %v361, 20
  %v604 = vpop.permute.xlu0 %603
  %605 = vrot.lane.b32.xlu0 %v364, 20
  %v606 = vpop.permute.xlu0 %605
  %607 = vrot.lane.b32.xlu0 %v367, 20
  %v608 = vpop.permute.xlu0 %607
  %609 = vrot.lane.b32.xlu0 %v578, 20
  %v610 = vpop.permute.xlu0 %609
  %vm627 = vcmask 195744
  %628 = vst.msk [vmem:[#allocation3] sm:$0xff] %vm627, %v580
  %629 = vst.msk [vmem:[#allocation3 + $0x10] sm:$0xff] %vm627, %v582
  %630 = vst.msk [vmem:[#allocation3 + $0x20] sm:$0xff] %vm627, %v584
  %631 = vst.msk [vmem:[#allocation3 + $0x30] sm:$0xff] %vm627, %v586
  %632 = vst.msk [vmem:[#allocation3 + $0x40] sm:$0xff] %vm627, %v588
  %633 = vst.msk [vmem:[#allocation3 + $0x50] sm:$0xff] %vm627, %v590
  %634 = vst.msk [vmem:[#allocation3 + $0x60] sm:$0xff] %vm627, %v592
  %635 = vst.msk [vmem:[#allocation3 + $0x70] sm:$0xff] %vm627, %v594
  %636 = vst.msk [vmem:[#allocation3 + $0x80] sm:$0xff] %vm627, %v596
  %637 = vst.msk [vmem:[#allocation3 + $0x90] sm:$0xff] %vm627, %v598
  %638 = vst.msk [vmem:[#allocation3 + $0xa0] sm:$0xff] %vm627, %v600
  %639 = vst.msk [vmem:[#allocation3 + $0xb0] sm:$0xff] %vm627, %v602
  %640 = vst.msk [vmem:[#allocation3 + $0xc0] sm:$0xff] %vm627, %v604
  %641 = vst.msk [vmem:[#allocation3 + $0xd0] sm:$0xff] %vm627, %v606
  %642 = vst.msk [vmem:[#allocation3 + $0xe0] sm:$0xff] %vm627, %v608
  %643 = vst.msk [vmem:[#allocation3 + $0xf0] sm:$0xff] %vm627, %v610
  %646 = vrot.lane.b32.xlu0 %v120, 24
  %v647 = vpop.permute.xlu0 %646
  %648 = vrot.lane.b32.xlu0 %v122, 24
  %v649 = vpop.permute.xlu0 %648
  %650 = vrot.lane.b32.xlu0 %v124, 24
  %v651 = vpop.permute.xlu0 %650
  %652 = vrot.lane.b32.xlu0 %v126, 24
  %v653 = vpop.permute.xlu0 %652
  %654 = vrot.lane.b32.xlu0 %v128, 24
  %v655 = vpop.permute.xlu0 %654
  %656 = vrot.lane.b32.xlu0 %v130, 24
  %v657 = vpop.permute.xlu0 %656
  %658 = vrot.lane.b32.xlu0 %v132, 24
  %v659 = vpop.permute.xlu0 %658
  %660 = vrot.lane.b32.xlu0 %v134, 24
  %v661 = vpop.permute.xlu0 %660
  %662 = vrot.lane.b32.xlu0 %v140, 24
  %v663 = vpop.permute.xlu0 %662
  %664 = vrot.lane.b32.xlu0 %v142, 24
  %v665 = vpop.permute.xlu0 %664
  %666 = vrot.lane.b32.xlu0 %v144, 24
  %v667 = vpop.permute.xlu0 %666
  %668 = vrot.lane.b32.xlu0 %v146, 24
  %v669 = vpop.permute.xlu0 %668
  %670 = vrot.lane.b32.xlu0 %v148, 24
  %v671 = vpop.permute.xlu0 %670
  %672 = vrot.lane.b32.xlu0 %v150, 24
  %v673 = vpop.permute.xlu0 %672
  %674 = vrot.lane.b32.xlu0 %v152, 24
  %v675 = vpop.permute.xlu0 %674
  %676 = vrot.lane.b32.xlu0 %v154, 24
  %v677 = vpop.permute.xlu0 %676
  %vm694 = vcmask 228544
  %695 = vst.msk [vmem:[#allocation3] sm:$0xff] %vm694, %v647
  %696 = vst.msk [vmem:[#allocation3 + $0x10] sm:$0xff] %vm694, %v649
  %697 = vst.msk [vmem:[#allocation3 + $0x20] sm:$0xff] %vm694, %v651
  %698 = vst.msk [vmem:[#allocation3 + $0x30] sm:$0xff] %vm694, %v653
  %699 = vst.msk [vmem:[#allocation3 + $0x40] sm:$0xff] %vm694, %v655
  %700 = vst.msk [vmem:[#allocation3 + $0x50] sm:$0xff] %vm694, %v657
  %701 = vst.msk [vmem:[#allocation3 + $0x60] sm:$0xff] %vm694, %v659
  %702 = vst.msk [vmem:[#allocation3 + $0x70] sm:$0xff] %vm694, %v661
  %703 = vst.msk [vmem:[#allocation3 + $0x80] sm:$0xff] %vm694, %v663
  %704 = vst.msk [vmem:[#allocation3 + $0x90] sm:$0xff] %vm694, %v665
  %705 = vst.msk [vmem:[#allocation3 + $0xa0] sm:$0xff] %vm694, %v667
  %706 = vst.msk [vmem:[#allocation3 + $0xb0] sm:$0xff] %vm694, %v669
  %707 = vst.msk [vmem:[#allocation3 + $0xc0] sm:$0xff] %vm694, %v671
  %708 = vst.msk [vmem:[#allocation3 + $0xd0] sm:$0xff] %vm694, %v673
  %709 = vst.msk [vmem:[#allocation3 + $0xe0] sm:$0xff] %vm694, %v675
  %710 = vst.msk [vmem:[#allocation3 + $0xf0] sm:$0xff] %vm694, %v677
  %v713 = vrot.slane %v134, 1
  %v714 = vrot.slane %v135, 1
  %v715 = vsel %vm205, %v713, %v714
  %v716 = vrot.slane %v154, 1
  %v717 = vrot.slane %v155, 1
  %v718 = vsel %vm205, %v716, %v717
  %719 = vrot.lane.b32.xlu0 %v214, 28
  %v720 = vpop.permute.xlu0 %719
  %721 = vrot.lane.b32.xlu0 %v217, 28
  %v722 = vpop.permute.xlu0 %721
  %723 = vrot.lane.b32.xlu0 %v220, 28
  %v724 = vpop.permute.xlu0 %723
  %725 = vrot.lane.b32.xlu0 %v223, 28
  %v726 = vpop.permute.xlu0 %725
  %727 = vrot.lane.b32.xlu0 %v226, 28
  %v728 = vpop.permute.xlu0 %727
  %729 = vrot.lane.b32.xlu0 %v229, 28
  %v730 = vpop.permute.xlu0 %729
  %731 = vrot.lane.b32.xlu0 %v504, 28
  %v732 = vpop.permute.xlu0 %731
  %733 = vrot.lane.b32.xlu0 %v715, 28
  %v734 = vpop.permute.xlu0 %733
  %735 = vrot.lane.b32.xlu0 %v238, 28
  %v736 = vpop.permute.xlu0 %735
  %737 = vrot.lane.b32.xlu0 %v241, 28
  %v738 = vpop.permute.xlu0 %737
  %739 = vrot.lane.b32.xlu0 %v244, 28
  %v740 = vpop.permute.xlu0 %739
  %741 = vrot.lane.b32.xlu0 %v247, 28
  %v742 = vpop.permute.xlu0 %741
  %743 = vrot.lane.b32.xlu0 %v250, 28
  %v744 = vpop.permute.xlu0 %743
  %745 = vrot.lane.b32.xlu0 %v253, 28
  %v746 = vpop.permute.xlu0 %745
  %747 = vrot.lane.b32.xlu0 %v507, 28
  %v748 = vpop.permute.xlu0 %747
  %749 = vrot.lane.b32.xlu0 %v718, 28
  %v750 = vpop.permute.xlu0 %749
  %vm767 = vcmask 261344
  %768 = vst.msk [vmem:[#allocation3] sm:$0xff] %vm767, %v720
  %769 = vst.msk [vmem:[#allocation3 + $0x10] sm:$0xff] %vm767, %v722
  %770 = vst.msk [vmem:[#allocation3 + $0x20] sm:$0xff] %vm767, %v724
  %771 = vst.msk [vmem:[#allocation3 + $0x30] sm:$0xff] %vm767, %v726
  %772 = vst.msk [vmem:[#allocation3 + $0x40] sm:$0xff] %vm767, %v728
  %773 = vst.msk [vmem:[#allocation3 + $0x50] sm:$0xff] %vm767, %v730
  %774 = vst.msk [vmem:[#allocation3 + $0x60] sm:$0xff] %vm767, %v732
  %775 = vst.msk [vmem:[#allocation3 + $0x70] sm:$0xff] %vm767, %v734
  %776 = vst.msk [vmem:[#allocation3 + $0x80] sm:$0xff] %vm767, %v736
  %777 = vst.msk [vmem:[#allocation3 + $0x90] sm:$0xff] %vm767, %v738
  %778 = vst.msk [vmem:[#allocation3 + $0xa0] sm:$0xff] %vm767, %v740
  %779 = vst.msk [vmem:[#allocation3 + $0xb0] sm:$0xff] %vm767, %v742
  %780 = vst.msk [vmem:[#allocation3 + $0xc0] sm:$0xff] %vm767, %v744
  %781 = vst.msk [vmem:[#allocation3 + $0xd0] sm:$0xff] %vm767, %v746
  %782 = vst.msk [vmem:[#allocation3 + $0xe0] sm:$0xff] %vm767, %v748
  %783 = vst.msk [vmem:[#allocation3 + $0xf0] sm:$0xff] %vm767, %v750
  %v784 = vrot.slane %v134, 2
  %v785 = vrot.slane %v135, 2
  %v786 = vsel %vm319, %v784, %v785
  %v787 = vrot.slane %v154, 2
  %v788 = vrot.slane %v155, 2
  %v789 = vsel %vm319, %v787, %v788
  %790 = vrot.lane.b32.xlu0 %v328, 32
  %v791 = vpop.permute.xlu0 %790
  %792 = vrot.lane.b32.xlu0 %v331, 32
  %v793 = vpop.permute.xlu0 %792
  %794 = vrot.lane.b32.xlu0 %v334, 32
  %v795 = vpop.permute.xlu0 %794
  %796 = vrot.lane.b32.xlu0 %v337, 32
  %v797 = vpop.permute.xlu0 %796
  %798 = vrot.lane.b32.xlu0 %v340, 32
  %v799 = vpop.permute.xlu0 %798
  %800 = vrot.lane.b32.xlu0 %v343, 32
  %v801 = vpop.permute.xlu0 %800
  %802 = vrot.lane.b32.xlu0 %v575, 32
  %v803 = vpop.permute.xlu0 %802
  %804 = vrot.lane.b32.xlu0 %v786, 32
  %v805 = vpop.permute.xlu0 %804
  %806 = vrot.lane.b32.xlu0 %v352, 32
  %v807 = vpop.permute.xlu0 %806
  %808 = vrot.lane.b32.xlu0 %v355, 32
  %v809 = vpop.permute.xlu0 %808
  %810 = vrot.lane.b32.xlu0 %v358, 32
  %v811 = vpop.permute.xlu0 %810
  %812 = vrot.lane.b32.xlu0 %v361, 32
  %v813 = vpop.permute.xlu0 %812
  %814 = vrot.lane.b32.xlu0 %v364, 32
  %v815 = vpop.permute.xlu0 %814
  %816 = vrot.lane.b32.xlu0 %v367, 32
  %v817 = vpop.permute.xlu0 %816
  %818 = vrot.lane.b32.xlu0 %v578, 32
  %v819 = vpop.permute.xlu0 %818
  %820 = vrot.lane.b32.xlu0 %v789, 32
  %v821 = vpop.permute.xlu0 %820
  %vm838 = vcmask 294144
  %839 = vst.msk [vmem:[#allocation3] sm:$0xff] %vm838, %v791
  %840 = vst.msk [vmem:[#allocation3 + $0x10] sm:$0xff] %vm838, %v793
  %841 = vst.msk [vmem:[#allocation3 + $0x20] sm:$0xff] %vm838, %v795
  %842 = vst.msk [vmem:[#allocation3 + $0x30] sm:$0xff] %vm838, %v797
  %843 = vst.msk [vmem:[#allocation3 + $0x40] sm:$0xff] %vm838, %v799
  %844 = vst.msk [vmem:[#allocation3 + $0x50] sm:$0xff] %vm838, %v801
  %845 = vst.msk [vmem:[#allocation3 + $0x60] sm:$0xff] %vm838, %v803
  %846 = vst.msk [vmem:[#allocation3 + $0x70] sm:$0xff] %vm838, %v805
  %847 = vst.msk [vmem:[#allocation3 + $0x80] sm:$0xff] %vm838, %v807
  %848 = vst.msk [vmem:[#allocation3 + $0x90] sm:$0xff] %vm838, %v809
  %849 = vst.msk [vmem:[#allocation3 + $0xa0] sm:$0xff] %vm838, %v811
  %850 = vst.msk [vmem:[#allocation3 + $0xb0] sm:$0xff] %vm838, %v813
  %851 = vst.msk [vmem:[#allocation3 + $0xc0] sm:$0xff] %vm838, %v815
  %852 = vst.msk [vmem:[#allocation3 + $0xd0] sm:$0xff] %vm838, %v817
  %853 = vst.msk [vmem:[#allocation3 + $0xe0] sm:$0xff] %vm838, %v819
  %854 = vst.msk [vmem:[#allocation3 + $0xf0] sm:$0xff] %vm838, %v821
  %v855 = vld [vmem:[#allocation3] sm:$0xff]
  %v856 = vld [vmem:[#allocation3 + $0x10] sm:$0xff]
  %v857 = vld [vmem:[#allocation3 + $0x20] sm:$0xff]
  %v858 = vld [vmem:[#allocation3 + $0x30] sm:$0xff]
  %v859 = vld [vmem:[#allocation3 + $0x40] sm:$0xff]
  %v860 = vld [vmem:[#allocation3 + $0x50] sm:$0xff]
  %v861 = vld [vmem:[#allocation3 + $0x60] sm:$0xff]
  %v862 = vld [vmem:[#allocation3 + $0x70] sm:$0xff]
  %v863 = vld [vmem:[#allocation3 + $0x80] sm:$0xff]
  %v864 = vld [vmem:[#allocation3 + $0x90] sm:$0xff]
  %v865 = vld [vmem:[#allocation3 + $0xa0] sm:$0xff]
  %v866 = vld [vmem:[#allocation3 + $0xb0] sm:$0xff]
  %v867 = vld [vmem:[#allocation3 + $0xc0] sm:$0xff]
  %v868 = vld [vmem:[#allocation3 + $0xd0] sm:$0xff]
  %v869 = vld [vmem:[#allocation3 + $0xe0] sm:$0xff]
  %v870 = vld [vmem:[#allocation3 + $0xf0] sm:$0xff]
  %v871 = vpack.c.bf16 %v856, %v855
  %v872 = vpack.c.bf16 %v858, %v857
  %v873 = vpack.c.bf16 %v860, %v859
  %v874 = vpack.c.bf16 %v862, %v861
  %v875 = vpack.c.bf16 %v864, %v863
  %v876 = vpack.c.bf16 %v866, %v865
  %v877 = vpack.c.bf16 %v868, %v867
  %v878 = vpack.c.bf16 %v870, %v869
  %v879 = vld [vmem:[%s1] sm:$0xf]
  %v880 = vld [vmem:[%s1 + $0x4] sm:$0xf]
  %v881 = vld [vmem:[%s1 + $0x8] sm:$0xf]
  %v882 = vld [vmem:[%s1 + $0xc] sm:$0xf]
  %v883 = vld [vmem:[%s1 + $0x10] sm:$0x3]
  %v889 = vunpack.c.l.b16 %v879
  %v890 = vunpack.c.l.b16 %v880
  %v891 = vunpack.c.l.b16 %v881
  %v892 = vunpack.c.l.b16 %v882
  %v893 = vunpack.c.l.b16 %v883
  %v894 = vpack.c.b16 %v890, %v889
  %v895 = vpack.c.b16 %v892, %v891
  %v896 = vpack.c.b16 %v893, %v893
  %vm899 = vcmask 293888
  %v901 = vsel %vm899, %v871, 0
  %v904 = vsel %vm899, %v872, 0
  %v907 = vsel %vm899, %v873, 0
  %v910 = vsel %vm899, %v874, 0
  %v913 = vsel %vm899, %v875, 0
  %v916 = vsel %vm899, %v876, 0
  %v919 = vsel %vm899, %v877, 0
  %v922 = vsel %vm899, %v878, 0
  %vm924 = vcmask 1041408
  %v926 = vsel %vm924, %v896, 0
  %928 = vmatprep.subr.bf16.mxu0 0
  %929 = vmatpush1.bf16.msra.mxu0 %v894
  %930 = vmatprep.subr.bf16.mxu0 0
  %931 = vmatpush1.bf16.msra.mxu0 %v895
  %932 = vmatprep.subr.bf16.mxu0 0
  %933 = vmatpush1.bf16.msra.mxu0 %v926
  %934 = vmatprep.subr.bf16.mxu0 0
  %935 = vmatpush1.bf16.msra.mxu0 0
  %936 = vmatprep.subr.bf16.mxu0 0
  %937 = vmatpush1.bf16.msra.mxu0 0
  %938 = vmatprep.subr.bf16.mxu0 0
  %939 = vmatpush1.bf16.msra.mxu0 0
  %940 = vmatprep.subr.bf16.mxu0 0
  %941 = vmatpush1.bf16.msra.mxu0 0
  %942 = vmatprep.subr.bf16.mxu0 0
  %943 = vmatpush1.bf16.msra.mxu0 0
  %944 = vmatprep.subr.bf16.mxu0 0
  %945 = vmatpush1.bf16.msra.mxu0 0
  %946 = vmatprep.subr.bf16.mxu0 0
  %947 = vmatpush1.bf16.msra.mxu0 0
  %948 = vmatprep.subr.bf16.mxu0 0
  %949 = vmatpush1.bf16.msra.mxu0 0
  %950 = vmatprep.subr.bf16.mxu0 0
  %951 = vmatpush1.bf16.msra.mxu0 0
  %952 = vmatprep.subr.bf16.mxu0 0
  %953 = vmatpush1.bf16.msra.mxu0 0
  %954 = vmatprep.subr.bf16.mxu0 0
  %955 = vmatpush1.bf16.msra.mxu0 0
  %956 = vmatprep.subr.bf16.mxu0 0
  %957 = vmatpush1.bf16.msra.mxu0 0
  %958 = vmatprep.subr.bf16.mxu0 0
  %959 = vmatpush1.bf16.msra.mxu0 0
  %960 = vmatprep.mubr.bf16.mxu0 0
  %961 = vmatmul.mubr.bf16.gmra.mrb[0].mxu0 %v901
  %v962 = vpop.f32.mrb[0].mxu0
  %v963 = vadd.f32 0.0, %v962
  %v964 = vpop.f32.mrb[0].mxu0
  %v965 = vpop.f32.mrb[0].mxu0
  %v966 = vadd.f32 0.0, %v965
  %v967 = vpop.f32.mrb[0].mxu0
  %968 = vmatprep.mubr.bf16.mxu0 0
  %969 = vmatmul.mubr.bf16.gmra.mrb[0].mxu0 %v904
  %v970 = vpop.f32.mrb[0].mxu0
  %v971 = vadd.f32 0.0, %v970
  %v972 = vpop.f32.mrb[0].mxu0
  %v973 = vpop.f32.mrb[0].mxu0
  %v974 = vadd.f32 0.0, %v973
  %v975 = vpop.f32.mrb[0].mxu0
  %976 = vmatprep.mubr.bf16.mxu0 0
  %977 = vmatmul.mubr.bf16.gmra.mrb[0].mxu0 %v907
  %v978 = vpop.f32.mrb[0].mxu0
  %v979 = vadd.f32 0.0, %v978
  %v980 = vpop.f32.mrb[0].mxu0
  %v981 = vpop.f32.mrb[0].mxu0
  %v982 = vadd.f32 0.0, %v981
  %v983 = vpop.f32.mrb[0].mxu0
  %984 = vmatprep.mubr.bf16.mxu0 0
  %985 = vmatmul.mubr.bf16.gmra.mrb[0].mxu0 %v910
  %v986 = vpop.f32.mrb[0].mxu0
  %v987 = vadd.f32 0.0, %v986
  %v988 = vpop.f32.mrb[0].mxu0
  %v989 = vpop.f32.mrb[0].mxu0
  %v990 = vadd.f32 0.0, %v989
  %v991 = vpop.f32.mrb[0].mxu0
  %992 = vmatprep.mubr.bf16.mxu0 0
  %993 = vmatmul.mubr.bf16.gmra.mrb[0].mxu0 %v913
  %v994 = vpop.f32.mrb[0].mxu0
  %v995 = vadd.f32 0.0, %v994
  %v996 = vpop.f32.mrb[0].mxu0
  %v997 = vpop.f32.mrb[0].mxu0
  %v998 = vadd.f32 0.0, %v997
  %v999 = vpop.f32.mrb[0].mxu0
  %1000 = vmatprep.mubr.bf16.mxu0 0
  %1001 = vmatmul.mubr.bf16.gmra.mrb[0].mxu0 %v916
  %v1002 = vpop.f32.mrb[0].mxu0
  %v1003 = vadd.f32 0.0, %v1002
  %v1004 = vpop.f32.mrb[0].mxu0
  %v1005 = vpop.f32.mrb[0].mxu0
  %v1006 = vadd.f32 0.0, %v1005
  %v1007 = vpop.f32.mrb[0].mxu0
  %1008 = vmatprep.mubr.bf16.mxu0 0
  %1009 = vmatmul.mubr.bf16.gmra.mrb[0].mxu0 %v919
  %v1010 = vpop.f32.mrb[0].mxu0
  %v1011 = vadd.f32 0.0, %v1010
  %v1012 = vpop.f32.mrb[0].mxu0
  %v1013 = vpop.f32.mrb[0].mxu0
  %v1014 = vadd.f32 0.0, %v1013
  %v1015 = vpop.f32.mrb[0].mxu0
  %1016 = vmatprep.mubr.bf16.mxu0 0
  %1017 = vmatmul.mubr.bf16.gmra.mrb[0].mxu0 %v922
  %v1018 = vpop.f32.mrb[0].mxu0
  %v1019 = vadd.f32 0.0, %v1018
  %v1020 = vpop.f32.mrb[0].mxu0
  %v1021 = vpop.f32.mrb[0].mxu0
  %v1022 = vadd.f32 0.0, %v1021
  %v1023 = vpop.f32.mrb[0].mxu0
  %1024 = vdwg.mxu0
  %v1025 = vsel %vm74, %v963, 0.0
  %v1026 = vsel %vm74, %v966, 0.0
  %v1027 = vadd.f32 %v1025, %v1026
  %v1028 = vsel %vm74, %v971, 0.0
  %v1029 = vadd.f32 %v1027, %v1028
  %v1030 = vsel %vm74, %v974, 0.0
  %v1031 = vadd.f32 %v1029, %v1030
  %v1032 = vsel %vm74, %v979, 0.0
  %v1033 = vadd.f32 %v1031, %v1032
  %v1034 = vsel %vm74, %v982, 0.0
  %v1035 = vadd.f32 %v1033, %v1034
  %v1036 = vsel %vm74, %v987, 0.0
  %v1037 = vadd.f32 %v1035, %v1036
  %v1038 = vsel %vm74, %v990, 0.0
  %v1039 = vadd.f32 %v1037, %v1038
  %v1040 = vsel %vm74, %v995, 0.0
  %v1041 = vadd.f32 %v1039, %v1040
  %v1042 = vsel %vm74, %v998, 0.0
  %v1043 = vadd.f32 %v1041, %v1042
  %v1044 = vsel %vm74, %v1003, 0.0
  %v1045 = vadd.f32 %v1043, %v1044
  %v1046 = vsel %vm74, %v1006, 0.0
  %v1047 = vadd.f32 %v1045, %v1046
  %v1048 = vsel %vm74, %v1011, 0.0
  %v1049 = vadd.f32 %v1047, %v1048
  %v1050 = vsel %vm74, %v1014, 0.0
  %v1051 = vadd.f32 %v1049, %v1050
  %v1052 = vsel %vm74, %v1019, 0.0
  %v1053 = vadd.f32 %v1051, %v1052
  %v1054 = vsel %vm74, %v1022, 0.0
  %v1055 = vadd.f32 %v1053, %v1054
  %v1056 = vrot.slane %v1055, 4
  %v1057 = vadd.f32 %v1055, %v1056
  %v1058 = vrot.slane %v1057, 2
  %v1059 = vadd.f32 %v1057, %v1058
  %v1060 = vrot.slane %v1059, 1
  %v1061 = vadd.f32 %v1059, %v1060
  %v1062 = vrcp.pop 128.0
  %v1063 = vmul.f32 %v1061, %v1062
  %v1064 = vmul.f32 %v963, %v963
  %v1065 = vmul.f32 %v966, %v966
  %v1066 = vmul.f32 %v971, %v971
  %v1067 = vmul.f32 %v974, %v974
  %v1068 = vmul.f32 %v979, %v979
  %v1069 = vmul.f32 %v982, %v982
  %v1070 = vmul.f32 %v987, %v987
  %v1071 = vmul.f32 %v990, %v990
  %v1072 = vmul.f32 %v995, %v995
  %v1073 = vmul.f32 %v998, %v998
  %v1074 = vmul.f32 %v1003, %v1003
  %v1075 = vmul.f32 %v1006, %v1006
  %v1076 = vmul.f32 %v1011, %v1011
  %v1077 = vmul.f32 %v1014, %v1014
  %v1078 = vmul.f32 %v1019, %v1019
  %v1079 = vmul.f32 %v1022, %v1022
  %v1080 = vsel %vm74, %v1064, 0.0
  %v1081 = vsel %vm74, %v1065, 0.0
  %v1082 = vadd.f32 %v1080, %v1081
  %v1083 = vsel %vm74, %v1066, 0.0
  %v1084 = vadd.f32 %v1082, %v1083
  %v1085 = vsel %vm74, %v1067, 0.0
  %v1086 = vadd.f32 %v1084, %v1085
  %v1087 = vsel %vm74, %v1068, 0.0
  %v1088 = vadd.f32 %v1086, %v1087
  %v1089 = vsel %vm74, %v1069, 0.0
  %v1090 = vadd.f32 %v1088, %v1089
  %v1091 = vsel %vm74, %v1070, 0.0
  %v1092 = vadd.f32 %v1090, %v1091
  %v1093 = vsel %vm74, %v1071, 0.0
  %v1094 = vadd.f32 %v1092, %v1093
  %v1095 = vsel %vm74, %v1072, 0.0
  %v1096 = vadd.f32 %v1094, %v1095
  %v1097 = vsel %vm74, %v1073, 0.0
  %v1098 = vadd.f32 %v1096, %v1097
  %v1099 = vsel %vm74, %v1074, 0.0
  %v1100 = vadd.f32 %v1098, %v1099
  %v1101 = vsel %vm74, %v1075, 0.0
  %v1102 = vadd.f32 %v1100, %v1101
  %v1103 = vsel %vm74, %v1076, 0.0
  %v1104 = vadd.f32 %v1102, %v1103
  %v1105 = vsel %vm74, %v1077, 0.0
  %v1106 = vadd.f32 %v1104, %v1105
  %v1107 = vsel %vm74, %v1078, 0.0
  %v1108 = vadd.f32 %v1106, %v1107
  %v1109 = vsel %vm74, %v1079, 0.0
  %v1110 = vadd.f32 %v1108, %v1109
  %v1111 = vrot.slane %v1110, 4
  %v1112 = vadd.f32 %v1110, %v1111
  %v1113 = vrot.slane %v1112, 2
  %v1114 = vadd.f32 %v1112, %v1113
  %v1115 = vrot.slane %v1114, 1
  %v1116 = vadd.f32 %v1114, %v1115
  %v1117 = vmul.f32 %v1116, %v1062
  %v1118 = vmul.f32 %v1063, %v1063
  %v1119 = vsub.f32 %v1117, %v1118
  %v1120 = vmax.f32 %v1119, 0.0
  %v1121 = vld [vmem:[%s2] sm:$0x1]
  %v1122 = vadd.f32 %v1120, 1e-05
  %v1123 = vrsqrt.pop %v1122
  %v1124 = vmul.f32 %v1121, %v1123
  %v1126 = vlaneseq
  %v1127 = vshrl.u32 %v1126, 7
  %v1128 = vsub.s32 0, %v1127
  %v1129 = vrot.slane %v1124, %v1128
  %v1131 = vmul.f32 %v963, %v1129
  %v1132 = vmul.f32 %v966, %v1129
  %v1133 = vmul.f32 %v971, %v1129
  %v1134 = vmul.f32 %v974, %v1129
  %v1135 = vmul.f32 %v979, %v1129
  %v1136 = vmul.f32 %v982, %v1129
  %v1137 = vmul.f32 %v987, %v1129
  %v1138 = vmul.f32 %v990, %v1129
  %v1139 = vmul.f32 %v995, %v1129
  %v1140 = vmul.f32 %v998, %v1129
  %v1141 = vmul.f32 %v1003, %v1129
  %v1142 = vmul.f32 %v1006, %v1129
  %v1143 = vmul.f32 %v1011, %v1129
  %v1144 = vmul.f32 %v1014, %v1129
  %v1145 = vmul.f32 %v1019, %v1129
  %v1146 = vmul.f32 %v1022, %v1129
  %v1147 = vld [vmem:[%s3] sm:$0x1]
  %v1148 = vmul.f32 %v1063, %v1124
  %v1149 = vsub.f32 %v1147, %v1148
  %v1151 = vlaneseq
  %v1152 = vshrl.u32 %v1151, 7
  %v1153 = vsub.s32 0, %v1152
  %v1154 = vrot.slane %v1149, %v1153
  %v1156 = vadd.f32 %v1131, %v1154
  %v1157 = vadd.f32 %v1132, %v1154
  %v1158 = vadd.f32 %v1133, %v1154
  %v1159 = vadd.f32 %v1134, %v1154
  %v1160 = vadd.f32 %v1135, %v1154
  %v1161 = vadd.f32 %v1136, %v1154
  %v1162 = vadd.f32 %v1137, %v1154
  %v1163 = vadd.f32 %v1138, %v1154
  %v1164 = vadd.f32 %v1139, %v1154
  %v1165 = vadd.f32 %v1140, %v1154
  %v1166 = vadd.f32 %v1141, %v1154
  %v1167 = vadd.f32 %v1142, %v1154
  %v1168 = vadd.f32 %v1143, %v1154
  %v1169 = vadd.f32 %v1144, %v1154
  %v1170 = vadd.f32 %v1145, %v1154
  %v1171 = vadd.f32 %v1146, %v1154
  %v1172 = vmax.f32 %v1156, 0.0
  %v1173 = vmax.f32 %v1157, 0.0
  %v1174 = vmax.f32 %v1158, 0.0
  %v1175 = vmax.f32 %v1159, 0.0
  %v1176 = vmax.f32 %v1160, 0.0
  %v1177 = vmax.f32 %v1161, 0.0
  %v1178 = vmax.f32 %v1162, 0.0
  %v1179 = vmax.f32 %v1163, 0.0
  %v1180 = vmax.f32 %v1164, 0.0
  %v1181 = vmax.f32 %v1165, 0.0
  %v1182 = vmax.f32 %v1166, 0.0
  %v1183 = vmax.f32 %v1167, 0.0
  %v1184 = vmax.f32 %v1168, 0.0
  %v1185 = vmax.f32 %v1169, 0.0
  %v1186 = vmax.f32 %v1170, 0.0
  %v1187 = vmax.f32 %v1171, 0.0
  %s1188 = scalar_lea.vmem [#allocation2], 16
  %1189 = vst.msk [vmem:[%s1188 + $0x1] sm:$0xff] %vm74, %v1172
  %1190 = vst.msk [vmem:[%s1188 + $0x11] sm:$0xff] %vm74, %v1173
  %1191 = vst.msk [vmem:[%s1188 + $0x21] sm:$0xff] %vm74, %v1174
  %1192 = vst.msk [vmem:[%s1188 + $0x31] sm:$0xff] %vm74, %v1175
  %1193 = vst.msk [vmem:[%s1188 + $0x41] sm:$0xff] %vm74, %v1176
  %1194 = vst.msk [vmem:[%s1188 + $0x51] sm:$0xff] %vm74, %v1177
  %1195 = vst.msk [vmem:[%s1188 + $0x61] sm:$0xff] %vm74, %v1178
  %1196 = vst.msk [vmem:[%s1188 + $0x71] sm:$0xff] %vm74, %v1179
  %1197 = vst.msk [vmem:[%s1188 + $0xa1] sm:$0xff] %vm74, %v1180
  %1198 = vst.msk [vmem:[%s1188 + $0xb1] sm:$0xff] %vm74, %v1181
  %1199 = vst.msk [vmem:[%s1188 + $0xc1] sm:$0xff] %vm74, %v1182
  %1200 = vst.msk [vmem:[%s1188 + $0xd1] sm:$0xff] %vm74, %v1183
  %1201 = vst.msk [vmem:[%s1188 + $0xe1] sm:$0xff] %vm74, %v1184
  %1202 = vst.msk [vmem:[%s1188 + $0xf1] sm:$0xff] %vm74, %v1185
  %1203 = vst.msk [vmem:[%s1188 + $0x101] sm:$0xff] %vm74, %v1186
  %1204 = vst.msk [vmem:[%s1188 + $0x111] sm:$0xff] %vm74, %v1187
  %v1205 = vld [vmem:[#allocation2] sm:$0xff]
  %v1206 = vld [vmem:[#allocation2 + $0x8] sm:$0x3]
  %v1207 = vld [vmem:[#allocation2 + $0x10] sm:$0xff]
  %v1208 = vld [vmem:[#allocation2 + $0x18] sm:$0x3]
  %v1209 = vld [vmem:[#allocation2 + $0x20] sm:$0xff]
  %v1210 = vld [vmem:[#allocation2 + $0x28] sm:$0x3]
  %v1211 = vld [vmem:[#allocation2 + $0x30] sm:$0xff]
  %v1212 = vld [vmem:[#allocation2 + $0x38] sm:$0x3]
  %v1213 = vld [vmem:[#allocation2 + $0x40] sm:$0xff]
  %v1214 = vld [vmem:[#allocation2 + $0x48] sm:$0x3]
  %v1215 = vld [vmem:[#allocation2 + $0x50] sm:$0xff]
  %v1216 = vld [vmem:[#allocation2 + $0x58] sm:$0x3]
  %v1217 = vld [vmem:[#allocation2 + $0x60] sm:$0xff]
  %v1218 = vld [vmem:[#allocation2 + $0x68] sm:$0x3]
  %v1219 = vld [vmem:[#allocation2 + $0x70] sm:$0xff]
  %v1220 = vld [vmem:[#allocation2 + $0x78] sm:$0x3]
  %v1221 = vld [vmem:[#allocation2 + $0x80] sm:$0xff]
  %v1222 = vld [vmem:[#allocation2 + $0x88] sm:$0x3]
  %v1223 = vld [vmem:[#allocation2 + $0x90] sm:$0xff]
  %v1224 = vld [vmem:[#allocation2 + $0x98] sm:$0x3]
  %v1225 = vld [vmem:[#allocation2 + $0xa0] sm:$0xff]
  %v1226 = vld [vmem:[#allocation2 + $0xa8] sm:$0x3]
  %v1227 = vld [vmem:[#allocation2 + $0xb0] sm:$0xff]
  %v1228 = vld [vmem:[#allocation2 + $0xb8] sm:$0x3]
  %v1229 = vld [vmem:[#allocation2 + $0xc0] sm:$0xff]
  %v1230 = vld [vmem:[#allocation2 + $0xc8] sm:$0x3]
  %v1231 = vld [vmem:[#allocation2 + $0xd0] sm:$0xff]
  %v1232 = vld [vmem:[#allocation2 + $0xd8] sm:$0x3]
  %v1233 = vld [vmem:[#allocation2 + $0xe0] sm:$0xff]
  %v1234 = vld [vmem:[#allocation2 + $0xe8] sm:$0x3]
  %v1235 = vld [vmem:[#allocation2 + $0xf0] sm:$0xff]
  %v1236 = vld [vmem:[#allocation2 + $0xf8] sm:$0x3]
  %v1237 = vld [vmem:[#allocation2 + $0x100] sm:$0xff]
  %v1238 = vld [vmem:[#allocation2 + $0x108] sm:$0x3]
  %v1239 = vld [vmem:[#allocation2 + $0x110] sm:$0xff]
  %v1240 = vld [vmem:[#allocation2 + $0x118] sm:$0x3]
  %v1241 = vld [vmem:[#allocation2 + $0x120] sm:$0xff]
  %v1242 = vld [vmem:[#allocation2 + $0x128] sm:$0x3]
  %v1243 = vld [vmem:[#allocation2 + $0x130] sm:$0xff]
  %v1244 = vld [vmem:[#allocation2 + $0x138] sm:$0x3]
  %1245 = vst.msk [vmem:[#allocation3] sm:$0xff] %vm74, %v1205
  %1246 = vst.msk [vmem:[#allocation3 + $0x10] sm:$0xff] %vm74, %v1207
  %1247 = vst.msk [vmem:[#allocation3 + $0x20] sm:$0xff] %vm74, %v1209
  %1248 = vst.msk [vmem:[#allocation3 + $0x30] sm:$0xff] %vm74, %v1211
  %1249 = vst.msk [vmem:[#allocation3 + $0x40] sm:$0xff] %vm74, %v1213
  %1250 = vst.msk [vmem:[#allocation3 + $0x50] sm:$0xff] %vm74, %v1215
  %1251 = vst.msk [vmem:[#allocation3 + $0x60] sm:$0xff] %vm74, %v1217
  %1252 = vst.msk [vmem:[#allocation3 + $0x70] sm:$0xff] %vm74, %v1219
  %1253 = vst.msk [vmem:[#allocation3 + $0x80] sm:$0xff] %vm74, %v1225
  %1254 = vst.msk [vmem:[#allocation3 + $0x90] sm:$0xff] %vm74, %v1227
  %1255 = vst.msk [vmem:[#allocation3 + $0xa0] sm:$0xff] %vm74, %v1229
  %1256 = vst.msk [vmem:[#allocation3 + $0xb0] sm:$0xff] %vm74, %v1231
  %1257 = vst.msk [vmem:[#allocation3 + $0xc0] sm:$0xff] %vm74, %v1233
  %1258 = vst.msk [vmem:[#allocation3 + $0xd0] sm:$0xff] %vm74, %v1235
  %1259 = vst.msk [vmem:[#allocation3 + $0xe0] sm:$0xff] %vm74, %v1237
  %1260 = vst.msk [vmem:[#allocation3 + $0xf0] sm:$0xff] %vm74, %v1239
  %v1293 = vrot.slane %v1205, 1
  %v1294 = vrot.slane %v1206, 1
  %v1295 = vsel %vm205, %v1293, %v1294
  %v1296 = vrot.slane %v1207, 1
  %v1297 = vrot.slane %v1208, 1
  %v1298 = vsel %vm205, %v1296, %v1297
  %v1299 = vrot.slane %v1209, 1
  %v1300 = vrot.slane %v1210, 1
  %v1301 = vsel %vm205, %v1299, %v1300
  %v1302 = vrot.slane %v1211, 1
  %v1303 = vrot.slane %v1212, 1
  %v1304 = vsel %vm205, %v1302, %v1303
  %v1305 = vrot.slane %v1213, 1
  %v1306 = vrot.slane %v1214, 1
  %v1307 = vsel %vm205, %v1305, %v1306
  %v1308 = vrot.slane %v1215, 1
  %v1309 = vrot.slane %v1216, 1
  %v1310 = vsel %vm205, %v1308, %v1309
  %v1311 = vrot.slane %v1217, 1
  %v1312 = vrot.slane %v1218, 1
  %v1313 = vsel %vm205, %v1311, %v1312
  %v1314 = vrot.slane %v1219, 1
  %v1315 = vrot.slane %v1220, 1
  %v1316 = vsel %vm205, %v1314, %v1315
  %v1317 = vrot.slane %v1225, 1
  %v1318 = vrot.slane %v1226, 1
  %v1319 = vsel %vm205, %v1317, %v1318
  %v1320 = vrot.slane %v1227, 1
  %v1321 = vrot.slane %v1228, 1
  %v1322 = vsel %vm205, %v1320, %v1321
  %v1323 = vrot.slane %v1229, 1
  %v1324 = vrot.slane %v1230, 1
  %v1325 = vsel %vm205, %v1323, %v1324
  %v1326 = vrot.slane %v1231, 1
  %v1327 = vrot.slane %v1232, 1
  %v1328 = vsel %vm205, %v1326, %v1327
  %v1329 = vrot.slane %v1233, 1
  %v1330 = vrot.slane %v1234, 1
  %v1331 = vsel %vm205, %v1329, %v1330
  %v1332 = vrot.slane %v1235, 1
  %v1333 = vrot.slane %v1236, 1
  %v1334 = vsel %vm205, %v1332, %v1333
  %v1335 = vrot.slane %v1237, 1
  %v1336 = vrot.slane %v1238, 1
  %v1337 = vsel %vm205, %v1335, %v1336
  %v1338 = vrot.slane %v1239, 1
  %v1339 = vrot.slane %v1240, 1
  %v1340 = vsel %vm205, %v1338, %v1339
  %1341 = vrot.lane.b32.xlu0 %v1295, 16
  %v1342 = vpop.permute.xlu0 %1341
  %1343 = vrot.lane.b32.xlu0 %v1298, 16
  %v1344 = vpop.permute.xlu0 %1343
  %1345 = vrot.lane.b32.xlu0 %v1301, 16
  %v1346 = vpop.permute.xlu0 %1345
  %1347 = vrot.lane.b32.xlu0 %v1304, 16
  %v1348 = vpop.permute.xlu0 %1347
  %1349 = vrot.lane.b32.xlu0 %v1307, 16
  %v1350 = vpop.permute.xlu0 %1349
  %1351 = vrot.lane.b32.xlu0 %v1310, 16
  %v1352 = vpop.permute.xlu0 %1351
  %1353 = vrot.lane.b32.xlu0 %v1313, 16
  %v1354 = vpop.permute.xlu0 %1353
  %1355 = vrot.lane.b32.xlu0 %v1316, 16
  %v1356 = vpop.permute.xlu0 %1355
  %1357 = vrot.lane.b32.xlu0 %v1319, 16
  %v1358 = vpop.permute.xlu0 %1357
  %1359 = vrot.lane.b32.xlu0 %v1322, 16
  %v1360 = vpop.permute.xlu0 %1359
  %1361 = vrot.lane.b32.xlu0 %v1325, 16
  %v1362 = vpop.permute.xlu0 %1361
  %1363 = vrot.lane.b32.xlu0 %v1328, 16
  %v1364 = vpop.permute.xlu0 %1363
  %1365 = vrot.lane.b32.xlu0 %v1331, 16
  %v1366 = vpop.permute.xlu0 %1365
  %1367 = vrot.lane.b32.xlu0 %v1334, 16
  %v1368 = vpop.permute.xlu0 %1367
  %1369 = vrot.lane.b32.xlu0 %v1337, 16
  %v1370 = vpop.permute.xlu0 %1369
  %1371 = vrot.lane.b32.xlu0 %v1340, 16
  %v1372 = vpop.permute.xlu0 %1371
  %vm1389 = vcmask 261248
  %1390 = vst.msk [vmem:[#allocation3] sm:$0xff] %vm1389, %v1342
  %1391 = vst.msk [vmem:[#allocation3 + $0x10] sm:$0xff] %vm1389, %v1344
  %1392 = vst.msk [vmem:[#allocation3 + $0x20] sm:$0xff] %vm1389, %v1346
  %1393 = vst.msk [vmem:[#allocation3 + $0x30] sm:$0xff] %vm1389, %v1348
  %1394 = vst.msk [vmem:[#allocation3 + $0x40] sm:$0xff] %vm1389, %v1350
  %1395 = vst.msk [vmem:[#allocation3 + $0x50] sm:$0xff] %vm1389, %v1352
  %1396 = vst.msk [vmem:[#allocation3 + $0x60] sm:$0xff] %vm1389, %v1354
  %1397 = vst.msk [vmem:[#allocation3 + $0x70] sm:$0xff] %vm1389, %v1356
  %1398 = vst.msk [vmem:[#allocation3 + $0x80] sm:$0xff] %vm1389, %v1358
  %1399 = vst.msk [vmem:[#allocation3 + $0x90] sm:$0xff] %vm1389, %v1360
  %1400 = vst.msk [vmem:[#allocation3 + $0xa0] sm:$0xff] %vm1389, %v1362
  %1401 = vst.msk [vmem:[#allocation3 + $0xb0] sm:$0xff] %vm1389, %v1364
  %1402 = vst.msk [vmem:[#allocation3 + $0xc0] sm:$0xff] %vm1389, %v1366
  %1403 = vst.msk [vmem:[#allocation3 + $0xd0] sm:$0xff] %vm1389, %v1368
  %1404 = vst.msk [vmem:[#allocation3 + $0xe0] sm:$0xff] %vm1389, %v1370
  %1405 = vst.msk [vmem:[#allocation3 + $0xf0] sm:$0xff] %vm1389, %v1372
  %v1406 = vrot.slane %v1205, 2
  %v1407 = vrot.slane %v1206, 2
  %v1408 = vsel %vm319, %v1406, %v1407
  %v1409 = vrot.slane %v1207, 2
  %v1410 = vrot.slane %v1208, 2
  %v1411 = vsel %vm319, %v1409, %v1410
  %v1412 = vrot.slane %v1209, 2
  %v1413 = vrot.slane %v1210, 2
  %v1414 = vsel %vm319, %v1412, %v1413
  %v1415 = vrot.slane %v1211, 2
  %v1416 = vrot.slane %v1212, 2
  %v1417 = vsel %vm319, %v1415, %v1416
  %v1418 = vrot.slane %v1213, 2
  %v1419 = vrot.slane %v1214, 2
  %v1420 = vsel %vm319, %v1418, %v1419
  %v1421 = vrot.slane %v1215, 2
  %v1422 = vrot.slane %v1216, 2
  %v1423 = vsel %vm319, %v1421, %v1422
  %v1424 = vrot.slane %v1217, 2
  %v1425 = vrot.slane %v1218, 2
  %v1426 = vsel %vm319, %v1424, %v1425
  %v1427 = vrot.slane %v1219, 2
  %v1428 = vrot.slane %v1220, 2
  %v1429 = vsel %vm319, %v1427, %v1428
  %v1430 = vrot.slane %v1225, 2
  %v1431 = vrot.slane %v1226, 2
  %v1432 = vsel %vm319, %v1430, %v1431
  %v1433 = vrot.slane %v1227, 2
  %v1434 = vrot.slane %v1228, 2
  %v1435 = vsel %vm319, %v1433, %v1434
  %v1436 = vrot.slane %v1229, 2
  %v1437 = vrot.slane %v1230, 2
  %v1438 = vsel %vm319, %v1436, %v1437
  %v1439 = vrot.slane %v1231, 2
  %v1440 = vrot.slane %v1232, 2
  %v1441 = vsel %vm319, %v1439, %v1440
  %v1442 = vrot.slane %v1233, 2
  %v1443 = vrot.slane %v1234, 2
  %v1444 = vsel %vm319, %v1442, %v1443
  %v1445 = vrot.slane %v1235, 2
  %v1446 = vrot.slane %v1236, 2
  %v1447 = vsel %vm319, %v1445, %v1446
  %v1448 = vrot.slane %v1237, 2
  %v1449 = vrot.slane %v1238, 2
  %v1450 = vsel %vm319, %v1448, %v1449
  %v1451 = vrot.slane %v1239, 2
  %v1452 = vrot.slane %v1240, 2
  %v1453 = vsel %vm319, %v1451, %v1452
  %1454 = vrot.lane.b32.xlu0 %v1408, 32
  %v1455 = vpop.permute.xlu0 %1454
  %1456 = vrot.lane.b32.xlu0 %v1411, 32
  %v1457 = vpop.permute.xlu0 %1456
  %1458 = vrot.lane.b32.xlu0 %v1414, 32
  %v1459 = vpop.permute.xlu0 %1458
  %1460 = vrot.lane.b32.xlu0 %v1417, 32
  %v1461 = vpop.permute.xlu0 %1460
  %1462 = vrot.lane.b32.xlu0 %v1420, 32
  %v1463 = vpop.permute.xlu0 %1462
  %1464 = vrot.lane.b32.xlu0 %v1423, 32
  %v1465 = vpop.permute.xlu0 %1464
  %1466 = vrot.lane.b32.xlu0 %v1426, 32
  %v1467 = vpop.permute.xlu0 %1466
  %1468 = vrot.lane.b32.xlu0 %v1429, 32
  %v1469 = vpop.permute.xlu0 %1468
  %1470 = vrot.lane.b32.xlu0 %v1432, 32
  %v1471 = vpop.permute.xlu0 %1470
  %1472 = vrot.lane.b32.xlu0 %v1435, 32
  %v1473 = vpop.permute.xlu0 %1472
  %1474 = vrot.lane.b32.xlu0 %v1438, 32
  %v1475 = vpop.permute.xlu0 %1474
  %1476 = vrot.lane.b32.xlu0 %v1441, 32
  %v1477 = vpop.permute.xlu0 %1476
  %1478 = vrot.lane.b32.xlu0 %v1444, 32
  %v1479 = vpop.permute.xlu0 %1478
  %1480 = vrot.lane.b32.xlu0 %v1447, 32
  %v1481 = vpop.permute.xlu0 %1480
  %1482 = vrot.lane.b32.xlu0 %v1450, 32
  %v1483 = vpop.permute.xlu0 %1482
  %1484 = vrot.lane.b32.xlu0 %v1453, 32
  %v1485 = vpop.permute.xlu0 %1484
  %vm1502 = vcmask 392448
  %1503 = vst.msk [vmem:[#allocation3] sm:$0xff] %vm1502, %v1455
  %1504 = vst.msk [vmem:[#allocation3 + $0x10] sm:$0xff] %vm1502, %v1457
  %1505 = vst.msk [vmem:[#allocation3 + $0x20] sm:$0xff] %vm1502, %v1459
  %1506 = vst.msk [vmem:[#allocation3 + $0x30] sm:$0xff] %vm1502, %v1461
  %1507 = vst.msk [vmem:[#allocation3 + $0x40] sm:$0xff] %vm1502, %v1463
  %1508 = vst.msk [vmem:[#allocation3 + $0x50] sm:$0xff] %vm1502, %v1465
  %1509 = vst.msk [vmem:[#allocation3 + $0x60] sm:$0xff] %vm1502, %v1467
  %1510 = vst.msk [vmem:[#allocation3 + $0x70] sm:$0xff] %vm1502, %v1469
  %1511 = vst.msk [vmem:[#allocation3 + $0x80] sm:$0xff] %vm1502, %v1471
  %1512 = vst.msk [vmem:[#allocation3 + $0x90] sm:$0xff] %vm1502, %v1473
  %1513 = vst.msk [vmem:[#allocation3 + $0xa0] sm:$0xff] %vm1502, %v1475
  %1514 = vst.msk [vmem:[#allocation3 + $0xb0] sm:$0xff] %vm1502, %v1477
  %1515 = vst.msk [vmem:[#allocation3 + $0xc0] sm:$0xff] %vm1502, %v1479
  %1516 = vst.msk [vmem:[#allocation3 + $0xd0] sm:$0xff] %vm1502, %v1481
  %1517 = vst.msk [vmem:[#allocation3 + $0xe0] sm:$0xff] %vm1502, %v1483
  %1518 = vst.msk [vmem:[#allocation3 + $0xf0] sm:$0xff] %vm1502, %v1485
  %1521 = vrot.lane.b32.xlu0 %v1207, 48
  %v1522 = vpop.permute.xlu0 %1521
  %1523 = vrot.lane.b32.xlu0 %v1209, 48
  %v1524 = vpop.permute.xlu0 %1523
  %1525 = vrot.lane.b32.xlu0 %v1211, 48
  %v1526 = vpop.permute.xlu0 %1525
  %1527 = vrot.lane.b32.xlu0 %v1213, 48
  %v1528 = vpop.permute.xlu0 %1527
  %1529 = vrot.lane.b32.xlu0 %v1215, 48
  %v1530 = vpop.permute.xlu0 %1529
  %1531 = vrot.lane.b32.xlu0 %v1217, 48
  %v1532 = vpop.permute.xlu0 %1531
  %1533 = vrot.lane.b32.xlu0 %v1219, 48
  %v1534 = vpop.permute.xlu0 %1533
  %1535 = vrot.lane.b32.xlu0 %v1221, 48
  %v1536 = vpop.permute.xlu0 %1535
  %1537 = vrot.lane.b32.xlu0 %v1227, 48
  %v1538 = vpop.permute.xlu0 %1537
  %1539 = vrot.lane.b32.xlu0 %v1229, 48
  %v1540 = vpop.permute.xlu0 %1539
  %1541 = vrot.lane.b32.xlu0 %v1231, 48
  %v1542 = vpop.permute.xlu0 %1541
  %1543 = vrot.lane.b32.xlu0 %v1233, 48
  %v1544 = vpop.permute.xlu0 %1543
  %1545 = vrot.lane.b32.xlu0 %v1235, 48
  %v1546 = vpop.permute.xlu0 %1545
  %1547 = vrot.lane.b32.xlu0 %v1237, 48
  %v1548 = vpop.permute.xlu0 %1547
  %1549 = vrot.lane.b32.xlu0 %v1239, 48
  %v1550 = vpop.permute.xlu0 %1549
  %1551 = vrot.lane.b32.xlu0 %v1241, 48
  %v1552 = vpop.permute.xlu0 %1551
  %vm1569 = vcmask 523648
  %1570 = vst.msk [vmem:[#allocation3] sm:$0xff] %vm1569, %v1522
  %1571 = vst.msk [vmem:[#allocation3 + $0x10] sm:$0xff] %vm1569, %v1524
  %1572 = vst.msk [vmem:[#allocation3 + $0x20] sm:$0xff] %vm1569, %v1526
  %1573 = vst.msk [vmem:[#allocation3 + $0x30] sm:$0xff] %vm1569, %v1528
  %1574 = vst.msk [vmem:[#allocation3 + $0x40] sm:$0xff] %vm1569, %v1530
  %1575 = vst.msk [vmem:[#allocation3 + $0x50] sm:$0xff] %vm1569, %v1532
  %1576 = vst.msk [vmem:[#allocation3 + $0x60] sm:$0xff] %vm1569, %v1534
  %1577 = vst.msk [vmem:[#allocation3 + $0x70] sm:$0xff] %vm1569, %v1536
  %1578 = vst.msk [vmem:[#allocation3 + $0x80] sm:$0xff] %vm1569, %v1538
  %1579 = vst.msk [vmem:[#allocation3 + $0x90] sm:$0xff] %vm1569, %v1540
  %1580 = vst.msk [vmem:[#allocation3 + $0xa0] sm:$0xff] %vm1569, %v1542
  %1581 = vst.msk [vmem:[#allocation3 + $0xb0] sm:$0xff] %vm1569, %v1544
  %1582 = vst.msk [vmem:[#allocation3 + $0xc0] sm:$0xff] %vm1569, %v1546
  %1583 = vst.msk [vmem:[#allocation3 + $0xd0] sm:$0xff] %vm1569, %v1548
  %1584 = vst.msk [vmem:[#allocation3 + $0xe0] sm:$0xff] %vm1569, %v1550
  %1585 = vst.msk [vmem:[#allocation3 + $0xf0] sm:$0xff] %vm1569, %v1552
  %v1588 = vrot.slane %v1221, 1
  %v1589 = vrot.slane %v1222, 1
  %v1590 = vsel %vm205, %v1588, %v1589
  %v1591 = vrot.slane %v1241, 1
  %v1592 = vrot.slane %v1242, 1
  %v1593 = vsel %vm205, %v1591, %v1592
  %1594 = vrot.lane.b32.xlu0 %v1298, 64
  %v1595 = vpop.permute.xlu0 %1594
  %1596 = vrot.lane.b32.xlu0 %v1301, 64
  %v1597 = vpop.permute.xlu0 %1596
  %1598 = vrot.lane.b32.xlu0 %v1304, 64
  %v1599 = vpop.permute.xlu0 %1598
  %1600 = vrot.lane.b32.xlu0 %v1307, 64
  %v1601 = vpop.permute.xlu0 %1600
  %1602 = vrot.lane.b32.xlu0 %v1310, 64
  %v1603 = vpop.permute.xlu0 %1602
  %1604 = vrot.lane.b32.xlu0 %v1313, 64
  %v1605 = vpop.permute.xlu0 %1604
  %1606 = vrot.lane.b32.xlu0 %v1316, 64
  %v1607 = vpop.permute.xlu0 %1606
  %1608 = vrot.lane.b32.xlu0 %v1590, 64
  %v1609 = vpop.permute.xlu0 %1608
  %1610 = vrot.lane.b32.xlu0 %v1322, 64
  %v1611 = vpop.permute.xlu0 %1610
  %1612 = vrot.lane.b32.xlu0 %v1325, 64
  %v1613 = vpop.permute.xlu0 %1612
  %1614 = vrot.lane.b32.xlu0 %v1328, 64
  %v1615 = vpop.permute.xlu0 %1614
  %1616 = vrot.lane.b32.xlu0 %v1331, 64
  %v1617 = vpop.permute.xlu0 %1616
  %1618 = vrot.lane.b32.xlu0 %v1334, 64
  %v1619 = vpop.permute.xlu0 %1618
  %1620 = vrot.lane.b32.xlu0 %v1337, 64
  %v1621 = vpop.permute.xlu0 %1620
  %1622 = vrot.lane.b32.xlu0 %v1340, 64
  %v1623 = vpop.permute.xlu0 %1622
  %1624 = vrot.lane.b32.xlu0 %v1593, 64
  %v1625 = vpop.permute.xlu0 %1624
  %vm1642 = vcmask 654848
  %1643 = vst.msk [vmem:[#allocation3] sm:$0xff] %vm1642, %v1595
  %1644 = vst.msk [vmem:[#allocation3 + $0x10] sm:$0xff] %vm1642, %v1597
  %1645 = vst.msk [vmem:[#allocation3 + $0x20] sm:$0xff] %vm1642, %v1599
  %1646 = vst.msk [vmem:[#allocation3 + $0x30] sm:$0xff] %vm1642, %v1601
  %1647 = vst.msk [vmem:[#allocation3 + $0x40] sm:$0xff] %vm1642, %v1603
  %1648 = vst.msk [vmem:[#allocation3 + $0x50] sm:$0xff] %vm1642, %v1605
  %1649 = vst.msk [vmem:[#allocation3 + $0x60] sm:$0xff] %vm1642, %v1607
  %1650 = vst.msk [vmem:[#allocation3 + $0x70] sm:$0xff] %vm1642, %v1609
  %1651 = vst.msk [vmem:[#allocation3 + $0x80] sm:$0xff] %vm1642, %v1611
  %1652 = vst.msk [vmem:[#allocation3 + $0x90] sm:$0xff] %vm1642, %v1613
  %1653 = vst.msk [vmem:[#allocation3 + $0xa0] sm:$0xff] %vm1642, %v1615
  %1654 = vst.msk [vmem:[#allocation3 + $0xb0] sm:$0xff] %vm1642, %v1617
  %1655 = vst.msk [vmem:[#allocation3 + $0xc0] sm:$0xff] %vm1642, %v1619
  %1656 = vst.msk [vmem:[#allocation3 + $0xd0] sm:$0xff] %vm1642, %v1621
  %1657 = vst.msk [vmem:[#allocation3 + $0xe0] sm:$0xff] %vm1642, %v1623
  %1658 = vst.msk [vmem:[#allocation3 + $0xf0] sm:$0xff] %vm1642, %v1625
  %v1659 = vrot.slane %v1221, 2
  %v1660 = vrot.slane %v1222, 2
  %v1661 = vsel %vm319, %v1659, %v1660
  %v1662 = vrot.slane %v1241, 2
  %v1663 = vrot.slane %v1242, 2
  %v1664 = vsel %vm319, %v1662, %v1663
  %1665 = vrot.lane.b32.xlu0 %v1411, 80
  %v1666 = vpop.permute.xlu0 %1665
  %1667 = vrot.lane.b32.xlu0 %v1414, 80
  %v1668 = vpop.permute.xlu0 %1667
  %1669 = vrot.lane.b32.xlu0 %v1417, 80
  %v1670 = vpop.permute.xlu0 %1669
  %1671 = vrot.lane.b32.xlu0 %v1420, 80
  %v1672 = vpop.permute.xlu0 %1671
  %1673 = vrot.lane.b32.xlu0 %v1423, 80
  %v1674 = vpop.permute.xlu0 %1673
  %1675 = vrot.lane.b32.xlu0 %v1426, 80
  %v1676 = vpop.permute.xlu0 %1675
  %1677 = vrot.lane.b32.xlu0 %v1429, 80
  %v1678 = vpop.permute.xlu0 %1677
  %1679 = vrot.lane.b32.xlu0 %v1661, 80
  %v1680 = vpop.permute.xlu0 %1679
  %1681 = vrot.lane.b32.xlu0 %v1435, 80
  %v1682 = vpop.permute.xlu0 %1681
  %1683 = vrot.lane.b32.xlu0 %v1438, 80
  %v1684 = vpop.permute.xlu0 %1683
  %1685 = vrot.lane.b32.xlu0 %v1441, 80
  %v1686 = vpop.permute.xlu0 %1685
  %1687 = vrot.lane.b32.xlu0 %v1444, 80
  %v1688 = vpop.permute.xlu0 %1687
  %1689 = vrot.lane.b32.xlu0 %v1447, 80
  %v1690 = vpop.permute.xlu0 %1689
  %1691 = vrot.lane.b32.xlu0 %v1450, 80
  %v1692 = vpop.permute.xlu0 %1691
  %1693 = vrot.lane.b32.xlu0 %v1453, 80
  %v1694 = vpop.permute.xlu0 %1693
  %1695 = vrot.lane.b32.xlu0 %v1664, 80
  %v1696 = vpop.permute.xlu0 %1695
  %vm1713 = vcmask 786048
  %1714 = vst.msk [vmem:[#allocation3] sm:$0xff] %vm1713, %v1666
  %1715 = vst.msk [vmem:[#allocation3 + $0x10] sm:$0xff] %vm1713, %v1668
  %1716 = vst.msk [vmem:[#allocation3 + $0x20] sm:$0xff] %vm1713, %v1670
  %1717 = vst.msk [vmem:[#allocation3 + $0x30] sm:$0xff] %vm1713, %v1672
  %1718 = vst.msk [vmem:[#allocation3 + $0x40] sm:$0xff] %vm1713, %v1674
  %1719 = vst.msk [vmem:[#allocation3 + $0x50] sm:$0xff] %vm1713, %v1676
  %1720 = vst.msk [vmem:[#allocation3 + $0x60] sm:$0xff] %vm1713, %v1678
  %1721 = vst.msk [vmem:[#allocation3 + $0x70] sm:$0xff] %vm1713, %v1680
  %1722 = vst.msk [vmem:[#allocation3 + $0x80] sm:$0xff] %vm1713, %v1682
  %1723 = vst.msk [vmem:[#allocation3 + $0x90] sm:$0xff] %vm1713, %v1684
  %1724 = vst.msk [vmem:[#allocation3 + $0xa0] sm:$0xff] %vm1713, %v1686
  %1725 = vst.msk [vmem:[#allocation3 + $0xb0] sm:$0xff] %vm1713, %v1688
  %1726 = vst.msk [vmem:[#allocation3 + $0xc0] sm:$0xff] %vm1713, %v1690
  %1727 = vst.msk [vmem:[#allocation3 + $0xd0] sm:$0xff] %vm1713, %v1692
  %1728 = vst.msk [vmem:[#allocation3 + $0xe0] sm:$0xff] %vm1713, %v1694
  %1729 = vst.msk [vmem:[#allocation3 + $0xf0] sm:$0xff] %vm1713, %v1696
  %1732 = vrot.lane.b32.xlu0 %v1209, 96
  %v1733 = vpop.permute.xlu0 %1732
  %1734 = vrot.lane.b32.xlu0 %v1211, 96
  %v1735 = vpop.permute.xlu0 %1734
  %1736 = vrot.lane.b32.xlu0 %v1213, 96
  %v1737 = vpop.permute.xlu0 %1736
  %1738 = vrot.lane.b32.xlu0 %v1215, 96
  %v1739 = vpop.permute.xlu0 %1738
  %1740 = vrot.lane.b32.xlu0 %v1217, 96
  %v1741 = vpop.permute.xlu0 %1740
  %1742 = vrot.lane.b32.xlu0 %v1219, 96
  %v1743 = vpop.permute.xlu0 %1742
  %1744 = vrot.lane.b32.xlu0 %v1221, 96
  %v1745 = vpop.permute.xlu0 %1744
  %1746 = vrot.lane.b32.xlu0 %v1223, 96
  %v1747 = vpop.permute.xlu0 %1746
  %1748 = vrot.lane.b32.xlu0 %v1229, 96
  %v1749 = vpop.permute.xlu0 %1748
  %1750 = vrot.lane.b32.xlu0 %v1231, 96
  %v1751 = vpop.permute.xlu0 %1750
  %1752 = vrot.lane.b32.xlu0 %v1233, 96
  %v1753 = vpop.permute.xlu0 %1752
  %1754 = vrot.lane.b32.xlu0 %v1235, 96
  %v1755 = vpop.permute.xlu0 %1754
  %1756 = vrot.lane.b32.xlu0 %v1237, 96
  %v1757 = vpop.permute.xlu0 %1756
  %1758 = vrot.lane.b32.xlu0 %v1239, 96
  %v1759 = vpop.permute.xlu0 %1758
  %1760 = vrot.lane.b32.xlu0 %v1241, 96
  %v1761 = vpop.permute.xlu0 %1760
  %1762 = vrot.lane.b32.xlu0 %v1243, 96
  %v1763 = vpop.permute.xlu0 %1762
  %vm1780 = vcmask 917248
  %1781 = vst.msk [vmem:[#allocation3] sm:$0xff] %vm1780, %v1733
  %1782 = vst.msk [vmem:[#allocation3 + $0x10] sm:$0xff] %vm1780, %v1735
  %1783 = vst.msk [vmem:[#allocation3 + $0x20] sm:$0xff] %vm1780, %v1737
  %1784 = vst.msk [vmem:[#allocation3 + $0x30] sm:$0xff] %vm1780, %v1739
  %1785 = vst.msk [vmem:[#allocation3 + $0x40] sm:$0xff] %vm1780, %v1741
  %1786 = vst.msk [vmem:[#allocation3 + $0x50] sm:$0xff] %vm1780, %v1743
  %1787 = vst.msk [vmem:[#allocation3 + $0x60] sm:$0xff] %vm1780, %v1745
  %1788 = vst.msk [vmem:[#allocation3 + $0x70] sm:$0xff] %vm1780, %v1747
  %1789 = vst.msk [vmem:[#allocation3 + $0x80] sm:$0xff] %vm1780, %v1749
  %1790 = vst.msk [vmem:[#allocation3 + $0x90] sm:$0xff] %vm1780, %v1751
  %1791 = vst.msk [vmem:[#allocation3 + $0xa0] sm:$0xff] %vm1780, %v1753
  %1792 = vst.msk [vmem:[#allocation3 + $0xb0] sm:$0xff] %vm1780, %v1755
  %1793 = vst.msk [vmem:[#allocation3 + $0xc0] sm:$0xff] %vm1780, %v1757
  %1794 = vst.msk [vmem:[#allocation3 + $0xd0] sm:$0xff] %vm1780, %v1759
  %1795 = vst.msk [vmem:[#allocation3 + $0xe0] sm:$0xff] %vm1780, %v1761
  %1796 = vst.msk [vmem:[#allocation3 + $0xf0] sm:$0xff] %vm1780, %v1763
  %v1799 = vrot.slane %v1223, 1
  %v1800 = vrot.slane %v1224, 1
  %v1801 = vsel %vm205, %v1799, %v1800
  %v1802 = vrot.slane %v1243, 1
  %v1803 = vrot.slane %v1244, 1
  %v1804 = vsel %vm205, %v1802, %v1803
  %1805 = vrot.lane.b32.xlu0 %v1301, 112
  %v1806 = vpop.permute.xlu0 %1805
  %1807 = vrot.lane.b32.xlu0 %v1304, 112
  %v1808 = vpop.permute.xlu0 %1807
  %1809 = vrot.lane.b32.xlu0 %v1307, 112
  %v1810 = vpop.permute.xlu0 %1809
  %1811 = vrot.lane.b32.xlu0 %v1310, 112
  %v1812 = vpop.permute.xlu0 %1811
  %1813 = vrot.lane.b32.xlu0 %v1313, 112
  %v1814 = vpop.permute.xlu0 %1813
  %1815 = vrot.lane.b32.xlu0 %v1316, 112
  %v1816 = vpop.permute.xlu0 %1815
  %1817 = vrot.lane.b32.xlu0 %v1590, 112
  %v1818 = vpop.permute.xlu0 %1817
  %1819 = vrot.lane.b32.xlu0 %v1801, 112
  %v1820 = vpop.permute.xlu0 %1819
  %1821 = vrot.lane.b32.xlu0 %v1325, 112
  %v1822 = vpop.permute.xlu0 %1821
  %1823 = vrot.lane.b32.xlu0 %v1328, 112
  %v1824 = vpop.permute.xlu0 %1823
  %1825 = vrot.lane.b32.xlu0 %v1331, 112
  %v1826 = vpop.permute.xlu0 %1825
  %1827 = vrot.lane.b32.xlu0 %v1334, 112
  %v1828 = vpop.permute.xlu0 %1827
  %1829 = vrot.lane.b32.xlu0 %v1337, 112
  %v1830 = vpop.permute.xlu0 %1829
  %1831 = vrot.lane.b32.xlu0 %v1340, 112
  %v1832 = vpop.permute.xlu0 %1831
  %1833 = vrot.lane.b32.xlu0 %v1593, 112
  %v1834 = vpop.permute.xlu0 %1833
  %1835 = vrot.lane.b32.xlu0 %v1804, 112
  %v1836 = vpop.permute.xlu0 %1835
  %vm1853 = vcmask 1048448
  %1854 = vst.msk [vmem:[#allocation3] sm:$0xff] %vm1853, %v1806
  %1855 = vst.msk [vmem:[#allocation3 + $0x10] sm:$0xff] %vm1853, %v1808
  %1856 = vst.msk [vmem:[#allocation3 + $0x20] sm:$0xff] %vm1853, %v1810
  %1857 = vst.msk [vmem:[#allocation3 + $0x30] sm:$0xff] %vm1853, %v1812
  %1858 = vst.msk [vmem:[#allocation3 + $0x40] sm:$0xff] %vm1853, %v1814
  %1859 = vst.msk [vmem:[#allocation3 + $0x50] sm:$0xff] %vm1853, %v1816
  %1860 = vst.msk [vmem:[#allocation3 + $0x60] sm:$0xff] %vm1853, %v1818
  %1861 = vst.msk [vmem:[#allocation3 + $0x70] sm:$0xff] %vm1853, %v1820
  %1862 = vst.msk [vmem:[#allocation3 + $0x80] sm:$0xff] %vm1853, %v1822
  %1863 = vst.msk [vmem:[#allocation3 + $0x90] sm:$0xff] %vm1853, %v1824
  %1864 = vst.msk [vmem:[#allocation3 + $0xa0] sm:$0xff] %vm1853, %v1826
  %1865 = vst.msk [vmem:[#allocation3 + $0xb0] sm:$0xff] %vm1853, %v1828
  %1866 = vst.msk [vmem:[#allocation3 + $0xc0] sm:$0xff] %vm1853, %v1830
  %1867 = vst.msk [vmem:[#allocation3 + $0xd0] sm:$0xff] %vm1853, %v1832
  %1868 = vst.msk [vmem:[#allocation3 + $0xe0] sm:$0xff] %vm1853, %v1834
  %1869 = vst.msk [vmem:[#allocation3 + $0xf0] sm:$0xff] %vm1853, %v1836
  %v1870 = vrot.slane %v1223, 2
  %v1871 = vrot.slane %v1224, 2
  %v1872 = vsel %vm319, %v1870, %v1871
  %v1873 = vrot.slane %v1243, 2
  %v1874 = vrot.slane %v1244, 2
  %v1875 = vsel %vm319, %v1873, %v1874
  %1892 = vst.msk [vmem:[#allocation3 + $0x8] sm:$0xff] %vm74, %v1414
  %1893 = vst.msk [vmem:[#allocation3 + $0x18] sm:$0xff] %vm74, %v1417
  %1894 = vst.msk [vmem:[#allocation3 + $0x28] sm:$0xff] %vm74, %v1420
  %1895 = vst.msk [vmem:[#allocation3 + $0x38] sm:$0xff] %vm74, %v1423
  %1896 = vst.msk [vmem:[#allocation3 + $0x48] sm:$0xff] %vm74, %v1426
  %1897 = vst.msk [vmem:[#allocation3 + $0x58] sm:$0xff] %vm74, %v1429
  %1898 = vst.msk [vmem:[#allocation3 + $0x68] sm:$0xff] %vm74, %v1661
  %1899 = vst.msk [vmem:[#allocation3 + $0x78] sm:$0xff] %vm74, %v1872
  %1900 = vst.msk [vmem:[#allocation3 + $0x88] sm:$0xff] %vm74, %v1438
  %1901 = vst.msk [vmem:[#allocation3 + $0x98] sm:$0xff] %vm74, %v1441
  %1902 = vst.msk [vmem:[#allocation3 + $0xa8] sm:$0xff] %vm74, %v1444
  %1903 = vst.msk [vmem:[#allocation3 + $0xb8] sm:$0xff] %vm74, %v1447
  %1904 = vst.msk [vmem:[#allocation3 + $0xc8] sm:$0xff] %vm74, %v1450
  %1905 = vst.msk [vmem:[#allocation3 + $0xd8] sm:$0xff] %vm74, %v1453
  %1906 = vst.msk [vmem:[#allocation3 + $0xe8] sm:$0xff] %vm74, %v1664
  %1907 = vst.msk [vmem:[#allocation3 + $0xf8] sm:$0xff] %vm74, %v1875
  %v1908 = vld [vmem:[#allocation3] sm:$0xff]
  %v1909 = vld [vmem:[#allocation3 + $0x8] sm:$0xff]
  %v1910 = vld [vmem:[#allocation3 + $0x10] sm:$0xff]
  %v1911 = vld [vmem:[#allocation3 + $0x18] sm:$0xff]
  %v1912 = vld [vmem:[#allocation3 + $0x20] sm:$0xff]
  %v1913 = vld [vmem:[#allocation3 + $0x28] sm:$0xff]
  %v1914 = vld [vmem:[#allocation3 + $0x30] sm:$0xff]
  %v1915 = vld [vmem:[#allocation3 + $0x38] sm:$0xff]
  %v1916 = vld [vmem:[#allocation3 + $0x40] sm:$0xff]
  %v1917 = vld [vmem:[#allocation3 + $0x48] sm:$0xff]
  %v1918 = vld [vmem:[#allocation3 + $0x50] sm:$0xff]
  %v1919 = vld [vmem:[#allocation3 + $0x58] sm:$0xff]
  %v1920 = vld [vmem:[#allocation3 + $0x60] sm:$0xff]
  %v1921 = vld [vmem:[#allocation3 + $0x68] sm:$0xff]
  %v1922 = vld [vmem:[#allocation3 + $0x70] sm:$0xff]
  %v1923 = vld [vmem:[#allocation3 + $0x78] sm:$0xff]
  %v1924 = vld [vmem:[#allocation3 + $0x80] sm:$0xff]
  %v1925 = vld [vmem:[#allocation3 + $0x88] sm:$0xff]
  %v1926 = vld [vmem:[#allocation3 + $0x90] sm:$0xff]
  %v1927 = vld [vmem:[#allocation3 + $0x98] sm:$0xff]
  %v1928 = vld [vmem:[#allocation3 + $0xa0] sm:$0xff]
  %v1929 = vld [vmem:[#allocation3 + $0xa8] sm:$0xff]
  %v1930 = vld [vmem:[#allocation3 + $0xb0] sm:$0xff]
  %v1931 = vld [vmem:[#allocation3 + $0xb8] sm:$0xff]
  %v1932 = vld [vmem:[#allocation3 + $0xc0] sm:$0xff]
  %v1933 = vld [vmem:[#allocation3 + $0xc8] sm:$0xff]
  %v1934 = vld [vmem:[#allocation3 + $0xd0] sm:$0xff]
  %v1935 = vld [vmem:[#allocation3 + $0xd8] sm:$0xff]
  %v1936 = vld [vmem:[#allocation3 + $0xe0] sm:$0xff]
  %v1937 = vld [vmem:[#allocation3 + $0xe8] sm:$0xff]
  %v1938 = vld [vmem:[#allocation3 + $0xf0] sm:$0xff]
  %v1939 = vld [vmem:[#allocation3 + $0xf8] sm:$0xff]
  %v1940 = vpack.c.bf16 %v1910, %v1908
  %v1941 = vpack.c.bf16 %v1911, %v1909
  %v1942 = vpack.c.bf16 %v1914, %v1912
  %v1943 = vpack.c.bf16 %v1915, %v1913
  %v1944 = vpack.c.bf16 %v1918, %v1916
  %v1945 = vpack.c.bf16 %v1919, %v1917
  %v1946 = vpack.c.bf16 %v1922, %v1920
  %v1947 = vpack.c.bf16 %v1923, %v1921
  %v1948 = vpack.c.bf16 %v1926, %v1924
  %v1949 = vpack.c.bf16 %v1927, %v1925
  %v1950 = vpack.c.bf16 %v1930, %v1928
  %v1951 = vpack.c.bf16 %v1931, %v1929
  %v1952 = vpack.c.bf16 %v1934, %v1932
  %v1953 = vpack.c.bf16 %v1935, %v1933
  %v1954 = vpack.c.bf16 %v1938, %v1936
  %v1955 = vpack.c.bf16 %v1939, %v1937
  %v1956 = vld [vmem:[%s4] sm:$0xf]
  %v1957 = vld [vmem:[%s4 + $0x4] sm:$0xf]
  %v1958 = vld [vmem:[%s4 + $0x8] sm:$0xf]
  %v1959 = vld [vmem:[%s4 + $0xc] sm:$0xf]
  %v1960 = vld [vmem:[%s4 + $0x10] sm:$0xf]
  %v1961 = vld [vmem:[%s4 + $0x14] sm:$0xf]
  %v1962 = vld [vmem:[%s4 + $0x18] sm:$0xf]
  %v1963 = vld [vmem:[%s4 + $0x1c] sm:$0xf]
  %v1964 = vld [vmem:[%s4 + $0x20] sm:$0xf]
  %v1965 = vld [vmem:[%s4 + $0x24] sm:$0xf]
  %v1966 = vld [vmem:[%s4 + $0x28] sm:$0xf]
  %v1967 = vld [vmem:[%s4 + $0x2c] sm:$0xf]
  %v1968 = vld [vmem:[%s4 + $0x30] sm:$0xf]
  %v1969 = vld [vmem:[%s4 + $0x34] sm:$0xf]
  %v1970 = vld [vmem:[%s4 + $0x38] sm:$0xf]
  %v1971 = vld [vmem:[%s4 + $0x3c] sm:$0xf]
  %v1972 = vld [vmem:[%s4 + $0x40] sm:$0xf]
  %v1973 = vld [vmem:[%s4 + $0x44] sm:$0xf]
  %v1992 = vunpack.c.l.b16 %v1956
  %v1993 = vunpack.c.l.b16 %v1957
  %v1994 = vunpack.c.l.b16 %v1958
  %v1995 = vunpack.c.l.b16 %v1959
  %v1996 = vunpack.c.l.b16 %v1960
  %v1997 = vunpack.c.l.b16 %v1961
  %v1998 = vunpack.c.l.b16 %v1962
  %v1999 = vunpack.c.l.b16 %v1963
  %v2000 = vunpack.c.l.b16 %v1964
  %v2001 = vunpack.c.l.b16 %v1965
  %v2002 = vunpack.c.l.b16 %v1966
  %v2003 = vunpack.c.l.b16 %v1967
  %v2004 = vunpack.c.l.b16 %v1968
  %v2005 = vunpack.c.l.b16 %v1969
  %v2006 = vunpack.c.l.b16 %v1970
  %v2007 = vunpack.c.l.b16 %v1971
  %v2008 = vunpack.c.l.b16 %v1972
  %v2009 = vunpack.c.l.b16 %v1973
  %v2010 = vpack.c.b16 %v1993, %v1992
  %v2011 = vpack.c.b16 %v1995, %v1994
  %v2012 = vpack.c.b16 %v1997, %v1996
  %v2013 = vpack.c.b16 %v1999, %v1998
  %v2014 = vpack.c.b16 %v2001, %v2000
  %v2015 = vpack.c.b16 %v2003, %v2002
  %v2016 = vpack.c.b16 %v2005, %v2004
  %v2017 = vpack.c.b16 %v2007, %v2006
  %v2018 = vpack.c.b16 %v2009, %v2008
  %v2029 = vsel %vm74, %v1941, 0
  %v2032 = vsel %vm74, %v1943, 0
  %v2035 = vsel %vm74, %v1945, 0
  %v2038 = vsel %vm74, %v1947, 0
  %v2041 = vsel %vm74, %v1949, 0
  %v2044 = vsel %vm74, %v1951, 0
  %v2047 = vsel %vm74, %v1953, 0
  %v2050 = vsel %vm74, %v1955, 0
  %2052 = vmatprep.subr.bf16.mxu0 0
  %2053 = vmatpush1.bf16.msra.mxu0 %v2010
  %2054 = vmatprep.subr.bf16.mxu0 0
  %2055 = vmatpush1.bf16.msra.mxu0 %v2011
  %2056 = vmatprep.subr.bf16.mxu0 0
  %2057 = vmatpush1.bf16.msra.mxu0 %v2012
  %2058 = vmatprep.subr.bf16.mxu0 0
  %2059 = vmatpush1.bf16.msra.mxu0 %v2013
  %2060 = vmatprep.subr.bf16.mxu0 0
  %2061 = vmatpush1.bf16.msra.mxu0 %v2014
  %2062 = vmatprep.subr.bf16.mxu0 0
  %2063 = vmatpush1.bf16.msra.mxu0 %v2015
  %2064 = vmatprep.subr.bf16.mxu0 0
  %2065 = vmatpush1.bf16.msra.mxu0 %v2016
  %2066 = vmatprep.subr.bf16.mxu0 0
  %2067 = vmatpush1.bf16.msra.mxu0 %v2017
  %2068 = vmatprep.subr.bf16.mxu0 0
  %2069 = vmatpush1.bf16.msra.mxu0 %v2018
  %2070 = vmatprep.subr.bf16.mxu0 0
  %2071 = vmatpush1.bf16.msra.mxu0 0
  %2072 = vmatprep.subr.bf16.mxu0 0
  %2073 = vmatpush1.bf16.msra.mxu0 0
  %2074 = vmatprep.subr.bf16.mxu0 0
  %2075 = vmatpush1.bf16.msra.mxu0 0
  %2076 = vmatprep.subr.bf16.mxu0 0
  %2077 = vmatpush1.bf16.msra.mxu0 0
  %2078 = vmatprep.subr.bf16.mxu0 0
  %2079 = vmatpush1.bf16.msra.mxu0 0
  %2080 = vmatprep.subr.bf16.mxu0 0
  %2081 = vmatpush1.bf16.msra.mxu0 0
  %2082 = vmatprep.subr.bf16.mxu0 0
  %2083 = vmatpush1.bf16.msra.mxu0 0
  %2084 = vmatprep.mubr.bf16.mxu0 %v2029
  %2085 = vmatmul.mubr.bf16.gmra.mrb[0].mxu0 %v1940
  %v2086 = vpop.f32.mrb[0].mxu0
  %v2087 = vadd.f32 0.0, %v2086
  %v2088 = vpop.f32.mrb[0].mxu0
  %v2089 = vpop.f32.mrb[0].mxu0
  %v2090 = vadd.f32 0.0, %v2089
  %v2091 = vpop.f32.mrb[0].mxu0
  %2092 = vmatprep.mubr.bf16.mxu0 %v2032
  %2093 = vmatmul.mubr.bf16.gmra.mrb[0].mxu0 %v1942
  %v2094 = vpop.f32.mrb[0].mxu0
  %v2095 = vadd.f32 0.0, %v2094
  %v2096 = vpop.f32.mrb[0].mxu0
  %v2097 = vpop.f32.mrb[0].mxu0
  %v2098 = vadd.f32 0.0, %v2097
  %v2099 = vpop.f32.mrb[0].mxu0
  %2100 = vmatprep.mubr.bf16.mxu0 %v2035
  %2101 = vmatmul.mubr.bf16.gmra.mrb[0].mxu0 %v1944
  %v2102 = vpop.f32.mrb[0].mxu0
  %v2103 = vadd.f32 0.0, %v2102
  %v2104 = vpop.f32.mrb[0].mxu0
  %v2105 = vpop.f32.mrb[0].mxu0
  %v2106 = vadd.f32 0.0, %v2105
  %v2107 = vpop.f32.mrb[0].mxu0
  %2108 = vmatprep.mubr.bf16.mxu0 %v2038
  %2109 = vmatmul.mubr.bf16.gmra.mrb[0].mxu0 %v1946
  %v2110 = vpop.f32.mrb[0].mxu0
  %v2111 = vadd.f32 0.0, %v2110
  %v2112 = vpop.f32.mrb[0].mxu0
  %v2113 = vpop.f32.mrb[0].mxu0
  %v2114 = vadd.f32 0.0, %v2113
  %v2115 = vpop.f32.mrb[0].mxu0
  %2116 = vmatprep.mubr.bf16.mxu0 %v2041
  %2117 = vmatmul.mubr.bf16.gmra.mrb[0].mxu0 %v1948
  %v2118 = vpop.f32.mrb[0].mxu0
  %v2119 = vadd.f32 0.0, %v2118
  %v2120 = vpop.f32.mrb[0].mxu0
  %v2121 = vpop.f32.mrb[0].mxu0
  %v2122 = vadd.f32 0.0, %v2121
  %v2123 = vpop.f32.mrb[0].mxu0
  %2124 = vmatprep.mubr.bf16.mxu0 %v2044
  %2125 = vmatmul.mubr.bf16.gmra.mrb[0].mxu0 %v1950
  %v2126 = vpop.f32.mrb[0].mxu0
  %v2127 = vadd.f32 0.0, %v2126
  %v2128 = vpop.f32.mrb[0].mxu0
  %v2129 = vpop.f32.mrb[0].mxu0
  %v2130 = vadd.f32 0.0, %v2129
  %v2131 = vpop.f32.mrb[0].mxu0
  %2132 = vmatprep.mubr.bf16.mxu0 %v2047
  %2133 = vmatmul.mubr.bf16.gmra.mrb[0].mxu0 %v1952
  %v2134 = vpop.f32.mrb[0].mxu0
  %v2135 = vadd.f32 0.0, %v2134
  %v2136 = vpop.f32.mrb[0].mxu0
  %v2137 = vpop.f32.mrb[0].mxu0
  %v2138 = vadd.f32 0.0, %v2137
  %v2139 = vpop.f32.mrb[0].mxu0
  %2140 = vmatprep.mubr.bf16.mxu0 %v2050
  %2141 = vmatmul.mubr.bf16.gmra.mrb[0].mxu0 %v1954
  %v2142 = vpop.f32.mrb[0].mxu0
  %v2143 = vadd.f32 0.0, %v2142
  %v2144 = vpop.f32.mrb[0].mxu0
  %v2145 = vpop.f32.mrb[0].mxu0
  %v2146 = vadd.f32 0.0, %v2145
  %v2147 = vpop.f32.mrb[0].mxu0
  %2148 = vdwg.mxu0
  %v2149 = vsel %vm74, %v2087, 0.0
  %v2150 = vsel %vm74, %v2090, 0.0
  %v2151 = vadd.f32 %v2149, %v2150
  %v2152 = vsel %vm74, %v2095, 0.0
  %v2153 = vadd.f32 %v2151, %v2152
  %v2154 = vsel %vm74, %v2098, 0.0
  %v2155 = vadd.f32 %v2153, %v2154
  %v2156 = vsel %vm74, %v2103, 0.0
  %v2157 = vadd.f32 %v2155, %v2156
  %v2158 = vsel %vm74, %v2106, 0.0
  %v2159 = vadd.f32 %v2157, %v2158
  %v2160 = vsel %vm74, %v2111, 0.0
  %v2161 = vadd.f32 %v2159, %v2160
  %v2162 = vsel %vm74, %v2114, 0.0
  %v2163 = vadd.f32 %v2161, %v2162
  %v2164 = vsel %vm74, %v2119, 0.0
  %v2165 = vadd.f32 %v2163, %v2164
  %v2166 = vsel %vm74, %v2122, 0.0
  %v2167 = vadd.f32 %v2165, %v2166
  %v2168 = vsel %vm74, %v2127, 0.0
  %v2169 = vadd.f32 %v2167, %v2168
  %v2170 = vsel %vm74, %v2130, 0.0
  %v2171 = vadd.f32 %v2169, %v2170
  %v2172 = vsel %vm74, %v2135, 0.0
  %v2173 = vadd.f32 %v2171, %v2172
  %v2174 = vsel %vm74, %v2138, 0.0
  %v2175 = vadd.f32 %v2173, %v2174
  %v2176 = vsel %vm74, %v2143, 0.0
  %v2177 = vadd.f32 %v2175, %v2176
  %v2178 = vsel %vm74, %v2146, 0.0
  %v2179 = vadd.f32 %v2177, %v2178
  %v2180 = vrot.slane %v2179, 4
  %v2181 = vadd.f32 %v2179, %v2180
  %v2182 = vrot.slane %v2181, 2
  %v2183 = vadd.f32 %v2181, %v2182
  %v2184 = vrot.slane %v2183, 1
  %v2185 = vadd.f32 %v2183, %v2184
  %v2186 = vmul.f32 %v2185, %v1062
  %v2187 = vmul.f32 %v2087, %v2087
  %v2188 = vmul.f32 %v2090, %v2090
  %v2189 = vmul.f32 %v2095, %v2095
  %v2190 = vmul.f32 %v2098, %v2098
  %v2191 = vmul.f32 %v2103, %v2103
  %v2192 = vmul.f32 %v2106, %v2106
  %v2193 = vmul.f32 %v2111, %v2111
  %v2194 = vmul.f32 %v2114, %v2114
  %v2195 = vmul.f32 %v2119, %v2119
  %v2196 = vmul.f32 %v2122, %v2122
  %v2197 = vmul.f32 %v2127, %v2127
  %v2198 = vmul.f32 %v2130, %v2130
  %v2199 = vmul.f32 %v2135, %v2135
  %v2200 = vmul.f32 %v2138, %v2138
  %v2201 = vmul.f32 %v2143, %v2143
  %v2202 = vmul.f32 %v2146, %v2146
  %v2203 = vsel %vm74, %v2187, 0.0
  %v2204 = vsel %vm74, %v2188, 0.0
  %v2205 = vadd.f32 %v2203, %v2204
  %v2206 = vsel %vm74, %v2189, 0.0
  %v2207 = vadd.f32 %v2205, %v2206
  %v2208 = vsel %vm74, %v2190, 0.0
  %v2209 = vadd.f32 %v2207, %v2208
  %v2210 = vsel %vm74, %v2191, 0.0
  %v2211 = vadd.f32 %v2209, %v2210
  %v2212 = vsel %vm74, %v2192, 0.0
  %v2213 = vadd.f32 %v2211, %v2212
  %v2214 = vsel %vm74, %v2193, 0.0
  %v2215 = vadd.f32 %v2213, %v2214
  %v2216 = vsel %vm74, %v2194, 0.0
  %v2217 = vadd.f32 %v2215, %v2216
  %v2218 = vsel %vm74, %v2195, 0.0
  %v2219 = vadd.f32 %v2217, %v2218
  %v2220 = vsel %vm74, %v2196, 0.0
  %v2221 = vadd.f32 %v2219, %v2220
  %v2222 = vsel %vm74, %v2197, 0.0
  %v2223 = vadd.f32 %v2221, %v2222
  %v2224 = vsel %vm74, %v2198, 0.0
  %v2225 = vadd.f32 %v2223, %v2224
  %v2226 = vsel %vm74, %v2199, 0.0
  %v2227 = vadd.f32 %v2225, %v2226
  %v2228 = vsel %vm74, %v2200, 0.0
  %v2229 = vadd.f32 %v2227, %v2228
  %v2230 = vsel %vm74, %v2201, 0.0
  %v2231 = vadd.f32 %v2229, %v2230
  %v2232 = vsel %vm74, %v2202, 0.0
  %v2233 = vadd.f32 %v2231, %v2232
  %v2234 = vrot.slane %v2233, 4
  %v2235 = vadd.f32 %v2233, %v2234
  %v2236 = vrot.slane %v2235, 2
  %v2237 = vadd.f32 %v2235, %v2236
  %v2238 = vrot.slane %v2237, 1
  %v2239 = vadd.f32 %v2237, %v2238
  %v2240 = vmul.f32 %v2239, %v1062
  %v2241 = vmul.f32 %v2186, %v2186
  %v2242 = vsub.f32 %v2240, %v2241
  %v2243 = vmax.f32 %v2242, 0.0
  %v2244 = vld [vmem:[%s5] sm:$0x1]
  %v2245 = vadd.f32 %v2243, 1e-05
  %v2246 = vrsqrt.pop %v2245
  %v2247 = vmul.f32 %v2244, %v2246
  %v2249 = vlaneseq
  %v2250 = vshrl.u32 %v2249, 7
  %v2251 = vsub.s32 0, %v2250
  %v2252 = vrot.slane %v2247, %v2251
  %v2254 = vmul.f32 %v2087, %v2252
  %v2255 = vmul.f32 %v2090, %v2252
  %v2256 = vmul.f32 %v2095, %v2252
  %v2257 = vmul.f32 %v2098, %v2252
  %v2258 = vmul.f32 %v2103, %v2252
  %v2259 = vmul.f32 %v2106, %v2252
  %v2260 = vmul.f32 %v2111, %v2252
  %v2261 = vmul.f32 %v2114, %v2252
  %v2262 = vmul.f32 %v2119, %v2252
  %v2263 = vmul.f32 %v2122, %v2252
  %v2264 = vmul.f32 %v2127, %v2252
  %v2265 = vmul.f32 %v2130, %v2252
  %v2266 = vmul.f32 %v2135, %v2252
  %v2267 = vmul.f32 %v2138, %v2252
  %v2268 = vmul.f32 %v2143, %v2252
  %v2269 = vmul.f32 %v2146, %v2252
  %v2270 = vld [vmem:[%s6] sm:$0x1]
  %v2271 = vmul.f32 %v2186, %v2247
  %v2272 = vsub.f32 %v2270, %v2271
  %v2274 = vlaneseq
  %v2275 = vshrl.u32 %v2274, 7
  %v2276 = vsub.s32 0, %v2275
  %v2277 = vrot.slane %v2272, %v2276
  %v2279 = vadd.f32 %v2254, %v2277
  %v2280 = vadd.f32 %v2255, %v2277
  %v2281 = vadd.f32 %v2256, %v2277
  %v2282 = vadd.f32 %v2257, %v2277
  %v2283 = vadd.f32 %v2258, %v2277
  %v2284 = vadd.f32 %v2259, %v2277
  %v2285 = vadd.f32 %v2260, %v2277
  %v2286 = vadd.f32 %v2261, %v2277
  %v2287 = vadd.f32 %v2262, %v2277
  %v2288 = vadd.f32 %v2263, %v2277
  %v2289 = vadd.f32 %v2264, %v2277
  %v2290 = vadd.f32 %v2265, %v2277
  %v2291 = vadd.f32 %v2266, %v2277
  %v2292 = vadd.f32 %v2267, %v2277
  %v2293 = vadd.f32 %v2268, %v2277
  %v2294 = vadd.f32 %v2269, %v2277
  %v2295 = vmax.f32 %v2279, 0.0
  %v2296 = vmax.f32 %v2280, 0.0
  %v2297 = vmax.f32 %v2281, 0.0
  %v2298 = vmax.f32 %v2282, 0.0
  %v2299 = vmax.f32 %v2283, 0.0
  %v2300 = vmax.f32 %v2284, 0.0
  %v2301 = vmax.f32 %v2285, 0.0
  %v2302 = vmax.f32 %v2286, 0.0
  %v2303 = vmax.f32 %v2287, 0.0
  %v2304 = vmax.f32 %v2288, 0.0
  %v2305 = vmax.f32 %v2289, 0.0
  %v2306 = vmax.f32 %v2290, 0.0
  %v2307 = vmax.f32 %v2291, 0.0
  %v2308 = vmax.f32 %v2292, 0.0
  %v2309 = vmax.f32 %v2293, 0.0
  %v2310 = vmax.f32 %v2294, 0.0
  %2311 = vst.msk [vmem:[%s1188 + $0x1] sm:$0xff] %vm74, %v2295
  %2312 = vst.msk [vmem:[%s1188 + $0x11] sm:$0xff] %vm74, %v2296
  %2313 = vst.msk [vmem:[%s1188 + $0x21] sm:$0xff] %vm74, %v2297
  %2314 = vst.msk [vmem:[%s1188 + $0x31] sm:$0xff] %vm74, %v2298
  %2315 = vst.msk [vmem:[%s1188 + $0x41] sm:$0xff] %vm74, %v2299
  %2316 = vst.msk [vmem:[%s1188 + $0x51] sm:$0xff] %vm74, %v2300
  %2317 = vst.msk [vmem:[%s1188 + $0x61] sm:$0xff] %vm74, %v2301
  %2318 = vst.msk [vmem:[%s1188 + $0x71] sm:$0xff] %vm74, %v2302
  %2319 = vst.msk [vmem:[%s1188 + $0xa1] sm:$0xff] %vm74, %v2303
  %2320 = vst.msk [vmem:[%s1188 + $0xb1] sm:$0xff] %vm74, %v2304
  %2321 = vst.msk [vmem:[%s1188 + $0xc1] sm:$0xff] %vm74, %v2305
  %2322 = vst.msk [vmem:[%s1188 + $0xd1] sm:$0xff] %vm74, %v2306
  %2323 = vst.msk [vmem:[%s1188 + $0xe1] sm:$0xff] %vm74, %v2307
  %2324 = vst.msk [vmem:[%s1188 + $0xf1] sm:$0xff] %vm74, %v2308
  %2325 = vst.msk [vmem:[%s1188 + $0x101] sm:$0xff] %vm74, %v2309
  %2326 = vst.msk [vmem:[%s1188 + $0x111] sm:$0xff] %vm74, %v2310
  %v2327 = vld [vmem:[#allocation2] sm:$0xff]
  %v2328 = vld [vmem:[#allocation2 + $0x8] sm:$0x3]
  %v2329 = vld [vmem:[#allocation2 + $0x10] sm:$0xff]
  %v2330 = vld [vmem:[#allocation2 + $0x18] sm:$0x3]
  %v2331 = vld [vmem:[#allocation2 + $0x20] sm:$0xff]
  %v2332 = vld [vmem:[#allocation2 + $0x28] sm:$0x3]
  %v2333 = vld [vmem:[#allocation2 + $0x30] sm:$0xff]
  %v2334 = vld [vmem:[#allocation2 + $0x38] sm:$0x3]
  %v2335 = vld [vmem:[#allocation2 + $0x40] sm:$0xff]
  %v2336 = vld [vmem:[#allocation2 + $0x48] sm:$0x3]
  %v2337 = vld [vmem:[#allocation2 + $0x50] sm:$0xff]
  %v2338 = vld [vmem:[#allocation2 + $0x58] sm:$0x3]
  %v2339 = vld [vmem:[#allocation2 + $0x60] sm:$0xff]
  %v2340 = vld [vmem:[#allocation2 + $0x68] sm:$0x3]
  %v2341 = vld [vmem:[#allocation2 + $0x70] sm:$0xff]
  %v2342 = vld [vmem:[#allocation2 + $0x78] sm:$0x3]
  %v2343 = vld [vmem:[#allocation2 + $0x80] sm:$0xff]
  %v2344 = vld [vmem:[#allocation2 + $0x88] sm:$0x3]
  %v2345 = vld [vmem:[#allocation2 + $0x90] sm:$0xff]
  %v2346 = vld [vmem:[#allocation2 + $0x98] sm:$0x3]
  %v2347 = vld [vmem:[#allocation2 + $0xa0] sm:$0xff]
  %v2348 = vld [vmem:[#allocation2 + $0xa8] sm:$0x3]
  %v2349 = vld [vmem:[#allocation2 + $0xb0] sm:$0xff]
  %v2350 = vld [vmem:[#allocation2 + $0xb8] sm:$0x3]
  %v2351 = vld [vmem:[#allocation2 + $0xc0] sm:$0xff]
  %v2352 = vld [vmem:[#allocation2 + $0xc8] sm:$0x3]
  %v2353 = vld [vmem:[#allocation2 + $0xd0] sm:$0xff]
  %v2354 = vld [vmem:[#allocation2 + $0xd8] sm:$0x3]
  %v2355 = vld [vmem:[#allocation2 + $0xe0] sm:$0xff]
  %v2356 = vld [vmem:[#allocation2 + $0xe8] sm:$0x3]
  %v2357 = vld [vmem:[#allocation2 + $0xf0] sm:$0xff]
  %v2358 = vld [vmem:[#allocation2 + $0xf8] sm:$0x3]
  %v2359 = vld [vmem:[#allocation2 + $0x100] sm:$0xff]
  %v2360 = vld [vmem:[#allocation2 + $0x108] sm:$0x3]
  %v2361 = vld [vmem:[#allocation2 + $0x110] sm:$0xff]
  %v2362 = vld [vmem:[#allocation2 + $0x118] sm:$0x3]
  %v2363 = vld [vmem:[#allocation2 + $0x120] sm:$0xff]
  %v2364 = vld [vmem:[#allocation2 + $0x128] sm:$0x3]
  %v2365 = vld [vmem:[#allocation2 + $0x130] sm:$0xff]
  %v2366 = vld [vmem:[#allocation2 + $0x138] sm:$0x3]
  %2367 = vst.msk [vmem:[#allocation3] sm:$0xff] %vm74, %v2327
  %2368 = vst.msk [vmem:[#allocation3 + $0x10] sm:$0xff] %vm74, %v2329
  %2369 = vst.msk [vmem:[#allocation3 + $0x20] sm:$0xff] %vm74, %v2331
  %2370 = vst.msk [vmem:[#allocation3 + $0x30] sm:$0xff] %vm74, %v2333
  %2371 = vst.msk [vmem:[#allocation3 + $0x40] sm:$0xff] %vm74, %v2335
  %2372 = vst.msk [vmem:[#allocation3 + $0x50] sm:$0xff] %vm74, %v2337
  %2373 = vst.msk [vmem:[#allocation3 + $0x60] sm:$0xff] %vm74, %v2339
  %2374 = vst.msk [vmem:[#allocation3 + $0x70] sm:$0xff] %vm74, %v2341
  %2375 = vst.msk [vmem:[#allocation3 + $0x80] sm:$0xff] %vm74, %v2347
  %2376 = vst.msk [vmem:[#allocation3 + $0x90] sm:$0xff] %vm74, %v2349
  %2377 = vst.msk [vmem:[#allocation3 + $0xa0] sm:$0xff] %vm74, %v2351
  %2378 = vst.msk [vmem:[#allocation3 + $0xb0] sm:$0xff] %vm74, %v2353
  %2379 = vst.msk [vmem:[#allocation3 + $0xc0] sm:$0xff] %vm74, %v2355
  %2380 = vst.msk [vmem:[#allocation3 + $0xd0] sm:$0xff] %vm74, %v2357
  %2381 = vst.msk [vmem:[#allocation3 + $0xe0] sm:$0xff] %vm74, %v2359
  %2382 = vst.msk [vmem:[#allocation3 + $0xf0] sm:$0xff] %vm74, %v2361
  %v2415 = vrot.slane %v2327, 1
  %v2416 = vrot.slane %v2328, 1
  %v2417 = vsel %vm205, %v2415, %v2416
  %v2418 = vrot.slane %v2329, 1
  %v2419 = vrot.slane %v2330, 1
  %v2420 = vsel %vm205, %v2418, %v2419
  %v2421 = vrot.slane %v2331, 1
  %v2422 = vrot.slane %v2332, 1
  %v2423 = vsel %vm205, %v2421, %v2422
  %v2424 = vrot.slane %v2333, 1
  %v2425 = vrot.slane %v2334, 1
  %v2426 = vsel %vm205, %v2424, %v2425
  %v2427 = vrot.slane %v2335, 1
  %v2428 = vrot.slane %v2336, 1
  %v2429 = vsel %vm205, %v2427, %v2428
  %v2430 = vrot.slane %v2337, 1
  %v2431 = vrot.slane %v2338, 1
  %v2432 = vsel %vm205, %v2430, %v2431
  %v2433 = vrot.slane %v2339, 1
  %v2434 = vrot.slane %v2340, 1
  %v2435 = vsel %vm205, %v2433, %v2434
  %v2436 = vrot.slane %v2341, 1
  %v2437 = vrot.slane %v2342, 1
  %v2438 = vsel %vm205, %v2436, %v2437
  %v2439 = vrot.slane %v2347, 1
  %v2440 = vrot.slane %v2348, 1
  %v2441 = vsel %vm205, %v2439, %v2440
  %v2442 = vrot.slane %v2349, 1
  %v2443 = vrot.slane %v2350, 1
  %v2444 = vsel %vm205, %v2442, %v2443
  %v2445 = vrot.slane %v2351, 1
  %v2446 = vrot.slane %v2352, 1
  %v2447 = vsel %vm205, %v2445, %v2446
  %v2448 = vrot.slane %v2353, 1
  %v2449 = vrot.slane %v2354, 1
  %v2450 = vsel %vm205, %v2448, %v2449
  %v2451 = vrot.slane %v2355, 1
  %v2452 = vrot.slane %v2356, 1
  %v2453 = vsel %vm205, %v2451, %v2452
  %v2454 = vrot.slane %v2357, 1
  %v2455 = vrot.slane %v2358, 1
  %v2456 = vsel %vm205, %v2454, %v2455
  %v2457 = vrot.slane %v2359, 1
  %v2458 = vrot.slane %v2360, 1
  %v2459 = vsel %vm205, %v2457, %v2458
  %v2460 = vrot.slane %v2361, 1
  %v2461 = vrot.slane %v2362, 1
  %v2462 = vsel %vm205, %v2460, %v2461
  %2463 = vrot.lane.b32.xlu0 %v2417, 16
  %v2464 = vpop.permute.xlu0 %2463
  %2465 = vrot.lane.b32.xlu0 %v2420, 16
  %v2466 = vpop.permute.xlu0 %2465
  %2467 = vrot.lane.b32.xlu0 %v2423, 16
  %v2468 = vpop.permute.xlu0 %2467
  %2469 = vrot.lane.b32.xlu0 %v2426, 16
  %v2470 = vpop.permute.xlu0 %2469
  %2471 = vrot.lane.b32.xlu0 %v2429, 16
  %v2472 = vpop.permute.xlu0 %2471
  %2473 = vrot.lane.b32.xlu0 %v2432, 16
  %v2474 = vpop.permute.xlu0 %2473
  %2475 = vrot.lane.b32.xlu0 %v2435, 16
  %v2476 = vpop.permute.xlu0 %2475
  %2477 = vrot.lane.b32.xlu0 %v2438, 16
  %v2478 = vpop.permute.xlu0 %2477
  %2479 = vrot.lane.b32.xlu0 %v2441, 16
  %v2480 = vpop.permute.xlu0 %2479
  %2481 = vrot.lane.b32.xlu0 %v2444, 16
  %v2482 = vpop.permute.xlu0 %2481
  %2483 = vrot.lane.b32.xlu0 %v2447, 16
  %v2484 = vpop.permute.xlu0 %2483
  %2485 = vrot.lane.b32.xlu0 %v2450, 16
  %v2486 = vpop.permute.xlu0 %2485
  %2487 = vrot.lane.b32.xlu0 %v2453, 16
  %v2488 = vpop.permute.xlu0 %2487
  %2489 = vrot.lane.b32.xlu0 %v2456, 16
  %v2490 = vpop.permute.xlu0 %2489
  %2491 = vrot.lane.b32.xlu0 %v2459, 16
  %v2492 = vpop.permute.xlu0 %2491
  %2493 = vrot.lane.b32.xlu0 %v2462, 16
  %v2494 = vpop.permute.xlu0 %2493
  %2511 = vst.msk [vmem:[#allocation3] sm:$0xff] %vm1389, %v2464
  %2512 = vst.msk [vmem:[#allocation3 + $0x10] sm:$0xff] %vm1389, %v2466
  %2513 = vst.msk [vmem:[#allocation3 + $0x20] sm:$0xff] %vm1389, %v2468
  %2514 = vst.msk [vmem:[#allocation3 + $0x30] sm:$0xff] %vm1389, %v2470
  %2515 = vst.msk [vmem:[#allocation3 + $0x40] sm:$0xff] %vm1389, %v2472
  %2516 = vst.msk [vmem:[#allocation3 + $0x50] sm:$0xff] %vm1389, %v2474
  %2517 = vst.msk [vmem:[#allocation3 + $0x60] sm:$0xff] %vm1389, %v2476
  %2518 = vst.msk [vmem:[#allocation3 + $0x70] sm:$0xff] %vm1389, %v2478
  %2519 = vst.msk [vmem:[#allocation3 + $0x80] sm:$0xff] %vm1389, %v2480
  %2520 = vst.msk [vmem:[#allocation3 + $0x90] sm:$0xff] %vm1389, %v2482
  %2521 = vst.msk [vmem:[#allocation3 + $0xa0] sm:$0xff] %vm1389, %v2484
  %2522 = vst.msk [vmem:[#allocation3 + $0xb0] sm:$0xff] %vm1389, %v2486
  %2523 = vst.msk [vmem:[#allocation3 + $0xc0] sm:$0xff] %vm1389, %v2488
  %2524 = vst.msk [vmem:[#allocation3 + $0xd0] sm:$0xff] %vm1389, %v2490
  %2525 = vst.msk [vmem:[#allocation3 + $0xe0] sm:$0xff] %vm1389, %v2492
  %2526 = vst.msk [vmem:[#allocation3 + $0xf0] sm:$0xff] %vm1389, %v2494
  %v2527 = vrot.slane %v2327, 2
  %v2528 = vrot.slane %v2328, 2
  %v2529 = vsel %vm319, %v2527, %v2528
  %v2530 = vrot.slane %v2329, 2
  %v2531 = vrot.slane %v2330, 2
  %v2532 = vsel %vm319, %v2530, %v2531
  %v2533 = vrot.slane %v2331, 2
  %v2534 = vrot.slane %v2332, 2
  %v2535 = vsel %vm319, %v2533, %v2534
  %v2536 = vrot.slane %v2333, 2
  %v2537 = vrot.slane %v2334, 2
  %v2538 = vsel %vm319, %v2536, %v2537
  %v2539 = vrot.slane %v2335, 2
  %v2540 = vrot.slane %v2336, 2
  %v2541 = vsel %vm319, %v2539, %v2540
  %v2542 = vrot.slane %v2337, 2
  %v2543 = vrot.slane %v2338, 2
  %v2544 = vsel %vm319, %v2542, %v2543
  %v2545 = vrot.slane %v2339, 2
  %v2546 = vrot.slane %v2340, 2
  %v2547 = vsel %vm319, %v2545, %v2546
  %v2548 = vrot.slane %v2341, 2
  %v2549 = vrot.slane %v2342, 2
  %v2550 = vsel %vm319, %v2548, %v2549
  %v2551 = vrot.slane %v2347, 2
  %v2552 = vrot.slane %v2348, 2
  %v2553 = vsel %vm319, %v2551, %v2552
  %v2554 = vrot.slane %v2349, 2
  %v2555 = vrot.slane %v2350, 2
  %v2556 = vsel %vm319, %v2554, %v2555
  %v2557 = vrot.slane %v2351, 2
  %v2558 = vrot.slane %v2352, 2
  %v2559 = vsel %vm319, %v2557, %v2558
  %v2560 = vrot.slane %v2353, 2
  %v2561 = vrot.slane %v2354, 2
  %v2562 = vsel %vm319, %v2560, %v2561
  %v2563 = vrot.slane %v2355, 2
  %v2564 = vrot.slane %v2356, 2
  %v2565 = vsel %vm319, %v2563, %v2564
  %v2566 = vrot.slane %v2357, 2
  %v2567 = vrot.slane %v2358, 2
  %v2568 = vsel %vm319, %v2566, %v2567
  %v2569 = vrot.slane %v2359, 2
  %v2570 = vrot.slane %v2360, 2
  %v2571 = vsel %vm319, %v2569, %v2570
  %v2572 = vrot.slane %v2361, 2
  %v2573 = vrot.slane %v2362, 2
  %v2574 = vsel %vm319, %v2572, %v2573
  %2575 = vrot.lane.b32.xlu0 %v2529, 32
  %v2576 = vpop.permute.xlu0 %2575
  %2577 = vrot.lane.b32.xlu0 %v2532, 32
  %v2578 = vpop.permute.xlu0 %2577
  %2579 = vrot.lane.b32.xlu0 %v2535, 32
  %v2580 = vpop.permute.xlu0 %2579
  %2581 = vrot.lane.b32.xlu0 %v2538, 32
  %v2582 = vpop.permute.xlu0 %2581
  %2583 = vrot.lane.b32.xlu0 %v2541, 32
  %v2584 = vpop.permute.xlu0 %2583
  %2585 = vrot.lane.b32.xlu0 %v2544, 32
  %v2586 = vpop.permute.xlu0 %2585
  %2587 = vrot.lane.b32.xlu0 %v2547, 32
  %v2588 = vpop.permute.xlu0 %2587
  %2589 = vrot.lane.b32.xlu0 %v2550, 32
  %v2590 = vpop.permute.xlu0 %2589
  %2591 = vrot.lane.b32.xlu0 %v2553, 32
  %v2592 = vpop.permute.xlu0 %2591
  %2593 = vrot.lane.b32.xlu0 %v2556, 32
  %v2594 = vpop.permute.xlu0 %2593
  %2595 = vrot.lane.b32.xlu0 %v2559, 32
  %v2596 = vpop.permute.xlu0 %2595
  %2597 = vrot.lane.b32.xlu0 %v2562, 32
  %v2598 = vpop.permute.xlu0 %2597
  %2599 = vrot.lane.b32.xlu0 %v2565, 32
  %v2600 = vpop.permute.xlu0 %2599
  %2601 = vrot.lane.b32.xlu0 %v2568, 32
  %v2602 = vpop.permute.xlu0 %2601
  %2603 = vrot.lane.b32.xlu0 %v2571, 32
  %v2604 = vpop.permute.xlu0 %2603
  %2605 = vrot.lane.b32.xlu0 %v2574, 32
  %v2606 = vpop.permute.xlu0 %2605
  %2623 = vst.msk [vmem:[#allocation3] sm:$0xff] %vm1502, %v2576
  %2624 = vst.msk [vmem:[#allocation3 + $0x10] sm:$0xff] %vm1502, %v2578
  %2625 = vst.msk [vmem:[#allocation3 + $0x20] sm:$0xff] %vm1502, %v2580
  %2626 = vst.msk [vmem:[#allocation3 + $0x30] sm:$0xff] %vm1502, %v2582
  %2627 = vst.msk [vmem:[#allocation3 + $0x40] sm:$0xff] %vm1502, %v2584
  %2628 = vst.msk [vmem:[#allocation3 + $0x50] sm:$0xff] %vm1502, %v2586
  %2629 = vst.msk [vmem:[#allocation3 + $0x60] sm:$0xff] %vm1502, %v2588
  %2630 = vst.msk [vmem:[#allocation3 + $0x70] sm:$0xff] %vm1502, %v2590
  %2631 = vst.msk [vmem:[#allocation3 + $0x80] sm:$0xff] %vm1502, %v2592
  %2632 = vst.msk [vmem:[#allocation3 + $0x90] sm:$0xff] %vm1502, %v2594
  %2633 = vst.msk [vmem:[#allocation3 + $0xa0] sm:$0xff] %vm1502, %v2596
  %2634 = vst.msk [vmem:[#allocation3 + $0xb0] sm:$0xff] %vm1502, %v2598
  %2635 = vst.msk [vmem:[#allocation3 + $0xc0] sm:$0xff] %vm1502, %v2600
  %2636 = vst.msk [vmem:[#allocation3 + $0xd0] sm:$0xff] %vm1502, %v2602
  %2637 = vst.msk [vmem:[#allocation3 + $0xe0] sm:$0xff] %vm1502, %v2604
  %2638 = vst.msk [vmem:[#allocation3 + $0xf0] sm:$0xff] %vm1502, %v2606
  %2641 = vrot.lane.b32.xlu0 %v2329, 48
  %v2642 = vpop.permute.xlu0 %2641
  %2643 = vrot.lane.b32.xlu0 %v2331, 48
  %v2644 = vpop.permute.xlu0 %2643
  %2645 = vrot.lane.b32.xlu0 %v2333, 48
  %v2646 = vpop.permute.xlu0 %2645
  %2647 = vrot.lane.b32.xlu0 %v2335, 48
  %v2648 = vpop.permute.xlu0 %2647
  %2649 = vrot.lane.b32.xlu0 %v2337, 48
  %v2650 = vpop.permute.xlu0 %2649
  %2651 = vrot.lane.b32.xlu0 %v2339, 48
  %v2652 = vpop.permute.xlu0 %2651
  %2653 = vrot.lane.b32.xlu0 %v2341, 48
  %v2654 = vpop.permute.xlu0 %2653
  %2655 = vrot.lane.b32.xlu0 %v2343, 48
  %v2656 = vpop.permute.xlu0 %2655
  %2657 = vrot.lane.b32.xlu0 %v2349, 48
  %v2658 = vpop.permute.xlu0 %2657
  %2659 = vrot.lane.b32.xlu0 %v2351, 48
  %v2660 = vpop.permute.xlu0 %2659
  %2661 = vrot.lane.b32.xlu0 %v2353, 48
  %v2662 = vpop.permute.xlu0 %2661
  %2663 = vrot.lane.b32.xlu0 %v2355, 48
  %v2664 = vpop.permute.xlu0 %2663
  %2665 = vrot.lane.b32.xlu0 %v2357, 48
  %v2666 = vpop.permute.xlu0 %2665
  %2667 = vrot.lane.b32.xlu0 %v2359, 48
  %v2668 = vpop.permute.xlu0 %2667
  %2669 = vrot.lane.b32.xlu0 %v2361, 48
  %v2670 = vpop.permute.xlu0 %2669
  %2671 = vrot.lane.b32.xlu0 %v2363, 48
  %v2672 = vpop.permute.xlu0 %2671
  %2689 = vst.msk [vmem:[#allocation3] sm:$0xff] %vm1569, %v2642
  %2690 = vst.msk [vmem:[#allocation3 + $0x10] sm:$0xff] %vm1569, %v2644
  %2691 = vst.msk [vmem:[#allocation3 + $0x20] sm:$0xff] %vm1569, %v2646
  %2692 = vst.msk [vmem:[#allocation3 + $0x30] sm:$0xff] %vm1569, %v2648
  %2693 = vst.msk [vmem:[#allocation3 + $0x40] sm:$0xff] %vm1569, %v2650
  %2694 = vst.msk [vmem:[#allocation3 + $0x50] sm:$0xff] %vm1569, %v2652
  %2695 = vst.msk [vmem:[#allocation3 + $0x60] sm:$0xff] %vm1569, %v2654
  %2696 = vst.msk [vmem:[#allocation3 + $0x70] sm:$0xff] %vm1569, %v2656
  %2697 = vst.msk [vmem:[#allocation3 + $0x80] sm:$0xff] %vm1569, %v2658
  %2698 = vst.msk [vmem:[#allocation3 + $0x90] sm:$0xff] %vm1569, %v2660
  %2699 = vst.msk [vmem:[#allocation3 + $0xa0] sm:$0xff] %vm1569, %v2662
  %2700 = vst.msk [vmem:[#allocation3 + $0xb0] sm:$0xff] %vm1569, %v2664
  %2701 = vst.msk [vmem:[#allocation3 + $0xc0] sm:$0xff] %vm1569, %v2666
  %2702 = vst.msk [vmem:[#allocation3 + $0xd0] sm:$0xff] %vm1569, %v2668
  %2703 = vst.msk [vmem:[#allocation3 + $0xe0] sm:$0xff] %vm1569, %v2670
  %2704 = vst.msk [vmem:[#allocation3 + $0xf0] sm:$0xff] %vm1569, %v2672
  %v2707 = vrot.slane %v2343, 1
  %v2708 = vrot.slane %v2344, 1
  %v2709 = vsel %vm205, %v2707, %v2708
  %v2710 = vrot.slane %v2363, 1
  %v2711 = vrot.slane %v2364, 1
  %v2712 = vsel %vm205, %v2710, %v2711
  %2713 = vrot.lane.b32.xlu0 %v2420, 64
  %v2714 = vpop.permute.xlu0 %2713
  %2715 = vrot.lane.b32.xlu0 %v2423, 64
  %v2716 = vpop.permute.xlu0 %2715
  %2717 = vrot.lane.b32.xlu0 %v2426, 64
  %v2718 = vpop.permute.xlu0 %2717
  %2719 = vrot.lane.b32.xlu0 %v2429, 64
  %v2720 = vpop.permute.xlu0 %2719
  %2721 = vrot.lane.b32.xlu0 %v2432, 64
  %v2722 = vpop.permute.xlu0 %2721
  %2723 = vrot.lane.b32.xlu0 %v2435, 64
  %v2724 = vpop.permute.xlu0 %2723
  %2725 = vrot.lane.b32.xlu0 %v2438, 64
  %v2726 = vpop.permute.xlu0 %2725
  %2727 = vrot.lane.b32.xlu0 %v2709, 64
  %v2728 = vpop.permute.xlu0 %2727
  %2729 = vrot.lane.b32.xlu0 %v2444, 64
  %v2730 = vpop.permute.xlu0 %2729
  %2731 = vrot.lane.b32.xlu0 %v2447, 64
  %v2732 = vpop.permute.xlu0 %2731
  %2733 = vrot.lane.b32.xlu0 %v2450, 64
  %v2734 = vpop.permute.xlu0 %2733
  %2735 = vrot.lane.b32.xlu0 %v2453, 64
  %v2736 = vpop.permute.xlu0 %2735
  %2737 = vrot.lane.b32.xlu0 %v2456, 64
  %v2738 = vpop.permute.xlu0 %2737
  %2739 = vrot.lane.b32.xlu0 %v2459, 64
  %v2740 = vpop.permute.xlu0 %2739
  %2741 = vrot.lane.b32.xlu0 %v2462, 64
  %v2742 = vpop.permute.xlu0 %2741
  %2743 = vrot.lane.b32.xlu0 %v2712, 64
  %v2744 = vpop.permute.xlu0 %2743
  %2761 = vst.msk [vmem:[#allocation3] sm:$0xff] %vm1642, %v2714
  %2762 = vst.msk [vmem:[#allocation3 + $0x10] sm:$0xff] %vm1642, %v2716
  %2763 = vst.msk [vmem:[#allocation3 + $0x20] sm:$0xff] %vm1642, %v2718
  %2764 = vst.msk [vmem:[#allocation3 + $0x30] sm:$0xff] %vm1642, %v2720
  %2765 = vst.msk [vmem:[#allocation3 + $0x40] sm:$0xff] %vm1642, %v2722
  %2766 = vst.msk [vmem:[#allocation3 + $0x50] sm:$0xff] %vm1642, %v2724
  %2767 = vst.msk [vmem:[#allocation3 + $0x60] sm:$0xff] %vm1642, %v2726
  %2768 = vst.msk [vmem:[#allocation3 + $0x70] sm:$0xff] %vm1642, %v2728
  %2769 = vst.msk [vmem:[#allocation3 + $0x80] sm:$0xff] %vm1642, %v2730
  %2770 = vst.msk [vmem:[#allocation3 + $0x90] sm:$0xff] %vm1642, %v2732
  %2771 = vst.msk [vmem:[#allocation3 + $0xa0] sm:$0xff] %vm1642, %v2734
  %2772 = vst.msk [vmem:[#allocation3 + $0xb0] sm:$0xff] %vm1642, %v2736
  %2773 = vst.msk [vmem:[#allocation3 + $0xc0] sm:$0xff] %vm1642, %v2738
  %2774 = vst.msk [vmem:[#allocation3 + $0xd0] sm:$0xff] %vm1642, %v2740
  %2775 = vst.msk [vmem:[#allocation3 + $0xe0] sm:$0xff] %vm1642, %v2742
  %2776 = vst.msk [vmem:[#allocation3 + $0xf0] sm:$0xff] %vm1642, %v2744
  %v2777 = vrot.slane %v2343, 2
  %v2778 = vrot.slane %v2344, 2
  %v2779 = vsel %vm319, %v2777, %v2778
  %v2780 = vrot.slane %v2363, 2
  %v2781 = vrot.slane %v2364, 2
  %v2782 = vsel %vm319, %v2780, %v2781
  %2783 = vrot.lane.b32.xlu0 %v2532, 80
  %v2784 = vpop.permute.xlu0 %2783
  %2785 = vrot.lane.b32.xlu0 %v2535, 80
  %v2786 = vpop.permute.xlu0 %2785
  %2787 = vrot.lane.b32.xlu0 %v2538, 80
  %v2788 = vpop.permute.xlu0 %2787
  %2789 = vrot.lane.b32.xlu0 %v2541, 80
  %v2790 = vpop.permute.xlu0 %2789
  %2791 = vrot.lane.b32.xlu0 %v2544, 80
  %v2792 = vpop.permute.xlu0 %2791
  %2793 = vrot.lane.b32.xlu0 %v2547, 80
  %v2794 = vpop.permute.xlu0 %2793
  %2795 = vrot.lane.b32.xlu0 %v2550, 80
  %v2796 = vpop.permute.xlu0 %2795
  %2797 = vrot.lane.b32.xlu0 %v2779, 80
  %v2798 = vpop.permute.xlu0 %2797
  %2799 = vrot.lane.b32.xlu0 %v2556, 80
  %v2800 = vpop.permute.xlu0 %2799
  %2801 = vrot.lane.b32.xlu0 %v2559, 80
  %v2802 = vpop.permute.xlu0 %2801
  %2803 = vrot.lane.b32.xlu0 %v2562, 80
  %v2804 = vpop.permute.xlu0 %2803
  %2805 = vrot.lane.b32.xlu0 %v2565, 80
  %v2806 = vpop.permute.xlu0 %2805
  %2807 = vrot.lane.b32.xlu0 %v2568, 80
  %v2808 = vpop.permute.xlu0 %2807
  %2809 = vrot.lane.b32.xlu0 %v2571, 80
  %v2810 = vpop.permute.xlu0 %2809
  %2811 = vrot.lane.b32.xlu0 %v2574, 80
  %v2812 = vpop.permute.xlu0 %2811
  %2813 = vrot.lane.b32.xlu0 %v2782, 80
  %v2814 = vpop.permute.xlu0 %2813
  %2831 = vst.msk [vmem:[#allocation3] sm:$0xff] %vm1713, %v2784
  %2832 = vst.msk [vmem:[#allocation3 + $0x10] sm:$0xff] %vm1713, %v2786
  %2833 = vst.msk [vmem:[#allocation3 + $0x20] sm:$0xff] %vm1713, %v2788
  %2834 = vst.msk [vmem:[#allocation3 + $0x30] sm:$0xff] %vm1713, %v2790
  %2835 = vst.msk [vmem:[#allocation3 + $0x40] sm:$0xff] %vm1713, %v2792
  %2836 = vst.msk [vmem:[#allocation3 + $0x50] sm:$0xff] %vm1713, %v2794
  %2837 = vst.msk [vmem:[#allocation3 + $0x60] sm:$0xff] %vm1713, %v2796
  %2838 = vst.msk [vmem:[#allocation3 + $0x70] sm:$0xff] %vm1713, %v2798
  %2839 = vst.msk [vmem:[#allocation3 + $0x80] sm:$0xff] %vm1713, %v2800
  %2840 = vst.msk [vmem:[#allocation3 + $0x90] sm:$0xff] %vm1713, %v2802
  %2841 = vst.msk [vmem:[#allocation3 + $0xa0] sm:$0xff] %vm1713, %v2804
  %2842 = vst.msk [vmem:[#allocation3 + $0xb0] sm:$0xff] %vm1713, %v2806
  %2843 = vst.msk [vmem:[#allocation3 + $0xc0] sm:$0xff] %vm1713, %v2808
  %2844 = vst.msk [vmem:[#allocation3 + $0xd0] sm:$0xff] %vm1713, %v2810
  %2845 = vst.msk [vmem:[#allocation3 + $0xe0] sm:$0xff] %vm1713, %v2812
  %2846 = vst.msk [vmem:[#allocation3 + $0xf0] sm:$0xff] %vm1713, %v2814
  %2849 = vrot.lane.b32.xlu0 %v2331, 96
  %v2850 = vpop.permute.xlu0 %2849
  %2851 = vrot.lane.b32.xlu0 %v2333, 96
  %v2852 = vpop.permute.xlu0 %2851
  %2853 = vrot.lane.b32.xlu0 %v2335, 96
  %v2854 = vpop.permute.xlu0 %2853
  %2855 = vrot.lane.b32.xlu0 %v2337, 96
  %v2856 = vpop.permute.xlu0 %2855
  %2857 = vrot.lane.b32.xlu0 %v2339, 96
  %v2858 = vpop.permute.xlu0 %2857
  %2859 = vrot.lane.b32.xlu0 %v2341, 96
  %v2860 = vpop.permute.xlu0 %2859
  %2861 = vrot.lane.b32.xlu0 %v2343, 96
  %v2862 = vpop.permute.xlu0 %2861
  %2863 = vrot.lane.b32.xlu0 %v2345, 96
  %v2864 = vpop.permute.xlu0 %2863
  %2865 = vrot.lane.b32.xlu0 %v2351, 96
  %v2866 = vpop.permute.xlu0 %2865
  %2867 = vrot.lane.b32.xlu0 %v2353, 96
  %v2868 = vpop.permute.xlu0 %2867
  %2869 = vrot.lane.b32.xlu0 %v2355, 96
  %v2870 = vpop.permute.xlu0 %2869
  %2871 = vrot.lane.b32.xlu0 %v2357, 96
  %v2872 = vpop.permute.xlu0 %2871
  %2873 = vrot.lane.b32.xlu0 %v2359, 96
  %v2874 = vpop.permute.xlu0 %2873
  %2875 = vrot.lane.b32.xlu0 %v2361, 96
  %v2876 = vpop.permute.xlu0 %2875
  %2877 = vrot.lane.b32.xlu0 %v2363, 96
  %v2878 = vpop.permute.xlu0 %2877
  %2879 = vrot.lane.b32.xlu0 %v2365, 96
  %v2880 = vpop.permute.xlu0 %2879
  %2897 = vst.msk [vmem:[#allocation3] sm:$0xff] %vm1780, %v2850
  %2898 = vst.msk [vmem:[#allocation3 + $0x10] sm:$0xff] %vm1780, %v2852
  %2899 = vst.msk [vmem:[#allocation3 + $0x20] sm:$0xff] %vm1780, %v2854
  %2900 = vst.msk [vmem:[#allocation3 + $0x30] sm:$0xff] %vm1780, %v2856
  %2901 = vst.msk [vmem:[#allocation3 + $0x40] sm:$0xff] %vm1780, %v2858
  %2902 = vst.msk [vmem:[#allocation3 + $0x50] sm:$0xff] %vm1780, %v2860
  %2903 = vst.msk [vmem:[#allocation3 + $0x60] sm:$0xff] %vm1780, %v2862
  %2904 = vst.msk [vmem:[#allocation3 + $0x70] sm:$0xff] %vm1780, %v2864
  %2905 = vst.msk [vmem:[#allocation3 + $0x80] sm:$0xff] %vm1780, %v2866
  %2906 = vst.msk [vmem:[#allocation3 + $0x90] sm:$0xff] %vm1780, %v2868
  %2907 = vst.msk [vmem:[#allocation3 + $0xa0] sm:$0xff] %vm1780, %v2870
  %2908 = vst.msk [vmem:[#allocation3 + $0xb0] sm:$0xff] %vm1780, %v2872
  %2909 = vst.msk [vmem:[#allocation3 + $0xc0] sm:$0xff] %vm1780, %v2874
  %2910 = vst.msk [vmem:[#allocation3 + $0xd0] sm:$0xff] %vm1780, %v2876
  %2911 = vst.msk [vmem:[#allocation3 + $0xe0] sm:$0xff] %vm1780, %v2878
  %2912 = vst.msk [vmem:[#allocation3 + $0xf0] sm:$0xff] %vm1780, %v2880
  %v2915 = vrot.slane %v2345, 1
  %v2916 = vrot.slane %v2346, 1
  %v2917 = vsel %vm205, %v2915, %v2916
  %v2918 = vrot.slane %v2365, 1
  %v2919 = vrot.slane %v2366, 1
  %v2920 = vsel %vm205, %v2918, %v2919
  %2921 = vrot.lane.b32.xlu0 %v2423, 112
  %v2922 = vpop.permute.xlu0 %2921
  %2923 = vrot.lane.b32.xlu0 %v2426, 112
  %v2924 = vpop.permute.xlu0 %2923
  %2925 = vrot.lane.b32.xlu0 %v2429, 112
  %v2926 = vpop.permute.xlu0 %2925
  %2927 = vrot.lane.b32.xlu0 %v2432, 112
  %v2928 = vpop.permute.xlu0 %2927
  %2929 = vrot.lane.b32.xlu0 %v2435, 112
  %v2930 = vpop.permute.xlu0 %2929
  %2931 = vrot.lane.b32.xlu0 %v2438, 112
  %v2932 = vpop.permute.xlu0 %2931
  %2933 = vrot.lane.b32.xlu0 %v2709, 112
  %v2934 = vpop.permute.xlu0 %2933
  %2935 = vrot.lane.b32.xlu0 %v2917, 112
  %v2936 = vpop.permute.xlu0 %2935
  %2937 = vrot.lane.b32.xlu0 %v2447, 112
  %v2938 = vpop.permute.xlu0 %2937
  %2939 = vrot.lane.b32.xlu0 %v2450, 112
  %v2940 = vpop.permute.xlu0 %2939
  %2941 = vrot.lane.b32.xlu0 %v2453, 112
  %v2942 = vpop.permute.xlu0 %2941
  %2943 = vrot.lane.b32.xlu0 %v2456, 112
  %v2944 = vpop.permute.xlu0 %2943
  %2945 = vrot.lane.b32.xlu0 %v2459, 112
  %v2946 = vpop.permute.xlu0 %2945
  %2947 = vrot.lane.b32.xlu0 %v2462, 112
  %v2948 = vpop.permute.xlu0 %2947
  %2949 = vrot.lane.b32.xlu0 %v2712, 112
  %v2950 = vpop.permute.xlu0 %2949
  %2951 = vrot.lane.b32.xlu0 %v2920, 112
  %v2952 = vpop.permute.xlu0 %2951
  %2969 = vst.msk [vmem:[#allocation3] sm:$0xff] %vm1853, %v2922
  %2970 = vst.msk [vmem:[#allocation3 + $0x10] sm:$0xff] %vm1853, %v2924
  %2971 = vst.msk [vmem:[#allocation3 + $0x20] sm:$0xff] %vm1853, %v2926
  %2972 = vst.msk [vmem:[#allocation3 + $0x30] sm:$0xff] %vm1853, %v2928
  %2973 = vst.msk [vmem:[#allocation3 + $0x40] sm:$0xff] %vm1853, %v2930
  %2974 = vst.msk [vmem:[#allocation3 + $0x50] sm:$0xff] %vm1853, %v2932
  %2975 = vst.msk [vmem:[#allocation3 + $0x60] sm:$0xff] %vm1853, %v2934
  %2976 = vst.msk [vmem:[#allocation3 + $0x70] sm:$0xff] %vm1853, %v2936
  %2977 = vst.msk [vmem:[#allocation3 + $0x80] sm:$0xff] %vm1853, %v2938
  %2978 = vst.msk [vmem:[#allocation3 + $0x90] sm:$0xff] %vm1853, %v2940
  %2979 = vst.msk [vmem:[#allocation3 + $0xa0] sm:$0xff] %vm1853, %v2942
  %2980 = vst.msk [vmem:[#allocation3 + $0xb0] sm:$0xff] %vm1853, %v2944
  %2981 = vst.msk [vmem:[#allocation3 + $0xc0] sm:$0xff] %vm1853, %v2946
  %2982 = vst.msk [vmem:[#allocation3 + $0xd0] sm:$0xff] %vm1853, %v2948
  %2983 = vst.msk [vmem:[#allocation3 + $0xe0] sm:$0xff] %vm1853, %v2950
  %2984 = vst.msk [vmem:[#allocation3 + $0xf0] sm:$0xff] %vm1853, %v2952
  %v2985 = vrot.slane %v2345, 2
  %v2986 = vrot.slane %v2346, 2
  %v2987 = vsel %vm319, %v2985, %v2986
  %v2988 = vrot.slane %v2365, 2
  %v2989 = vrot.slane %v2366, 2
  %v2990 = vsel %vm319, %v2988, %v2989
  %3007 = vst.msk [vmem:[#allocation3 + $0x8] sm:$0xff] %vm74, %v2535
  %3008 = vst.msk [vmem:[#allocation3 + $0x18] sm:$0xff] %vm74, %v2538
  %3009 = vst.msk [vmem:[#allocation3 + $0x28] sm:$0xff] %vm74, %v2541
  %3010 = vst.msk [vmem:[#allocation3 + $0x38] sm:$0xff] %vm74, %v2544
  %3011 = vst.msk [vmem:[#allocation3 + $0x48] sm:$0xff] %vm74, %v2547
  %3012 = vst.msk [vmem:[#allocation3 + $0x58] sm:$0xff] %vm74, %v2550
  %3013 = vst.msk [vmem:[#allocation3 + $0x68] sm:$0xff] %vm74, %v2779
  %3014 = vst.msk [vmem:[#allocation3 + $0x78] sm:$0xff] %vm74, %v2987
  %3015 = vst.msk [vmem:[#allocation3 + $0x88] sm:$0xff] %vm74, %v2559
  %3016 = vst.msk [vmem:[#allocation3 + $0x98] sm:$0xff] %vm74, %v2562
  %3017 = vst.msk [vmem:[#allocation3 + $0xa8] sm:$0xff] %vm74, %v2565
  %3018 = vst.msk [vmem:[#allocation3 + $0xb8] sm:$0xff] %vm74, %v2568
  %3019 = vst.msk [vmem:[#allocation3 + $0xc8] sm:$0xff] %vm74, %v2571
  %3020 = vst.msk [vmem:[#allocation3 + $0xd8] sm:$0xff] %vm74, %v2574
  %3021 = vst.msk [vmem:[#allocation3 + $0xe8] sm:$0xff] %vm74, %v2782
  %3022 = vst.msk [vmem:[#allocation3 + $0xf8] sm:$0xff] %vm74, %v2990
  %v3023 = vld [vmem:[#allocation3] sm:$0xff]
  %v3024 = vld [vmem:[#allocation3 + $0x8] sm:$0xff]
  %v3025 = vld [vmem:[#allocation3 + $0x10] sm:$0xff]
  %v3026 = vld [vmem:[#allocation3 + $0x18] sm:$0xff]
  %v3027 = vld [vmem:[#allocation3 + $0x20] sm:$0xff]
  %v3028 = vld [vmem:[#allocation3 + $0x28] sm:$0xff]
  %v3029 = vld [vmem:[#allocation3 + $0x30] sm:$0xff]
  %v3030 = vld [vmem:[#allocation3 + $0x38] sm:$0xff]
  %v3031 = vld [vmem:[#allocation3 + $0x40] sm:$0xff]
  %v3032 = vld [vmem:[#allocation3 + $0x48] sm:$0xff]
  %v3033 = vld [vmem:[#allocation3 + $0x50] sm:$0xff]
  %v3034 = vld [vmem:[#allocation3 + $0x58] sm:$0xff]
  %v3035 = vld [vmem:[#allocation3 + $0x60] sm:$0xff]
  %v3036 = vld [vmem:[#allocation3 + $0x68] sm:$0xff]
  %v3037 = vld [vmem:[#allocation3 + $0x70] sm:$0xff]
  %v3038 = vld [vmem:[#allocation3 + $0x78] sm:$0xff]
  %v3039 = vld [vmem:[#allocation3 + $0x80] sm:$0xff]
  %v3040 = vld [vmem:[#allocation3 + $0x88] sm:$0xff]
  %v3041 = vld [vmem:[#allocation3 + $0x90] sm:$0xff]
  %v3042 = vld [vmem:[#allocation3 + $0x98] sm:$0xff]
  %v3043 = vld [vmem:[#allocation3 + $0xa0] sm:$0xff]
  %v3044 = vld [vmem:[#allocation3 + $0xa8] sm:$0xff]
  %v3045 = vld [vmem:[#allocation3 + $0xb0] sm:$0xff]
  %v3046 = vld [vmem:[#allocation3 + $0xb8] sm:$0xff]
  %v3047 = vld [vmem:[#allocation3 + $0xc0] sm:$0xff]
  %v3048 = vld [vmem:[#allocation3 + $0xc8] sm:$0xff]
  %v3049 = vld [vmem:[#allocation3 + $0xd0] sm:$0xff]
  %v3050 = vld [vmem:[#allocation3 + $0xd8] sm:$0xff]
  %v3051 = vld [vmem:[#allocation3 + $0xe0] sm:$0xff]
  %v3052 = vld [vmem:[#allocation3 + $0xe8] sm:$0xff]
  %v3053 = vld [vmem:[#allocation3 + $0xf0] sm:$0xff]
  %v3054 = vld [vmem:[#allocation3 + $0xf8] sm:$0xff]
  %v3055 = vpack.c.bf16 %v3025, %v3023
  %v3056 = vpack.c.bf16 %v3026, %v3024
  %v3057 = vpack.c.bf16 %v3029, %v3027
  %v3058 = vpack.c.bf16 %v3030, %v3028
  %v3059 = vpack.c.bf16 %v3033, %v3031
  %v3060 = vpack.c.bf16 %v3034, %v3032
  %v3061 = vpack.c.bf16 %v3037, %v3035
  %v3062 = vpack.c.bf16 %v3038, %v3036
  %v3063 = vpack.c.bf16 %v3041, %v3039
  %v3064 = vpack.c.bf16 %v3042, %v3040
  %v3065 = vpack.c.bf16 %v3045, %v3043
  %v3066 = vpack.c.bf16 %v3046, %v3044
  %v3067 = vpack.c.bf16 %v3049, %v3047
  %v3068 = vpack.c.bf16 %v3050, %v3048
  %v3069 = vpack.c.bf16 %v3053, %v3051
  %v3070 = vpack.c.bf16 %v3054, %v3052
  %v3071 = vld [vmem:[%s7] sm:$0xf]
  %v3072 = vld [vmem:[%s7 + $0x4] sm:$0xf]
  %v3073 = vld [vmem:[%s7 + $0x8] sm:$0xf]
  %v3074 = vld [vmem:[%s7 + $0xc] sm:$0xf]
  %v3075 = vld [vmem:[%s7 + $0x10] sm:$0xf]
  %v3076 = vld [vmem:[%s7 + $0x14] sm:$0xf]
  %v3077 = vld [vmem:[%s7 + $0x18] sm:$0xf]
  %v3078 = vld [vmem:[%s7 + $0x1c] sm:$0xf]
  %v3079 = vld [vmem:[%s7 + $0x20] sm:$0xf]
  %v3080 = vld [vmem:[%s7 + $0x24] sm:$0xf]
  %v3081 = vld [vmem:[%s7 + $0x28] sm:$0xf]
  %v3082 = vld [vmem:[%s7 + $0x2c] sm:$0xf]
  %v3083 = vld [vmem:[%s7 + $0x30] sm:$0xf]
  %v3084 = vld [vmem:[%s7 + $0x34] sm:$0xf]
  %v3085 = vld [vmem:[%s7 + $0x38] sm:$0xf]
  %v3086 = vld [vmem:[%s7 + $0x3c] sm:$0xf]
  %v3087 = vld [vmem:[%s7 + $0x40] sm:$0xf]
  %v3088 = vld [vmem:[%s7 + $0x44] sm:$0xf]
  %v3107 = vunpack.c.l.b16 %v3071
  %v3108 = vunpack.c.l.b16 %v3072
  %v3109 = vunpack.c.l.b16 %v3073
  %v3110 = vunpack.c.l.b16 %v3074
  %v3111 = vunpack.c.l.b16 %v3075
  %v3112 = vunpack.c.l.b16 %v3076
  %v3113 = vunpack.c.l.b16 %v3077
  %v3114 = vunpack.c.l.b16 %v3078
  %v3115 = vunpack.c.l.b16 %v3079
  %v3116 = vunpack.c.l.b16 %v3080
  %v3117 = vunpack.c.l.b16 %v3081
  %v3118 = vunpack.c.l.b16 %v3082
  %v3119 = vunpack.c.l.b16 %v3083
  %v3120 = vunpack.c.l.b16 %v3084
  %v3121 = vunpack.c.l.b16 %v3085
  %v3122 = vunpack.c.l.b16 %v3086
  %v3123 = vunpack.c.l.b16 %v3087
  %v3124 = vunpack.c.l.b16 %v3088
  %v3125 = vpack.c.b16 %v3108, %v3107
  %v3126 = vpack.c.b16 %v3110, %v3109
  %v3127 = vpack.c.b16 %v3112, %v3111
  %v3128 = vpack.c.b16 %v3114, %v3113
  %v3129 = vpack.c.b16 %v3116, %v3115
  %v3130 = vpack.c.b16 %v3118, %v3117
  %v3131 = vpack.c.b16 %v3120, %v3119
  %v3132 = vpack.c.b16 %v3122, %v3121
  %v3133 = vpack.c.b16 %v3124, %v3123
  %v3144 = vsel %vm74, %v3056, 0
  %v3147 = vsel %vm74, %v3058, 0
  %v3150 = vsel %vm74, %v3060, 0
  %v3153 = vsel %vm74, %v3062, 0
  %v3156 = vsel %vm74, %v3064, 0
  %v3159 = vsel %vm74, %v3066, 0
  %v3162 = vsel %vm74, %v3068, 0
  %v3165 = vsel %vm74, %v3070, 0
  %3167 = vmatprep.subr.bf16.mxu0 0
  %3168 = vmatpush1.bf16.msra.mxu0 %v3125
  %3169 = vmatprep.subr.bf16.mxu0 0
  %3170 = vmatpush1.bf16.msra.mxu0 %v3126
  %3171 = vmatprep.subr.bf16.mxu0 0
  %3172 = vmatpush1.bf16.msra.mxu0 %v3127
  %3173 = vmatprep.subr.bf16.mxu0 0
  %3174 = vmatpush1.bf16.msra.mxu0 %v3128
  %3175 = vmatprep.subr.bf16.mxu0 0
  %3176 = vmatpush1.bf16.msra.mxu0 %v3129
  %3177 = vmatprep.subr.bf16.mxu0 0
  %3178 = vmatpush1.bf16.msra.mxu0 %v3130
  %3179 = vmatprep.subr.bf16.mxu0 0
  %3180 = vmatpush1.bf16.msra.mxu0 %v3131
  %3181 = vmatprep.subr.bf16.mxu0 0
  %3182 = vmatpush1.bf16.msra.mxu0 %v3132
  %3183 = vmatprep.subr.bf16.mxu0 0
  %3184 = vmatpush1.bf16.msra.mxu0 %v3133
  %3185 = vmatprep.subr.bf16.mxu0 0
  %3186 = vmatpush1.bf16.msra.mxu0 0
  %3187 = vmatprep.subr.bf16.mxu0 0
  %3188 = vmatpush1.bf16.msra.mxu0 0
  %3189 = vmatprep.subr.bf16.mxu0 0
  %3190 = vmatpush1.bf16.msra.mxu0 0
  %3191 = vmatprep.subr.bf16.mxu0 0
  %3192 = vmatpush1.bf16.msra.mxu0 0
  %3193 = vmatprep.subr.bf16.mxu0 0
  %3194 = vmatpush1.bf16.msra.mxu0 0
  %3195 = vmatprep.subr.bf16.mxu0 0
  %3196 = vmatpush1.bf16.msra.mxu0 0
  %3197 = vmatprep.subr.bf16.mxu0 0
  %3198 = vmatpush1.bf16.msra.mxu0 0
  %3199 = vmatprep.mubr.bf16.mxu0 %v3144
  %3200 = vmatmul.mubr.bf16.gmra.mrb[0].mxu0 %v3055
  %v3201 = vpop.f32.mrb[0].mxu0
  %v3202 = vadd.f32 0.0, %v3201
  %v3203 = vpop.f32.mrb[0].mxu0
  %v3204 = vpop.f32.mrb[0].mxu0
  %v3205 = vadd.f32 0.0, %v3204
  %v3206 = vpop.f32.mrb[0].mxu0
  %3207 = vmatprep.mubr.bf16.mxu0 %v3147
  %3208 = vmatmul.mubr.bf16.gmra.mrb[0].mxu0 %v3057
  %v3209 = vpop.f32.mrb[0].mxu0
  %v3210 = vadd.f32 0.0, %v3209
  %v3211 = vpop.f32.mrb[0].mxu0
  %v3212 = vpop.f32.mrb[0].mxu0
  %v3213 = vadd.f32 0.0, %v3212
  %v3214 = vpop.f32.mrb[0].mxu0
  %3215 = vmatprep.mubr.bf16.mxu0 %v3150
  %3216 = vmatmul.mubr.bf16.gmra.mrb[0].mxu0 %v3059
  %v3217 = vpop.f32.mrb[0].mxu0
  %v3218 = vadd.f32 0.0, %v3217
  %v3219 = vpop.f32.mrb[0].mxu0
  %v3220 = vpop.f32.mrb[0].mxu0
  %v3221 = vadd.f32 0.0, %v3220
  %v3222 = vpop.f32.mrb[0].mxu0
  %3223 = vmatprep.mubr.bf16.mxu0 %v3153
  %3224 = vmatmul.mubr.bf16.gmra.mrb[0].mxu0 %v3061
  %v3225 = vpop.f32.mrb[0].mxu0
  %v3226 = vadd.f32 0.0, %v3225
  %v3227 = vpop.f32.mrb[0].mxu0
  %v3228 = vpop.f32.mrb[0].mxu0
  %v3229 = vadd.f32 0.0, %v3228
  %v3230 = vpop.f32.mrb[0].mxu0
  %3231 = vmatprep.mubr.bf16.mxu0 %v3156
  %3232 = vmatmul.mubr.bf16.gmra.mrb[0].mxu0 %v3063
  %v3233 = vpop.f32.mrb[0].mxu0
  %v3234 = vadd.f32 0.0, %v3233
  %v3235 = vpop.f32.mrb[0].mxu0
  %v3236 = vpop.f32.mrb[0].mxu0
  %v3237 = vadd.f32 0.0, %v3236
  %v3238 = vpop.f32.mrb[0].mxu0
  %3239 = vmatprep.mubr.bf16.mxu0 %v3159
  %3240 = vmatmul.mubr.bf16.gmra.mrb[0].mxu0 %v3065
  %v3241 = vpop.f32.mrb[0].mxu0
  %v3242 = vadd.f32 0.0, %v3241
  %v3243 = vpop.f32.mrb[0].mxu0
  %v3244 = vpop.f32.mrb[0].mxu0
  %v3245 = vadd.f32 0.0, %v3244
  %v3246 = vpop.f32.mrb[0].mxu0
  %3247 = vmatprep.mubr.bf16.mxu0 %v3162
  %3248 = vmatmul.mubr.bf16.gmra.mrb[0].mxu0 %v3067
  %v3249 = vpop.f32.mrb[0].mxu0
  %v3250 = vadd.f32 0.0, %v3249
  %v3251 = vpop.f32.mrb[0].mxu0
  %v3252 = vpop.f32.mrb[0].mxu0
  %v3253 = vadd.f32 0.0, %v3252
  %v3254 = vpop.f32.mrb[0].mxu0
  %3255 = vmatprep.mubr.bf16.mxu0 %v3165
  %3256 = vmatmul.mubr.bf16.gmra.mrb[0].mxu0 %v3069
  %v3257 = vpop.f32.mrb[0].mxu0
  %v3258 = vadd.f32 0.0, %v3257
  %v3259 = vpop.f32.mrb[0].mxu0
  %v3260 = vpop.f32.mrb[0].mxu0
  %v3261 = vadd.f32 0.0, %v3260
  %v3262 = vpop.f32.mrb[0].mxu0
  %3263 = vdwg.mxu0
  %v3264 = vsel %vm74, %v3202, 0.0
  %v3265 = vsel %vm74, %v3205, 0.0
  %v3266 = vadd.f32 %v3264, %v3265
  %v3267 = vsel %vm74, %v3210, 0.0
  %v3268 = vadd.f32 %v3266, %v3267
  %v3269 = vsel %vm74, %v3213, 0.0
  %v3270 = vadd.f32 %v3268, %v3269
  %v3271 = vsel %vm74, %v3218, 0.0
  %v3272 = vadd.f32 %v3270, %v3271
  %v3273 = vsel %vm74, %v3221, 0.0
  %v3274 = vadd.f32 %v3272, %v3273
  %v3275 = vsel %vm74, %v3226, 0.0
  %v3276 = vadd.f32 %v3274, %v3275
  %v3277 = vsel %vm74, %v3229, 0.0
  %v3278 = vadd.f32 %v3276, %v3277
  %v3279 = vsel %vm74, %v3234, 0.0
  %v3280 = vadd.f32 %v3278, %v3279
  %v3281 = vsel %vm74, %v3237, 0.0
  %v3282 = vadd.f32 %v3280, %v3281
  %v3283 = vsel %vm74, %v3242, 0.0
  %v3284 = vadd.f32 %v3282, %v3283
  %v3285 = vsel %vm74, %v3245, 0.0
  %v3286 = vadd.f32 %v3284, %v3285
  %v3287 = vsel %vm74, %v3250, 0.0
  %v3288 = vadd.f32 %v3286, %v3287
  %v3289 = vsel %vm74, %v3253, 0.0
  %v3290 = vadd.f32 %v3288, %v3289
  %v3291 = vsel %vm74, %v3258, 0.0
  %v3292 = vadd.f32 %v3290, %v3291
  %v3293 = vsel %vm74, %v3261, 0.0
  %v3294 = vadd.f32 %v3292, %v3293
  %v3295 = vrot.slane %v3294, 4
  %v3296 = vadd.f32 %v3294, %v3295
  %v3297 = vrot.slane %v3296, 2
  %v3298 = vadd.f32 %v3296, %v3297
  %v3299 = vrot.slane %v3298, 1
  %v3300 = vadd.f32 %v3298, %v3299
  %v3301 = vmul.f32 %v3300, %v1062
  %v3302 = vmul.f32 %v3202, %v3202
  %v3303 = vmul.f32 %v3205, %v3205
  %v3304 = vmul.f32 %v3210, %v3210
  %v3305 = vmul.f32 %v3213, %v3213
  %v3306 = vmul.f32 %v3218, %v3218
  %v3307 = vmul.f32 %v3221, %v3221
  %v3308 = vmul.f32 %v3226, %v3226
  %v3309 = vmul.f32 %v3229, %v3229
  %v3310 = vmul.f32 %v3234, %v3234
  %v3311 = vmul.f32 %v3237, %v3237
  %v3312 = vmul.f32 %v3242, %v3242
  %v3313 = vmul.f32 %v3245, %v3245
  %v3314 = vmul.f32 %v3250, %v3250
  %v3315 = vmul.f32 %v3253, %v3253
  %v3316 = vmul.f32 %v3258, %v3258
  %v3317 = vmul.f32 %v3261, %v3261
  %v3318 = vsel %vm74, %v3302, 0.0
  %v3319 = vsel %vm74, %v3303, 0.0
  %v3320 = vadd.f32 %v3318, %v3319
  %v3321 = vsel %vm74, %v3304, 0.0
  %v3322 = vadd.f32 %v3320, %v3321
  %v3323 = vsel %vm74, %v3305, 0.0
  %v3324 = vadd.f32 %v3322, %v3323
  %v3325 = vsel %vm74, %v3306, 0.0
  %v3326 = vadd.f32 %v3324, %v3325
  %v3327 = vsel %vm74, %v3307, 0.0
  %v3328 = vadd.f32 %v3326, %v3327
  %v3329 = vsel %vm74, %v3308, 0.0
  %v3330 = vadd.f32 %v3328, %v3329
  %v3331 = vsel %vm74, %v3309, 0.0
  %v3332 = vadd.f32 %v3330, %v3331
  %v3333 = vsel %vm74, %v3310, 0.0
  %v3334 = vadd.f32 %v3332, %v3333
  %v3335 = vsel %vm74, %v3311, 0.0
  %v3336 = vadd.f32 %v3334, %v3335
  %v3337 = vsel %vm74, %v3312, 0.0
  %v3338 = vadd.f32 %v3336, %v3337
  %v3339 = vsel %vm74, %v3313, 0.0
  %v3340 = vadd.f32 %v3338, %v3339
  %v3341 = vsel %vm74, %v3314, 0.0
  %v3342 = vadd.f32 %v3340, %v3341
  %v3343 = vsel %vm74, %v3315, 0.0
  %v3344 = vadd.f32 %v3342, %v3343
  %v3345 = vsel %vm74, %v3316, 0.0
  %v3346 = vadd.f32 %v3344, %v3345
  %v3347 = vsel %vm74, %v3317, 0.0
  %v3348 = vadd.f32 %v3346, %v3347
  %v3349 = vrot.slane %v3348, 4
  %v3350 = vadd.f32 %v3348, %v3349
  %v3351 = vrot.slane %v3350, 2
  %v3352 = vadd.f32 %v3350, %v3351
  %v3353 = vrot.slane %v3352, 1
  %v3354 = vadd.f32 %v3352, %v3353
  %v3355 = vmul.f32 %v3354, %v1062
  %v3356 = vmul.f32 %v3301, %v3301
  %v3357 = vsub.f32 %v3355, %v3356
  %v3358 = vmax.f32 %v3357, 0.0
  %v3359 = vld [vmem:[%s8] sm:$0x1]
  %v3360 = vadd.f32 %v3358, 1e-05
  %v3361 = vrsqrt.pop %v3360
  %v3362 = vmul.f32 %v3359, %v3361
  %v3364 = vlaneseq
  %v3365 = vshrl.u32 %v3364, 7
  %v3366 = vsub.s32 0, %v3365
  %v3367 = vrot.slane %v3362, %v3366
  %v3369 = vmul.f32 %v3202, %v3367
  %v3370 = vmul.f32 %v3205, %v3367
  %v3371 = vmul.f32 %v3210, %v3367
  %v3372 = vmul.f32 %v3213, %v3367
  %v3373 = vmul.f32 %v3218, %v3367
  %v3374 = vmul.f32 %v3221, %v3367
  %v3375 = vmul.f32 %v3226, %v3367
  %v3376 = vmul.f32 %v3229, %v3367
  %v3377 = vmul.f32 %v3234, %v3367
  %v3378 = vmul.f32 %v3237, %v3367
  %v3379 = vmul.f32 %v3242, %v3367
  %v3380 = vmul.f32 %v3245, %v3367
  %v3381 = vmul.f32 %v3250, %v3367
  %v3382 = vmul.f32 %v3253, %v3367
  %v3383 = vmul.f32 %v3258, %v3367
  %v3384 = vmul.f32 %v3261, %v3367
  %v3385 = vld [vmem:[%s9] sm:$0x1]
  %v3386 = vmul.f32 %v3301, %v3362
  %v3387 = vsub.f32 %v3385, %v3386
  %v3389 = vlaneseq
  %v3390 = vshrl.u32 %v3389, 7
  %v3391 = vsub.s32 0, %v3390
  %v3392 = vrot.slane %v3387, %v3391
  %v3394 = vadd.f32 %v3369, %v3392
  %v3395 = vadd.f32 %v3370, %v3392
  %v3396 = vadd.f32 %v3371, %v3392
  %v3397 = vadd.f32 %v3372, %v3392
  %v3398 = vadd.f32 %v3373, %v3392
  %v3399 = vadd.f32 %v3374, %v3392
  %v3400 = vadd.f32 %v3375, %v3392
  %v3401 = vadd.f32 %v3376, %v3392
  %v3402 = vadd.f32 %v3377, %v3392
  %v3403 = vadd.f32 %v3378, %v3392
  %v3404 = vadd.f32 %v3379, %v3392
  %v3405 = vadd.f32 %v3380, %v3392
  %v3406 = vadd.f32 %v3381, %v3392
  %v3407 = vadd.f32 %v3382, %v3392
  %v3408 = vadd.f32 %v3383, %v3392
  %v3409 = vadd.f32 %v3384, %v3392
  %v3410 = vadd.f32 %v3394, %v1172
  %v3411 = vadd.f32 %v3395, %v1173
  %v3412 = vadd.f32 %v3396, %v1174
  %v3413 = vadd.f32 %v3397, %v1175
  %v3414 = vadd.f32 %v3398, %v1176
  %v3415 = vadd.f32 %v3399, %v1177
  %v3416 = vadd.f32 %v3400, %v1178
  %v3417 = vadd.f32 %v3401, %v1179
  %v3418 = vadd.f32 %v3402, %v1180
  %v3419 = vadd.f32 %v3403, %v1181
  %v3420 = vadd.f32 %v3404, %v1182
  %v3421 = vadd.f32 %v3405, %v1183
  %v3422 = vadd.f32 %v3406, %v1184
  %v3423 = vadd.f32 %v3407, %v1185
  %v3424 = vadd.f32 %v3408, %v1186
  %v3425 = vadd.f32 %v3409, %v1187
  %v3426 = vmax.f32 %v3410, 0.0
  %v3427 = vmax.f32 %v3411, 0.0
  %v3428 = vmax.f32 %v3412, 0.0
  %v3429 = vmax.f32 %v3413, 0.0
  %v3430 = vmax.f32 %v3414, 0.0
  %v3431 = vmax.f32 %v3415, 0.0
  %v3432 = vmax.f32 %v3416, 0.0
  %v3433 = vmax.f32 %v3417, 0.0
  %v3434 = vmax.f32 %v3418, 0.0
  %v3435 = vmax.f32 %v3419, 0.0
  %v3436 = vmax.f32 %v3420, 0.0
  %v3437 = vmax.f32 %v3421, 0.0
  %v3438 = vmax.f32 %v3422, 0.0
  %v3439 = vmax.f32 %v3423, 0.0
  %v3440 = vmax.f32 %v3424, 0.0
  %v3441 = vmax.f32 %v3425, 0.0
  %3442 = vst.msk [vmem:[%s1188 + $0x1] sm:$0xff] %vm74, %v3426
  %3443 = vst.msk [vmem:[%s1188 + $0x11] sm:$0xff] %vm74, %v3427
  %3444 = vst.msk [vmem:[%s1188 + $0x21] sm:$0xff] %vm74, %v3428
  %3445 = vst.msk [vmem:[%s1188 + $0x31] sm:$0xff] %vm74, %v3429
  %3446 = vst.msk [vmem:[%s1188 + $0x41] sm:$0xff] %vm74, %v3430
  %3447 = vst.msk [vmem:[%s1188 + $0x51] sm:$0xff] %vm74, %v3431
  %3448 = vst.msk [vmem:[%s1188 + $0x61] sm:$0xff] %vm74, %v3432
  %3449 = vst.msk [vmem:[%s1188 + $0x71] sm:$0xff] %vm74, %v3433
  %3450 = vst.msk [vmem:[%s1188 + $0xa1] sm:$0xff] %vm74, %v3434
  %3451 = vst.msk [vmem:[%s1188 + $0xb1] sm:$0xff] %vm74, %v3435
  %3452 = vst.msk [vmem:[%s1188 + $0xc1] sm:$0xff] %vm74, %v3436
  %3453 = vst.msk [vmem:[%s1188 + $0xd1] sm:$0xff] %vm74, %v3437
  %3454 = vst.msk [vmem:[%s1188 + $0xe1] sm:$0xff] %vm74, %v3438
  %3455 = vst.msk [vmem:[%s1188 + $0xf1] sm:$0xff] %vm74, %v3439
  %3456 = vst.msk [vmem:[%s1188 + $0x101] sm:$0xff] %vm74, %v3440
  %3457 = vst.msk [vmem:[%s1188 + $0x111] sm:$0xff] %vm74, %v3441
  %v3458 = vld [vmem:[#allocation2] sm:$0xff]
  %v3459 = vld [vmem:[#allocation2 + $0x8] sm:$0x3]
  %v3460 = vld [vmem:[#allocation2 + $0x10] sm:$0xff]
  %v3461 = vld [vmem:[#allocation2 + $0x18] sm:$0x3]
  %v3462 = vld [vmem:[#allocation2 + $0x20] sm:$0xff]
  %v3463 = vld [vmem:[#allocation2 + $0x28] sm:$0x3]
  %v3464 = vld [vmem:[#allocation2 + $0x30] sm:$0xff]
  %v3465 = vld [vmem:[#allocation2 + $0x38] sm:$0x3]
  %v3466 = vld [vmem:[#allocation2 + $0x40] sm:$0xff]
  %v3467 = vld [vmem:[#allocation2 + $0x48] sm:$0x3]
  %v3468 = vld [vmem:[#allocation2 + $0x50] sm:$0xff]
  %v3469 = vld [vmem:[#allocation2 + $0x58] sm:$0x3]
  %v3470 = vld [vmem:[#allocation2 + $0x60] sm:$0xff]
  %v3471 = vld [vmem:[#allocation2 + $0x68] sm:$0x3]
  %v3472 = vld [vmem:[#allocation2 + $0x70] sm:$0xff]
  %v3473 = vld [vmem:[#allocation2 + $0x78] sm:$0x3]
  %v3474 = vld [vmem:[#allocation2 + $0x80] sm:$0xff]
  %v3475 = vld [vmem:[#allocation2 + $0x88] sm:$0x3]
  %v3476 = vld [vmem:[#allocation2 + $0x90] sm:$0xff]
  %v3477 = vld [vmem:[#allocation2 + $0x98] sm:$0x3]
  %v3478 = vld [vmem:[#allocation2 + $0xa0] sm:$0xff]
  %v3479 = vld [vmem:[#allocation2 + $0xa8] sm:$0x3]
  %v3480 = vld [vmem:[#allocation2 + $0xb0] sm:$0xff]
  %v3481 = vld [vmem:[#allocation2 + $0xb8] sm:$0x3]
  %v3482 = vld [vmem:[#allocation2 + $0xc0] sm:$0xff]
  %v3483 = vld [vmem:[#allocation2 + $0xc8] sm:$0x3]
  %v3484 = vld [vmem:[#allocation2 + $0xd0] sm:$0xff]
  %v3485 = vld [vmem:[#allocation2 + $0xd8] sm:$0x3]
  %v3486 = vld [vmem:[#allocation2 + $0xe0] sm:$0xff]
  %v3487 = vld [vmem:[#allocation2 + $0xe8] sm:$0x3]
  %v3488 = vld [vmem:[#allocation2 + $0xf0] sm:$0xff]
  %v3489 = vld [vmem:[#allocation2 + $0xf8] sm:$0x3]
  %v3490 = vld [vmem:[#allocation2 + $0x100] sm:$0xff]
  %v3491 = vld [vmem:[#allocation2 + $0x108] sm:$0x3]
  %v3492 = vld [vmem:[#allocation2 + $0x110] sm:$0xff]
  %v3493 = vld [vmem:[#allocation2 + $0x118] sm:$0x3]
  %v3494 = vld [vmem:[#allocation2 + $0x120] sm:$0xff]
  %v3495 = vld [vmem:[#allocation2 + $0x128] sm:$0x3]
  %v3496 = vld [vmem:[#allocation2 + $0x130] sm:$0xff]
  %v3497 = vld [vmem:[#allocation2 + $0x138] sm:$0x3]
  %3498 = vst.msk [vmem:[#allocation3] sm:$0xff] %vm74, %v3458
  %3499 = vst.msk [vmem:[#allocation3 + $0x10] sm:$0xff] %vm74, %v3460
  %3500 = vst.msk [vmem:[#allocation3 + $0x20] sm:$0xff] %vm74, %v3462
  %3501 = vst.msk [vmem:[#allocation3 + $0x30] sm:$0xff] %vm74, %v3464
  %3502 = vst.msk [vmem:[#allocation3 + $0x40] sm:$0xff] %vm74, %v3466
  %3503 = vst.msk [vmem:[#allocation3 + $0x50] sm:$0xff] %vm74, %v3468
  %3504 = vst.msk [vmem:[#allocation3 + $0x60] sm:$0xff] %vm74, %v3470
  %3505 = vst.msk [vmem:[#allocation3 + $0x70] sm:$0xff] %vm74, %v3472
  %3506 = vst.msk [vmem:[#allocation3 + $0x80] sm:$0xff] %vm74, %v3478
  %3507 = vst.msk [vmem:[#allocation3 + $0x90] sm:$0xff] %vm74, %v3480
  %3508 = vst.msk [vmem:[#allocation3 + $0xa0] sm:$0xff] %vm74, %v3482
  %3509 = vst.msk [vmem:[#allocation3 + $0xb0] sm:$0xff] %vm74, %v3484
  %3510 = vst.msk [vmem:[#allocation3 + $0xc0] sm:$0xff] %vm74, %v3486
  %3511 = vst.msk [vmem:[#allocation3 + $0xd0] sm:$0xff] %vm74, %v3488
  %3512 = vst.msk [vmem:[#allocation3 + $0xe0] sm:$0xff] %vm74, %v3490
  %3513 = vst.msk [vmem:[#allocation3 + $0xf0] sm:$0xff] %vm74, %v3492
  %v3546 = vrot.slane %v3458, 1
  %v3547 = vrot.slane %v3459, 1
  %v3548 = vsel %vm205, %v3546, %v3547
  %v3549 = vrot.slane %v3460, 1
  %v3550 = vrot.slane %v3461, 1
  %v3551 = vsel %vm205, %v3549, %v3550
  %v3552 = vrot.slane %v3462, 1
  %v3553 = vrot.slane %v3463, 1
  %v3554 = vsel %vm205, %v3552, %v3553
  %v3555 = vrot.slane %v3464, 1
  %v3556 = vrot.slane %v3465, 1
  %v3557 = vsel %vm205, %v3555, %v3556
  %v3558 = vrot.slane %v3466, 1
  %v3559 = vrot.slane %v3467, 1
  %v3560 = vsel %vm205, %v3558, %v3559
  %v3561 = vrot.slane %v3468, 1
  %v3562 = vrot.slane %v3469, 1
  %v3563 = vsel %vm205, %v3561, %v3562
  %v3564 = vrot.slane %v3470, 1
  %v3565 = vrot.slane %v3471, 1
  %v3566 = vsel %vm205, %v3564, %v3565
  %v3567 = vrot.slane %v3472, 1
  %v3568 = vrot.slane %v3473, 1
  %v3569 = vsel %vm205, %v3567, %v3568
  %v3570 = vrot.slane %v3478, 1
  %v3571 = vrot.slane %v3479, 1
  %v3572 = vsel %vm205, %v3570, %v3571
  %v3573 = vrot.slane %v3480, 1
  %v3574 = vrot.slane %v3481, 1
  %v3575 = vsel %vm205, %v3573, %v3574
  %v3576 = vrot.slane %v3482, 1
  %v3577 = vrot.slane %v3483, 1
  %v3578 = vsel %vm205, %v3576, %v3577
  %v3579 = vrot.slane %v3484, 1
  %v3580 = vrot.slane %v3485, 1
  %v3581 = vsel %vm205, %v3579, %v3580
  %v3582 = vrot.slane %v3486, 1
  %v3583 = vrot.slane %v3487, 1
  %v3584 = vsel %vm205, %v3582, %v3583
  %v3585 = vrot.slane %v3488, 1
  %v3586 = vrot.slane %v3489, 1
  %v3587 = vsel %vm205, %v3585, %v3586
  %v3588 = vrot.slane %v3490, 1
  %v3589 = vrot.slane %v3491, 1
  %v3590 = vsel %vm205, %v3588, %v3589
  %v3591 = vrot.slane %v3492, 1
  %v3592 = vrot.slane %v3493, 1
  %v3593 = vsel %vm205, %v3591, %v3592
  %3594 = vrot.lane.b32.xlu0 %v3548, 16
  %v3595 = vpop.permute.xlu0 %3594
  %3596 = vrot.lane.b32.xlu0 %v3551, 16
  %v3597 = vpop.permute.xlu0 %3596
  %3598 = vrot.lane.b32.xlu0 %v3554, 16
  %v3599 = vpop.permute.xlu0 %3598
  %3600 = vrot.lane.b32.xlu0 %v3557, 16
  %v3601 = vpop.permute.xlu0 %3600
  %3602 = vrot.lane.b32.xlu0 %v3560, 16
  %v3603 = vpop.permute.xlu0 %3602
  %3604 = vrot.lane.b32.xlu0 %v3563, 16
  %v3605 = vpop.permute.xlu0 %3604
  %3606 = vrot.lane.b32.xlu0 %v3566, 16
  %v3607 = vpop.permute.xlu0 %3606
  %3608 = vrot.lane.b32.xlu0 %v3569, 16
  %v3609 = vpop.permute.xlu0 %3608
  %3610 = vrot.lane.b32.xlu0 %v3572, 16
  %v3611 = vpop.permute.xlu0 %3610
  %3612 = vrot.lane.b32.xlu0 %v3575, 16
  %v3613 = vpop.permute.xlu0 %3612
  %3614 = vrot.lane.b32.xlu0 %v3578, 16
  %v3615 = vpop.permute.xlu0 %3614
  %3616 = vrot.lane.b32.xlu0 %v3581, 16
  %v3617 = vpop.permute.xlu0 %3616
  %3618 = vrot.lane.b32.xlu0 %v3584, 16
  %v3619 = vpop.permute.xlu0 %3618
  %3620 = vrot.lane.b32.xlu0 %v3587, 16
  %v3621 = vpop.permute.xlu0 %3620
  %3622 = vrot.lane.b32.xlu0 %v3590, 16
  %v3623 = vpop.permute.xlu0 %3622
  %3624 = vrot.lane.b32.xlu0 %v3593, 16
  %v3625 = vpop.permute.xlu0 %3624
  %3642 = vst.msk [vmem:[#allocation3] sm:$0xff] %vm1389, %v3595
  %3643 = vst.msk [vmem:[#allocation3 + $0x10] sm:$0xff] %vm1389, %v3597
  %3644 = vst.msk [vmem:[#allocation3 + $0x20] sm:$0xff] %vm1389, %v3599
  %3645 = vst.msk [vmem:[#allocation3 + $0x30] sm:$0xff] %vm1389, %v3601
  %3646 = vst.msk [vmem:[#allocation3 + $0x40] sm:$0xff] %vm1389, %v3603
  %3647 = vst.msk [vmem:[#allocation3 + $0x50] sm:$0xff] %vm1389, %v3605
  %3648 = vst.msk [vmem:[#allocation3 + $0x60] sm:$0xff] %vm1389, %v3607
  %3649 = vst.msk [vmem:[#allocation3 + $0x70] sm:$0xff] %vm1389, %v3609
  %3650 = vst.msk [vmem:[#allocation3 + $0x80] sm:$0xff] %vm1389, %v3611
  %3651 = vst.msk [vmem:[#allocation3 + $0x90] sm:$0xff] %vm1389, %v3613
  %3652 = vst.msk [vmem:[#allocation3 + $0xa0] sm:$0xff] %vm1389, %v3615
  %3653 = vst.msk [vmem:[#allocation3 + $0xb0] sm:$0xff] %vm1389, %v3617
  %3654 = vst.msk [vmem:[#allocation3 + $0xc0] sm:$0xff] %vm1389, %v3619
  %3655 = vst.msk [vmem:[#allocation3 + $0xd0] sm:$0xff] %vm1389, %v3621
  %3656 = vst.msk [vmem:[#allocation3 + $0xe0] sm:$0xff] %vm1389, %v3623
  %3657 = vst.msk [vmem:[#allocation3 + $0xf0] sm:$0xff] %vm1389, %v3625
  %v3658 = vrot.slane %v3458, 2
  %v3659 = vrot.slane %v3459, 2
  %v3660 = vsel %vm319, %v3658, %v3659
  %v3661 = vrot.slane %v3460, 2
  %v3662 = vrot.slane %v3461, 2
  %v3663 = vsel %vm319, %v3661, %v3662
  %v3664 = vrot.slane %v3462, 2
  %v3665 = vrot.slane %v3463, 2
  %v3666 = vsel %vm319, %v3664, %v3665
  %v3667 = vrot.slane %v3464, 2
  %v3668 = vrot.slane %v3465, 2
  %v3669 = vsel %vm319, %v3667, %v3668
  %v3670 = vrot.slane %v3466, 2
  %v3671 = vrot.slane %v3467, 2
  %v3672 = vsel %vm319, %v3670, %v3671
  %v3673 = vrot.slane %v3468, 2
  %v3674 = vrot.slane %v3469, 2
  %v3675 = vsel %vm319, %v3673, %v3674
  %v3676 = vrot.slane %v3470, 2
  %v3677 = vrot.slane %v3471, 2
  %v3678 = vsel %vm319, %v3676, %v3677
  %v3679 = vrot.slane %v3472, 2
  %v3680 = vrot.slane %v3473, 2
  %v3681 = vsel %vm319, %v3679, %v3680
  %v3682 = vrot.slane %v3478, 2
  %v3683 = vrot.slane %v3479, 2
  %v3684 = vsel %vm319, %v3682, %v3683
  %v3685 = vrot.slane %v3480, 2
  %v3686 = vrot.slane %v3481, 2
  %v3687 = vsel %vm319, %v3685, %v3686
  %v3688 = vrot.slane %v3482, 2
  %v3689 = vrot.slane %v3483, 2
  %v3690 = vsel %vm319, %v3688, %v3689
  %v3691 = vrot.slane %v3484, 2
  %v3692 = vrot.slane %v3485, 2
  %v3693 = vsel %vm319, %v3691, %v3692
  %v3694 = vrot.slane %v3486, 2
  %v3695 = vrot.slane %v3487, 2
  %v3696 = vsel %vm319, %v3694, %v3695
  %v3697 = vrot.slane %v3488, 2
  %v3698 = vrot.slane %v3489, 2
  %v3699 = vsel %vm319, %v3697, %v3698
  %v3700 = vrot.slane %v3490, 2
  %v3701 = vrot.slane %v3491, 2
  %v3702 = vsel %vm319, %v3700, %v3701
  %v3703 = vrot.slane %v3492, 2
  %v3704 = vrot.slane %v3493, 2
  %v3705 = vsel %vm319, %v3703, %v3704
  %3706 = vrot.lane.b32.xlu0 %v3660, 32
  %v3707 = vpop.permute.xlu0 %3706
  %3708 = vrot.lane.b32.xlu0 %v3663, 32
  %v3709 = vpop.permute.xlu0 %3708
  %3710 = vrot.lane.b32.xlu0 %v3666, 32
  %v3711 = vpop.permute.xlu0 %3710
  %3712 = vrot.lane.b32.xlu0 %v3669, 32
  %v3713 = vpop.permute.xlu0 %3712
  %3714 = vrot.lane.b32.xlu0 %v3672, 32
  %v3715 = vpop.permute.xlu0 %3714
  %3716 = vrot.lane.b32.xlu0 %v3675, 32
  %v3717 = vpop.permute.xlu0 %3716
  %3718 = vrot.lane.b32.xlu0 %v3678, 32
  %v3719 = vpop.permute.xlu0 %3718
  %3720 = vrot.lane.b32.xlu0 %v3681, 32
  %v3721 = vpop.permute.xlu0 %3720
  %3722 = vrot.lane.b32.xlu0 %v3684, 32
  %v3723 = vpop.permute.xlu0 %3722
  %3724 = vrot.lane.b32.xlu0 %v3687, 32
  %v3725 = vpop.permute.xlu0 %3724
  %3726 = vrot.lane.b32.xlu0 %v3690, 32
  %v3727 = vpop.permute.xlu0 %3726
  %3728 = vrot.lane.b32.xlu0 %v3693, 32
  %v3729 = vpop.permute.xlu0 %3728
  %3730 = vrot.lane.b32.xlu0 %v3696, 32
  %v3731 = vpop.permute.xlu0 %3730
  %3732 = vrot.lane.b32.xlu0 %v3699, 32
  %v3733 = vpop.permute.xlu0 %3732
  %3734 = vrot.lane.b32.xlu0 %v3702, 32
  %v3735 = vpop.permute.xlu0 %3734
  %3736 = vrot.lane.b32.xlu0 %v3705, 32
  %v3737 = vpop.permute.xlu0 %3736
  %3754 = vst.msk [vmem:[#allocation3] sm:$0xff] %vm1502, %v3707
  %3755 = vst.msk [vmem:[#allocation3 + $0x10] sm:$0xff] %vm1502, %v3709
  %3756 = vst.msk [vmem:[#allocation3 + $0x20] sm:$0xff] %vm1502, %v3711
  %3757 = vst.msk [vmem:[#allocation3 + $0x30] sm:$0xff] %vm1502, %v3713
  %3758 = vst.msk [vmem:[#allocation3 + $0x40] sm:$0xff] %vm1502, %v3715
  %3759 = vst.msk [vmem:[#allocation3 + $0x50] sm:$0xff] %vm1502, %v3717
  %3760 = vst.msk [vmem:[#allocation3 + $0x60] sm:$0xff] %vm1502, %v3719
  %3761 = vst.msk [vmem:[#allocation3 + $0x70] sm:$0xff] %vm1502, %v3721
  %3762 = vst.msk [vmem:[#allocation3 + $0x80] sm:$0xff] %vm1502, %v3723
  %3763 = vst.msk [vmem:[#allocation3 + $0x90] sm:$0xff] %vm1502, %v3725
  %3764 = vst.msk [vmem:[#allocation3 + $0xa0] sm:$0xff] %vm1502, %v3727
  %3765 = vst.msk [vmem:[#allocation3 + $0xb0] sm:$0xff] %vm1502, %v3729
  %3766 = vst.msk [vmem:[#allocation3 + $0xc0] sm:$0xff] %vm1502, %v3731
  %3767 = vst.msk [vmem:[#allocation3 + $0xd0] sm:$0xff] %vm1502, %v3733
  %3768 = vst.msk [vmem:[#allocation3 + $0xe0] sm:$0xff] %vm1502, %v3735
  %3769 = vst.msk [vmem:[#allocation3 + $0xf0] sm:$0xff] %vm1502, %v3737
  %3772 = vrot.lane.b32.xlu0 %v3460, 48
  %v3773 = vpop.permute.xlu0 %3772
  %3774 = vrot.lane.b32.xlu0 %v3462, 48
  %v3775 = vpop.permute.xlu0 %3774
  %3776 = vrot.lane.b32.xlu0 %v3464, 48
  %v3777 = vpop.permute.xlu0 %3776
  %3778 = vrot.lane.b32.xlu0 %v3466, 48
  %v3779 = vpop.permute.xlu0 %3778
  %3780 = vrot.lane.b32.xlu0 %v3468, 48
  %v3781 = vpop.permute.xlu0 %3780
  %3782 = vrot.lane.b32.xlu0 %v3470, 48
  %v3783 = vpop.permute.xlu0 %3782
  %3784 = vrot.lane.b32.xlu0 %v3472, 48
  %v3785 = vpop.permute.xlu0 %3784
  %3786 = vrot.lane.b32.xlu0 %v3474, 48
  %v3787 = vpop.permute.xlu0 %3786
  %3788 = vrot.lane.b32.xlu0 %v3480, 48
  %v3789 = vpop.permute.xlu0 %3788
  %3790 = vrot.lane.b32.xlu0 %v3482, 48
  %v3791 = vpop.permute.xlu0 %3790
  %3792 = vrot.lane.b32.xlu0 %v3484, 48
  %v3793 = vpop.permute.xlu0 %3792
  %3794 = vrot.lane.b32.xlu0 %v3486, 48
  %v3795 = vpop.permute.xlu0 %3794
  %3796 = vrot.lane.b32.xlu0 %v3488, 48
  %v3797 = vpop.permute.xlu0 %3796
  %3798 = vrot.lane.b32.xlu0 %v3490, 48
  %v3799 = vpop.permute.xlu0 %3798
  %3800 = vrot.lane.b32.xlu0 %v3492, 48
  %v3801 = vpop.permute.xlu0 %3800
  %3802 = vrot.lane.b32.xlu0 %v3494, 48
  %v3803 = vpop.permute.xlu0 %3802
  %3820 = vst.msk [vmem:[#allocation3] sm:$0xff] %vm1569, %v3773
  %3821 = vst.msk [vmem:[#allocation3 + $0x10] sm:$0xff] %vm1569, %v3775
  %3822 = vst.msk [vmem:[#allocation3 + $0x20] sm:$0xff] %vm1569, %v3777
  %3823 = vst.msk [vmem:[#allocation3 + $0x30] sm:$0xff] %vm1569, %v3779
  %3824 = vst.msk [vmem:[#allocation3 + $0x40] sm:$0xff] %vm1569, %v3781
  %3825 = vst.msk [vmem:[#allocation3 + $0x50] sm:$0xff] %vm1569, %v3783
  %3826 = vst.msk [vmem:[#allocation3 + $0x60] sm:$0xff] %vm1569, %v3785
  %3827 = vst.msk [vmem:[#allocation3 + $0x70] sm:$0xff] %vm1569, %v3787
  %3828 = vst.msk [vmem:[#allocation3 + $0x80] sm:$0xff] %vm1569, %v3789
  %3829 = vst.msk [vmem:[#allocation3 + $0x90] sm:$0xff] %vm1569, %v3791
  %3830 = vst.msk [vmem:[#allocation3 + $0xa0] sm:$0xff] %vm1569, %v3793
  %3831 = vst.msk [vmem:[#allocation3 + $0xb0] sm:$0xff] %vm1569, %v3795
  %3832 = vst.msk [vmem:[#allocation3 + $0xc0] sm:$0xff] %vm1569, %v3797
  %3833 = vst.msk [vmem:[#allocation3 + $0xd0] sm:$0xff] %vm1569, %v3799
  %3834 = vst.msk [vmem:[#allocation3 + $0xe0] sm:$0xff] %vm1569, %v3801
  %3835 = vst.msk [vmem:[#allocation3 + $0xf0] sm:$0xff] %vm1569, %v3803
  %v3838 = vrot.slane %v3474, 1
  %v3839 = vrot.slane %v3475, 1
  %v3840 = vsel %vm205, %v3838, %v3839
  %v3841 = vrot.slane %v3494, 1
  %v3842 = vrot.slane %v3495, 1
  %v3843 = vsel %vm205, %v3841, %v3842
  %3844 = vrot.lane.b32.xlu0 %v3551, 64
  %v3845 = vpop.permute.xlu0 %3844
  %3846 = vrot.lane.b32.xlu0 %v3554, 64
  %v3847 = vpop.permute.xlu0 %3846
  %3848 = vrot.lane.b32.xlu0 %v3557, 64
  %v3849 = vpop.permute.xlu0 %3848
  %3850 = vrot.lane.b32.xlu0 %v3560, 64
  %v3851 = vpop.permute.xlu0 %3850
  %3852 = vrot.lane.b32.xlu0 %v3563, 64
  %v3853 = vpop.permute.xlu0 %3852
  %3854 = vrot.lane.b32.xlu0 %v3566, 64
  %v3855 = vpop.permute.xlu0 %3854
  %3856 = vrot.lane.b32.xlu0 %v3569, 64
  %v3857 = vpop.permute.xlu0 %3856
  %3858 = vrot.lane.b32.xlu0 %v3840, 64
  %v3859 = vpop.permute.xlu0 %3858
  %3860 = vrot.lane.b32.xlu0 %v3575, 64
  %v3861 = vpop.permute.xlu0 %3860
  %3862 = vrot.lane.b32.xlu0 %v3578, 64
  %v3863 = vpop.permute.xlu0 %3862
  %3864 = vrot.lane.b32.xlu0 %v3581, 64
  %v3865 = vpop.permute.xlu0 %3864
  %3866 = vrot.lane.b32.xlu0 %v3584, 64
  %v3867 = vpop.permute.xlu0 %3866
  %3868 = vrot.lane.b32.xlu0 %v3587, 64
  %v3869 = vpop.permute.xlu0 %3868
  %3870 = vrot.lane.b32.xlu0 %v3590, 64
  %v3871 = vpop.permute.xlu0 %3870
  %3872 = vrot.lane.b32.xlu0 %v3593, 64
  %v3873 = vpop.permute.xlu0 %3872
  %3874 = vrot.lane.b32.xlu0 %v3843, 64
  %v3875 = vpop.permute.xlu0 %3874
  %3892 = vst.msk [vmem:[#allocation3] sm:$0xff] %vm1642, %v3845
  %3893 = vst.msk [vmem:[#allocation3 + $0x10] sm:$0xff] %vm1642, %v3847
  %3894 = vst.msk [vmem:[#allocation3 + $0x20] sm:$0xff] %vm1642, %v3849
  %3895 = vst.msk [vmem:[#allocation3 + $0x30] sm:$0xff] %vm1642, %v3851
  %3896 = vst.msk [vmem:[#allocation3 + $0x40] sm:$0xff] %vm1642, %v3853
  %3897 = vst.msk [vmem:[#allocation3 + $0x50] sm:$0xff] %vm1642, %v3855
  %3898 = vst.msk [vmem:[#allocation3 + $0x60] sm:$0xff] %vm1642, %v3857
  %3899 = vst.msk [vmem:[#allocation3 + $0x70] sm:$0xff] %vm1642, %v3859
  %3900 = vst.msk [vmem:[#allocation3 + $0x80] sm:$0xff] %vm1642, %v3861
  %3901 = vst.msk [vmem:[#allocation3 + $0x90] sm:$0xff] %vm1642, %v3863
  %3902 = vst.msk [vmem:[#allocation3 + $0xa0] sm:$0xff] %vm1642, %v3865
  %3903 = vst.msk [vmem:[#allocation3 + $0xb0] sm:$0xff] %vm1642, %v3867
  %3904 = vst.msk [vmem:[#allocation3 + $0xc0] sm:$0xff] %vm1642, %v3869
  %3905 = vst.msk [vmem:[#allocation3 + $0xd0] sm:$0xff] %vm1642, %v3871
  %3906 = vst.msk [vmem:[#allocation3 + $0xe0] sm:$0xff] %vm1642, %v3873
  %3907 = vst.msk [vmem:[#allocation3 + $0xf0] sm:$0xff] %vm1642, %v3875
  %v3908 = vrot.slane %v3474, 2
  %v3909 = vrot.slane %v3475, 2
  %v3910 = vsel %vm319, %v3908, %v3909
  %v3911 = vrot.slane %v3494, 2
  %v3912 = vrot.slane %v3495, 2
  %v3913 = vsel %vm319, %v3911, %v3912
  %3914 = vrot.lane.b32.xlu0 %v3663, 80
  %v3915 = vpop.permute.xlu0 %3914
  %3916 = vrot.lane.b32.xlu0 %v3666, 80
  %v3917 = vpop.permute.xlu0 %3916
  %3918 = vrot.lane.b32.xlu0 %v3669, 80
  %v3919 = vpop.permute.xlu0 %3918
  %3920 = vrot.lane.b32.xlu0 %v3672, 80
  %v3921 = vpop.permute.xlu0 %3920
  %3922 = vrot.lane.b32.xlu0 %v3675, 80
  %v3923 = vpop.permute.xlu0 %3922
  %3924 = vrot.lane.b32.xlu0 %v3678, 80
  %v3925 = vpop.permute.xlu0 %3924
  %3926 = vrot.lane.b32.xlu0 %v3681, 80
  %v3927 = vpop.permute.xlu0 %3926
  %3928 = vrot.lane.b32.xlu0 %v3910, 80
  %v3929 = vpop.permute.xlu0 %3928
  %3930 = vrot.lane.b32.xlu0 %v3687, 80
  %v3931 = vpop.permute.xlu0 %3930
  %3932 = vrot.lane.b32.xlu0 %v3690, 80
  %v3933 = vpop.permute.xlu0 %3932
  %3934 = vrot.lane.b32.xlu0 %v3693, 80
  %v3935 = vpop.permute.xlu0 %3934
  %3936 = vrot.lane.b32.xlu0 %v3696, 80
  %v3937 = vpop.permute.xlu0 %3936
  %3938 = vrot.lane.b32.xlu0 %v3699, 80
  %v3939 = vpop.permute.xlu0 %3938
  %3940 = vrot.lane.b32.xlu0 %v3702, 80
  %v3941 = vpop.permute.xlu0 %3940
  %3942 = vrot.lane.b32.xlu0 %v3705, 80
  %v3943 = vpop.permute.xlu0 %3942
  %3944 = vrot.lane.b32.xlu0 %v3913, 80
  %v3945 = vpop.permute.xlu0 %3944
  %3962 = vst.msk [vmem:[#allocation3] sm:$0xff] %vm1713, %v3915
  %3963 = vst.msk [vmem:[#allocation3 + $0x10] sm:$0xff] %vm1713, %v3917
  %3964 = vst.msk [vmem:[#allocation3 + $0x20] sm:$0xff] %vm1713, %v3919
  %3965 = vst.msk [vmem:[#allocation3 + $0x30] sm:$0xff] %vm1713, %v3921
  %3966 = vst.msk [vmem:[#allocation3 + $0x40] sm:$0xff] %vm1713, %v3923
  %3967 = vst.msk [vmem:[#allocation3 + $0x50] sm:$0xff] %vm1713, %v3925
  %3968 = vst.msk [vmem:[#allocation3 + $0x60] sm:$0xff] %vm1713, %v3927
  %3969 = vst.msk [vmem:[#allocation3 + $0x70] sm:$0xff] %vm1713, %v3929
  %3970 = vst.msk [vmem:[#allocation3 + $0x80] sm:$0xff] %vm1713, %v3931
  %3971 = vst.msk [vmem:[#allocation3 + $0x90] sm:$0xff] %vm1713, %v3933
  %3972 = vst.msk [vmem:[#allocation3 + $0xa0] sm:$0xff] %vm1713, %v3935
  %3973 = vst.msk [vmem:[#allocation3 + $0xb0] sm:$0xff] %vm1713, %v3937
  %3974 = vst.msk [vmem:[#allocation3 + $0xc0] sm:$0xff] %vm1713, %v3939
  %3975 = vst.msk [vmem:[#allocation3 + $0xd0] sm:$0xff] %vm1713, %v3941
  %3976 = vst.msk [vmem:[#allocation3 + $0xe0] sm:$0xff] %vm1713, %v3943
  %3977 = vst.msk [vmem:[#allocation3 + $0xf0] sm:$0xff] %vm1713, %v3945
  %3980 = vrot.lane.b32.xlu0 %v3462, 96
  %v3981 = vpop.permute.xlu0 %3980
  %3982 = vrot.lane.b32.xlu0 %v3464, 96
  %v3983 = vpop.permute.xlu0 %3982
  %3984 = vrot.lane.b32.xlu0 %v3466, 96
  %v3985 = vpop.permute.xlu0 %3984
  %3986 = vrot.lane.b32.xlu0 %v3468, 96
  %v3987 = vpop.permute.xlu0 %3986
  %3988 = vrot.lane.b32.xlu0 %v3470, 96
  %v3989 = vpop.permute.xlu0 %3988
  %3990 = vrot.lane.b32.xlu0 %v3472, 96
  %v3991 = vpop.permute.xlu0 %3990
  %3992 = vrot.lane.b32.xlu0 %v3474, 96
  %v3993 = vpop.permute.xlu0 %3992
  %3994 = vrot.lane.b32.xlu0 %v3476, 96
  %v3995 = vpop.permute.xlu0 %3994
  %3996 = vrot.lane.b32.xlu0 %v3482, 96
  %v3997 = vpop.permute.xlu0 %3996
  %3998 = vrot.lane.b32.xlu0 %v3484, 96
  %v3999 = vpop.permute.xlu0 %3998
  %4000 = vrot.lane.b32.xlu0 %v3486, 96
  %v4001 = vpop.permute.xlu0 %4000
  %4002 = vrot.lane.b32.xlu0 %v3488, 96
  %v4003 = vpop.permute.xlu0 %4002
  %4004 = vrot.lane.b32.xlu0 %v3490, 96
  %v4005 = vpop.permute.xlu0 %4004
  %4006 = vrot.lane.b32.xlu0 %v3492, 96
  %v4007 = vpop.permute.xlu0 %4006
  %4008 = vrot.lane.b32.xlu0 %v3494, 96
  %v4009 = vpop.permute.xlu0 %4008
  %4010 = vrot.lane.b32.xlu0 %v3496, 96
  %v4011 = vpop.permute.xlu0 %4010
  %4028 = vst.msk [vmem:[#allocation3] sm:$0xff] %vm1780, %v3981
  %4029 = vst.msk [vmem:[#allocation3 + $0x10] sm:$0xff] %vm1780, %v3983
  %4030 = vst.msk [vmem:[#allocation3 + $0x20] sm:$0xff] %vm1780, %v3985
  %4031 = vst.msk [vmem:[#allocation3 + $0x30] sm:$0xff] %vm1780, %v3987
  %4032 = vst.msk [vmem:[#allocation3 + $0x40] sm:$0xff] %vm1780, %v3989
  %4033 = vst.msk [vmem:[#allocation3 + $0x50] sm:$0xff] %vm1780, %v3991
  %4034 = vst.msk [vmem:[#allocation3 + $0x60] sm:$0xff] %vm1780, %v3993
  %4035 = vst.msk [vmem:[#allocation3 + $0x70] sm:$0xff] %vm1780, %v3995
  %4036 = vst.msk [vmem:[#allocation3 + $0x80] sm:$0xff] %vm1780, %v3997
  %4037 = vst.msk [vmem:[#allocation3 + $0x90] sm:$0xff] %vm1780, %v3999
  %4038 = vst.msk [vmem:[#allocation3 + $0xa0] sm:$0xff] %vm1780, %v4001
  %4039 = vst.msk [vmem:[#allocation3 + $0xb0] sm:$0xff] %vm1780, %v4003
  %4040 = vst.msk [vmem:[#allocation3 + $0xc0] sm:$0xff] %vm1780, %v4005
  %4041 = vst.msk [vmem:[#allocation3 + $0xd0] sm:$0xff] %vm1780, %v4007
  %4042 = vst.msk [vmem:[#allocation3 + $0xe0] sm:$0xff] %vm1780, %v4009
  %4043 = vst.msk [vmem:[#allocation3 + $0xf0] sm:$0xff] %vm1780, %v4011
  %v4046 = vrot.slane %v3476, 1
  %v4047 = vrot.slane %v3477, 1
  %v4048 = vsel %vm205, %v4046, %v4047
  %v4049 = vrot.slane %v3496, 1
  %v4050 = vrot.slane %v3497, 1
  %v4051 = vsel %vm205, %v4049, %v4050
  %4052 = vrot.lane.b32.xlu0 %v3554, 112
  %v4053 = vpop.permute.xlu0 %4052
  %4054 = vrot.lane.b32.xlu0 %v3557, 112
  %v4055 = vpop.permute.xlu0 %4054
  %4056 = vrot.lane.b32.xlu0 %v3560, 112
  %v4057 = vpop.permute.xlu0 %4056
  %4058 = vrot.lane.b32.xlu0 %v3563, 112
  %v4059 = vpop.permute.xlu0 %4058
  %4060 = vrot.lane.b32.xlu0 %v3566, 112
  %v4061 = vpop.permute.xlu0 %4060
  %4062 = vrot.lane.b32.xlu0 %v3569, 112
  %v4063 = vpop.permute.xlu0 %4062
  %4064 = vrot.lane.b32.xlu0 %v3840, 112
  %v4065 = vpop.permute.xlu0 %4064
  %4066 = vrot.lane.b32.xlu0 %v4048, 112
  %v4067 = vpop.permute.xlu0 %4066
  %4068 = vrot.lane.b32.xlu0 %v3578, 112
  %v4069 = vpop.permute.xlu0 %4068
  %4070 = vrot.lane.b32.xlu0 %v3581, 112
  %v4071 = vpop.permute.xlu0 %4070
  %4072 = vrot.lane.b32.xlu0 %v3584, 112
  %v4073 = vpop.permute.xlu0 %4072
  %4074 = vrot.lane.b32.xlu0 %v3587, 112
  %v4075 = vpop.permute.xlu0 %4074
  %4076 = vrot.lane.b32.xlu0 %v3590, 112
  %v4077 = vpop.permute.xlu0 %4076
  %4078 = vrot.lane.b32.xlu0 %v3593, 112
  %v4079 = vpop.permute.xlu0 %4078
  %4080 = vrot.lane.b32.xlu0 %v3843, 112
  %v4081 = vpop.permute.xlu0 %4080
  %4082 = vrot.lane.b32.xlu0 %v4051, 112
  %v4083 = vpop.permute.xlu0 %4082
  %4100 = vst.msk [vmem:[#allocation3] sm:$0xff] %vm1853, %v4053
  %4101 = vst.msk [vmem:[#allocation3 + $0x10] sm:$0xff] %vm1853, %v4055
  %4102 = vst.msk [vmem:[#allocation3 + $0x20] sm:$0xff] %vm1853, %v4057
  %4103 = vst.msk [vmem:[#allocation3 + $0x30] sm:$0xff] %vm1853, %v4059
  %4104 = vst.msk [vmem:[#allocation3 + $0x40] sm:$0xff] %vm1853, %v4061
  %4105 = vst.msk [vmem:[#allocation3 + $0x50] sm:$0xff] %vm1853, %v4063
  %4106 = vst.msk [vmem:[#allocation3 + $0x60] sm:$0xff] %vm1853, %v4065
  %4107 = vst.msk [vmem:[#allocation3 + $0x70] sm:$0xff] %vm1853, %v4067
  %4108 = vst.msk [vmem:[#allocation3 + $0x80] sm:$0xff] %vm1853, %v4069
  %4109 = vst.msk [vmem:[#allocation3 + $0x90] sm:$0xff] %vm1853, %v4071
  %4110 = vst.msk [vmem:[#allocation3 + $0xa0] sm:$0xff] %vm1853, %v4073
  %4111 = vst.msk [vmem:[#allocation3 + $0xb0] sm:$0xff] %vm1853, %v4075
  %4112 = vst.msk [vmem:[#allocation3 + $0xc0] sm:$0xff] %vm1853, %v4077
  %4113 = vst.msk [vmem:[#allocation3 + $0xd0] sm:$0xff] %vm1853, %v4079
  %4114 = vst.msk [vmem:[#allocation3 + $0xe0] sm:$0xff] %vm1853, %v4081
  %4115 = vst.msk [vmem:[#allocation3 + $0xf0] sm:$0xff] %vm1853, %v4083
  %v4116 = vrot.slane %v3476, 2
  %v4117 = vrot.slane %v3477, 2
  %v4118 = vsel %vm319, %v4116, %v4117
  %v4119 = vrot.slane %v3496, 2
  %v4120 = vrot.slane %v3497, 2
  %v4121 = vsel %vm319, %v4119, %v4120
  %4138 = vst.msk [vmem:[#allocation3 + $0x8] sm:$0xff] %vm74, %v3666
  %4139 = vst.msk [vmem:[#allocation3 + $0x18] sm:$0xff] %vm74, %v3669
  %4140 = vst.msk [vmem:[#allocation3 + $0x28] sm:$0xff] %vm74, %v3672
  %4141 = vst.msk [vmem:[#allocation3 + $0x38] sm:$0xff] %vm74, %v3675
  %4142 = vst.msk [vmem:[#allocation3 + $0x48] sm:$0xff] %vm74, %v3678
  %4143 = vst.msk [vmem:[#allocation3 + $0x58] sm:$0xff] %vm74, %v3681
  %4144 = vst.msk [vmem:[#allocation3 + $0x68] sm:$0xff] %vm74, %v3910
  %4145 = vst.msk [vmem:[#allocation3 + $0x78] sm:$0xff] %vm74, %v4118
  %4146 = vst.msk [vmem:[#allocation3 + $0x88] sm:$0xff] %vm74, %v3690
  %4147 = vst.msk [vmem:[#allocation3 + $0x98] sm:$0xff] %vm74, %v3693
  %4148 = vst.msk [vmem:[#allocation3 + $0xa8] sm:$0xff] %vm74, %v3696
  %4149 = vst.msk [vmem:[#allocation3 + $0xb8] sm:$0xff] %vm74, %v3699
  %4150 = vst.msk [vmem:[#allocation3 + $0xc8] sm:$0xff] %vm74, %v3702
  %4151 = vst.msk [vmem:[#allocation3 + $0xd8] sm:$0xff] %vm74, %v3705
  %4152 = vst.msk [vmem:[#allocation3 + $0xe8] sm:$0xff] %vm74, %v3913
  %4153 = vst.msk [vmem:[#allocation3 + $0xf8] sm:$0xff] %vm74, %v4121
  %v4154 = vld [vmem:[#allocation3] sm:$0xff]
  %v4155 = vld [vmem:[#allocation3 + $0x8] sm:$0xff]
  %v4156 = vld [vmem:[#allocation3 + $0x10] sm:$0xff]
  %v4157 = vld [vmem:[#allocation3 + $0x18] sm:$0xff]
  %v4158 = vld [vmem:[#allocation3 + $0x20] sm:$0xff]
  %v4159 = vld [vmem:[#allocation3 + $0x28] sm:$0xff]
  %v4160 = vld [vmem:[#allocation3 + $0x30] sm:$0xff]
  %v4161 = vld [vmem:[#allocation3 + $0x38] sm:$0xff]
  %v4162 = vld [vmem:[#allocation3 + $0x40] sm:$0xff]
  %v4163 = vld [vmem:[#allocation3 + $0x48] sm:$0xff]
  %v4164 = vld [vmem:[#allocation3 + $0x50] sm:$0xff]
  %v4165 = vld [vmem:[#allocation3 + $0x58] sm:$0xff]
  %v4166 = vld [vmem:[#allocation3 + $0x60] sm:$0xff]
  %v4167 = vld [vmem:[#allocation3 + $0x68] sm:$0xff]
  %v4168 = vld [vmem:[#allocation3 + $0x70] sm:$0xff]
  %v4169 = vld [vmem:[#allocation3 + $0x78] sm:$0xff]
  %v4170 = vld [vmem:[#allocation3 + $0x80] sm:$0xff]
  %v4171 = vld [vmem:[#allocation3 + $0x88] sm:$0xff]
  %v4172 = vld [vmem:[#allocation3 + $0x90] sm:$0xff]
  %v4173 = vld [vmem:[#allocation3 + $0x98] sm:$0xff]
  %v4174 = vld [vmem:[#allocation3 + $0xa0] sm:$0xff]
  %v4175 = vld [vmem:[#allocation3 + $0xa8] sm:$0xff]
  %v4176 = vld [vmem:[#allocation3 + $0xb0] sm:$0xff]
  %v4177 = vld [vmem:[#allocation3 + $0xb8] sm:$0xff]
  %v4178 = vld [vmem:[#allocation3 + $0xc0] sm:$0xff]
  %v4179 = vld [vmem:[#allocation3 + $0xc8] sm:$0xff]
  %v4180 = vld [vmem:[#allocation3 + $0xd0] sm:$0xff]
  %v4181 = vld [vmem:[#allocation3 + $0xd8] sm:$0xff]
  %v4182 = vld [vmem:[#allocation3 + $0xe0] sm:$0xff]
  %v4183 = vld [vmem:[#allocation3 + $0xe8] sm:$0xff]
  %v4184 = vld [vmem:[#allocation3 + $0xf0] sm:$0xff]
  %v4185 = vld [vmem:[#allocation3 + $0xf8] sm:$0xff]
  %v4186 = vpack.c.bf16 %v4156, %v4154
  %v4187 = vpack.c.bf16 %v4157, %v4155
  %v4188 = vpack.c.bf16 %v4160, %v4158
  %v4189 = vpack.c.bf16 %v4161, %v4159
  %v4190 = vpack.c.bf16 %v4164, %v4162
  %v4191 = vpack.c.bf16 %v4165, %v4163
  %v4192 = vpack.c.bf16 %v4168, %v4166
  %v4193 = vpack.c.bf16 %v4169, %v4167
  %v4194 = vpack.c.bf16 %v4172, %v4170
  %v4195 = vpack.c.bf16 %v4173, %v4171
  %v4196 = vpack.c.bf16 %v4176, %v4174
  %v4197 = vpack.c.bf16 %v4177, %v4175
  %v4198 = vpack.c.bf16 %v4180, %v4178
  %v4199 = vpack.c.bf16 %v4181, %v4179
  %v4200 = vpack.c.bf16 %v4184, %v4182
  %v4201 = vpack.c.bf16 %v4185, %v4183
  %v4202 = vld [vmem:[%s10] sm:$0xf]
  %v4203 = vld [vmem:[%s10 + $0x4] sm:$0xf]
  %v4204 = vld [vmem:[%s10 + $0x8] sm:$0xf]
  %v4205 = vld [vmem:[%s10 + $0xc] sm:$0xf]
  %v4206 = vld [vmem:[%s10 + $0x10] sm:$0xf]
  %v4207 = vld [vmem:[%s10 + $0x14] sm:$0xf]
  %v4208 = vld [vmem:[%s10 + $0x18] sm:$0xf]
  %v4209 = vld [vmem:[%s10 + $0x1c] sm:$0xf]
  %v4210 = vld [vmem:[%s10 + $0x20] sm:$0xf]
  %v4211 = vld [vmem:[%s10 + $0x24] sm:$0xf]
  %v4212 = vld [vmem:[%s10 + $0x28] sm:$0xf]
  %v4213 = vld [vmem:[%s10 + $0x2c] sm:$0xf]
  %v4214 = vld [vmem:[%s10 + $0x30] sm:$0xf]
  %v4215 = vld [vmem:[%s10 + $0x34] sm:$0xf]
  %v4216 = vld [vmem:[%s10 + $0x38] sm:$0xf]
  %v4217 = vld [vmem:[%s10 + $0x3c] sm:$0xf]
  %v4218 = vld [vmem:[%s10 + $0x40] sm:$0xf]
  %v4219 = vld [vmem:[%s10 + $0x44] sm:$0xf]
  %v4238 = vunpack.c.l.b16 %v4202
  %v4239 = vunpack.c.l.b16 %v4203
  %v4240 = vunpack.c.l.b16 %v4204
  %v4241 = vunpack.c.l.b16 %v4205
  %v4242 = vunpack.c.l.b16 %v4206
  %v4243 = vunpack.c.l.b16 %v4207
  %v4244 = vunpack.c.l.b16 %v4208
  %v4245 = vunpack.c.l.b16 %v4209
  %v4246 = vunpack.c.l.b16 %v4210
  %v4247 = vunpack.c.l.b16 %v4211
  %v4248 = vunpack.c.l.b16 %v4212
  %v4249 = vunpack.c.l.b16 %v4213
  %v4250 = vunpack.c.l.b16 %v4214
  %v4251 = vunpack.c.l.b16 %v4215
  %v4252 = vunpack.c.l.b16 %v4216
  %v4253 = vunpack.c.l.b16 %v4217
  %v4254 = vunpack.c.l.b16 %v4218
  %v4255 = vunpack.c.l.b16 %v4219
  %v4256 = vpack.c.b16 %v4239, %v4238
  %v4257 = vpack.c.b16 %v4241, %v4240
  %v4258 = vpack.c.b16 %v4243, %v4242
  %v4259 = vpack.c.b16 %v4245, %v4244
  %v4260 = vpack.c.b16 %v4247, %v4246
  %v4261 = vpack.c.b16 %v4249, %v4248
  %v4262 = vpack.c.b16 %v4251, %v4250
  %v4263 = vpack.c.b16 %v4253, %v4252
  %v4264 = vpack.c.b16 %v4255, %v4254
  %v4275 = vsel %vm74, %v4187, 0
  %v4278 = vsel %vm74, %v4189, 0
  %v4281 = vsel %vm74, %v4191, 0
  %v4284 = vsel %vm74, %v4193, 0
  %v4287 = vsel %vm74, %v4195, 0
  %v4290 = vsel %vm74, %v4197, 0
  %v4293 = vsel %vm74, %v4199, 0
  %v4296 = vsel %vm74, %v4201, 0
  %4298 = vmatprep.subr.bf16.mxu0 0
  %4299 = vmatpush1.bf16.msra.mxu0 %v4256
  %4300 = vmatprep.subr.bf16.mxu0 0
  %4301 = vmatpush1.bf16.msra.mxu0 %v4257
  %4302 = vmatprep.subr.bf16.mxu0 0
  %4303 = vmatpush1.bf16.msra.mxu0 %v4258
  %4304 = vmatprep.subr.bf16.mxu0 0
  %4305 = vmatpush1.bf16.msra.mxu0 %v4259
  %4306 = vmatprep.subr.bf16.mxu0 0
  %4307 = vmatpush1.bf16.msra.mxu0 %v4260
  %4308 = vmatprep.subr.bf16.mxu0 0
  %4309 = vmatpush1.bf16.msra.mxu0 %v4261
  %4310 = vmatprep.subr.bf16.mxu0 0
  %4311 = vmatpush1.bf16.msra.mxu0 %v4262
  %4312 = vmatprep.subr.bf16.mxu0 0
  %4313 = vmatpush1.bf16.msra.mxu0 %v4263
  %4314 = vmatprep.subr.bf16.mxu0 0
  %4315 = vmatpush1.bf16.msra.mxu0 %v4264
  %4316 = vmatprep.subr.bf16.mxu0 0
  %4317 = vmatpush1.bf16.msra.mxu0 0
  %4318 = vmatprep.subr.bf16.mxu0 0
  %4319 = vmatpush1.bf16.msra.mxu0 0
  %4320 = vmatprep.subr.bf16.mxu0 0
  %4321 = vmatpush1.bf16.msra.mxu0 0
  %4322 = vmatprep.subr.bf16.mxu0 0
  %4323 = vmatpush1.bf16.msra.mxu0 0
  %4324 = vmatprep.subr.bf16.mxu0 0
  %4325 = vmatpush1.bf16.msra.mxu0 0
  %4326 = vmatprep.subr.bf16.mxu0 0
  %4327 = vmatpush1.bf16.msra.mxu0 0
  %4328 = vmatprep.subr.bf16.mxu0 0
  %4329 = vmatpush1.bf16.msra.mxu0 0
  %4330 = vmatprep.mubr.bf16.mxu0 %v4275
  %4331 = vmatmul.mubr.bf16.gmra.mrb[0].mxu0 %v4186
  %v4332 = vpop.f32.mrb[0].mxu0
  %v4333 = vadd.f32 0.0, %v4332
  %v4334 = vpop.f32.mrb[0].mxu0
  %v4335 = vpop.f32.mrb[0].mxu0
  %v4336 = vadd.f32 0.0, %v4335
  %v4337 = vpop.f32.mrb[0].mxu0
  %4338 = vmatprep.mubr.bf16.mxu0 %v4278
  %4339 = vmatmul.mubr.bf16.gmra.mrb[0].mxu0 %v4188
  %v4340 = vpop.f32.mrb[0].mxu0
  %v4341 = vadd.f32 0.0, %v4340
  %v4342 = vpop.f32.mrb[0].mxu0
  %v4343 = vpop.f32.mrb[0].mxu0
  %v4344 = vadd.f32 0.0, %v4343
  %v4345 = vpop.f32.mrb[0].mxu0
  %4346 = vmatprep.mubr.bf16.mxu0 %v4281
  %4347 = vmatmul.mubr.bf16.gmra.mrb[0].mxu0 %v4190
  %v4348 = vpop.f32.mrb[0].mxu0
  %v4349 = vadd.f32 0.0, %v4348
  %v4350 = vpop.f32.mrb[0].mxu0
  %v4351 = vpop.f32.mrb[0].mxu0
  %v4352 = vadd.f32 0.0, %v4351
  %v4353 = vpop.f32.mrb[0].mxu0
  %4354 = vmatprep.mubr.bf16.mxu0 %v4284
  %4355 = vmatmul.mubr.bf16.gmra.mrb[0].mxu0 %v4192
  %v4356 = vpop.f32.mrb[0].mxu0
  %v4357 = vadd.f32 0.0, %v4356
  %v4358 = vpop.f32.mrb[0].mxu0
  %v4359 = vpop.f32.mrb[0].mxu0
  %v4360 = vadd.f32 0.0, %v4359
  %v4361 = vpop.f32.mrb[0].mxu0
  %4362 = vmatprep.mubr.bf16.mxu0 %v4287
  %4363 = vmatmul.mubr.bf16.gmra.mrb[0].mxu0 %v4194
  %v4364 = vpop.f32.mrb[0].mxu0
  %v4365 = vadd.f32 0.0, %v4364
  %v4366 = vpop.f32.mrb[0].mxu0
  %v4367 = vpop.f32.mrb[0].mxu0
  %v4368 = vadd.f32 0.0, %v4367
  %v4369 = vpop.f32.mrb[0].mxu0
  %4370 = vmatprep.mubr.bf16.mxu0 %v4290
  %4371 = vmatmul.mubr.bf16.gmra.mrb[0].mxu0 %v4196
  %v4372 = vpop.f32.mrb[0].mxu0
  %v4373 = vadd.f32 0.0, %v4372
  %v4374 = vpop.f32.mrb[0].mxu0
  %v4375 = vpop.f32.mrb[0].mxu0
  %v4376 = vadd.f32 0.0, %v4375
  %v4377 = vpop.f32.mrb[0].mxu0
  %4378 = vmatprep.mubr.bf16.mxu0 %v4293
  %4379 = vmatmul.mubr.bf16.gmra.mrb[0].mxu0 %v4198
  %v4380 = vpop.f32.mrb[0].mxu0
  %v4381 = vadd.f32 0.0, %v4380
  %v4382 = vpop.f32.mrb[0].mxu0
  %v4383 = vpop.f32.mrb[0].mxu0
  %v4384 = vadd.f32 0.0, %v4383
  %v4385 = vpop.f32.mrb[0].mxu0
  %4386 = vmatprep.mubr.bf16.mxu0 %v4296
  %4387 = vmatmul.mubr.bf16.gmra.mrb[0].mxu0 %v4200
  %v4388 = vpop.f32.mrb[0].mxu0
  %v4389 = vadd.f32 0.0, %v4388
  %v4390 = vpop.f32.mrb[0].mxu0
  %v4391 = vpop.f32.mrb[0].mxu0
  %v4392 = vadd.f32 0.0, %v4391
  %v4393 = vpop.f32.mrb[0].mxu0
  %4394 = vdwg.mxu0
  %v4395 = vsel %vm74, %v4333, 0.0
  %v4396 = vsel %vm74, %v4336, 0.0
  %v4397 = vadd.f32 %v4395, %v4396
  %v4398 = vsel %vm74, %v4341, 0.0
  %v4399 = vadd.f32 %v4397, %v4398
  %v4400 = vsel %vm74, %v4344, 0.0
  %v4401 = vadd.f32 %v4399, %v4400
  %v4402 = vsel %vm74, %v4349, 0.0
  %v4403 = vadd.f32 %v4401, %v4402
  %v4404 = vsel %vm74, %v4352, 0.0
  %v4405 = vadd.f32 %v4403, %v4404
  %v4406 = vsel %vm74, %v4357, 0.0
  %v4407 = vadd.f32 %v4405, %v4406
  %v4408 = vsel %vm74, %v4360, 0.0
  %v4409 = vadd.f32 %v4407, %v4408
  %v4410 = vsel %vm74, %v4365, 0.0
  %v4411 = vadd.f32 %v4409, %v4410
  %v4412 = vsel %vm74, %v4368, 0.0
  %v4413 = vadd.f32 %v4411, %v4412
  %v4414 = vsel %vm74, %v4373, 0.0
  %v4415 = vadd.f32 %v4413, %v4414
  %v4416 = vsel %vm74, %v4376, 0.0
  %v4417 = vadd.f32 %v4415, %v4416
  %v4418 = vsel %vm74, %v4381, 0.0
  %v4419 = vadd.f32 %v4417, %v4418
  %v4420 = vsel %vm74, %v4384, 0.0
  %v4421 = vadd.f32 %v4419, %v4420
  %v4422 = vsel %vm74, %v4389, 0.0
  %v4423 = vadd.f32 %v4421, %v4422
  %v4424 = vsel %vm74, %v4392, 0.0
  %v4425 = vadd.f32 %v4423, %v4424
  %v4426 = vrot.slane %v4425, 4
  %v4427 = vadd.f32 %v4425, %v4426
  %v4428 = vrot.slane %v4427, 2
  %v4429 = vadd.f32 %v4427, %v4428
  %v4430 = vrot.slane %v4429, 1
  %v4431 = vadd.f32 %v4429, %v4430
  %v4432 = vmul.f32 %v4431, %v1062
  %v4433 = vmul.f32 %v4333, %v4333
  %v4434 = vmul.f32 %v4336, %v4336
  %v4435 = vmul.f32 %v4341, %v4341
  %v4436 = vmul.f32 %v4344, %v4344
  %v4437 = vmul.f32 %v4349, %v4349
  %v4438 = vmul.f32 %v4352, %v4352
  %v4439 = vmul.f32 %v4357, %v4357
  %v4440 = vmul.f32 %v4360, %v4360
  %v4441 = vmul.f32 %v4365, %v4365
  %v4442 = vmul.f32 %v4368, %v4368
  %v4443 = vmul.f32 %v4373, %v4373
  %v4444 = vmul.f32 %v4376, %v4376
  %v4445 = vmul.f32 %v4381, %v4381
  %v4446 = vmul.f32 %v4384, %v4384
  %v4447 = vmul.f32 %v4389, %v4389
  %v4448 = vmul.f32 %v4392, %v4392
  %v4449 = vsel %vm74, %v4433, 0.0
  %v4450 = vsel %vm74, %v4434, 0.0
  %v4451 = vadd.f32 %v4449, %v4450
  %v4452 = vsel %vm74, %v4435, 0.0
  %v4453 = vadd.f32 %v4451, %v4452
  %v4454 = vsel %vm74, %v4436, 0.0
  %v4455 = vadd.f32 %v4453, %v4454
  %v4456 = vsel %vm74, %v4437, 0.0
  %v4457 = vadd.f32 %v4455, %v4456
  %v4458 = vsel %vm74, %v4438, 0.0
  %v4459 = vadd.f32 %v4457, %v4458
  %v4460 = vsel %vm74, %v4439, 0.0
  %v4461 = vadd.f32 %v4459, %v4460
  %v4462 = vsel %vm74, %v4440, 0.0
  %v4463 = vadd.f32 %v4461, %v4462
  %v4464 = vsel %vm74, %v4441, 0.0
  %v4465 = vadd.f32 %v4463, %v4464
  %v4466 = vsel %vm74, %v4442, 0.0
  %v4467 = vadd.f32 %v4465, %v4466
  %v4468 = vsel %vm74, %v4443, 0.0
  %v4469 = vadd.f32 %v4467, %v4468
  %v4470 = vsel %vm74, %v4444, 0.0
  %v4471 = vadd.f32 %v4469, %v4470
  %v4472 = vsel %vm74, %v4445, 0.0
  %v4473 = vadd.f32 %v4471, %v4472
  %v4474 = vsel %vm74, %v4446, 0.0
  %v4475 = vadd.f32 %v4473, %v4474
  %v4476 = vsel %vm74, %v4447, 0.0
  %v4477 = vadd.f32 %v4475, %v4476
  %v4478 = vsel %vm74, %v4448, 0.0
  %v4479 = vadd.f32 %v4477, %v4478
  %v4480 = vrot.slane %v4479, 4
  %v4481 = vadd.f32 %v4479, %v4480
  %v4482 = vrot.slane %v4481, 2
  %v4483 = vadd.f32 %v4481, %v4482
  %v4484 = vrot.slane %v4483, 1
  %v4485 = vadd.f32 %v4483, %v4484
  %v4486 = vmul.f32 %v4485, %v1062
  %v4487 = vmul.f32 %v4432, %v4432
  %v4488 = vsub.f32 %v4486, %v4487
  %v4489 = vmax.f32 %v4488, 0.0
  %v4490 = vld [vmem:[%s11] sm:$0x1]
  %v4491 = vadd.f32 %v4489, 1e-05
  %v4492 = vrsqrt.pop %v4491
  %v4493 = vmul.f32 %v4490, %v4492
  %v4495 = vlaneseq
  %v4496 = vshrl.u32 %v4495, 7
  %v4497 = vsub.s32 0, %v4496
  %v4498 = vrot.slane %v4493, %v4497
  %v4500 = vmul.f32 %v4333, %v4498
  %v4501 = vmul.f32 %v4336, %v4498
  %v4502 = vmul.f32 %v4341, %v4498
  %v4503 = vmul.f32 %v4344, %v4498
  %v4504 = vmul.f32 %v4349, %v4498
  %v4505 = vmul.f32 %v4352, %v4498
  %v4506 = vmul.f32 %v4357, %v4498
  %v4507 = vmul.f32 %v4360, %v4498
  %v4508 = vmul.f32 %v4365, %v4498
  %v4509 = vmul.f32 %v4368, %v4498
  %v4510 = vmul.f32 %v4373, %v4498
  %v4511 = vmul.f32 %v4376, %v4498
  %v4512 = vmul.f32 %v4381, %v4498
  %v4513 = vmul.f32 %v4384, %v4498
  %v4514 = vmul.f32 %v4389, %v4498
  %v4515 = vmul.f32 %v4392, %v4498
  %v4516 = vld [vmem:[%s12] sm:$0x1]
  %v4517 = vmul.f32 %v4432, %v4493
  %v4518 = vsub.f32 %v4516, %v4517
  %v4520 = vlaneseq
  %v4521 = vshrl.u32 %v4520, 7
  %v4522 = vsub.s32 0, %v4521
  %v4523 = vrot.slane %v4518, %v4522
  %v4525 = vadd.f32 %v4500, %v4523
  %v4526 = vadd.f32 %v4501, %v4523
  %v4527 = vadd.f32 %v4502, %v4523
  %v4528 = vadd.f32 %v4503, %v4523
  %v4529 = vadd.f32 %v4504, %v4523
  %v4530 = vadd.f32 %v4505, %v4523
  %v4531 = vadd.f32 %v4506, %v4523
  %v4532 = vadd.f32 %v4507, %v4523
  %v4533 = vadd.f32 %v4508, %v4523
  %v4534 = vadd.f32 %v4509, %v4523
  %v4535 = vadd.f32 %v4510, %v4523
  %v4536 = vadd.f32 %v4511, %v4523
  %v4537 = vadd.f32 %v4512, %v4523
  %v4538 = vadd.f32 %v4513, %v4523
  %v4539 = vadd.f32 %v4514, %v4523
  %v4540 = vadd.f32 %v4515, %v4523
  %v4541 = vmax.f32 %v4525, 0.0
  %v4542 = vmax.f32 %v4526, 0.0
  %v4543 = vmax.f32 %v4527, 0.0
  %v4544 = vmax.f32 %v4528, 0.0
  %v4545 = vmax.f32 %v4529, 0.0
  %v4546 = vmax.f32 %v4530, 0.0
  %v4547 = vmax.f32 %v4531, 0.0
  %v4548 = vmax.f32 %v4532, 0.0
  %v4549 = vmax.f32 %v4533, 0.0
  %v4550 = vmax.f32 %v4534, 0.0
  %v4551 = vmax.f32 %v4535, 0.0
  %v4552 = vmax.f32 %v4536, 0.0
  %v4553 = vmax.f32 %v4537, 0.0
  %v4554 = vmax.f32 %v4538, 0.0
  %v4555 = vmax.f32 %v4539, 0.0
  %v4556 = vmax.f32 %v4540, 0.0
  %4557 = vst.msk [vmem:[%s1188 + $0x1] sm:$0xff] %vm74, %v4541
  %4558 = vst.msk [vmem:[%s1188 + $0x11] sm:$0xff] %vm74, %v4542
  %4559 = vst.msk [vmem:[%s1188 + $0x21] sm:$0xff] %vm74, %v4543
  %4560 = vst.msk [vmem:[%s1188 + $0x31] sm:$0xff] %vm74, %v4544
  %4561 = vst.msk [vmem:[%s1188 + $0x41] sm:$0xff] %vm74, %v4545
  %4562 = vst.msk [vmem:[%s1188 + $0x51] sm:$0xff] %vm74, %v4546
  %4563 = vst.msk [vmem:[%s1188 + $0x61] sm:$0xff] %vm74, %v4547
  %4564 = vst.msk [vmem:[%s1188 + $0x71] sm:$0xff] %vm74, %v4548
  %4565 = vst.msk [vmem:[%s1188 + $0xa1] sm:$0xff] %vm74, %v4549
  %4566 = vst.msk [vmem:[%s1188 + $0xb1] sm:$0xff] %vm74, %v4550
  %4567 = vst.msk [vmem:[%s1188 + $0xc1] sm:$0xff] %vm74, %v4551
  %4568 = vst.msk [vmem:[%s1188 + $0xd1] sm:$0xff] %vm74, %v4552
  %4569 = vst.msk [vmem:[%s1188 + $0xe1] sm:$0xff] %vm74, %v4553
  %4570 = vst.msk [vmem:[%s1188 + $0xf1] sm:$0xff] %vm74, %v4554
  %4571 = vst.msk [vmem:[%s1188 + $0x101] sm:$0xff] %vm74, %v4555
  %4572 = vst.msk [vmem:[%s1188 + $0x111] sm:$0xff] %vm74, %v4556
  %v4573 = vld [vmem:[#allocation2] sm:$0xff]
  %v4574 = vld [vmem:[#allocation2 + $0x8] sm:$0x3]
  %v4575 = vld [vmem:[#allocation2 + $0x10] sm:$0xff]
  %v4576 = vld [vmem:[#allocation2 + $0x18] sm:$0x3]
  %v4577 = vld [vmem:[#allocation2 + $0x20] sm:$0xff]
  %v4578 = vld [vmem:[#allocation2 + $0x28] sm:$0x3]
  %v4579 = vld [vmem:[#allocation2 + $0x30] sm:$0xff]
  %v4580 = vld [vmem:[#allocation2 + $0x38] sm:$0x3]
  %v4581 = vld [vmem:[#allocation2 + $0x40] sm:$0xff]
  %v4582 = vld [vmem:[#allocation2 + $0x48] sm:$0x3]
  %v4583 = vld [vmem:[#allocation2 + $0x50] sm:$0xff]
  %v4584 = vld [vmem:[#allocation2 + $0x58] sm:$0x3]
  %v4585 = vld [vmem:[#allocation2 + $0x60] sm:$0xff]
  %v4586 = vld [vmem:[#allocation2 + $0x68] sm:$0x3]
  %v4587 = vld [vmem:[#allocation2 + $0x70] sm:$0xff]
  %v4588 = vld [vmem:[#allocation2 + $0x78] sm:$0x3]
  %v4589 = vld [vmem:[#allocation2 + $0x80] sm:$0xff]
  %v4590 = vld [vmem:[#allocation2 + $0x88] sm:$0x3]
  %v4591 = vld [vmem:[#allocation2 + $0x90] sm:$0xff]
  %v4592 = vld [vmem:[#allocation2 + $0x98] sm:$0x3]
  %v4593 = vld [vmem:[#allocation2 + $0xa0] sm:$0xff]
  %v4594 = vld [vmem:[#allocation2 + $0xa8] sm:$0x3]
  %v4595 = vld [vmem:[#allocation2 + $0xb0] sm:$0xff]
  %v4596 = vld [vmem:[#allocation2 + $0xb8] sm:$0x3]
  %v4597 = vld [vmem:[#allocation2 + $0xc0] sm:$0xff]
  %v4598 = vld [vmem:[#allocation2 + $0xc8] sm:$0x3]
  %v4599 = vld [vmem:[#allocation2 + $0xd0] sm:$0xff]
  %v4600 = vld [vmem:[#allocation2 + $0xd8] sm:$0x3]
  %v4601 = vld [vmem:[#allocation2 + $0xe0] sm:$0xff]
  %v4602 = vld [vmem:[#allocation2 + $0xe8] sm:$0x3]
  %v4603 = vld [vmem:[#allocation2 + $0xf0] sm:$0xff]
  %v4604 = vld [vmem:[#allocation2 + $0xf8] sm:$0x3]
  %v4605 = vld [vmem:[#allocation2 + $0x100] sm:$0xff]
  %v4606 = vld [vmem:[#allocation2 + $0x108] sm:$0x3]
  %v4607 = vld [vmem:[#allocation2 + $0x110] sm:$0xff]
  %v4608 = vld [vmem:[#allocation2 + $0x118] sm:$0x3]
  %v4609 = vld [vmem:[#allocation2 + $0x120] sm:$0xff]
  %v4610 = vld [vmem:[#allocation2 + $0x128] sm:$0x3]
  %v4611 = vld [vmem:[#allocation2 + $0x130] sm:$0xff]
  %v4612 = vld [vmem:[#allocation2 + $0x138] sm:$0x3]
  %4613 = vst.msk [vmem:[#allocation3] sm:$0xff] %vm74, %v4573
  %4614 = vst.msk [vmem:[#allocation3 + $0x10] sm:$0xff] %vm74, %v4575
  %4615 = vst.msk [vmem:[#allocation3 + $0x20] sm:$0xff] %vm74, %v4577
  %4616 = vst.msk [vmem:[#allocation3 + $0x30] sm:$0xff] %vm74, %v4579
  %4617 = vst.msk [vmem:[#allocation3 + $0x40] sm:$0xff] %vm74, %v4581
  %4618 = vst.msk [vmem:[#allocation3 + $0x50] sm:$0xff] %vm74, %v4583
  %4619 = vst.msk [vmem:[#allocation3 + $0x60] sm:$0xff] %vm74, %v4585
  %4620 = vst.msk [vmem:[#allocation3 + $0x70] sm:$0xff] %vm74, %v4587
  %4621 = vst.msk [vmem:[#allocation3 + $0x80] sm:$0xff] %vm74, %v4593
  %4622 = vst.msk [vmem:[#allocation3 + $0x90] sm:$0xff] %vm74, %v4595
  %4623 = vst.msk [vmem:[#allocation3 + $0xa0] sm:$0xff] %vm74, %v4597
  %4624 = vst.msk [vmem:[#allocation3 + $0xb0] sm:$0xff] %vm74, %v4599
  %4625 = vst.msk [vmem:[#allocation3 + $0xc0] sm:$0xff] %vm74, %v4601
  %4626 = vst.msk [vmem:[#allocation3 + $0xd0] sm:$0xff] %vm74, %v4603
  %4627 = vst.msk [vmem:[#allocation3 + $0xe0] sm:$0xff] %vm74, %v4605
  %4628 = vst.msk [vmem:[#allocation3 + $0xf0] sm:$0xff] %vm74, %v4607
  %v4661 = vrot.slane %v4573, 1
  %v4662 = vrot.slane %v4574, 1
  %v4663 = vsel %vm205, %v4661, %v4662
  %v4664 = vrot.slane %v4575, 1
  %v4665 = vrot.slane %v4576, 1
  %v4666 = vsel %vm205, %v4664, %v4665
  %v4667 = vrot.slane %v4577, 1
  %v4668 = vrot.slane %v4578, 1
  %v4669 = vsel %vm205, %v4667, %v4668
  %v4670 = vrot.slane %v4579, 1
  %v4671 = vrot.slane %v4580, 1
  %v4672 = vsel %vm205, %v4670, %v4671
  %v4673 = vrot.slane %v4581, 1
  %v4674 = vrot.slane %v4582, 1
  %v4675 = vsel %vm205, %v4673, %v4674
  %v4676 = vrot.slane %v4583, 1
  %v4677 = vrot.slane %v4584, 1
  %v4678 = vsel %vm205, %v4676, %v4677
  %v4679 = vrot.slane %v4585, 1
  %v4680 = vrot.slane %v4586, 1
  %v4681 = vsel %vm205, %v4679, %v4680
  %v4682 = vrot.slane %v4587, 1
  %v4683 = vrot.slane %v4588, 1
  %v4684 = vsel %vm205, %v4682, %v4683
  %v4685 = vrot.slane %v4593, 1
  %v4686 = vrot.slane %v4594, 1
  %v4687 = vsel %vm205, %v4685, %v4686
  %v4688 = vrot.slane %v4595, 1
  %v4689 = vrot.slane %v4596, 1
  %v4690 = vsel %vm205, %v4688, %v4689
  %v4691 = vrot.slane %v4597, 1
  %v4692 = vrot.slane %v4598, 1
  %v4693 = vsel %vm205, %v4691, %v4692
  %v4694 = vrot.slane %v4599, 1
  %v4695 = vrot.slane %v4600, 1
  %v4696 = vsel %vm205, %v4694, %v4695
  %v4697 = vrot.slane %v4601, 1
  %v4698 = vrot.slane %v4602, 1
  %v4699 = vsel %vm205, %v4697, %v4698
  %v4700 = vrot.slane %v4603, 1
  %v4701 = vrot.slane %v4604, 1
  %v4702 = vsel %vm205, %v4700, %v4701
  %v4703 = vrot.slane %v4605, 1
  %v4704 = vrot.slane %v4606, 1
  %v4705 = vsel %vm205, %v4703, %v4704
  %v4706 = vrot.slane %v4607, 1
  %v4707 = vrot.slane %v4608, 1
  %v4708 = vsel %vm205, %v4706, %v4707
  %4709 = vrot.lane.b32.xlu0 %v4663, 16
  %v4710 = vpop.permute.xlu0 %4709
  %4711 = vrot.lane.b32.xlu0 %v4666, 16
  %v4712 = vpop.permute.xlu0 %4711
  %4713 = vrot.lane.b32.xlu0 %v4669, 16
  %v4714 = vpop.permute.xlu0 %4713
  %4715 = vrot.lane.b32.xlu0 %v4672, 16
  %v4716 = vpop.permute.xlu0 %4715
  %4717 = vrot.lane.b32.xlu0 %v4675, 16
  %v4718 = vpop.permute.xlu0 %4717
  %4719 = vrot.lane.b32.xlu0 %v4678, 16
  %v4720 = vpop.permute.xlu0 %4719
  %4721 = vrot.lane.b32.xlu0 %v4681, 16
  %v4722 = vpop.permute.xlu0 %4721
  %4723 = vrot.lane.b32.xlu0 %v4684, 16
  %v4724 = vpop.permute.xlu0 %4723
  %4725 = vrot.lane.b32.xlu0 %v4687, 16
  %v4726 = vpop.permute.xlu0 %4725
  %4727 = vrot.lane.b32.xlu0 %v4690, 16
  %v4728 = vpop.permute.xlu0 %4727
  %4729 = vrot.lane.b32.xlu0 %v4693, 16
  %v4730 = vpop.permute.xlu0 %4729
  %4731 = vrot.lane.b32.xlu0 %v4696, 16
  %v4732 = vpop.permute.xlu0 %4731
  %4733 = vrot.lane.b32.xlu0 %v4699, 16
  %v4734 = vpop.permute.xlu0 %4733
  %4735 = vrot.lane.b32.xlu0 %v4702, 16
  %v4736 = vpop.permute.xlu0 %4735
  %4737 = vrot.lane.b32.xlu0 %v4705, 16
  %v4738 = vpop.permute.xlu0 %4737
  %4739 = vrot.lane.b32.xlu0 %v4708, 16
  %v4740 = vpop.permute.xlu0 %4739
  %4757 = vst.msk [vmem:[#allocation3] sm:$0xff] %vm1389, %v4710
  %4758 = vst.msk [vmem:[#allocation3 + $0x10] sm:$0xff] %vm1389, %v4712
  %4759 = vst.msk [vmem:[#allocation3 + $0x20] sm:$0xff] %vm1389, %v4714
  %4760 = vst.msk [vmem:[#allocation3 + $0x30] sm:$0xff] %vm1389, %v4716
  %4761 = vst.msk [vmem:[#allocation3 + $0x40] sm:$0xff] %vm1389, %v4718
  %4762 = vst.msk [vmem:[#allocation3 + $0x50] sm:$0xff] %vm1389, %v4720
  %4763 = vst.msk [vmem:[#allocation3 + $0x60] sm:$0xff] %vm1389, %v4722
  %4764 = vst.msk [vmem:[#allocation3 + $0x70] sm:$0xff] %vm1389, %v4724
  %4765 = vst.msk [vmem:[#allocation3 + $0x80] sm:$0xff] %vm1389, %v4726
  %4766 = vst.msk [vmem:[#allocation3 + $0x90] sm:$0xff] %vm1389, %v4728
  %4767 = vst.msk [vmem:[#allocation3 + $0xa0] sm:$0xff] %vm1389, %v4730
  %4768 = vst.msk [vmem:[#allocation3 + $0xb0] sm:$0xff] %vm1389, %v4732
  %4769 = vst.msk [vmem:[#allocation3 + $0xc0] sm:$0xff] %vm1389, %v4734
  %4770 = vst.msk [vmem:[#allocation3 + $0xd0] sm:$0xff] %vm1389, %v4736
  %4771 = vst.msk [vmem:[#allocation3 + $0xe0] sm:$0xff] %vm1389, %v4738
  %4772 = vst.msk [vmem:[#allocation3 + $0xf0] sm:$0xff] %vm1389, %v4740
  %v4773 = vrot.slane %v4573, 2
  %v4774 = vrot.slane %v4574, 2
  %v4775 = vsel %vm319, %v4773, %v4774
  %v4776 = vrot.slane %v4575, 2
  %v4777 = vrot.slane %v4576, 2
  %v4778 = vsel %vm319, %v4776, %v4777
  %v4779 = vrot.slane %v4577, 2
  %v4780 = vrot.slane %v4578, 2
  %v4781 = vsel %vm319, %v4779, %v4780
  %v4782 = vrot.slane %v4579, 2
  %v4783 = vrot.slane %v4580, 2
  %v4784 = vsel %vm319, %v4782, %v4783
  %v4785 = vrot.slane %v4581, 2
  %v4786 = vrot.slane %v4582, 2
  %v4787 = vsel %vm319, %v4785, %v4786
  %v4788 = vrot.slane %v4583, 2
  %v4789 = vrot.slane %v4584, 2
  %v4790 = vsel %vm319, %v4788, %v4789
  %v4791 = vrot.slane %v4585, 2
  %v4792 = vrot.slane %v4586, 2
  %v4793 = vsel %vm319, %v4791, %v4792
  %v4794 = vrot.slane %v4587, 2
  %v4795 = vrot.slane %v4588, 2
  %v4796 = vsel %vm319, %v4794, %v4795
  %v4797 = vrot.slane %v4593, 2
  %v4798 = vrot.slane %v4594, 2
  %v4799 = vsel %vm319, %v4797, %v4798
  %v4800 = vrot.slane %v4595, 2
  %v4801 = vrot.slane %v4596, 2
  %v4802 = vsel %vm319, %v4800, %v4801
  %v4803 = vrot.slane %v4597, 2
  %v4804 = vrot.slane %v4598, 2
  %v4805 = vsel %vm319, %v4803, %v4804
  %v4806 = vrot.slane %v4599, 2
  %v4807 = vrot.slane %v4600, 2
  %v4808 = vsel %vm319, %v4806, %v4807
  %v4809 = vrot.slane %v4601, 2
  %v4810 = vrot.slane %v4602, 2
  %v4811 = vsel %vm319, %v4809, %v4810
  %v4812 = vrot.slane %v4603, 2
  %v4813 = vrot.slane %v4604, 2
  %v4814 = vsel %vm319, %v4812, %v4813
  %v4815 = vrot.slane %v4605, 2
  %v4816 = vrot.slane %v4606, 2
  %v4817 = vsel %vm319, %v4815, %v4816
  %v4818 = vrot.slane %v4607, 2
  %v4819 = vrot.slane %v4608, 2
  %v4820 = vsel %vm319, %v4818, %v4819
  %4821 = vrot.lane.b32.xlu0 %v4775, 32
  %v4822 = vpop.permute.xlu0 %4821
  %4823 = vrot.lane.b32.xlu0 %v4778, 32
  %v4824 = vpop.permute.xlu0 %4823
  %4825 = vrot.lane.b32.xlu0 %v4781, 32
  %v4826 = vpop.permute.xlu0 %4825
  %4827 = vrot.lane.b32.xlu0 %v4784, 32
  %v4828 = vpop.permute.xlu0 %4827
  %4829 = vrot.lane.b32.xlu0 %v4787, 32
  %v4830 = vpop.permute.xlu0 %4829
  %4831 = vrot.lane.b32.xlu0 %v4790, 32
  %v4832 = vpop.permute.xlu0 %4831
  %4833 = vrot.lane.b32.xlu0 %v4793, 32
  %v4834 = vpop.permute.xlu0 %4833
  %4835 = vrot.lane.b32.xlu0 %v4796, 32
  %v4836 = vpop.permute.xlu0 %4835
  %4837 = vrot.lane.b32.xlu0 %v4799, 32
  %v4838 = vpop.permute.xlu0 %4837
  %4839 = vrot.lane.b32.xlu0 %v4802, 32
  %v4840 = vpop.permute.xlu0 %4839
  %4841 = vrot.lane.b32.xlu0 %v4805, 32
  %v4842 = vpop.permute.xlu0 %4841
  %4843 = vrot.lane.b32.xlu0 %v4808, 32
  %v4844 = vpop.permute.xlu0 %4843
  %4845 = vrot.lane.b32.xlu0 %v4811, 32
  %v4846 = vpop.permute.xlu0 %4845
  %4847 = vrot.lane.b32.xlu0 %v4814, 32
  %v4848 = vpop.permute.xlu0 %4847
  %4849 = vrot.lane.b32.xlu0 %v4817, 32
  %v4850 = vpop.permute.xlu0 %4849
  %4851 = vrot.lane.b32.xlu0 %v4820, 32
  %v4852 = vpop.permute.xlu0 %4851
  %4869 = vst.msk [vmem:[#allocation3] sm:$0xff] %vm1502, %v4822
  %4870 = vst.msk [vmem:[#allocation3 + $0x10] sm:$0xff] %vm1502, %v4824
  %4871 = vst.msk [vmem:[#allocation3 + $0x20] sm:$0xff] %vm1502, %v4826
  %4872 = vst.msk [vmem:[#allocation3 + $0x30] sm:$0xff] %vm1502, %v4828
  %4873 = vst.msk [vmem:[#allocation3 + $0x40] sm:$0xff] %vm1502, %v4830
  %4874 = vst.msk [vmem:[#allocation3 + $0x50] sm:$0xff] %vm1502, %v4832
  %4875 = vst.msk [vmem:[#allocation3 + $0x60] sm:$0xff] %vm1502, %v4834
  %4876 = vst.msk [vmem:[#allocation3 + $0x70] sm:$0xff] %vm1502, %v4836
  %4877 = vst.msk [vmem:[#allocation3 + $0x80] sm:$0xff] %vm1502, %v4838
  %4878 = vst.msk [vmem:[#allocation3 + $0x90] sm:$0xff] %vm1502, %v4840
  %4879 = vst.msk [vmem:[#allocation3 + $0xa0] sm:$0xff] %vm1502, %v4842
  %4880 = vst.msk [vmem:[#allocation3 + $0xb0] sm:$0xff] %vm1502, %v4844
  %4881 = vst.msk [vmem:[#allocation3 + $0xc0] sm:$0xff] %vm1502, %v4846
  %4882 = vst.msk [vmem:[#allocation3 + $0xd0] sm:$0xff] %vm1502, %v4848
  %4883 = vst.msk [vmem:[#allocation3 + $0xe0] sm:$0xff] %vm1502, %v4850
  %4884 = vst.msk [vmem:[#allocation3 + $0xf0] sm:$0xff] %vm1502, %v4852
  %4887 = vrot.lane.b32.xlu0 %v4575, 48
  %v4888 = vpop.permute.xlu0 %4887
  %4889 = vrot.lane.b32.xlu0 %v4577, 48
  %v4890 = vpop.permute.xlu0 %4889
  %4891 = vrot.lane.b32.xlu0 %v4579, 48
  %v4892 = vpop.permute.xlu0 %4891
  %4893 = vrot.lane.b32.xlu0 %v4581, 48
  %v4894 = vpop.permute.xlu0 %4893
  %4895 = vrot.lane.b32.xlu0 %v4583, 48
  %v4896 = vpop.permute.xlu0 %4895
  %4897 = vrot.lane.b32.xlu0 %v4585, 48
  %v4898 = vpop.permute.xlu0 %4897
  %4899 = vrot.lane.b32.xlu0 %v4587, 48
  %v4900 = vpop.permute.xlu0 %4899
  %4901 = vrot.lane.b32.xlu0 %v4589, 48
  %v4902 = vpop.permute.xlu0 %4901
  %4903 = vrot.lane.b32.xlu0 %v4595, 48
  %v4904 = vpop.permute.xlu0 %4903
  %4905 = vrot.lane.b32.xlu0 %v4597, 48
  %v4906 = vpop.permute.xlu0 %4905
  %4907 = vrot.lane.b32.xlu0 %v4599, 48
  %v4908 = vpop.permute.xlu0 %4907
  %4909 = vrot.lane.b32.xlu0 %v4601, 48
  %v4910 = vpop.permute.xlu0 %4909
  %4911 = vrot.lane.b32.xlu0 %v4603, 48
  %v4912 = vpop.permute.xlu0 %4911
  %4913 = vrot.lane.b32.xlu0 %v4605, 48
  %v4914 = vpop.permute.xlu0 %4913
  %4915 = vrot.lane.b32.xlu0 %v4607, 48
  %v4916 = vpop.permute.xlu0 %4915
  %4917 = vrot.lane.b32.xlu0 %v4609, 48
  %v4918 = vpop.permute.xlu0 %4917
  %4935 = vst.msk [vmem:[#allocation3] sm:$0xff] %vm1569, %v4888
  %4936 = vst.msk [vmem:[#allocation3 + $0x10] sm:$0xff] %vm1569, %v4890
  %4937 = vst.msk [vmem:[#allocation3 + $0x20] sm:$0xff] %vm1569, %v4892
  %4938 = vst.msk [vmem:[#allocation3 + $0x30] sm:$0xff] %vm1569, %v4894
  %4939 = vst.msk [vmem:[#allocation3 + $0x40] sm:$0xff] %vm1569, %v4896
  %4940 = vst.msk [vmem:[#allocation3 + $0x50] sm:$0xff] %vm1569, %v4898
  %4941 = vst.msk [vmem:[#allocation3 + $0x60] sm:$0xff] %vm1569, %v4900
  %4942 = vst.msk [vmem:[#allocation3 + $0x70] sm:$0xff] %vm1569, %v4902
  %4943 = vst.msk [vmem:[#allocation3 + $0x80] sm:$0xff] %vm1569, %v4904
  %4944 = vst.msk [vmem:[#allocation3 + $0x90] sm:$0xff] %vm1569, %v4906
  %4945 = vst.msk [vmem:[#allocation3 + $0xa0] sm:$0xff] %vm1569, %v4908
  %4946 = vst.msk [vmem:[#allocation3 + $0xb0] sm:$0xff] %vm1569, %v4910
  %4947 = vst.msk [vmem:[#allocation3 + $0xc0] sm:$0xff] %vm1569, %v4912
  %4948 = vst.msk [vmem:[#allocation3 + $0xd0] sm:$0xff] %vm1569, %v4914
  %4949 = vst.msk [vmem:[#allocation3 + $0xe0] sm:$0xff] %vm1569, %v4916
  %4950 = vst.msk [vmem:[#allocation3 + $0xf0] sm:$0xff] %vm1569, %v4918
  %v4953 = vrot.slane %v4589, 1
  %v4954 = vrot.slane %v4590, 1
  %v4955 = vsel %vm205, %v4953, %v4954
  %v4956 = vrot.slane %v4609, 1
  %v4957 = vrot.slane %v4610, 1
  %v4958 = vsel %vm205, %v4956, %v4957
  %4959 = vrot.lane.b32.xlu0 %v4666, 64
  %v4960 = vpop.permute.xlu0 %4959
  %4961 = vrot.lane.b32.xlu0 %v4669, 64
  %v4962 = vpop.permute.xlu0 %4961
  %4963 = vrot.lane.b32.xlu0 %v4672, 64
  %v4964 = vpop.permute.xlu0 %4963
  %4965 = vrot.lane.b32.xlu0 %v4675, 64
  %v4966 = vpop.permute.xlu0 %4965
  %4967 = vrot.lane.b32.xlu0 %v4678, 64
  %v4968 = vpop.permute.xlu0 %4967
  %4969 = vrot.lane.b32.xlu0 %v4681, 64
  %v4970 = vpop.permute.xlu0 %4969
  %4971 = vrot.lane.b32.xlu0 %v4684, 64
  %v4972 = vpop.permute.xlu0 %4971
  %4973 = vrot.lane.b32.xlu0 %v4955, 64
  %v4974 = vpop.permute.xlu0 %4973
  %4975 = vrot.lane.b32.xlu0 %v4690, 64
  %v4976 = vpop.permute.xlu0 %4975
  %4977 = vrot.lane.b32.xlu0 %v4693, 64
  %v4978 = vpop.permute.xlu0 %4977
  %4979 = vrot.lane.b32.xlu0 %v4696, 64
  %v4980 = vpop.permute.xlu0 %4979
  %4981 = vrot.lane.b32.xlu0 %v4699, 64
  %v4982 = vpop.permute.xlu0 %4981
  %4983 = vrot.lane.b32.xlu0 %v4702, 64
  %v4984 = vpop.permute.xlu0 %4983
  %4985 = vrot.lane.b32.xlu0 %v4705, 64
  %v4986 = vpop.permute.xlu0 %4985
  %4987 = vrot.lane.b32.xlu0 %v4708, 64
  %v4988 = vpop.permute.xlu0 %4987
  %4989 = vrot.lane.b32.xlu0 %v4958, 64
  %v4990 = vpop.permute.xlu0 %4989
  %5007 = vst.msk [vmem:[#allocation3] sm:$0xff] %vm1642, %v4960
  %5008 = vst.msk [vmem:[#allocation3 + $0x10] sm:$0xff] %vm1642, %v4962
  %5009 = vst.msk [vmem:[#allocation3 + $0x20] sm:$0xff] %vm1642, %v4964
  %5010 = vst.msk [vmem:[#allocation3 + $0x30] sm:$0xff] %vm1642, %v4966
  %5011 = vst.msk [vmem:[#allocation3 + $0x40] sm:$0xff] %vm1642, %v4968
  %5012 = vst.msk [vmem:[#allocation3 + $0x50] sm:$0xff] %vm1642, %v4970
  %5013 = vst.msk [vmem:[#allocation3 + $0x60] sm:$0xff] %vm1642, %v4972
  %5014 = vst.msk [vmem:[#allocation3 + $0x70] sm:$0xff] %vm1642, %v4974
  %5015 = vst.msk [vmem:[#allocation3 + $0x80] sm:$0xff] %vm1642, %v4976
  %5016 = vst.msk [vmem:[#allocation3 + $0x90] sm:$0xff] %vm1642, %v4978
  %5017 = vst.msk [vmem:[#allocation3 + $0xa0] sm:$0xff] %vm1642, %v4980
  %5018 = vst.msk [vmem:[#allocation3 + $0xb0] sm:$0xff] %vm1642, %v4982
  %5019 = vst.msk [vmem:[#allocation3 + $0xc0] sm:$0xff] %vm1642, %v4984
  %5020 = vst.msk [vmem:[#allocation3 + $0xd0] sm:$0xff] %vm1642, %v4986
  %5021 = vst.msk [vmem:[#allocation3 + $0xe0] sm:$0xff] %vm1642, %v4988
  %5022 = vst.msk [vmem:[#allocation3 + $0xf0] sm:$0xff] %vm1642, %v4990
  %v5023 = vrot.slane %v4589, 2
  %v5024 = vrot.slane %v4590, 2
  %v5025 = vsel %vm319, %v5023, %v5024
  %v5026 = vrot.slane %v4609, 2
  %v5027 = vrot.slane %v4610, 2
  %v5028 = vsel %vm319, %v5026, %v5027
  %5029 = vrot.lane.b32.xlu0 %v4778, 80
  %v5030 = vpop.permute.xlu0 %5029
  %5031 = vrot.lane.b32.xlu0 %v4781, 80
  %v5032 = vpop.permute.xlu0 %5031
  %5033 = vrot.lane.b32.xlu0 %v4784, 80
  %v5034 = vpop.permute.xlu0 %5033
  %5035 = vrot.lane.b32.xlu0 %v4787, 80
  %v5036 = vpop.permute.xlu0 %5035
  %5037 = vrot.lane.b32.xlu0 %v4790, 80
  %v5038 = vpop.permute.xlu0 %5037
  %5039 = vrot.lane.b32.xlu0 %v4793, 80
  %v5040 = vpop.permute.xlu0 %5039
  %5041 = vrot.lane.b32.xlu0 %v4796, 80
  %v5042 = vpop.permute.xlu0 %5041
  %5043 = vrot.lane.b32.xlu0 %v5025, 80
  %v5044 = vpop.permute.xlu0 %5043
  %5045 = vrot.lane.b32.xlu0 %v4802, 80
  %v5046 = vpop.permute.xlu0 %5045
  %5047 = vrot.lane.b32.xlu0 %v4805, 80
  %v5048 = vpop.permute.xlu0 %5047
  %5049 = vrot.lane.b32.xlu0 %v4808, 80
  %v5050 = vpop.permute.xlu0 %5049
  %5051 = vrot.lane.b32.xlu0 %v4811, 80
  %v5052 = vpop.permute.xlu0 %5051
  %5053 = vrot.lane.b32.xlu0 %v4814, 80
  %v5054 = vpop.permute.xlu0 %5053
  %5055 = vrot.lane.b32.xlu0 %v4817, 80
  %v5056 = vpop.permute.xlu0 %5055
  %5057 = vrot.lane.b32.xlu0 %v4820, 80
  %v5058 = vpop.permute.xlu0 %5057
  %5059 = vrot.lane.b32.xlu0 %v5028, 80
  %v5060 = vpop.permute.xlu0 %5059
  %5077 = vst.msk [vmem:[#allocation3] sm:$0xff] %vm1713, %v5030
  %5078 = vst.msk [vmem:[#allocation3 + $0x10] sm:$0xff] %vm1713, %v5032
  %5079 = vst.msk [vmem:[#allocation3 + $0x20] sm:$0xff] %vm1713, %v5034
  %5080 = vst.msk [vmem:[#allocation3 + $0x30] sm:$0xff] %vm1713, %v5036
  %5081 = vst.msk [vmem:[#allocation3 + $0x40] sm:$0xff] %vm1713, %v5038
  %5082 = vst.msk [vmem:[#allocation3 + $0x50] sm:$0xff] %vm1713, %v5040
  %5083 = vst.msk [vmem:[#allocation3 + $0x60] sm:$0xff] %vm1713, %v5042
  %5084 = vst.msk [vmem:[#allocation3 + $0x70] sm:$0xff] %vm1713, %v5044
  %5085 = vst.msk [vmem:[#allocation3 + $0x80] sm:$0xff] %vm1713, %v5046
  %5086 = vst.msk [vmem:[#allocation3 + $0x90] sm:$0xff] %vm1713, %v5048
  %5087 = vst.msk [vmem:[#allocation3 + $0xa0] sm:$0xff] %vm1713, %v5050
  %5088 = vst.msk [vmem:[#allocation3 + $0xb0] sm:$0xff] %vm1713, %v5052
  %5089 = vst.msk [vmem:[#allocation3 + $0xc0] sm:$0xff] %vm1713, %v5054
  %5090 = vst.msk [vmem:[#allocation3 + $0xd0] sm:$0xff] %vm1713, %v5056
  %5091 = vst.msk [vmem:[#allocation3 + $0xe0] sm:$0xff] %vm1713, %v5058
  %5092 = vst.msk [vmem:[#allocation3 + $0xf0] sm:$0xff] %vm1713, %v5060
  %5095 = vrot.lane.b32.xlu0 %v4577, 96
  %v5096 = vpop.permute.xlu0 %5095
  %5097 = vrot.lane.b32.xlu0 %v4579, 96
  %v5098 = vpop.permute.xlu0 %5097
  %5099 = vrot.lane.b32.xlu0 %v4581, 96
  %v5100 = vpop.permute.xlu0 %5099
  %5101 = vrot.lane.b32.xlu0 %v4583, 96
  %v5102 = vpop.permute.xlu0 %5101
  %5103 = vrot.lane.b32.xlu0 %v4585, 96
  %v5104 = vpop.permute.xlu0 %5103
  %5105 = vrot.lane.b32.xlu0 %v4587, 96
  %v5106 = vpop.permute.xlu0 %5105
  %5107 = vrot.lane.b32.xlu0 %v4589, 96
  %v5108 = vpop.permute.xlu0 %5107
  %5109 = vrot.lane.b32.xlu0 %v4591, 96
  %v5110 = vpop.permute.xlu0 %5109
  %5111 = vrot.lane.b32.xlu0 %v4597, 96
  %v5112 = vpop.permute.xlu0 %5111
  %5113 = vrot.lane.b32.xlu0 %v4599, 96
  %v5114 = vpop.permute.xlu0 %5113
  %5115 = vrot.lane.b32.xlu0 %v4601, 96
  %v5116 = vpop.permute.xlu0 %5115
  %5117 = vrot.lane.b32.xlu0 %v4603, 96
  %v5118 = vpop.permute.xlu0 %5117
  %5119 = vrot.lane.b32.xlu0 %v4605, 96
  %v5120 = vpop.permute.xlu0 %5119
  %5121 = vrot.lane.b32.xlu0 %v4607, 96
  %v5122 = vpop.permute.xlu0 %5121
  %5123 = vrot.lane.b32.xlu0 %v4609, 96
  %v5124 = vpop.permute.xlu0 %5123
  %5125 = vrot.lane.b32.xlu0 %v4611, 96
  %v5126 = vpop.permute.xlu0 %5125
  %5143 = vst.msk [vmem:[#allocation3] sm:$0xff] %vm1780, %v5096
  %5144 = vst.msk [vmem:[#allocation3 + $0x10] sm:$0xff] %vm1780, %v5098
  %5145 = vst.msk [vmem:[#allocation3 + $0x20] sm:$0xff] %vm1780, %v5100
  %5146 = vst.msk [vmem:[#allocation3 + $0x30] sm:$0xff] %vm1780, %v5102
  %5147 = vst.msk [vmem:[#allocation3 + $0x40] sm:$0xff] %vm1780, %v5104
  %5148 = vst.msk [vmem:[#allocation3 + $0x50] sm:$0xff] %vm1780, %v5106
  %5149 = vst.msk [vmem:[#allocation3 + $0x60] sm:$0xff] %vm1780, %v5108
  %5150 = vst.msk [vmem:[#allocation3 + $0x70] sm:$0xff] %vm1780, %v5110
  %5151 = vst.msk [vmem:[#allocation3 + $0x80] sm:$0xff] %vm1780, %v5112
  %5152 = vst.msk [vmem:[#allocation3 + $0x90] sm:$0xff] %vm1780, %v5114
  %5153 = vst.msk [vmem:[#allocation3 + $0xa0] sm:$0xff] %vm1780, %v5116
  %5154 = vst.msk [vmem:[#allocation3 + $0xb0] sm:$0xff] %vm1780, %v5118
  %5155 = vst.msk [vmem:[#allocation3 + $0xc0] sm:$0xff] %vm1780, %v5120
  %5156 = vst.msk [vmem:[#allocation3 + $0xd0] sm:$0xff] %vm1780, %v5122
  %5157 = vst.msk [vmem:[#allocation3 + $0xe0] sm:$0xff] %vm1780, %v5124
  %5158 = vst.msk [vmem:[#allocation3 + $0xf0] sm:$0xff] %vm1780, %v5126
  %v5161 = vrot.slane %v4591, 1
  %v5162 = vrot.slane %v4592, 1
  %v5163 = vsel %vm205, %v5161, %v5162
  %v5164 = vrot.slane %v4611, 1
  %v5165 = vrot.slane %v4612, 1
  %v5166 = vsel %vm205, %v5164, %v5165
  %5167 = vrot.lane.b32.xlu0 %v4669, 112
  %v5168 = vpop.permute.xlu0 %5167
  %5169 = vrot.lane.b32.xlu0 %v4672, 112
  %v5170 = vpop.permute.xlu0 %5169
  %5171 = vrot.lane.b32.xlu0 %v4675, 112
  %v5172 = vpop.permute.xlu0 %5171
  %5173 = vrot.lane.b32.xlu0 %v4678, 112
  %v5174 = vpop.permute.xlu0 %5173
  %5175 = vrot.lane.b32.xlu0 %v4681, 112
  %v5176 = vpop.permute.xlu0 %5175
  %5177 = vrot.lane.b32.xlu0 %v4684, 112
  %v5178 = vpop.permute.xlu0 %5177
  %5179 = vrot.lane.b32.xlu0 %v4955, 112
  %v5180 = vpop.permute.xlu0 %5179
  %5181 = vrot.lane.b32.xlu0 %v5163, 112
  %v5182 = vpop.permute.xlu0 %5181
  %5183 = vrot.lane.b32.xlu0 %v4693, 112
  %v5184 = vpop.permute.xlu0 %5183
  %5185 = vrot.lane.b32.xlu0 %v4696, 112
  %v5186 = vpop.permute.xlu0 %5185
  %5187 = vrot.lane.b32.xlu0 %v4699, 112
  %v5188 = vpop.permute.xlu0 %5187
  %5189 = vrot.lane.b32.xlu0 %v4702, 112
  %v5190 = vpop.permute.xlu0 %5189
  %5191 = vrot.lane.b32.xlu0 %v4705, 112
  %v5192 = vpop.permute.xlu0 %5191
  %5193 = vrot.lane.b32.xlu0 %v4708, 112
  %v5194 = vpop.permute.xlu0 %5193
  %5195 = vrot.lane.b32.xlu0 %v4958, 112
  %v5196 = vpop.permute.xlu0 %5195
  %5197 = vrot.lane.b32.xlu0 %v5166, 112
  %v5198 = vpop.permute.xlu0 %5197
  %5215 = vst.msk [vmem:[#allocation3] sm:$0xff] %vm1853, %v5168
  %5216 = vst.msk [vmem:[#allocation3 + $0x10] sm:$0xff] %vm1853, %v5170
  %5217 = vst.msk [vmem:[#allocation3 + $0x20] sm:$0xff] %vm1853, %v5172
  %5218 = vst.msk [vmem:[#allocation3 + $0x30] sm:$0xff] %vm1853, %v5174
  %5219 = vst.msk [vmem:[#allocation3 + $0x40] sm:$0xff] %vm1853, %v5176
  %5220 = vst.msk [vmem:[#allocation3 + $0x50] sm:$0xff] %vm1853, %v5178
  %5221 = vst.msk [vmem:[#allocation3 + $0x60] sm:$0xff] %vm1853, %v5180
  %5222 = vst.msk [vmem:[#allocation3 + $0x70] sm:$0xff] %vm1853, %v5182
  %5223 = vst.msk [vmem:[#allocation3 + $0x80] sm:$0xff] %vm1853, %v5184
  %5224 = vst.msk [vmem:[#allocation3 + $0x90] sm:$0xff] %vm1853, %v5186
  %5225 = vst.msk [vmem:[#allocation3 + $0xa0] sm:$0xff] %vm1853, %v5188
  %5226 = vst.msk [vmem:[#allocation3 + $0xb0] sm:$0xff] %vm1853, %v5190
  %5227 = vst.msk [vmem:[#allocation3 + $0xc0] sm:$0xff] %vm1853, %v5192
  %5228 = vst.msk [vmem:[#allocation3 + $0xd0] sm:$0xff] %vm1853, %v5194
  %5229 = vst.msk [vmem:[#allocation3 + $0xe0] sm:$0xff] %vm1853, %v5196
  %5230 = vst.msk [vmem:[#allocation3 + $0xf0] sm:$0xff] %vm1853, %v5198
  %v5231 = vrot.slane %v4591, 2
  %v5232 = vrot.slane %v4592, 2
  %v5233 = vsel %vm319, %v5231, %v5232
  %v5234 = vrot.slane %v4611, 2
  %v5235 = vrot.slane %v4612, 2
  %v5236 = vsel %vm319, %v5234, %v5235
  %5253 = vst.msk [vmem:[#allocation3 + $0x8] sm:$0xff] %vm74, %v4781
  %5254 = vst.msk [vmem:[#allocation3 + $0x18] sm:$0xff] %vm74, %v4784
  %5255 = vst.msk [vmem:[#allocation3 + $0x28] sm:$0xff] %vm74, %v4787
  %5256 = vst.msk [vmem:[#allocation3 + $0x38] sm:$0xff] %vm74, %v4790
  %5257 = vst.msk [vmem:[#allocation3 + $0x48] sm:$0xff] %vm74, %v4793
  %5258 = vst.msk [vmem:[#allocation3 + $0x58] sm:$0xff] %vm74, %v4796
  %5259 = vst.msk [vmem:[#allocation3 + $0x68] sm:$0xff] %vm74, %v5025
  %5260 = vst.msk [vmem:[#allocation3 + $0x78] sm:$0xff] %vm74, %v5233
  %5261 = vst.msk [vmem:[#allocation3 + $0x88] sm:$0xff] %vm74, %v4805
  %5262 = vst.msk [vmem:[#allocation3 + $0x98] sm:$0xff] %vm74, %v4808
  %5263 = vst.msk [vmem:[#allocation3 + $0xa8] sm:$0xff] %vm74, %v4811
  %5264 = vst.msk [vmem:[#allocation3 + $0xb8] sm:$0xff] %vm74, %v4814
  %5265 = vst.msk [vmem:[#allocation3 + $0xc8] sm:$0xff] %vm74, %v4817
  %5266 = vst.msk [vmem:[#allocation3 + $0xd8] sm:$0xff] %vm74, %v4820
  %5267 = vst.msk [vmem:[#allocation3 + $0xe8] sm:$0xff] %vm74, %v5028
  %5268 = vst.msk [vmem:[#allocation3 + $0xf8] sm:$0xff] %vm74, %v5236
  %v5269 = vld [vmem:[#allocation3] sm:$0xff]
  %v5270 = vld [vmem:[#allocation3 + $0x8] sm:$0xff]
  %v5271 = vld [vmem:[#allocation3 + $0x10] sm:$0xff]
  %v5272 = vld [vmem:[#allocation3 + $0x18] sm:$0xff]
  %v5273 = vld [vmem:[#allocation3 + $0x20] sm:$0xff]
  %v5274 = vld [vmem:[#allocation3 + $0x28] sm:$0xff]
  %v5275 = vld [vmem:[#allocation3 + $0x30] sm:$0xff]
  %v5276 = vld [vmem:[#allocation3 + $0x38] sm:$0xff]
  %v5277 = vld [vmem:[#allocation3 + $0x40] sm:$0xff]
  %v5278 = vld [vmem:[#allocation3 + $0x48] sm:$0xff]
  %v5279 = vld [vmem:[#allocation3 + $0x50] sm:$0xff]
  %v5280 = vld [vmem:[#allocation3 + $0x58] sm:$0xff]
  %v5281 = vld [vmem:[#allocation3 + $0x60] sm:$0xff]
  %v5282 = vld [vmem:[#allocation3 + $0x68] sm:$0xff]
  %v5283 = vld [vmem:[#allocation3 + $0x70] sm:$0xff]
  %v5284 = vld [vmem:[#allocation3 + $0x78] sm:$0xff]
  %v5285 = vld [vmem:[#allocation3 + $0x80] sm:$0xff]
  %v5286 = vld [vmem:[#allocation3 + $0x88] sm:$0xff]
  %v5287 = vld [vmem:[#allocation3 + $0x90] sm:$0xff]
  %v5288 = vld [vmem:[#allocation3 + $0x98] sm:$0xff]
  %v5289 = vld [vmem:[#allocation3 + $0xa0] sm:$0xff]
  %v5290 = vld [vmem:[#allocation3 + $0xa8] sm:$0xff]
  %v5291 = vld [vmem:[#allocation3 + $0xb0] sm:$0xff]
  %v5292 = vld [vmem:[#allocation3 + $0xb8] sm:$0xff]
  %v5293 = vld [vmem:[#allocation3 + $0xc0] sm:$0xff]
  %v5294 = vld [vmem:[#allocation3 + $0xc8] sm:$0xff]
  %v5295 = vld [vmem:[#allocation3 + $0xd0] sm:$0xff]
  %v5296 = vld [vmem:[#allocation3 + $0xd8] sm:$0xff]
  %v5297 = vld [vmem:[#allocation3 + $0xe0] sm:$0xff]
  %v5298 = vld [vmem:[#allocation3 + $0xe8] sm:$0xff]
  %v5299 = vld [vmem:[#allocation3 + $0xf0] sm:$0xff]
  %v5300 = vld [vmem:[#allocation3 + $0xf8] sm:$0xff]
  %v5301 = vpack.c.bf16 %v5271, %v5269
  %v5302 = vpack.c.bf16 %v5272, %v5270
  %v5303 = vpack.c.bf16 %v5275, %v5273
  %v5304 = vpack.c.bf16 %v5276, %v5274
  %v5305 = vpack.c.bf16 %v5279, %v5277
  %v5306 = vpack.c.bf16 %v5280, %v5278
  %v5307 = vpack.c.bf16 %v5283, %v5281
  %v5308 = vpack.c.bf16 %v5284, %v5282
  %v5309 = vpack.c.bf16 %v5287, %v5285
  %v5310 = vpack.c.bf16 %v5288, %v5286
  %v5311 = vpack.c.bf16 %v5291, %v5289
  %v5312 = vpack.c.bf16 %v5292, %v5290
  %v5313 = vpack.c.bf16 %v5295, %v5293
  %v5314 = vpack.c.bf16 %v5296, %v5294
  %v5315 = vpack.c.bf16 %v5299, %v5297
  %v5316 = vpack.c.bf16 %v5300, %v5298
  %v5317 = vld [vmem:[%s13] sm:$0xf]
  %v5318 = vld [vmem:[%s13 + $0x4] sm:$0xf]
  %v5319 = vld [vmem:[%s13 + $0x8] sm:$0xf]
  %v5320 = vld [vmem:[%s13 + $0xc] sm:$0xf]
  %v5321 = vld [vmem:[%s13 + $0x10] sm:$0xf]
  %v5322 = vld [vmem:[%s13 + $0x14] sm:$0xf]
  %v5323 = vld [vmem:[%s13 + $0x18] sm:$0xf]
  %v5324 = vld [vmem:[%s13 + $0x1c] sm:$0xf]
  %v5325 = vld [vmem:[%s13 + $0x20] sm:$0xf]
  %v5326 = vld [vmem:[%s13 + $0x24] sm:$0xf]
  %v5327 = vld [vmem:[%s13 + $0x28] sm:$0xf]
  %v5328 = vld [vmem:[%s13 + $0x2c] sm:$0xf]
  %v5329 = vld [vmem:[%s13 + $0x30] sm:$0xf]
  %v5330 = vld [vmem:[%s13 + $0x34] sm:$0xf]
  %v5331 = vld [vmem:[%s13 + $0x38] sm:$0xf]
  %v5332 = vld [vmem:[%s13 + $0x3c] sm:$0xf]
  %v5333 = vld [vmem:[%s13 + $0x40] sm:$0xf]
  %v5334 = vld [vmem:[%s13 + $0x44] sm:$0xf]
  %v5353 = vunpack.c.l.b16 %v5317
  %v5354 = vunpack.c.l.b16 %v5318
  %v5355 = vunpack.c.l.b16 %v5319
  %v5356 = vunpack.c.l.b16 %v5320
  %v5357 = vunpack.c.l.b16 %v5321
  %v5358 = vunpack.c.l.b16 %v5322
  %v5359 = vunpack.c.l.b16 %v5323
  %v5360 = vunpack.c.l.b16 %v5324
  %v5361 = vunpack.c.l.b16 %v5325
  %v5362 = vunpack.c.l.b16 %v5326
  %v5363 = vunpack.c.l.b16 %v5327
  %v5364 = vunpack.c.l.b16 %v5328
  %v5365 = vunpack.c.l.b16 %v5329
  %v5366 = vunpack.c.l.b16 %v5330
  %v5367 = vunpack.c.l.b16 %v5331
  %v5368 = vunpack.c.l.b16 %v5332
  %v5369 = vunpack.c.l.b16 %v5333
  %v5370 = vunpack.c.l.b16 %v5334
  %v5371 = vpack.c.b16 %v5354, %v5353
  %v5372 = vpack.c.b16 %v5356, %v5355
  %v5373 = vpack.c.b16 %v5358, %v5357
  %v5374 = vpack.c.b16 %v5360, %v5359
  %v5375 = vpack.c.b16 %v5362, %v5361
  %v5376 = vpack.c.b16 %v5364, %v5363
  %v5377 = vpack.c.b16 %v5366, %v5365
  %v5378 = vpack.c.b16 %v5368, %v5367
  %v5379 = vpack.c.b16 %v5370, %v5369
  %v5390 = vsel %vm74, %v5302, 0
  %v5393 = vsel %vm74, %v5304, 0
  %v5396 = vsel %vm74, %v5306, 0
  %v5399 = vsel %vm74, %v5308, 0
  %v5402 = vsel %vm74, %v5310, 0
  %v5405 = vsel %vm74, %v5312, 0
  %v5408 = vsel %vm74, %v5314, 0
  %v5411 = vsel %vm74, %v5316, 0
  %5413 = vmatprep.subr.bf16.mxu0 0
  %5414 = vmatpush1.bf16.msra.mxu0 %v5371
  %5415 = vmatprep.subr.bf16.mxu0 0
  %5416 = vmatpush1.bf16.msra.mxu0 %v5372
  %5417 = vmatprep.subr.bf16.mxu0 0
  %5418 = vmatpush1.bf16.msra.mxu0 %v5373
  %5419 = vmatprep.subr.bf16.mxu0 0
  %5420 = vmatpush1.bf16.msra.mxu0 %v5374
  %5421 = vmatprep.subr.bf16.mxu0 0
  %5422 = vmatpush1.bf16.msra.mxu0 %v5375
  %5423 = vmatprep.subr.bf16.mxu0 0
  %5424 = vmatpush1.bf16.msra.mxu0 %v5376
  %5425 = vmatprep.subr.bf16.mxu0 0
  %5426 = vmatpush1.bf16.msra.mxu0 %v5377
  %5427 = vmatprep.subr.bf16.mxu0 0
  %5428 = vmatpush1.bf16.msra.mxu0 %v5378
  %5429 = vmatprep.subr.bf16.mxu0 0
  %5430 = vmatpush1.bf16.msra.mxu0 %v5379
  %5431 = vmatprep.subr.bf16.mxu0 0
  %5432 = vmatpush1.bf16.msra.mxu0 0
  %5433 = vmatprep.subr.bf16.mxu0 0
  %5434 = vmatpush1.bf16.msra.mxu0 0
  %5435 = vmatprep.subr.bf16.mxu0 0
  %5436 = vmatpush1.bf16.msra.mxu0 0
  %5437 = vmatprep.subr.bf16.mxu0 0
  %5438 = vmatpush1.bf16.msra.mxu0 0
  %5439 = vmatprep.subr.bf16.mxu0 0
  %5440 = vmatpush1.bf16.msra.mxu0 0
  %5441 = vmatprep.subr.bf16.mxu0 0
  %5442 = vmatpush1.bf16.msra.mxu0 0
  %5443 = vmatprep.subr.bf16.mxu0 0
  %5444 = vmatpush1.bf16.msra.mxu0 0
  %5445 = vmatprep.mubr.bf16.mxu0 %v5390
  %5446 = vmatmul.mubr.bf16.gmra.mrb[0].mxu0 %v5301
  %v5447 = vpop.f32.mrb[0].mxu0
  %v5448 = vadd.f32 0.0, %v5447
  %v5449 = vpop.f32.mrb[0].mxu0
  %v5450 = vpop.f32.mrb[0].mxu0
  %v5451 = vadd.f32 0.0, %v5450
  %v5452 = vpop.f32.mrb[0].mxu0
  %5453 = vmatprep.mubr.bf16.mxu0 %v5393
  %5454 = vmatmul.mubr.bf16.gmra.mrb[0].mxu0 %v5303
  %v5455 = vpop.f32.mrb[0].mxu0
  %v5456 = vadd.f32 0.0, %v5455
  %v5457 = vpop.f32.mrb[0].mxu0
  %v5458 = vpop.f32.mrb[0].mxu0
  %v5459 = vadd.f32 0.0, %v5458
  %v5460 = vpop.f32.mrb[0].mxu0
  %5461 = vmatprep.mubr.bf16.mxu0 %v5396
  %5462 = vmatmul.mubr.bf16.gmra.mrb[0].mxu0 %v5305
  %v5463 = vpop.f32.mrb[0].mxu0
  %v5464 = vadd.f32 0.0, %v5463
  %v5465 = vpop.f32.mrb[0].mxu0
  %v5466 = vpop.f32.mrb[0].mxu0
  %v5467 = vadd.f32 0.0, %v5466
  %v5468 = vpop.f32.mrb[0].mxu0
  %5469 = vmatprep.mubr.bf16.mxu0 %v5399
  %5470 = vmatmul.mubr.bf16.gmra.mrb[0].mxu0 %v5307
  %v5471 = vpop.f32.mrb[0].mxu0
  %v5472 = vadd.f32 0.0, %v5471
  %v5473 = vpop.f32.mrb[0].mxu0
  %v5474 = vpop.f32.mrb[0].mxu0
  %v5475 = vadd.f32 0.0, %v5474
  %v5476 = vpop.f32.mrb[0].mxu0
  %5477 = vmatprep.mubr.bf16.mxu0 %v5402
  %5478 = vmatmul.mubr.bf16.gmra.mrb[0].mxu0 %v5309
  %v5479 = vpop.f32.mrb[0].mxu0
  %v5480 = vadd.f32 0.0, %v5479
  %v5481 = vpop.f32.mrb[0].mxu0
  %v5482 = vpop.f32.mrb[0].mxu0
  %v5483 = vadd.f32 0.0, %v5482
  %v5484 = vpop.f32.mrb[0].mxu0
  %5485 = vmatprep.mubr.bf16.mxu0 %v5405
  %5486 = vmatmul.mubr.bf16.gmra.mrb[0].mxu0 %v5311
  %v5487 = vpop.f32.mrb[0].mxu0
  %v5488 = vadd.f32 0.0, %v5487
  %v5489 = vpop.f32.mrb[0].mxu0
  %v5490 = vpop.f32.mrb[0].mxu0
  %v5491 = vadd.f32 0.0, %v5490
  %v5492 = vpop.f32.mrb[0].mxu0
  %5493 = vmatprep.mubr.bf16.mxu0 %v5408
  %5494 = vmatmul.mubr.bf16.gmra.mrb[0].mxu0 %v5313
  %v5495 = vpop.f32.mrb[0].mxu0
  %v5496 = vadd.f32 0.0, %v5495
  %v5497 = vpop.f32.mrb[0].mxu0
  %v5498 = vpop.f32.mrb[0].mxu0
  %v5499 = vadd.f32 0.0, %v5498
  %v5500 = vpop.f32.mrb[0].mxu0
  %5501 = vmatprep.mubr.bf16.mxu0 %v5411
  %5502 = vmatmul.mubr.bf16.gmra.mrb[0].mxu0 %v5315
  %v5503 = vpop.f32.mrb[0].mxu0
  %v5504 = vadd.f32 0.0, %v5503
  %v5505 = vpop.f32.mrb[0].mxu0
  %v5506 = vpop.f32.mrb[0].mxu0
  %v5507 = vadd.f32 0.0, %v5506
  %v5508 = vpop.f32.mrb[0].mxu0
  %5509 = vdwg.mxu0
  %v5510 = vsel %vm74, %v5448, 0.0
  %v5511 = vsel %vm74, %v5451, 0.0
  %v5512 = vadd.f32 %v5510, %v5511
  %v5513 = vsel %vm74, %v5456, 0.0
  %v5514 = vadd.f32 %v5512, %v5513
  %v5515 = vsel %vm74, %v5459, 0.0
  %v5516 = vadd.f32 %v5514, %v5515
  %v5517 = vsel %vm74, %v5464, 0.0
  %v5518 = vadd.f32 %v5516, %v5517
  %v5519 = vsel %vm74, %v5467, 0.0
  %v5520 = vadd.f32 %v5518, %v5519
  %v5521 = vsel %vm74, %v5472, 0.0
  %v5522 = vadd.f32 %v5520, %v5521
  %v5523 = vsel %vm74, %v5475, 0.0
  %v5524 = vadd.f32 %v5522, %v5523
  %v5525 = vsel %vm74, %v5480, 0.0
  %v5526 = vadd.f32 %v5524, %v5525
  %v5527 = vsel %vm74, %v5483, 0.0
  %v5528 = vadd.f32 %v5526, %v5527
  %v5529 = vsel %vm74, %v5488, 0.0
  %v5530 = vadd.f32 %v5528, %v5529
  %v5531 = vsel %vm74, %v5491, 0.0
  %v5532 = vadd.f32 %v5530, %v5531
  %v5533 = vsel %vm74, %v5496, 0.0
  %v5534 = vadd.f32 %v5532, %v5533
  %v5535 = vsel %vm74, %v5499, 0.0
  %v5536 = vadd.f32 %v5534, %v5535
  %v5537 = vsel %vm74, %v5504, 0.0
  %v5538 = vadd.f32 %v5536, %v5537
  %v5539 = vsel %vm74, %v5507, 0.0
  %v5540 = vadd.f32 %v5538, %v5539
  %v5541 = vrot.slane %v5540, 4
  %v5542 = vadd.f32 %v5540, %v5541
  %v5543 = vrot.slane %v5542, 2
  %v5544 = vadd.f32 %v5542, %v5543
  %v5545 = vrot.slane %v5544, 1
  %v5546 = vadd.f32 %v5544, %v5545
  %v5547 = vmul.f32 %v5546, %v1062
  %v5548 = vmul.f32 %v5448, %v5448
  %v5549 = vmul.f32 %v5451, %v5451
  %v5550 = vmul.f32 %v5456, %v5456
  %v5551 = vmul.f32 %v5459, %v5459
  %v5552 = vmul.f32 %v5464, %v5464
  %v5553 = vmul.f32 %v5467, %v5467
  %v5554 = vmul.f32 %v5472, %v5472
  %v5555 = vmul.f32 %v5475, %v5475
  %v5556 = vmul.f32 %v5480, %v5480
  %v5557 = vmul.f32 %v5483, %v5483
  %v5558 = vmul.f32 %v5488, %v5488
  %v5559 = vmul.f32 %v5491, %v5491
  %v5560 = vmul.f32 %v5496, %v5496
  %v5561 = vmul.f32 %v5499, %v5499
  %v5562 = vmul.f32 %v5504, %v5504
  %v5563 = vmul.f32 %v5507, %v5507
  %v5564 = vsel %vm74, %v5548, 0.0
  %v5565 = vsel %vm74, %v5549, 0.0
  %v5566 = vadd.f32 %v5564, %v5565
  %v5567 = vsel %vm74, %v5550, 0.0
  %v5568 = vadd.f32 %v5566, %v5567
  %v5569 = vsel %vm74, %v5551, 0.0
  %v5570 = vadd.f32 %v5568, %v5569
  %v5571 = vsel %vm74, %v5552, 0.0
  %v5572 = vadd.f32 %v5570, %v5571
  %v5573 = vsel %vm74, %v5553, 0.0
  %v5574 = vadd.f32 %v5572, %v5573
  %v5575 = vsel %vm74, %v5554, 0.0
  %v5576 = vadd.f32 %v5574, %v5575
  %v5577 = vsel %vm74, %v5555, 0.0
  %v5578 = vadd.f32 %v5576, %v5577
  %v5579 = vsel %vm74, %v5556, 0.0
  %v5580 = vadd.f32 %v5578, %v5579
  %v5581 = vsel %vm74, %v5557, 0.0
  %v5582 = vadd.f32 %v5580, %v5581
  %v5583 = vsel %vm74, %v5558, 0.0
  %v5584 = vadd.f32 %v5582, %v5583
  %v5585 = vsel %vm74, %v5559, 0.0
  %v5586 = vadd.f32 %v5584, %v5585
  %v5587 = vsel %vm74, %v5560, 0.0
  %v5588 = vadd.f32 %v5586, %v5587
  %v5589 = vsel %vm74, %v5561, 0.0
  %v5590 = vadd.f32 %v5588, %v5589
  %v5591 = vsel %vm74, %v5562, 0.0
  %v5592 = vadd.f32 %v5590, %v5591
  %v5593 = vsel %vm74, %v5563, 0.0
  %v5594 = vadd.f32 %v5592, %v5593
  %v5595 = vrot.slane %v5594, 4
  %v5596 = vadd.f32 %v5594, %v5595
  %v5597 = vrot.slane %v5596, 2
  %v5598 = vadd.f32 %v5596, %v5597
  %v5599 = vrot.slane %v5598, 1
  %v5600 = vadd.f32 %v5598, %v5599
  %v5601 = vmul.f32 %v5600, %v1062
  %v5602 = vmul.f32 %v5547, %v5547
  %v5603 = vsub.f32 %v5601, %v5602
  %v5604 = vmax.f32 %v5603, 0.0
  %v5605 = vld [vmem:[%s14] sm:$0x1]
  %v5606 = vadd.f32 %v5604, 1e-05
  %v5607 = vrsqrt.pop %v5606
  %v5608 = vmul.f32 %v5605, %v5607
  %v5610 = vlaneseq
  %v5611 = vshrl.u32 %v5610, 7
  %v5612 = vsub.s32 0, %v5611
  %v5613 = vrot.slane %v5608, %v5612
  %v5615 = vmul.f32 %v5448, %v5613
  %v5616 = vmul.f32 %v5451, %v5613
  %v5617 = vmul.f32 %v5456, %v5613
  %v5618 = vmul.f32 %v5459, %v5613
  %v5619 = vmul.f32 %v5464, %v5613
  %v5620 = vmul.f32 %v5467, %v5613
  %v5621 = vmul.f32 %v5472, %v5613
  %v5622 = vmul.f32 %v5475, %v5613
  %v5623 = vmul.f32 %v5480, %v5613
  %v5624 = vmul.f32 %v5483, %v5613
  %v5625 = vmul.f32 %v5488, %v5613
  %v5626 = vmul.f32 %v5491, %v5613
  %v5627 = vmul.f32 %v5496, %v5613
  %v5628 = vmul.f32 %v5499, %v5613
  %v5629 = vmul.f32 %v5504, %v5613
  %v5630 = vmul.f32 %v5507, %v5613
  %v5631 = vld [vmem:[%s15] sm:$0x1]
  %v5632 = vmul.f32 %v5547, %v5608
  %v5633 = vsub.f32 %v5631, %v5632
  %v5635 = vlaneseq
  %v5636 = vshrl.u32 %v5635, 7
  %v5637 = vsub.s32 0, %v5636
  %v5638 = vrot.slane %v5633, %v5637
  %v5640 = vadd.f32 %v5615, %v5638
  %v5641 = vadd.f32 %v5616, %v5638
  %v5642 = vadd.f32 %v5617, %v5638
  %v5643 = vadd.f32 %v5618, %v5638
  %v5644 = vadd.f32 %v5619, %v5638
  %v5645 = vadd.f32 %v5620, %v5638
  %v5646 = vadd.f32 %v5621, %v5638
  %v5647 = vadd.f32 %v5622, %v5638
  %v5648 = vadd.f32 %v5623, %v5638
  %v5649 = vadd.f32 %v5624, %v5638
  %v5650 = vadd.f32 %v5625, %v5638
  %v5651 = vadd.f32 %v5626, %v5638
  %v5652 = vadd.f32 %v5627, %v5638
  %v5653 = vadd.f32 %v5628, %v5638
  %v5654 = vadd.f32 %v5629, %v5638
  %v5655 = vadd.f32 %v5630, %v5638
  %v5656 = vadd.f32 %v5640, %v3426
  %v5657 = vadd.f32 %v5641, %v3427
  %v5658 = vadd.f32 %v5642, %v3428
  %v5659 = vadd.f32 %v5643, %v3429
  %v5660 = vadd.f32 %v5644, %v3430
  %v5661 = vadd.f32 %v5645, %v3431
  %v5662 = vadd.f32 %v5646, %v3432
  %v5663 = vadd.f32 %v5647, %v3433
  %v5664 = vadd.f32 %v5648, %v3434
  %v5665 = vadd.f32 %v5649, %v3435
  %v5666 = vadd.f32 %v5650, %v3436
  %v5667 = vadd.f32 %v5651, %v3437
  %v5668 = vadd.f32 %v5652, %v3438
  %v5669 = vadd.f32 %v5653, %v3439
  %v5670 = vadd.f32 %v5654, %v3440
  %v5671 = vadd.f32 %v5655, %v3441
  %v5672 = vmax.f32 %v5656, 0.0
  %v5673 = vmax.f32 %v5657, 0.0
  %v5674 = vmax.f32 %v5658, 0.0
  %v5675 = vmax.f32 %v5659, 0.0
  %v5676 = vmax.f32 %v5660, 0.0
  %v5677 = vmax.f32 %v5661, 0.0
  %v5678 = vmax.f32 %v5662, 0.0
  %v5679 = vmax.f32 %v5663, 0.0
  %v5680 = vmax.f32 %v5664, 0.0
  %v5681 = vmax.f32 %v5665, 0.0
  %v5682 = vmax.f32 %v5666, 0.0
  %v5683 = vmax.f32 %v5667, 0.0
  %v5684 = vmax.f32 %v5668, 0.0
  %v5685 = vmax.f32 %v5669, 0.0
  %v5686 = vmax.f32 %v5670, 0.0
  %v5687 = vmax.f32 %v5671, 0.0
  %5688 = vst.msk [vmem:[%s1188 + $0x1] sm:$0xff] %vm74, %v5672
  %5689 = vst.msk [vmem:[%s1188 + $0x11] sm:$0xff] %vm74, %v5673
  %5690 = vst.msk [vmem:[%s1188 + $0x21] sm:$0xff] %vm74, %v5674
  %5691 = vst.msk [vmem:[%s1188 + $0x31] sm:$0xff] %vm74, %v5675
  %5692 = vst.msk [vmem:[%s1188 + $0x41] sm:$0xff] %vm74, %v5676
  %5693 = vst.msk [vmem:[%s1188 + $0x51] sm:$0xff] %vm74, %v5677
  %5694 = vst.msk [vmem:[%s1188 + $0x61] sm:$0xff] %vm74, %v5678
  %5695 = vst.msk [vmem:[%s1188 + $0x71] sm:$0xff] %vm74, %v5679
  %5696 = vst.msk [vmem:[%s1188 + $0xa1] sm:$0xff] %vm74, %v5680
  %5697 = vst.msk [vmem:[%s1188 + $0xb1] sm:$0xff] %vm74, %v5681
  %5698 = vst.msk [vmem:[%s1188 + $0xc1] sm:$0xff] %vm74, %v5682
  %5699 = vst.msk [vmem:[%s1188 + $0xd1] sm:$0xff] %vm74, %v5683
  %5700 = vst.msk [vmem:[%s1188 + $0xe1] sm:$0xff] %vm74, %v5684
  %5701 = vst.msk [vmem:[%s1188 + $0xf1] sm:$0xff] %vm74, %v5685
  %5702 = vst.msk [vmem:[%s1188 + $0x101] sm:$0xff] %vm74, %v5686
  %5703 = vst.msk [vmem:[%s1188 + $0x111] sm:$0xff] %vm74, %v5687
  %v5704 = vld [vmem:[#allocation2] sm:$0xff]
  %v5705 = vld [vmem:[#allocation2 + $0x8] sm:$0x3]
  %v5706 = vld [vmem:[#allocation2 + $0x10] sm:$0xff]
  %v5707 = vld [vmem:[#allocation2 + $0x18] sm:$0x3]
  %v5708 = vld [vmem:[#allocation2 + $0x20] sm:$0xff]
  %v5709 = vld [vmem:[#allocation2 + $0x28] sm:$0x3]
  %v5710 = vld [vmem:[#allocation2 + $0x30] sm:$0xff]
  %v5711 = vld [vmem:[#allocation2 + $0x38] sm:$0x3]
  %v5712 = vld [vmem:[#allocation2 + $0x40] sm:$0xff]
  %v5713 = vld [vmem:[#allocation2 + $0x48] sm:$0x3]
  %v5714 = vld [vmem:[#allocation2 + $0x50] sm:$0xff]
  %v5715 = vld [vmem:[#allocation2 + $0x58] sm:$0x3]
  %v5716 = vld [vmem:[#allocation2 + $0x60] sm:$0xff]
  %v5717 = vld [vmem:[#allocation2 + $0x68] sm:$0x3]
  %v5718 = vld [vmem:[#allocation2 + $0x70] sm:$0xff]
  %v5719 = vld [vmem:[#allocation2 + $0x78] sm:$0x3]
  %v5720 = vld [vmem:[#allocation2 + $0x80] sm:$0xff]
  %v5721 = vld [vmem:[#allocation2 + $0x88] sm:$0x3]
  %v5722 = vld [vmem:[#allocation2 + $0x90] sm:$0xff]
  %v5723 = vld [vmem:[#allocation2 + $0x98] sm:$0x3]
  %v5724 = vld [vmem:[#allocation2 + $0xa0] sm:$0xff]
  %v5725 = vld [vmem:[#allocation2 + $0xa8] sm:$0x3]
  %v5726 = vld [vmem:[#allocation2 + $0xb0] sm:$0xff]
  %v5727 = vld [vmem:[#allocation2 + $0xb8] sm:$0x3]
  %v5728 = vld [vmem:[#allocation2 + $0xc0] sm:$0xff]
  %v5729 = vld [vmem:[#allocation2 + $0xc8] sm:$0x3]
  %v5730 = vld [vmem:[#allocation2 + $0xd0] sm:$0xff]
  %v5731 = vld [vmem:[#allocation2 + $0xd8] sm:$0x3]
  %v5732 = vld [vmem:[#allocation2 + $0xe0] sm:$0xff]
  %v5733 = vld [vmem:[#allocation2 + $0xe8] sm:$0x3]
  %v5734 = vld [vmem:[#allocation2 + $0xf0] sm:$0xff]
  %v5735 = vld [vmem:[#allocation2 + $0xf8] sm:$0x3]
  %v5736 = vld [vmem:[#allocation2 + $0x100] sm:$0xff]
  %v5737 = vld [vmem:[#allocation2 + $0x108] sm:$0x3]
  %v5738 = vld [vmem:[#allocation2 + $0x110] sm:$0xff]
  %v5739 = vld [vmem:[#allocation2 + $0x118] sm:$0x3]
  %v5740 = vld [vmem:[#allocation2 + $0x120] sm:$0xff]
  %v5741 = vld [vmem:[#allocation2 + $0x128] sm:$0x3]
  %v5742 = vld [vmem:[#allocation2 + $0x130] sm:$0xff]
  %v5743 = vld [vmem:[#allocation2 + $0x138] sm:$0x3]
  %5744 = vst.msk [vmem:[#allocation3] sm:$0xff] %vm74, %v5704
  %5745 = vst.msk [vmem:[#allocation3 + $0x10] sm:$0xff] %vm74, %v5706
  %5746 = vst.msk [vmem:[#allocation3 + $0x20] sm:$0xff] %vm74, %v5708
  %5747 = vst.msk [vmem:[#allocation3 + $0x30] sm:$0xff] %vm74, %v5710
  %5748 = vst.msk [vmem:[#allocation3 + $0x40] sm:$0xff] %vm74, %v5712
  %5749 = vst.msk [vmem:[#allocation3 + $0x50] sm:$0xff] %vm74, %v5714
  %5750 = vst.msk [vmem:[#allocation3 + $0x60] sm:$0xff] %vm74, %v5716
  %5751 = vst.msk [vmem:[#allocation3 + $0x70] sm:$0xff] %vm74, %v5718
  %5752 = vst.msk [vmem:[#allocation3 + $0x80] sm:$0xff] %vm74, %v5724
  %5753 = vst.msk [vmem:[#allocation3 + $0x90] sm:$0xff] %vm74, %v5726
  %5754 = vst.msk [vmem:[#allocation3 + $0xa0] sm:$0xff] %vm74, %v5728
  %5755 = vst.msk [vmem:[#allocation3 + $0xb0] sm:$0xff] %vm74, %v5730
  %5756 = vst.msk [vmem:[#allocation3 + $0xc0] sm:$0xff] %vm74, %v5732
  %5757 = vst.msk [vmem:[#allocation3 + $0xd0] sm:$0xff] %vm74, %v5734
  %5758 = vst.msk [vmem:[#allocation3 + $0xe0] sm:$0xff] %vm74, %v5736
  %5759 = vst.msk [vmem:[#allocation3 + $0xf0] sm:$0xff] %vm74, %v5738
  %v5792 = vrot.slane %v5704, 1
  %v5793 = vrot.slane %v5705, 1
  %v5794 = vsel %vm205, %v5792, %v5793
  %v5795 = vrot.slane %v5706, 1
  %v5796 = vrot.slane %v5707, 1
  %v5797 = vsel %vm205, %v5795, %v5796
  %v5798 = vrot.slane %v5708, 1
  %v5799 = vrot.slane %v5709, 1
  %v5800 = vsel %vm205, %v5798, %v5799
  %v5801 = vrot.slane %v5710, 1
  %v5802 = vrot.slane %v5711, 1
  %v5803 = vsel %vm205, %v5801, %v5802
  %v5804 = vrot.slane %v5712, 1
  %v5805 = vrot.slane %v5713, 1
  %v5806 = vsel %vm205, %v5804, %v5805
  %v5807 = vrot.slane %v5714, 1
  %v5808 = vrot.slane %v5715, 1
  %v5809 = vsel %vm205, %v5807, %v5808
  %v5810 = vrot.slane %v5716, 1
  %v5811 = vrot.slane %v5717, 1
  %v5812 = vsel %vm205, %v5810, %v5811
  %v5813 = vrot.slane %v5718, 1
  %v5814 = vrot.slane %v5719, 1
  %v5815 = vsel %vm205, %v5813, %v5814
  %v5816 = vrot.slane %v5724, 1
  %v5817 = vrot.slane %v5725, 1
  %v5818 = vsel %vm205, %v5816, %v5817
  %v5819 = vrot.slane %v5726, 1
  %v5820 = vrot.slane %v5727, 1
  %v5821 = vsel %vm205, %v5819, %v5820
  %v5822 = vrot.slane %v5728, 1
  %v5823 = vrot.slane %v5729, 1
  %v5824 = vsel %vm205, %v5822, %v5823
  %v5825 = vrot.slane %v5730, 1
  %v5826 = vrot.slane %v5731, 1
  %v5827 = vsel %vm205, %v5825, %v5826
  %v5828 = vrot.slane %v5732, 1
  %v5829 = vrot.slane %v5733, 1
  %v5830 = vsel %vm205, %v5828, %v5829
  %v5831 = vrot.slane %v5734, 1
  %v5832 = vrot.slane %v5735, 1
  %v5833 = vsel %vm205, %v5831, %v5832
  %v5834 = vrot.slane %v5736, 1
  %v5835 = vrot.slane %v5737, 1
  %v5836 = vsel %vm205, %v5834, %v5835
  %v5837 = vrot.slane %v5738, 1
  %v5838 = vrot.slane %v5739, 1
  %v5839 = vsel %vm205, %v5837, %v5838
  %5840 = vrot.lane.b32.xlu0 %v5794, 16
  %v5841 = vpop.permute.xlu0 %5840
  %5842 = vrot.lane.b32.xlu0 %v5797, 16
  %v5843 = vpop.permute.xlu0 %5842
  %5844 = vrot.lane.b32.xlu0 %v5800, 16
  %v5845 = vpop.permute.xlu0 %5844
  %5846 = vrot.lane.b32.xlu0 %v5803, 16
  %v5847 = vpop.permute.xlu0 %5846
  %5848 = vrot.lane.b32.xlu0 %v5806, 16
  %v5849 = vpop.permute.xlu0 %5848
  %5850 = vrot.lane.b32.xlu0 %v5809, 16
  %v5851 = vpop.permute.xlu0 %5850
  %5852 = vrot.lane.b32.xlu0 %v5812, 16
  %v5853 = vpop.permute.xlu0 %5852
  %5854 = vrot.lane.b32.xlu0 %v5815, 16
  %v5855 = vpop.permute.xlu0 %5854
  %5856 = vrot.lane.b32.xlu0 %v5818, 16
  %v5857 = vpop.permute.xlu0 %5856
  %5858 = vrot.lane.b32.xlu0 %v5821, 16
  %v5859 = vpop.permute.xlu0 %5858
  %5860 = vrot.lane.b32.xlu0 %v5824, 16
  %v5861 = vpop.permute.xlu0 %5860
  %5862 = vrot.lane.b32.xlu0 %v5827, 16
  %v5863 = vpop.permute.xlu0 %5862
  %5864 = vrot.lane.b32.xlu0 %v5830, 16
  %v5865 = vpop.permute.xlu0 %5864
  %5866 = vrot.lane.b32.xlu0 %v5833, 16
  %v5867 = vpop.permute.xlu0 %5866
  %5868 = vrot.lane.b32.xlu0 %v5836, 16
  %v5869 = vpop.permute.xlu0 %5868
  %5870 = vrot.lane.b32.xlu0 %v5839, 16
  %v5871 = vpop.permute.xlu0 %5870
  %5888 = vst.msk [vmem:[#allocation3] sm:$0xff] %vm1389, %v5841
  %5889 = vst.msk [vmem:[#allocation3 + $0x10] sm:$0xff] %vm1389, %v5843
  %5890 = vst.msk [vmem:[#allocation3 + $0x20] sm:$0xff] %vm1389, %v5845
  %5891 = vst.msk [vmem:[#allocation3 + $0x30] sm:$0xff] %vm1389, %v5847
  %5892 = vst.msk [vmem:[#allocation3 + $0x40] sm:$0xff] %vm1389, %v5849
  %5893 = vst.msk [vmem:[#allocation3 + $0x50] sm:$0xff] %vm1389, %v5851
  %5894 = vst.msk [vmem:[#allocation3 + $0x60] sm:$0xff] %vm1389, %v5853
  %5895 = vst.msk [vmem:[#allocation3 + $0x70] sm:$0xff] %vm1389, %v5855
  %5896 = vst.msk [vmem:[#allocation3 + $0x80] sm:$0xff] %vm1389, %v5857
  %5897 = vst.msk [vmem:[#allocation3 + $0x90] sm:$0xff] %vm1389, %v5859
  %5898 = vst.msk [vmem:[#allocation3 + $0xa0] sm:$0xff] %vm1389, %v5861
  %5899 = vst.msk [vmem:[#allocation3 + $0xb0] sm:$0xff] %vm1389, %v5863
  %5900 = vst.msk [vmem:[#allocation3 + $0xc0] sm:$0xff] %vm1389, %v5865
  %5901 = vst.msk [vmem:[#allocation3 + $0xd0] sm:$0xff] %vm1389, %v5867
  %5902 = vst.msk [vmem:[#allocation3 + $0xe0] sm:$0xff] %vm1389, %v5869
  %5903 = vst.msk [vmem:[#allocation3 + $0xf0] sm:$0xff] %vm1389, %v5871
  %v5904 = vrot.slane %v5704, 2
  %v5905 = vrot.slane %v5705, 2
  %v5906 = vsel %vm319, %v5904, %v5905
  %v5907 = vrot.slane %v5706, 2
  %v5908 = vrot.slane %v5707, 2
  %v5909 = vsel %vm319, %v5907, %v5908
  %v5910 = vrot.slane %v5708, 2
  %v5911 = vrot.slane %v5709, 2
  %v5912 = vsel %vm319, %v5910, %v5911
  %v5913 = vrot.slane %v5710, 2
  %v5914 = vrot.slane %v5711, 2
  %v5915 = vsel %vm319, %v5913, %v5914
  %v5916 = vrot.slane %v5712, 2
  %v5917 = vrot.slane %v5713, 2
  %v5918 = vsel %vm319, %v5916, %v5917
  %v5919 = vrot.slane %v5714, 2
  %v5920 = vrot.slane %v5715, 2
  %v5921 = vsel %vm319, %v5919, %v5920
  %v5922 = vrot.slane %v5716, 2
  %v5923 = vrot.slane %v5717, 2
  %v5924 = vsel %vm319, %v5922, %v5923
  %v5925 = vrot.slane %v5718, 2
  %v5926 = vrot.slane %v5719, 2
  %v5927 = vsel %vm319, %v5925, %v5926
  %v5928 = vrot.slane %v5724, 2
  %v5929 = vrot.slane %v5725, 2
  %v5930 = vsel %vm319, %v5928, %v5929
  %v5931 = vrot.slane %v5726, 2
  %v5932 = vrot.slane %v5727, 2
  %v5933 = vsel %vm319, %v5931, %v5932
  %v5934 = vrot.slane %v5728, 2
  %v5935 = vrot.slane %v5729, 2
  %v5936 = vsel %vm319, %v5934, %v5935
  %v5937 = vrot.slane %v5730, 2
  %v5938 = vrot.slane %v5731, 2
  %v5939 = vsel %vm319, %v5937, %v5938
  %v5940 = vrot.slane %v5732, 2
  %v5941 = vrot.slane %v5733, 2
  %v5942 = vsel %vm319, %v5940, %v5941
  %v5943 = vrot.slane %v5734, 2
  %v5944 = vrot.slane %v5735, 2
  %v5945 = vsel %vm319, %v5943, %v5944
  %v5946 = vrot.slane %v5736, 2
  %v5947 = vrot.slane %v5737, 2
  %v5948 = vsel %vm319, %v5946, %v5947
  %v5949 = vrot.slane %v5738, 2
  %v5950 = vrot.slane %v5739, 2
  %v5951 = vsel %vm319, %v5949, %v5950
  %5952 = vrot.lane.b32.xlu0 %v5906, 32
  %v5953 = vpop.permute.xlu0 %5952
  %5954 = vrot.lane.b32.xlu0 %v5909, 32
  %v5955 = vpop.permute.xlu0 %5954
  %5956 = vrot.lane.b32.xlu0 %v5912, 32
  %v5957 = vpop.permute.xlu0 %5956
  %5958 = vrot.lane.b32.xlu0 %v5915, 32
  %v5959 = vpop.permute.xlu0 %5958
  %5960 = vrot.lane.b32.xlu0 %v5918, 32
  %v5961 = vpop.permute.xlu0 %5960
  %5962 = vrot.lane.b32.xlu0 %v5921, 32
  %v5963 = vpop.permute.xlu0 %5962
  %5964 = vrot.lane.b32.xlu0 %v5924, 32
  %v5965 = vpop.permute.xlu0 %5964
  %5966 = vrot.lane.b32.xlu0 %v5927, 32
  %v5967 = vpop.permute.xlu0 %5966
  %5968 = vrot.lane.b32.xlu0 %v5930, 32
  %v5969 = vpop.permute.xlu0 %5968
  %5970 = vrot.lane.b32.xlu0 %v5933, 32
  %v5971 = vpop.permute.xlu0 %5970
  %5972 = vrot.lane.b32.xlu0 %v5936, 32
  %v5973 = vpop.permute.xlu0 %5972
  %5974 = vrot.lane.b32.xlu0 %v5939, 32
  %v5975 = vpop.permute.xlu0 %5974
  %5976 = vrot.lane.b32.xlu0 %v5942, 32
  %v5977 = vpop.permute.xlu0 %5976
  %5978 = vrot.lane.b32.xlu0 %v5945, 32
  %v5979 = vpop.permute.xlu0 %5978
  %5980 = vrot.lane.b32.xlu0 %v5948, 32
  %v5981 = vpop.permute.xlu0 %5980
  %5982 = vrot.lane.b32.xlu0 %v5951, 32
  %v5983 = vpop.permute.xlu0 %5982
  %6000 = vst.msk [vmem:[#allocation3] sm:$0xff] %vm1502, %v5953
  %6001 = vst.msk [vmem:[#allocation3 + $0x10] sm:$0xff] %vm1502, %v5955
  %6002 = vst.msk [vmem:[#allocation3 + $0x20] sm:$0xff] %vm1502, %v5957
  %6003 = vst.msk [vmem:[#allocation3 + $0x30] sm:$0xff] %vm1502, %v5959
  %6004 = vst.msk [vmem:[#allocation3 + $0x40] sm:$0xff] %vm1502, %v5961
  %6005 = vst.msk [vmem:[#allocation3 + $0x50] sm:$0xff] %vm1502, %v5963
  %6006 = vst.msk [vmem:[#allocation3 + $0x60] sm:$0xff] %vm1502, %v5965
  %6007 = vst.msk [vmem:[#allocation3 + $0x70] sm:$0xff] %vm1502, %v5967
  %6008 = vst.msk [vmem:[#allocation3 + $0x80] sm:$0xff] %vm1502, %v5969
  %6009 = vst.msk [vmem:[#allocation3 + $0x90] sm:$0xff] %vm1502, %v5971
  %6010 = vst.msk [vmem:[#allocation3 + $0xa0] sm:$0xff] %vm1502, %v5973
  %6011 = vst.msk [vmem:[#allocation3 + $0xb0] sm:$0xff] %vm1502, %v5975
  %6012 = vst.msk [vmem:[#allocation3 + $0xc0] sm:$0xff] %vm1502, %v5977
  %6013 = vst.msk [vmem:[#allocation3 + $0xd0] sm:$0xff] %vm1502, %v5979
  %6014 = vst.msk [vmem:[#allocation3 + $0xe0] sm:$0xff] %vm1502, %v5981
  %6015 = vst.msk [vmem:[#allocation3 + $0xf0] sm:$0xff] %vm1502, %v5983
  %6018 = vrot.lane.b32.xlu0 %v5706, 48
  %v6019 = vpop.permute.xlu0 %6018
  %6020 = vrot.lane.b32.xlu0 %v5708, 48
  %v6021 = vpop.permute.xlu0 %6020
  %6022 = vrot.lane.b32.xlu0 %v5710, 48
  %v6023 = vpop.permute.xlu0 %6022
  %6024 = vrot.lane.b32.xlu0 %v5712, 48
  %v6025 = vpop.permute.xlu0 %6024
  %6026 = vrot.lane.b32.xlu0 %v5714, 48
  %v6027 = vpop.permute.xlu0 %6026
  %6028 = vrot.lane.b32.xlu0 %v5716, 48
  %v6029 = vpop.permute.xlu0 %6028
  %6030 = vrot.lane.b32.xlu0 %v5718, 48
  %v6031 = vpop.permute.xlu0 %6030
  %6032 = vrot.lane.b32.xlu0 %v5720, 48
  %v6033 = vpop.permute.xlu0 %6032
  %6034 = vrot.lane.b32.xlu0 %v5726, 48
  %v6035 = vpop.permute.xlu0 %6034
  %6036 = vrot.lane.b32.xlu0 %v5728, 48
  %v6037 = vpop.permute.xlu0 %6036
  %6038 = vrot.lane.b32.xlu0 %v5730, 48
  %v6039 = vpop.permute.xlu0 %6038
  %6040 = vrot.lane.b32.xlu0 %v5732, 48
  %v6041 = vpop.permute.xlu0 %6040
  %6042 = vrot.lane.b32.xlu0 %v5734, 48
  %v6043 = vpop.permute.xlu0 %6042
  %6044 = vrot.lane.b32.xlu0 %v5736, 48
  %v6045 = vpop.permute.xlu0 %6044
  %6046 = vrot.lane.b32.xlu0 %v5738, 48
  %v6047 = vpop.permute.xlu0 %6046
  %6048 = vrot.lane.b32.xlu0 %v5740, 48
  %v6049 = vpop.permute.xlu0 %6048
  %6066 = vst.msk [vmem:[#allocation3] sm:$0xff] %vm1569, %v6019
  %6067 = vst.msk [vmem:[#allocation3 + $0x10] sm:$0xff] %vm1569, %v6021
  %6068 = vst.msk [vmem:[#allocation3 + $0x20] sm:$0xff] %vm1569, %v6023
  %6069 = vst.msk [vmem:[#allocation3 + $0x30] sm:$0xff] %vm1569, %v6025
  %6070 = vst.msk [vmem:[#allocation3 + $0x40] sm:$0xff] %vm1569, %v6027
  %6071 = vst.msk [vmem:[#allocation3 + $0x50] sm:$0xff] %vm1569, %v6029
  %6072 = vst.msk [vmem:[#allocation3 + $0x60] sm:$0xff] %vm1569, %v6031
  %6073 = vst.msk [vmem:[#allocation3 + $0x70] sm:$0xff] %vm1569, %v6033
  %6074 = vst.msk [vmem:[#allocation3 + $0x80] sm:$0xff] %vm1569, %v6035
  %6075 = vst.msk [vmem:[#allocation3 + $0x90] sm:$0xff] %vm1569, %v6037
  %6076 = vst.msk [vmem:[#allocation3 + $0xa0] sm:$0xff] %vm1569, %v6039
  %6077 = vst.msk [vmem:[#allocation3 + $0xb0] sm:$0xff] %vm1569, %v6041
  %6078 = vst.msk [vmem:[#allocation3 + $0xc0] sm:$0xff] %vm1569, %v6043
  %6079 = vst.msk [vmem:[#allocation3 + $0xd0] sm:$0xff] %vm1569, %v6045
  %6080 = vst.msk [vmem:[#allocation3 + $0xe0] sm:$0xff] %vm1569, %v6047
  %6081 = vst.msk [vmem:[#allocation3 + $0xf0] sm:$0xff] %vm1569, %v6049
  %v6084 = vrot.slane %v5720, 1
  %v6085 = vrot.slane %v5721, 1
  %v6086 = vsel %vm205, %v6084, %v6085
  %v6087 = vrot.slane %v5740, 1
  %v6088 = vrot.slane %v5741, 1
  %v6089 = vsel %vm205, %v6087, %v6088
  %6090 = vrot.lane.b32.xlu0 %v5797, 64
  %v6091 = vpop.permute.xlu0 %6090
  %6092 = vrot.lane.b32.xlu0 %v5800, 64
  %v6093 = vpop.permute.xlu0 %6092
  %6094 = vrot.lane.b32.xlu0 %v5803, 64
  %v6095 = vpop.permute.xlu0 %6094
  %6096 = vrot.lane.b32.xlu0 %v5806, 64
  %v6097 = vpop.permute.xlu0 %6096
  %6098 = vrot.lane.b32.xlu0 %v5809, 64
  %v6099 = vpop.permute.xlu0 %6098
  %6100 = vrot.lane.b32.xlu0 %v5812, 64
  %v6101 = vpop.permute.xlu0 %6100
  %6102 = vrot.lane.b32.xlu0 %v5815, 64
  %v6103 = vpop.permute.xlu0 %6102
  %6104 = vrot.lane.b32.xlu0 %v6086, 64
  %v6105 = vpop.permute.xlu0 %6104
  %6106 = vrot.lane.b32.xlu0 %v5821, 64
  %v6107 = vpop.permute.xlu0 %6106
  %6108 = vrot.lane.b32.xlu0 %v5824, 64
  %v6109 = vpop.permute.xlu0 %6108
  %6110 = vrot.lane.b32.xlu0 %v5827, 64
  %v6111 = vpop.permute.xlu0 %6110
  %6112 = vrot.lane.b32.xlu0 %v5830, 64
  %v6113 = vpop.permute.xlu0 %6112
  %6114 = vrot.lane.b32.xlu0 %v5833, 64
  %v6115 = vpop.permute.xlu0 %6114
  %6116 = vrot.lane.b32.xlu0 %v5836, 64
  %v6117 = vpop.permute.xlu0 %6116
  %6118 = vrot.lane.b32.xlu0 %v5839, 64
  %v6119 = vpop.permute.xlu0 %6118
  %6120 = vrot.lane.b32.xlu0 %v6089, 64
  %v6121 = vpop.permute.xlu0 %6120
  %6138 = vst.msk [vmem:[#allocation3] sm:$0xff] %vm1642, %v6091
  %6139 = vst.msk [vmem:[#allocation3 + $0x10] sm:$0xff] %vm1642, %v6093
  %6140 = vst.msk [vmem:[#allocation3 + $0x20] sm:$0xff] %vm1642, %v6095
  %6141 = vst.msk [vmem:[#allocation3 + $0x30] sm:$0xff] %vm1642, %v6097
  %6142 = vst.msk [vmem:[#allocation3 + $0x40] sm:$0xff] %vm1642, %v6099
  %6143 = vst.msk [vmem:[#allocation3 + $0x50] sm:$0xff] %vm1642, %v6101
  %6144 = vst.msk [vmem:[#allocation3 + $0x60] sm:$0xff] %vm1642, %v6103
  %6145 = vst.msk [vmem:[#allocation3 + $0x70] sm:$0xff] %vm1642, %v6105
  %6146 = vst.msk [vmem:[#allocation3 + $0x80] sm:$0xff] %vm1642, %v6107
  %6147 = vst.msk [vmem:[#allocation3 + $0x90] sm:$0xff] %vm1642, %v6109
  %6148 = vst.msk [vmem:[#allocation3 + $0xa0] sm:$0xff] %vm1642, %v6111
  %6149 = vst.msk [vmem:[#allocation3 + $0xb0] sm:$0xff] %vm1642, %v6113
  %6150 = vst.msk [vmem:[#allocation3 + $0xc0] sm:$0xff] %vm1642, %v6115
  %6151 = vst.msk [vmem:[#allocation3 + $0xd0] sm:$0xff] %vm1642, %v6117
  %6152 = vst.msk [vmem:[#allocation3 + $0xe0] sm:$0xff] %vm1642, %v6119
  %6153 = vst.msk [vmem:[#allocation3 + $0xf0] sm:$0xff] %vm1642, %v6121
  %v6154 = vrot.slane %v5720, 2
  %v6155 = vrot.slane %v5721, 2
  %v6156 = vsel %vm319, %v6154, %v6155
  %v6157 = vrot.slane %v5740, 2
  %v6158 = vrot.slane %v5741, 2
  %v6159 = vsel %vm319, %v6157, %v6158
  %6160 = vrot.lane.b32.xlu0 %v5909, 80
  %v6161 = vpop.permute.xlu0 %6160
  %6162 = vrot.lane.b32.xlu0 %v5912, 80
  %v6163 = vpop.permute.xlu0 %6162
  %6164 = vrot.lane.b32.xlu0 %v5915, 80
  %v6165 = vpop.permute.xlu0 %6164
  %6166 = vrot.lane.b32.xlu0 %v5918, 80
  %v6167 = vpop.permute.xlu0 %6166
  %6168 = vrot.lane.b32.xlu0 %v5921, 80
  %v6169 = vpop.permute.xlu0 %6168
  %6170 = vrot.lane.b32.xlu0 %v5924, 80
  %v6171 = vpop.permute.xlu0 %6170
  %6172 = vrot.lane.b32.xlu0 %v5927, 80
  %v6173 = vpop.permute.xlu0 %6172
  %6174 = vrot.lane.b32.xlu0 %v6156, 80
  %v6175 = vpop.permute.xlu0 %6174
  %6176 = vrot.lane.b32.xlu0 %v5933, 80
  %v6177 = vpop.permute.xlu0 %6176
  %6178 = vrot.lane.b32.xlu0 %v5936, 80
  %v6179 = vpop.permute.xlu0 %6178
  %6180 = vrot.lane.b32.xlu0 %v5939, 80
  %v6181 = vpop.permute.xlu0 %6180
  %6182 = vrot.lane.b32.xlu0 %v5942, 80
  %v6183 = vpop.permute.xlu0 %6182
  %6184 = vrot.lane.b32.xlu0 %v5945, 80
  %v6185 = vpop.permute.xlu0 %6184
  %6186 = vrot.lane.b32.xlu0 %v5948, 80
  %v6187 = vpop.permute.xlu0 %6186
  %6188 = vrot.lane.b32.xlu0 %v5951, 80
  %v6189 = vpop.permute.xlu0 %6188
  %6190 = vrot.lane.b32.xlu0 %v6159, 80
  %v6191 = vpop.permute.xlu0 %6190
  %6208 = vst.msk [vmem:[#allocation3] sm:$0xff] %vm1713, %v6161
  %6209 = vst.msk [vmem:[#allocation3 + $0x10] sm:$0xff] %vm1713, %v6163
  %6210 = vst.msk [vmem:[#allocation3 + $0x20] sm:$0xff] %vm1713, %v6165
  %6211 = vst.msk [vmem:[#allocation3 + $0x30] sm:$0xff] %vm1713, %v6167
  %6212 = vst.msk [vmem:[#allocation3 + $0x40] sm:$0xff] %vm1713, %v6169
  %6213 = vst.msk [vmem:[#allocation3 + $0x50] sm:$0xff] %vm1713, %v6171
  %6214 = vst.msk [vmem:[#allocation3 + $0x60] sm:$0xff] %vm1713, %v6173
  %6215 = vst.msk [vmem:[#allocation3 + $0x70] sm:$0xff] %vm1713, %v6175
  %6216 = vst.msk [vmem:[#allocation3 + $0x80] sm:$0xff] %vm1713, %v6177
  %6217 = vst.msk [vmem:[#allocation3 + $0x90] sm:$0xff] %vm1713, %v6179
  %6218 = vst.msk [vmem:[#allocation3 + $0xa0] sm:$0xff] %vm1713, %v6181
  %6219 = vst.msk [vmem:[#allocation3 + $0xb0] sm:$0xff] %vm1713, %v6183
  %6220 = vst.msk [vmem:[#allocation3 + $0xc0] sm:$0xff] %vm1713, %v6185
  %6221 = vst.msk [vmem:[#allocation3 + $0xd0] sm:$0xff] %vm1713, %v6187
  %6222 = vst.msk [vmem:[#allocation3 + $0xe0] sm:$0xff] %vm1713, %v6189
  %6223 = vst.msk [vmem:[#allocation3 + $0xf0] sm:$0xff] %vm1713, %v6191
  %6226 = vrot.lane.b32.xlu0 %v5708, 96
  %v6227 = vpop.permute.xlu0 %6226
  %6228 = vrot.lane.b32.xlu0 %v5710, 96
  %v6229 = vpop.permute.xlu0 %6228
  %6230 = vrot.lane.b32.xlu0 %v5712, 96
  %v6231 = vpop.permute.xlu0 %6230
  %6232 = vrot.lane.b32.xlu0 %v5714, 96
  %v6233 = vpop.permute.xlu0 %6232
  %6234 = vrot.lane.b32.xlu0 %v5716, 96
  %v6235 = vpop.permute.xlu0 %6234
  %6236 = vrot.lane.b32.xlu0 %v5718, 96
  %v6237 = vpop.permute.xlu0 %6236
  %6238 = vrot.lane.b32.xlu0 %v5720, 96
  %v6239 = vpop.permute.xlu0 %6238
  %6240 = vrot.lane.b32.xlu0 %v5722, 96
  %v6241 = vpop.permute.xlu0 %6240
  %6242 = vrot.lane.b32.xlu0 %v5728, 96
  %v6243 = vpop.permute.xlu0 %6242
  %6244 = vrot.lane.b32.xlu0 %v5730, 96
  %v6245 = vpop.permute.xlu0 %6244
  %6246 = vrot.lane.b32.xlu0 %v5732, 96
  %v6247 = vpop.permute.xlu0 %6246
  %6248 = vrot.lane.b32.xlu0 %v5734, 96
  %v6249 = vpop.permute.xlu0 %6248
  %6250 = vrot.lane.b32.xlu0 %v5736, 96
  %v6251 = vpop.permute.xlu0 %6250
  %6252 = vrot.lane.b32.xlu0 %v5738, 96
  %v6253 = vpop.permute.xlu0 %6252
  %6254 = vrot.lane.b32.xlu0 %v5740, 96
  %v6255 = vpop.permute.xlu0 %6254
  %6256 = vrot.lane.b32.xlu0 %v5742, 96
  %v6257 = vpop.permute.xlu0 %6256
  %6274 = vst.msk [vmem:[#allocation3] sm:$0xff] %vm1780, %v6227
  %6275 = vst.msk [vmem:[#allocation3 + $0x10] sm:$0xff] %vm1780, %v6229
  %6276 = vst.msk [vmem:[#allocation3 + $0x20] sm:$0xff] %vm1780, %v6231
  %6277 = vst.msk [vmem:[#allocation3 + $0x30] sm:$0xff] %vm1780, %v6233
  %6278 = vst.msk [vmem:[#allocation3 + $0x40] sm:$0xff] %vm1780, %v6235
  %6279 = vst.msk [vmem:[#allocation3 + $0x50] sm:$0xff] %vm1780, %v6237
  %6280 = vst.msk [vmem:[#allocation3 + $0x60] sm:$0xff] %vm1780, %v6239
  %6281 = vst.msk [vmem:[#allocation3 + $0x70] sm:$0xff] %vm1780, %v6241
  %6282 = vst.msk [vmem:[#allocation3 + $0x80] sm:$0xff] %vm1780, %v6243
  %6283 = vst.msk [vmem:[#allocation3 + $0x90] sm:$0xff] %vm1780, %v6245
  %6284 = vst.msk [vmem:[#allocation3 + $0xa0] sm:$0xff] %vm1780, %v6247
  %6285 = vst.msk [vmem:[#allocation3 + $0xb0] sm:$0xff] %vm1780, %v6249
  %6286 = vst.msk [vmem:[#allocation3 + $0xc0] sm:$0xff] %vm1780, %v6251
  %6287 = vst.msk [vmem:[#allocation3 + $0xd0] sm:$0xff] %vm1780, %v6253
  %6288 = vst.msk [vmem:[#allocation3 + $0xe0] sm:$0xff] %vm1780, %v6255
  %6289 = vst.msk [vmem:[#allocation3 + $0xf0] sm:$0xff] %vm1780, %v6257
  %v6292 = vrot.slane %v5722, 1
  %v6293 = vrot.slane %v5723, 1
  %v6294 = vsel %vm205, %v6292, %v6293
  %v6295 = vrot.slane %v5742, 1
  %v6296 = vrot.slane %v5743, 1
  %v6297 = vsel %vm205, %v6295, %v6296
  %6298 = vrot.lane.b32.xlu0 %v5800, 112
  %v6299 = vpop.permute.xlu0 %6298
  %6300 = vrot.lane.b32.xlu0 %v5803, 112
  %v6301 = vpop.permute.xlu0 %6300
  %6302 = vrot.lane.b32.xlu0 %v5806, 112
  %v6303 = vpop.permute.xlu0 %6302
  %6304 = vrot.lane.b32.xlu0 %v5809, 112
  %v6305 = vpop.permute.xlu0 %6304
  %6306 = vrot.lane.b32.xlu0 %v5812, 112
  %v6307 = vpop.permute.xlu0 %6306
  %6308 = vrot.lane.b32.xlu0 %v5815, 112
  %v6309 = vpop.permute.xlu0 %6308
  %6310 = vrot.lane.b32.xlu0 %v6086, 112
  %v6311 = vpop.permute.xlu0 %6310
  %6312 = vrot.lane.b32.xlu0 %v6294, 112
  %v6313 = vpop.permute.xlu0 %6312
  %6314 = vrot.lane.b32.xlu0 %v5824, 112
  %v6315 = vpop.permute.xlu0 %6314
  %6316 = vrot.lane.b32.xlu0 %v5827, 112
  %v6317 = vpop.permute.xlu0 %6316
  %6318 = vrot.lane.b32.xlu0 %v5830, 112
  %v6319 = vpop.permute.xlu0 %6318
  %6320 = vrot.lane.b32.xlu0 %v5833, 112
  %v6321 = vpop.permute.xlu0 %6320
  %6322 = vrot.lane.b32.xlu0 %v5836, 112
  %v6323 = vpop.permute.xlu0 %6322
  %6324 = vrot.lane.b32.xlu0 %v5839, 112
  %v6325 = vpop.permute.xlu0 %6324
  %6326 = vrot.lane.b32.xlu0 %v6089, 112
  %v6327 = vpop.permute.xlu0 %6326
  %6328 = vrot.lane.b32.xlu0 %v6297, 112
  %v6329 = vpop.permute.xlu0 %6328
  %6346 = vst.msk [vmem:[#allocation3] sm:$0xff] %vm1853, %v6299
  %6347 = vst.msk [vmem:[#allocation3 + $0x10] sm:$0xff] %vm1853, %v6301
  %6348 = vst.msk [vmem:[#allocation3 + $0x20] sm:$0xff] %vm1853, %v6303
  %6349 = vst.msk [vmem:[#allocation3 + $0x30] sm:$0xff] %vm1853, %v6305
  %6350 = vst.msk [vmem:[#allocation3 + $0x40] sm:$0xff] %vm1853, %v6307
  %6351 = vst.msk [vmem:[#allocation3 + $0x50] sm:$0xff] %vm1853, %v6309
  %6352 = vst.msk [vmem:[#allocation3 + $0x60] sm:$0xff] %vm1853, %v6311
  %6353 = vst.msk [vmem:[#allocation3 + $0x70] sm:$0xff] %vm1853, %v6313
  %6354 = vst.msk [vmem:[#allocation3 + $0x80] sm:$0xff] %vm1853, %v6315
  %6355 = vst.msk [vmem:[#allocation3 + $0x90] sm:$0xff] %vm1853, %v6317
  %6356 = vst.msk [vmem:[#allocation3 + $0xa0] sm:$0xff] %vm1853, %v6319
  %6357 = vst.msk [vmem:[#allocation3 + $0xb0] sm:$0xff] %vm1853, %v6321
  %6358 = vst.msk [vmem:[#allocation3 + $0xc0] sm:$0xff] %vm1853, %v6323
  %6359 = vst.msk [vmem:[#allocation3 + $0xd0] sm:$0xff] %vm1853, %v6325
  %6360 = vst.msk [vmem:[#allocation3 + $0xe0] sm:$0xff] %vm1853, %v6327
  %6361 = vst.msk [vmem:[#allocation3 + $0xf0] sm:$0xff] %vm1853, %v6329
  %v6362 = vrot.slane %v5722, 2
  %v6363 = vrot.slane %v5723, 2
  %v6364 = vsel %vm319, %v6362, %v6363
  %v6365 = vrot.slane %v5742, 2
  %v6366 = vrot.slane %v5743, 2
  %v6367 = vsel %vm319, %v6365, %v6366
  %6384 = vst.msk [vmem:[#allocation3 + $0x8] sm:$0xff] %vm74, %v5912
  %6385 = vst.msk [vmem:[#allocation3 + $0x18] sm:$0xff] %vm74, %v5915
  %6386 = vst.msk [vmem:[#allocation3 + $0x28] sm:$0xff] %vm74, %v5918
  %6387 = vst.msk [vmem:[#allocation3 + $0x38] sm:$0xff] %vm74, %v5921
  %6388 = vst.msk [vmem:[#allocation3 + $0x48] sm:$0xff] %vm74, %v5924
  %6389 = vst.msk [vmem:[#allocation3 + $0x58] sm:$0xff] %vm74, %v5927
  %6390 = vst.msk [vmem:[#allocation3 + $0x68] sm:$0xff] %vm74, %v6156
  %6391 = vst.msk [vmem:[#allocation3 + $0x78] sm:$0xff] %vm74, %v6364
  %6392 = vst.msk [vmem:[#allocation3 + $0x88] sm:$0xff] %vm74, %v5936
  %6393 = vst.msk [vmem:[#allocation3 + $0x98] sm:$0xff] %vm74, %v5939
  %6394 = vst.msk [vmem:[#allocation3 + $0xa8] sm:$0xff] %vm74, %v5942
  %6395 = vst.msk [vmem:[#allocation3 + $0xb8] sm:$0xff] %vm74, %v5945
  %6396 = vst.msk [vmem:[#allocation3 + $0xc8] sm:$0xff] %vm74, %v5948
  %6397 = vst.msk [vmem:[#allocation3 + $0xd8] sm:$0xff] %vm74, %v5951
  %6398 = vst.msk [vmem:[#allocation3 + $0xe8] sm:$0xff] %vm74, %v6159
  %6399 = vst.msk [vmem:[#allocation3 + $0xf8] sm:$0xff] %vm74, %v6367
  %v6400 = vld [vmem:[#allocation3] sm:$0xff]
  %v6401 = vld [vmem:[#allocation3 + $0x8] sm:$0xff]
  %v6402 = vld [vmem:[#allocation3 + $0x10] sm:$0xff]
  %v6403 = vld [vmem:[#allocation3 + $0x18] sm:$0xff]
  %v6404 = vld [vmem:[#allocation3 + $0x20] sm:$0xff]
  %v6405 = vld [vmem:[#allocation3 + $0x28] sm:$0xff]
  %v6406 = vld [vmem:[#allocation3 + $0x30] sm:$0xff]
  %v6407 = vld [vmem:[#allocation3 + $0x38] sm:$0xff]
  %v6408 = vld [vmem:[#allocation3 + $0x40] sm:$0xff]
  %v6409 = vld [vmem:[#allocation3 + $0x48] sm:$0xff]
  %v6410 = vld [vmem:[#allocation3 + $0x50] sm:$0xff]
  %v6411 = vld [vmem:[#allocation3 + $0x58] sm:$0xff]
  %v6412 = vld [vmem:[#allocation3 + $0x60] sm:$0xff]
  %v6413 = vld [vmem:[#allocation3 + $0x68] sm:$0xff]
  %v6414 = vld [vmem:[#allocation3 + $0x70] sm:$0xff]
  %v6415 = vld [vmem:[#allocation3 + $0x78] sm:$0xff]
  %v6416 = vld [vmem:[#allocation3 + $0x80] sm:$0xff]
  %v6417 = vld [vmem:[#allocation3 + $0x88] sm:$0xff]
  %v6418 = vld [vmem:[#allocation3 + $0x90] sm:$0xff]
  %v6419 = vld [vmem:[#allocation3 + $0x98] sm:$0xff]
  %v6420 = vld [vmem:[#allocation3 + $0xa0] sm:$0xff]
  %v6421 = vld [vmem:[#allocation3 + $0xa8] sm:$0xff]
  %v6422 = vld [vmem:[#allocation3 + $0xb0] sm:$0xff]
  %v6423 = vld [vmem:[#allocation3 + $0xb8] sm:$0xff]
  %v6424 = vld [vmem:[#allocation3 + $0xc0] sm:$0xff]
  %v6425 = vld [vmem:[#allocation3 + $0xc8] sm:$0xff]
  %v6426 = vld [vmem:[#allocation3 + $0xd0] sm:$0xff]
  %v6427 = vld [vmem:[#allocation3 + $0xd8] sm:$0xff]
  %v6428 = vld [vmem:[#allocation3 + $0xe0] sm:$0xff]
  %v6429 = vld [vmem:[#allocation3 + $0xe8] sm:$0xff]
  %v6430 = vld [vmem:[#allocation3 + $0xf0] sm:$0xff]
  %v6431 = vld [vmem:[#allocation3 + $0xf8] sm:$0xff]
  %v6432 = vpack.c.bf16 %v6402, %v6400
  %v6433 = vpack.c.bf16 %v6403, %v6401
  %v6434 = vpack.c.bf16 %v6406, %v6404
  %v6435 = vpack.c.bf16 %v6407, %v6405
  %v6436 = vpack.c.bf16 %v6410, %v6408
  %v6437 = vpack.c.bf16 %v6411, %v6409
  %v6438 = vpack.c.bf16 %v6414, %v6412
  %v6439 = vpack.c.bf16 %v6415, %v6413
  %v6440 = vpack.c.bf16 %v6418, %v6416
  %v6441 = vpack.c.bf16 %v6419, %v6417
  %v6442 = vpack.c.bf16 %v6422, %v6420
  %v6443 = vpack.c.bf16 %v6423, %v6421
  %v6444 = vpack.c.bf16 %v6426, %v6424
  %v6445 = vpack.c.bf16 %v6427, %v6425
  %v6446 = vpack.c.bf16 %v6430, %v6428
  %v6447 = vpack.c.bf16 %v6431, %v6429
  %v6448 = vld [vmem:[%s16] sm:$0xf]
  %v6449 = vld [vmem:[%s16 + $0x4] sm:$0xf]
  %v6450 = vld [vmem:[%s16 + $0x8] sm:$0xf]
  %v6451 = vld [vmem:[%s16 + $0xc] sm:$0xf]
  %v6452 = vld [vmem:[%s16 + $0x10] sm:$0xf]
  %v6453 = vld [vmem:[%s16 + $0x14] sm:$0xf]
  %v6454 = vld [vmem:[%s16 + $0x18] sm:$0xf]
  %v6455 = vld [vmem:[%s16 + $0x1c] sm:$0xf]
  %v6456 = vld [vmem:[%s16 + $0x20] sm:$0xf]
  %v6457 = vld [vmem:[%s16 + $0x24] sm:$0xf]
  %v6458 = vld [vmem:[%s16 + $0x28] sm:$0xf]
  %v6459 = vld [vmem:[%s16 + $0x2c] sm:$0xf]
  %v6460 = vld [vmem:[%s16 + $0x30] sm:$0xf]
  %v6461 = vld [vmem:[%s16 + $0x34] sm:$0xf]
  %v6462 = vld [vmem:[%s16 + $0x38] sm:$0xf]
  %v6463 = vld [vmem:[%s16 + $0x3c] sm:$0xf]
  %v6464 = vld [vmem:[%s16 + $0x40] sm:$0xf]
  %v6465 = vld [vmem:[%s16 + $0x44] sm:$0xf]
  %v6484 = vunpack.c.l.b16 %v6448
  %v6485 = vunpack.c.l.b16 %v6449
  %v6486 = vunpack.c.l.b16 %v6450
  %v6487 = vunpack.c.l.b16 %v6451
  %v6488 = vunpack.c.l.b16 %v6452
  %v6489 = vunpack.c.l.b16 %v6453
  %v6490 = vunpack.c.l.b16 %v6454
  %v6491 = vunpack.c.l.b16 %v6455
  %v6492 = vunpack.c.l.b16 %v6456
  %v6493 = vunpack.c.l.b16 %v6457
  %v6494 = vunpack.c.l.b16 %v6458
  %v6495 = vunpack.c.l.b16 %v6459
  %v6496 = vunpack.c.l.b16 %v6460
  %v6497 = vunpack.c.l.b16 %v6461
  %v6498 = vunpack.c.l.b16 %v6462
  %v6499 = vunpack.c.l.b16 %v6463
  %v6500 = vunpack.c.l.b16 %v6464
  %v6501 = vunpack.c.l.b16 %v6465
  %v6502 = vpack.c.b16 %v6485, %v6484
  %v6503 = vpack.c.b16 %v6487, %v6486
  %v6504 = vpack.c.b16 %v6489, %v6488
  %v6505 = vpack.c.b16 %v6491, %v6490
  %v6506 = vpack.c.b16 %v6493, %v6492
  %v6507 = vpack.c.b16 %v6495, %v6494
  %v6508 = vpack.c.b16 %v6497, %v6496
  %v6509 = vpack.c.b16 %v6499, %v6498
  %v6510 = vpack.c.b16 %v6501, %v6500
  %v6521 = vsel %vm74, %v6433, 0
  %v6524 = vsel %vm74, %v6435, 0
  %v6527 = vsel %vm74, %v6437, 0
  %v6530 = vsel %vm74, %v6439, 0
  %v6533 = vsel %vm74, %v6441, 0
  %v6536 = vsel %vm74, %v6443, 0
  %v6539 = vsel %vm74, %v6445, 0
  %v6542 = vsel %vm74, %v6447, 0
  %6544 = vmatprep.subr.bf16.mxu0 0
  %6545 = vmatpush1.bf16.msra.mxu0 %v6502
  %6546 = vmatprep.subr.bf16.mxu0 0
  %6547 = vmatpush1.bf16.msra.mxu0 %v6503
  %6548 = vmatprep.subr.bf16.mxu0 0
  %6549 = vmatpush1.bf16.msra.mxu0 %v6504
  %6550 = vmatprep.subr.bf16.mxu0 0
  %6551 = vmatpush1.bf16.msra.mxu0 %v6505
  %6552 = vmatprep.subr.bf16.mxu0 0
  %6553 = vmatpush1.bf16.msra.mxu0 %v6506
  %6554 = vmatprep.subr.bf16.mxu0 0
  %6555 = vmatpush1.bf16.msra.mxu0 %v6507
  %6556 = vmatprep.subr.bf16.mxu0 0
  %6557 = vmatpush1.bf16.msra.mxu0 %v6508
  %6558 = vmatprep.subr.bf16.mxu0 0
  %6559 = vmatpush1.bf16.msra.mxu0 %v6509
  %6560 = vmatprep.subr.bf16.mxu0 0
  %6561 = vmatpush1.bf16.msra.mxu0 %v6510
  %6562 = vmatprep.subr.bf16.mxu0 0
  %6563 = vmatpush1.bf16.msra.mxu0 0
  %6564 = vmatprep.subr.bf16.mxu0 0
  %6565 = vmatpush1.bf16.msra.mxu0 0
  %6566 = vmatprep.subr.bf16.mxu0 0
  %6567 = vmatpush1.bf16.msra.mxu0 0
  %6568 = vmatprep.subr.bf16.mxu0 0
  %6569 = vmatpush1.bf16.msra.mxu0 0
  %6570 = vmatprep.subr.bf16.mxu0 0
  %6571 = vmatpush1.bf16.msra.mxu0 0
  %6572 = vmatprep.subr.bf16.mxu0 0
  %6573 = vmatpush1.bf16.msra.mxu0 0
  %6574 = vmatprep.subr.bf16.mxu0 0
  %6575 = vmatpush1.bf16.msra.mxu0 0
  %6576 = vmatprep.mubr.bf16.mxu0 %v6521
  %6577 = vmatmul.mubr.bf16.gmra.mrb[0].mxu0 %v6432
  %v6578 = vpop.f32.mrb[0].mxu0
  %v6579 = vadd.f32 0.0, %v6578
  %v6580 = vpop.f32.mrb[0].mxu0
  %v6581 = vpop.f32.mrb[0].mxu0
  %v6582 = vadd.f32 0.0, %v6581
  %v6583 = vpop.f32.mrb[0].mxu0
  %6584 = vmatprep.mubr.bf16.mxu0 %v6524
  %6585 = vmatmul.mubr.bf16.gmra.mrb[0].mxu0 %v6434
  %v6586 = vpop.f32.mrb[0].mxu0
  %v6587 = vadd.f32 0.0, %v6586
  %v6588 = vpop.f32.mrb[0].mxu0
  %v6589 = vpop.f32.mrb[0].mxu0
  %v6590 = vadd.f32 0.0, %v6589
  %v6591 = vpop.f32.mrb[0].mxu0
  %6592 = vmatprep.mubr.bf16.mxu0 %v6527
  %6593 = vmatmul.mubr.bf16.gmra.mrb[0].mxu0 %v6436
  %v6594 = vpop.f32.mrb[0].mxu0
  %v6595 = vadd.f32 0.0, %v6594
  %v6596 = vpop.f32.mrb[0].mxu0
  %v6597 = vpop.f32.mrb[0].mxu0
  %v6598 = vadd.f32 0.0, %v6597
  %v6599 = vpop.f32.mrb[0].mxu0
  %6600 = vmatprep.mubr.bf16.mxu0 %v6530
  %6601 = vmatmul.mubr.bf16.gmra.mrb[0].mxu0 %v6438
  %v6602 = vpop.f32.mrb[0].mxu0
  %v6603 = vadd.f32 0.0, %v6602
  %v6604 = vpop.f32.mrb[0].mxu0
  %v6605 = vpop.f32.mrb[0].mxu0
  %v6606 = vadd.f32 0.0, %v6605
  %v6607 = vpop.f32.mrb[0].mxu0
  %6608 = vmatprep.mubr.bf16.mxu0 %v6533
  %6609 = vmatmul.mubr.bf16.gmra.mrb[0].mxu0 %v6440
  %v6610 = vpop.f32.mrb[0].mxu0
  %v6611 = vadd.f32 0.0, %v6610
  %v6612 = vpop.f32.mrb[0].mxu0
  %v6613 = vpop.f32.mrb[0].mxu0
  %v6614 = vadd.f32 0.0, %v6613
  %v6615 = vpop.f32.mrb[0].mxu0
  %6616 = vmatprep.mubr.bf16.mxu0 %v6536
  %6617 = vmatmul.mubr.bf16.gmra.mrb[0].mxu0 %v6442
  %v6618 = vpop.f32.mrb[0].mxu0
  %v6619 = vadd.f32 0.0, %v6618
  %v6620 = vpop.f32.mrb[0].mxu0
  %v6621 = vpop.f32.mrb[0].mxu0
  %v6622 = vadd.f32 0.0, %v6621
  %v6623 = vpop.f32.mrb[0].mxu0
  %6624 = vmatprep.mubr.bf16.mxu0 %v6539
  %6625 = vmatmul.mubr.bf16.gmra.mrb[0].mxu0 %v6444
  %v6626 = vpop.f32.mrb[0].mxu0
  %v6627 = vadd.f32 0.0, %v6626
  %v6628 = vpop.f32.mrb[0].mxu0
  %v6629 = vpop.f32.mrb[0].mxu0
  %v6630 = vadd.f32 0.0, %v6629
  %v6631 = vpop.f32.mrb[0].mxu0
  %6632 = vmatprep.mubr.bf16.mxu0 %v6542
  %6633 = vmatmul.mubr.bf16.gmra.mrb[0].mxu0 %v6446
  %v6634 = vpop.f32.mrb[0].mxu0
  %v6635 = vadd.f32 0.0, %v6634
  %v6636 = vpop.f32.mrb[0].mxu0
  %v6637 = vpop.f32.mrb[0].mxu0
  %v6638 = vadd.f32 0.0, %v6637
  %v6639 = vpop.f32.mrb[0].mxu0
  %6640 = vdwg.mxu0
  %vm6641 = vcmask 261120
  %v6642 = vsel %vm6641, %v6579, 0.0
  %v6643 = vsel %vm6641, %v6582, 0.0
  %v6644 = vadd.f32 %v6642, %v6643
  %v6645 = vsel %vm6641, %v6587, 0.0
  %v6646 = vadd.f32 %v6644, %v6645
  %v6647 = vsel %vm6641, %v6590, 0.0
  %v6648 = vadd.f32 %v6646, %v6647
  %v6649 = vsel %vm6641, %v6595, 0.0
  %v6650 = vadd.f32 %v6648, %v6649
  %v6651 = vsel %vm6641, %v6598, 0.0
  %v6652 = vadd.f32 %v6650, %v6651
  %v6653 = vsel %vm6641, %v6603, 0.0
  %v6654 = vadd.f32 %v6652, %v6653
  %v6655 = vsel %vm6641, %v6606, 0.0
  %v6656 = vadd.f32 %v6654, %v6655
  %v6657 = vsel %vm6641, %v6611, 0.0
  %v6658 = vadd.f32 %v6656, %v6657
  %v6659 = vsel %vm6641, %v6614, 0.0
  %v6660 = vadd.f32 %v6658, %v6659
  %v6661 = vsel %vm6641, %v6619, 0.0
  %v6662 = vadd.f32 %v6660, %v6661
  %v6663 = vsel %vm6641, %v6622, 0.0
  %v6664 = vadd.f32 %v6662, %v6663
  %v6665 = vsel %vm6641, %v6627, 0.0
  %v6666 = vadd.f32 %v6664, %v6665
  %v6667 = vsel %vm6641, %v6630, 0.0
  %v6668 = vadd.f32 %v6666, %v6667
  %v6669 = vsel %vm6641, %v6635, 0.0
  %v6670 = vadd.f32 %v6668, %v6669
  %v6671 = vsel %vm6641, %v6638, 0.0
  %v6672 = vadd.f32 %v6670, %v6671
  %v6673 = vrot.slane %v6672, 4
  %v6674 = vadd.f32 %v6672, %v6673
  %v6675 = vrot.slane %v6674, 2
  %v6676 = vadd.f32 %v6674, %v6675
  %v6677 = vrot.slane %v6676, 1
  %v6678 = vadd.f32 %v6676, %v6677
  %v6679 = vmul.f32 %v6678, %v1062
  %v6680 = vmul.f32 %v6579, %v6579
  %v6681 = vmul.f32 %v6582, %v6582
  %v6682 = vmul.f32 %v6587, %v6587
  %v6683 = vmul.f32 %v6590, %v6590
  %v6684 = vmul.f32 %v6595, %v6595
  %v6685 = vmul.f32 %v6598, %v6598
  %v6686 = vmul.f32 %v6603, %v6603
  %v6687 = vmul.f32 %v6606, %v6606
  %v6688 = vmul.f32 %v6611, %v6611
  %v6689 = vmul.f32 %v6614, %v6614
  %v6690 = vmul.f32 %v6619, %v6619
  %v6691 = vmul.f32 %v6622, %v6622
  %v6692 = vmul.f32 %v6627, %v6627
  %v6693 = vmul.f32 %v6630, %v6630
  %v6694 = vmul.f32 %v6635, %v6635
  %v6695 = vmul.f32 %v6638, %v6638
  %v6696 = vsel %vm6641, %v6680, 0.0
  %v6697 = vsel %vm6641, %v6681, 0.0
  %v6698 = vadd.f32 %v6696, %v6697
  %v6699 = vsel %vm6641, %v6682, 0.0
  %v6700 = vadd.f32 %v6698, %v6699
  %v6701 = vsel %vm6641, %v6683, 0.0
  %v6702 = vadd.f32 %v6700, %v6701
  %v6703 = vsel %vm6641, %v6684, 0.0
  %v6704 = vadd.f32 %v6702, %v6703
  %v6705 = vsel %vm6641, %v6685, 0.0
  %v6706 = vadd.f32 %v6704, %v6705
  %v6707 = vsel %vm6641, %v6686, 0.0
  %v6708 = vadd.f32 %v6706, %v6707
  %v6709 = vsel %vm6641, %v6687, 0.0
  %v6710 = vadd.f32 %v6708, %v6709
  %v6711 = vsel %vm6641, %v6688, 0.0
  %v6712 = vadd.f32 %v6710, %v6711
  %v6713 = vsel %vm6641, %v6689, 0.0
  %v6714 = vadd.f32 %v6712, %v6713
  %v6715 = vsel %vm6641, %v6690, 0.0
  %v6716 = vadd.f32 %v6714, %v6715
  %v6717 = vsel %vm6641, %v6691, 0.0
  %v6718 = vadd.f32 %v6716, %v6717
  %v6719 = vsel %vm6641, %v6692, 0.0
  %v6720 = vadd.f32 %v6718, %v6719
  %v6721 = vsel %vm6641, %v6693, 0.0
  %v6722 = vadd.f32 %v6720, %v6721
  %v6723 = vsel %vm6641, %v6694, 0.0
  %v6724 = vadd.f32 %v6722, %v6723
  %v6725 = vsel %vm6641, %v6695, 0.0
  %v6726 = vadd.f32 %v6724, %v6725
  %v6727 = vrot.slane %v6726, 4
  %v6728 = vadd.f32 %v6726, %v6727
  %v6729 = vrot.slane %v6728, 2
  %v6730 = vadd.f32 %v6728, %v6729
  %v6731 = vrot.slane %v6730, 1
  %v6732 = vadd.f32 %v6730, %v6731
  %v6733 = vmul.f32 %v6732, %v1062
  %v6734 = vmul.f32 %v6679, %v6679
  %v6735 = vsub.f32 %v6733, %v6734
  %v6736 = vmax.f32 %v6735, 0.0
  %v6737 = vld [vmem:[%s17] sm:$0x1]
  %v6738 = vadd.f32 %v6736, 1e-05
  %v6739 = vrsqrt.pop %v6738
  %v6740 = vmul.f32 %v6737, %v6739
  %v6742 = vlaneseq
  %v6743 = vshrl.u32 %v6742, 7
  %v6744 = vsub.s32 0, %v6743
  %v6745 = vrot.slane %v6740, %v6744
  %v6747 = vmul.f32 %v6579, %v6745
  %v6748 = vmul.f32 %v6582, %v6745
  %v6749 = vmul.f32 %v6587, %v6745
  %v6750 = vmul.f32 %v6590, %v6745
  %v6751 = vmul.f32 %v6595, %v6745
  %v6752 = vmul.f32 %v6598, %v6745
  %v6753 = vmul.f32 %v6603, %v6745
  %v6754 = vmul.f32 %v6606, %v6745
  %v6755 = vmul.f32 %v6611, %v6745
  %v6756 = vmul.f32 %v6614, %v6745
  %v6757 = vmul.f32 %v6619, %v6745
  %v6758 = vmul.f32 %v6622, %v6745
  %v6759 = vmul.f32 %v6627, %v6745
  %v6760 = vmul.f32 %v6630, %v6745
  %v6761 = vmul.f32 %v6635, %v6745
  %v6762 = vmul.f32 %v6638, %v6745
  %v6763 = vld [vmem:[%s18] sm:$0x1]
  %v6764 = vmul.f32 %v6679, %v6740
  %v6765 = vsub.f32 %v6763, %v6764
  %v6767 = vlaneseq
  %v6768 = vshrl.u32 %v6767, 7
  %v6769 = vsub.s32 0, %v6768
  %v6770 = vrot.slane %v6765, %v6769
  %v6772 = vadd.f32 %v6747, %v6770
  %v6773 = vadd.f32 %v6748, %v6770
  %v6774 = vadd.f32 %v6749, %v6770
  %v6775 = vadd.f32 %v6750, %v6770
  %v6776 = vadd.f32 %v6751, %v6770
  %v6777 = vadd.f32 %v6752, %v6770
  %v6778 = vadd.f32 %v6753, %v6770
  %v6779 = vadd.f32 %v6754, %v6770
  %v6780 = vadd.f32 %v6755, %v6770
  %v6781 = vadd.f32 %v6756, %v6770
  %v6782 = vadd.f32 %v6757, %v6770
  %v6783 = vadd.f32 %v6758, %v6770
  %v6784 = vadd.f32 %v6759, %v6770
  %v6785 = vadd.f32 %v6760, %v6770
  %v6786 = vadd.f32 %v6761, %v6770
  %v6787 = vadd.f32 %v6762, %v6770
  %v6788 = vmax.f32 %v6772, 0.0
  %v6789 = vmax.f32 %v6773, 0.0
  %v6790 = vmax.f32 %v6774, 0.0
  %v6791 = vmax.f32 %v6775, 0.0
  %v6792 = vmax.f32 %v6776, 0.0
  %v6793 = vmax.f32 %v6777, 0.0
  %v6794 = vmax.f32 %v6778, 0.0
  %v6795 = vmax.f32 %v6779, 0.0
  %v6796 = vmax.f32 %v6780, 0.0
  %v6797 = vmax.f32 %v6781, 0.0
  %v6798 = vmax.f32 %v6782, 0.0
  %v6799 = vmax.f32 %v6783, 0.0
  %v6800 = vmax.f32 %v6784, 0.0
  %v6801 = vmax.f32 %v6785, 0.0
  %v6802 = vmax.f32 %v6786, 0.0
  %v6803 = vmax.f32 %v6787, 0.0
  %6804 = vst.msk [vmem:[#allocation3] sm:$0xff] %vm74, %v5704
  %6805 = vst.msk [vmem:[#allocation3 + $0x10] sm:$0xff] %vm74, %v5706
  %6806 = vst.msk [vmem:[#allocation3 + $0x20] sm:$0xff] %vm74, %v5708
  %6807 = vst.msk [vmem:[#allocation3 + $0x30] sm:$0xff] %vm74, %v5710
  %6808 = vst.msk [vmem:[#allocation3 + $0x40] sm:$0xff] %vm74, %v5712
  %6809 = vst.msk [vmem:[#allocation3 + $0x50] sm:$0xff] %vm74, %v5714
  %6810 = vst.msk [vmem:[#allocation3 + $0x60] sm:$0xff] %vm74, %v5716
  %6811 = vst.msk [vmem:[#allocation3 + $0x70] sm:$0xff] %vm74, %v5718
  %6812 = vst.msk [vmem:[#allocation3 + $0x80] sm:$0xff] %vm74, %v5724
  %6813 = vst.msk [vmem:[#allocation3 + $0x90] sm:$0xff] %vm74, %v5726
  %6814 = vst.msk [vmem:[#allocation3 + $0xa0] sm:$0xff] %vm74, %v5728
  %6815 = vst.msk [vmem:[#allocation3 + $0xb0] sm:$0xff] %vm74, %v5730
  %6816 = vst.msk [vmem:[#allocation3 + $0xc0] sm:$0xff] %vm74, %v5732
  %6817 = vst.msk [vmem:[#allocation3 + $0xd0] sm:$0xff] %vm74, %v5734
  %6818 = vst.msk [vmem:[#allocation3 + $0xe0] sm:$0xff] %vm74, %v5736
  %6819 = vst.msk [vmem:[#allocation3 + $0xf0] sm:$0xff] %vm74, %v5738
  %6820 = vst.msk [vmem:[#allocation3] sm:$0xff] %vm1389, %v5841
  %6821 = vst.msk [vmem:[#allocation3 + $0x10] sm:$0xff] %vm1389, %v5843
  %6822 = vst.msk [vmem:[#allocation3 + $0x20] sm:$0xff] %vm1389, %v5845
  %6823 = vst.msk [vmem:[#allocation3 + $0x30] sm:$0xff] %vm1389, %v5847
  %6824 = vst.msk [vmem:[#allocation3 + $0x40] sm:$0xff] %vm1389, %v5849
  %6825 = vst.msk [vmem:[#allocation3 + $0x50] sm:$0xff] %vm1389, %v5851
  %6826 = vst.msk [vmem:[#allocation3 + $0x60] sm:$0xff] %vm1389, %v5853
  %6827 = vst.msk [vmem:[#allocation3 + $0x70] sm:$0xff] %vm1389, %v5855
  %6828 = vst.msk [vmem:[#allocation3 + $0x80] sm:$0xff] %vm1389, %v5857
  %6829 = vst.msk [vmem:[#allocation3 + $0x90] sm:$0xff] %vm1389, %v5859
  %6830 = vst.msk [vmem:[#allocation3 + $0xa0] sm:$0xff] %vm1389, %v5861
  %6831 = vst.msk [vmem:[#allocation3 + $0xb0] sm:$0xff] %vm1389, %v5863
  %6832 = vst.msk [vmem:[#allocation3 + $0xc0] sm:$0xff] %vm1389, %v5865
  %6833 = vst.msk [vmem:[#allocation3 + $0xd0] sm:$0xff] %vm1389, %v5867
  %6834 = vst.msk [vmem:[#allocation3 + $0xe0] sm:$0xff] %vm1389, %v5869
  %6835 = vst.msk [vmem:[#allocation3 + $0xf0] sm:$0xff] %vm1389, %v5871
  %6836 = vst.msk [vmem:[#allocation3] sm:$0xff] %vm1502, %v5953
  %6837 = vst.msk [vmem:[#allocation3 + $0x10] sm:$0xff] %vm1502, %v5955
  %6838 = vst.msk [vmem:[#allocation3 + $0x20] sm:$0xff] %vm1502, %v5957
  %6839 = vst.msk [vmem:[#allocation3 + $0x30] sm:$0xff] %vm1502, %v5959
  %6840 = vst.msk [vmem:[#allocation3 + $0x40] sm:$0xff] %vm1502, %v5961
  %6841 = vst.msk [vmem:[#allocation3 + $0x50] sm:$0xff] %vm1502, %v5963
  %6842 = vst.msk [vmem:[#allocation3 + $0x60] sm:$0xff] %vm1502, %v5965
  %6843 = vst.msk [vmem:[#allocation3 + $0x70] sm:$0xff] %vm1502, %v5967
  %6844 = vst.msk [vmem:[#allocation3 + $0x80] sm:$0xff] %vm1502, %v5969
  %6845 = vst.msk [vmem:[#allocation3 + $0x90] sm:$0xff] %vm1502, %v5971
  %6846 = vst.msk [vmem:[#allocation3 + $0xa0] sm:$0xff] %vm1502, %v5973
  %6847 = vst.msk [vmem:[#allocation3 + $0xb0] sm:$0xff] %vm1502, %v5975
  %6848 = vst.msk [vmem:[#allocation3 + $0xc0] sm:$0xff] %vm1502, %v5977
  %6849 = vst.msk [vmem:[#allocation3 + $0xd0] sm:$0xff] %vm1502, %v5979
  %6850 = vst.msk [vmem:[#allocation3 + $0xe0] sm:$0xff] %vm1502, %v5981
  %6851 = vst.msk [vmem:[#allocation3 + $0xf0] sm:$0xff] %vm1502, %v5983
  %6852 = vst.msk [vmem:[#allocation3] sm:$0xff] %vm1569, %v6019
  %6853 = vst.msk [vmem:[#allocation3 + $0x10] sm:$0xff] %vm1569, %v6021
  %6854 = vst.msk [vmem:[#allocation3 + $0x20] sm:$0xff] %vm1569, %v6023
  %6855 = vst.msk [vmem:[#allocation3 + $0x30] sm:$0xff] %vm1569, %v6025
  %6856 = vst.msk [vmem:[#allocation3 + $0x40] sm:$0xff] %vm1569, %v6027
  %6857 = vst.msk [vmem:[#allocation3 + $0x50] sm:$0xff] %vm1569, %v6029
  %6858 = vst.msk [vmem:[#allocation3 + $0x60] sm:$0xff] %vm1569, %v6031
  %6859 = vst.msk [vmem:[#allocation3 + $0x70] sm:$0xff] %vm1569, %v6033
  %6860 = vst.msk [vmem:[#allocation3 + $0x80] sm:$0xff] %vm1569, %v6035
  %6861 = vst.msk [vmem:[#allocation3 + $0x90] sm:$0xff] %vm1569, %v6037
  %6862 = vst.msk [vmem:[#allocation3 + $0xa0] sm:$0xff] %vm1569, %v6039
  %6863 = vst.msk [vmem:[#allocation3 + $0xb0] sm:$0xff] %vm1569, %v6041
  %6864 = vst.msk [vmem:[#allocation3 + $0xc0] sm:$0xff] %vm1569, %v6043
  %6865 = vst.msk [vmem:[#allocation3 + $0xd0] sm:$0xff] %vm1569, %v6045
  %6866 = vst.msk [vmem:[#allocation3 + $0xe0] sm:$0xff] %vm1569, %v6047
  %6867 = vst.msk [vmem:[#allocation3 + $0xf0] sm:$0xff] %vm1569, %v6049
  %6868 = vst.msk [vmem:[#allocation3] sm:$0xff] %vm1642, %v6091
  %6869 = vst.msk [vmem:[#allocation3 + $0x10] sm:$0xff] %vm1642, %v6093
  %6870 = vst.msk [vmem:[#allocation3 + $0x20] sm:$0xff] %vm1642, %v6095
  %6871 = vst.msk [vmem:[#allocation3 + $0x30] sm:$0xff] %vm1642, %v6097
  %6872 = vst.msk [vmem:[#allocation3 + $0x40] sm:$0xff] %vm1642, %v6099
  %6873 = vst.msk [vmem:[#allocation3 + $0x50] sm:$0xff] %vm1642, %v6101
  %6874 = vst.msk [vmem:[#allocation3 + $0x60] sm:$0xff] %vm1642, %v6103
  %6875 = vst.msk [vmem:[#allocation3 + $0x70] sm:$0xff] %vm1642, %v6105
  %6876 = vst.msk [vmem:[#allocation3 + $0x80] sm:$0xff] %vm1642, %v6107
  %6877 = vst.msk [vmem:[#allocation3 + $0x90] sm:$0xff] %vm1642, %v6109
  %6878 = vst.msk [vmem:[#allocation3 + $0xa0] sm:$0xff] %vm1642, %v6111
  %6879 = vst.msk [vmem:[#allocation3 + $0xb0] sm:$0xff] %vm1642, %v6113
  %6880 = vst.msk [vmem:[#allocation3 + $0xc0] sm:$0xff] %vm1642, %v6115
  %6881 = vst.msk [vmem:[#allocation3 + $0xd0] sm:$0xff] %vm1642, %v6117
  %6882 = vst.msk [vmem:[#allocation3 + $0xe0] sm:$0xff] %vm1642, %v6119
  %6883 = vst.msk [vmem:[#allocation3 + $0xf0] sm:$0xff] %vm1642, %v6121
  %6884 = vst.msk [vmem:[#allocation3] sm:$0xff] %vm1713, %v6161
  %6885 = vst.msk [vmem:[#allocation3 + $0x10] sm:$0xff] %vm1713, %v6163
  %6886 = vst.msk [vmem:[#allocation3 + $0x20] sm:$0xff] %vm1713, %v6165
  %6887 = vst.msk [vmem:[#allocation3 + $0x30] sm:$0xff] %vm1713, %v6167
  %6888 = vst.msk [vmem:[#allocation3 + $0x40] sm:$0xff] %vm1713, %v6169
  %6889 = vst.msk [vmem:[#allocation3 + $0x50] sm:$0xff] %vm1713, %v6171
  %6890 = vst.msk [vmem:[#allocation3 + $0x60] sm:$0xff] %vm1713, %v6173
  %6891 = vst.msk [vmem:[#allocation3 + $0x70] sm:$0xff] %vm1713, %v6175
  %6892 = vst.msk [vmem:[#allocation3 + $0x80] sm:$0xff] %vm1713, %v6177
  %6893 = vst.msk [vmem:[#allocation3 + $0x90] sm:$0xff] %vm1713, %v6179
  %6894 = vst.msk [vmem:[#allocation3 + $0xa0] sm:$0xff] %vm1713, %v6181
  %6895 = vst.msk [vmem:[#allocation3 + $0xb0] sm:$0xff] %vm1713, %v6183
  %6896 = vst.msk [vmem:[#allocation3 + $0xc0] sm:$0xff] %vm1713, %v6185
  %6897 = vst.msk [vmem:[#allocation3 + $0xd0] sm:$0xff] %vm1713, %v6187
  %6898 = vst.msk [vmem:[#allocation3 + $0xe0] sm:$0xff] %vm1713, %v6189
  %6899 = vst.msk [vmem:[#allocation3 + $0xf0] sm:$0xff] %vm1713, %v6191
  %6900 = vst.msk [vmem:[#allocation3] sm:$0xff] %vm1780, %v6227
  %6901 = vst.msk [vmem:[#allocation3 + $0x10] sm:$0xff] %vm1780, %v6229
  %6902 = vst.msk [vmem:[#allocation3 + $0x20] sm:$0xff] %vm1780, %v6231
  %6903 = vst.msk [vmem:[#allocation3 + $0x30] sm:$0xff] %vm1780, %v6233
  %6904 = vst.msk [vmem:[#allocation3 + $0x40] sm:$0xff] %vm1780, %v6235
  %6905 = vst.msk [vmem:[#allocation3 + $0x50] sm:$0xff] %vm1780, %v6237
  %6906 = vst.msk [vmem:[#allocation3 + $0x60] sm:$0xff] %vm1780, %v6239
  %6907 = vst.msk [vmem:[#allocation3 + $0x70] sm:$0xff] %vm1780, %v6241
  %6908 = vst.msk [vmem:[#allocation3 + $0x80] sm:$0xff] %vm1780, %v6243
  %6909 = vst.msk [vmem:[#allocation3 + $0x90] sm:$0xff] %vm1780, %v6245
  %6910 = vst.msk [vmem:[#allocation3 + $0xa0] sm:$0xff] %vm1780, %v6247
  %6911 = vst.msk [vmem:[#allocation3 + $0xb0] sm:$0xff] %vm1780, %v6249
  %6912 = vst.msk [vmem:[#allocation3 + $0xc0] sm:$0xff] %vm1780, %v6251
  %6913 = vst.msk [vmem:[#allocation3 + $0xd0] sm:$0xff] %vm1780, %v6253
  %6914 = vst.msk [vmem:[#allocation3 + $0xe0] sm:$0xff] %vm1780, %v6255
  %6915 = vst.msk [vmem:[#allocation3 + $0xf0] sm:$0xff] %vm1780, %v6257
  %6916 = vst.msk [vmem:[#allocation3] sm:$0xff] %vm1853, %v6299
  %6917 = vst.msk [vmem:[#allocation3 + $0x10] sm:$0xff] %vm1853, %v6301
  %6918 = vst.msk [vmem:[#allocation3 + $0x20] sm:$0xff] %vm1853, %v6303
  %6919 = vst.msk [vmem:[#allocation3 + $0x30] sm:$0xff] %vm1853, %v6305
  %6920 = vst.msk [vmem:[#allocation3 + $0x40] sm:$0xff] %vm1853, %v6307
  %6921 = vst.msk [vmem:[#allocation3 + $0x50] sm:$0xff] %vm1853, %v6309
  %6922 = vst.msk [vmem:[#allocation3 + $0x60] sm:$0xff] %vm1853, %v6311
  %6923 = vst.msk [vmem:[#allocation3 + $0x70] sm:$0xff] %vm1853, %v6313
  %6924 = vst.msk [vmem:[#allocation3 + $0x80] sm:$0xff] %vm1853, %v6315
  %6925 = vst.msk [vmem:[#allocation3 + $0x90] sm:$0xff] %vm1853, %v6317
  %6926 = vst.msk [vmem:[#allocation3 + $0xa0] sm:$0xff] %vm1853, %v6319
  %6927 = vst.msk [vmem:[#allocation3 + $0xb0] sm:$0xff] %vm1853, %v6321
  %6928 = vst.msk [vmem:[#allocation3 + $0xc0] sm:$0xff] %vm1853, %v6323
  %6929 = vst.msk [vmem:[#allocation3 + $0xd0] sm:$0xff] %vm1853, %v6325
  %6930 = vst.msk [vmem:[#allocation3 + $0xe0] sm:$0xff] %vm1853, %v6327
  %6931 = vst.msk [vmem:[#allocation3 + $0xf0] sm:$0xff] %vm1853, %v6329
  %6932 = vst.msk [vmem:[#allocation3 + $0x8] sm:$0xff] %vm74, %v5912
  %6933 = vst.msk [vmem:[#allocation3 + $0x18] sm:$0xff] %vm74, %v5915
  %6934 = vst.msk [vmem:[#allocation3 + $0x28] sm:$0xff] %vm74, %v5918
  %6935 = vst.msk [vmem:[#allocation3 + $0x38] sm:$0xff] %vm74, %v5921
  %6936 = vst.msk [vmem:[#allocation3 + $0x48] sm:$0xff] %vm74, %v5924
  %6937 = vst.msk [vmem:[#allocation3 + $0x58] sm:$0xff] %vm74, %v5927
  %6938 = vst.msk [vmem:[#allocation3 + $0x68] sm:$0xff] %vm74, %v6156
  %6939 = vst.msk [vmem:[#allocation3 + $0x78] sm:$0xff] %vm74, %v6364
  %6940 = vst.msk [vmem:[#allocation3 + $0x88] sm:$0xff] %vm74, %v5936
  %6941 = vst.msk [vmem:[#allocation3 + $0x98] sm:$0xff] %vm74, %v5939
  %6942 = vst.msk [vmem:[#allocation3 + $0xa8] sm:$0xff] %vm74, %v5942
  %6943 = vst.msk [vmem:[#allocation3 + $0xb8] sm:$0xff] %vm74, %v5945
  %6944 = vst.msk [vmem:[#allocation3 + $0xc8] sm:$0xff] %vm74, %v5948
  %6945 = vst.msk [vmem:[#allocation3 + $0xd8] sm:$0xff] %vm74, %v5951
  %6946 = vst.msk [vmem:[#allocation3 + $0xe8] sm:$0xff] %vm74, %v6159
  %6947 = vst.msk [vmem:[#allocation3 + $0xf8] sm:$0xff] %vm74, %v6367
  %v6948 = vld [vmem:[#allocation3] sm:$0xff]
  %v6949 = vld [vmem:[#allocation3 + $0x8] sm:$0xff]
  %v6950 = vld [vmem:[#allocation3 + $0x10] sm:$0xff]
  %v6951 = vld [vmem:[#allocation3 + $0x18] sm:$0xff]
  %v6952 = vld [vmem:[#allocation3 + $0x20] sm:$0xff]
  %v6953 = vld [vmem:[#allocation3 + $0x28] sm:$0xff]
  %v6954 = vld [vmem:[#allocation3 + $0x30] sm:$0xff]
  %v6955 = vld [vmem:[#allocation3 + $0x38] sm:$0xff]
  %v6956 = vld [vmem:[#allocation3 + $0x40] sm:$0xff]
  %v6957 = vld [vmem:[#allocation3 + $0x48] sm:$0xff]
  %v6958 = vld [vmem:[#allocation3 + $0x50] sm:$0xff]
  %v6959 = vld [vmem:[#allocation3 + $0x58] sm:$0xff]
  %v6960 = vld [vmem:[#allocation3 + $0x60] sm:$0xff]
  %v6961 = vld [vmem:[#allocation3 + $0x68] sm:$0xff]
  %v6962 = vld [vmem:[#allocation3 + $0x70] sm:$0xff]
  %v6963 = vld [vmem:[#allocation3 + $0x78] sm:$0xff]
  %v6964 = vld [vmem:[#allocation3 + $0x80] sm:$0xff]
  %v6965 = vld [vmem:[#allocation3 + $0x88] sm:$0xff]
  %v6966 = vld [vmem:[#allocation3 + $0x90] sm:$0xff]
  %v6967 = vld [vmem:[#allocation3 + $0x98] sm:$0xff]
  %v6968 = vld [vmem:[#allocation3 + $0xa0] sm:$0xff]
  %v6969 = vld [vmem:[#allocation3 + $0xa8] sm:$0xff]
  %v6970 = vld [vmem:[#allocation3 + $0xb0] sm:$0xff]
  %v6971 = vld [vmem:[#allocation3 + $0xb8] sm:$0xff]
  %v6972 = vld [vmem:[#allocation3 + $0xc0] sm:$0xff]
  %v6973 = vld [vmem:[#allocation3 + $0xc8] sm:$0xff]
  %v6974 = vld [vmem:[#allocation3 + $0xd0] sm:$0xff]
  %v6975 = vld [vmem:[#allocation3 + $0xd8] sm:$0xff]
  %v6976 = vld [vmem:[#allocation3 + $0xe0] sm:$0xff]
  %v6977 = vld [vmem:[#allocation3 + $0xe8] sm:$0xff]
  %v6978 = vld [vmem:[#allocation3 + $0xf0] sm:$0xff]
  %v6979 = vld [vmem:[#allocation3 + $0xf8] sm:$0xff]
  %v6980 = vpack.c.bf16 %v6950, %v6948
  %v6981 = vpack.c.bf16 %v6951, %v6949
  %v6982 = vpack.c.bf16 %v6954, %v6952
  %v6983 = vpack.c.bf16 %v6955, %v6953
  %v6984 = vpack.c.bf16 %v6958, %v6956
  %v6985 = vpack.c.bf16 %v6959, %v6957
  %v6986 = vpack.c.bf16 %v6962, %v6960
  %v6987 = vpack.c.bf16 %v6963, %v6961
  %v6988 = vpack.c.bf16 %v6966, %v6964
  %v6989 = vpack.c.bf16 %v6967, %v6965
  %v6990 = vpack.c.bf16 %v6970, %v6968
  %v6991 = vpack.c.bf16 %v6971, %v6969
  %v6992 = vpack.c.bf16 %v6974, %v6972
  %v6993 = vpack.c.bf16 %v6975, %v6973
  %v6994 = vpack.c.bf16 %v6978, %v6976
  %v6995 = vpack.c.bf16 %v6979, %v6977
  %v6996 = vld [vmem:[%s19] sm:$0xf]
  %v6997 = vld [vmem:[%s19 + $0x4] sm:$0xf]
  %v6998 = vld [vmem:[%s19 + $0x8] sm:$0xf]
  %v6999 = vld [vmem:[%s19 + $0xc] sm:$0xf]
  %v7000 = vld [vmem:[%s19 + $0x10] sm:$0xf]
  %v7001 = vld [vmem:[%s19 + $0x14] sm:$0xf]
  %v7002 = vld [vmem:[%s19 + $0x18] sm:$0xf]
  %v7003 = vld [vmem:[%s19 + $0x1c] sm:$0xf]
  %v7004 = vld [vmem:[%s19 + $0x20] sm:$0xf]
  %v7005 = vld [vmem:[%s19 + $0x24] sm:$0xf]
  %v7006 = vld [vmem:[%s19 + $0x28] sm:$0xf]
  %v7007 = vld [vmem:[%s19 + $0x2c] sm:$0xf]
  %v7008 = vld [vmem:[%s19 + $0x30] sm:$0xf]
  %v7009 = vld [vmem:[%s19 + $0x34] sm:$0xf]
  %v7010 = vld [vmem:[%s19 + $0x38] sm:$0xf]
  %v7011 = vld [vmem:[%s19 + $0x3c] sm:$0xf]
  %v7012 = vld [vmem:[%s19 + $0x40] sm:$0xf]
  %v7013 = vld [vmem:[%s19 + $0x44] sm:$0xf]
  %v7032 = vunpack.c.l.b16 %v6996
  %v7033 = vunpack.c.l.b16 %v6997
  %v7034 = vunpack.c.l.b16 %v6998
  %v7035 = vunpack.c.l.b16 %v6999
  %v7036 = vunpack.c.l.b16 %v7000
  %v7037 = vunpack.c.l.b16 %v7001
  %v7038 = vunpack.c.l.b16 %v7002
  %v7039 = vunpack.c.l.b16 %v7003
  %v7040 = vunpack.c.l.b16 %v7004
  %v7041 = vunpack.c.l.b16 %v7005
  %v7042 = vunpack.c.l.b16 %v7006
  %v7043 = vunpack.c.l.b16 %v7007
  %v7044 = vunpack.c.l.b16 %v7008
  %v7045 = vunpack.c.l.b16 %v7009
  %v7046 = vunpack.c.l.b16 %v7010
  %v7047 = vunpack.c.l.b16 %v7011
  %v7048 = vunpack.c.l.b16 %v7012
  %v7049 = vunpack.c.l.b16 %v7013
  %v7050 = vpack.c.b16 %v7033, %v7032
  %v7051 = vpack.c.b16 %v7035, %v7034
  %v7052 = vpack.c.b16 %v7037, %v7036
  %v7053 = vpack.c.b16 %v7039, %v7038
  %v7054 = vpack.c.b16 %v7041, %v7040
  %v7055 = vpack.c.b16 %v7043, %v7042
  %v7056 = vpack.c.b16 %v7045, %v7044
  %v7057 = vpack.c.b16 %v7047, %v7046
  %v7058 = vpack.c.b16 %v7049, %v7048
  %v7069 = vsel %vm74, %v6981, 0
  %v7072 = vsel %vm74, %v6983, 0
  %v7075 = vsel %vm74, %v6985, 0
  %v7078 = vsel %vm74, %v6987, 0
  %v7081 = vsel %vm74, %v6989, 0
  %v7084 = vsel %vm74, %v6991, 0
  %v7087 = vsel %vm74, %v6993, 0
  %v7090 = vsel %vm74, %v6995, 0
  %7092 = vmatprep.subr.bf16.mxu0 0
  %7093 = vmatpush1.bf16.msra.mxu0 %v7050
  %7094 = vmatprep.subr.bf16.mxu0 0
  %7095 = vmatpush1.bf16.msra.mxu0 %v7051
  %7096 = vmatprep.subr.bf16.mxu0 0
  %7097 = vmatpush1.bf16.msra.mxu0 %v7052
  %7098 = vmatprep.subr.bf16.mxu0 0
  %7099 = vmatpush1.bf16.msra.mxu0 %v7053
  %7100 = vmatprep.subr.bf16.mxu0 0
  %7101 = vmatpush1.bf16.msra.mxu0 %v7054
  %7102 = vmatprep.subr.bf16.mxu0 0
  %7103 = vmatpush1.bf16.msra.mxu0 %v7055
  %7104 = vmatprep.subr.bf16.mxu0 0
  %7105 = vmatpush1.bf16.msra.mxu0 %v7056
  %7106 = vmatprep.subr.bf16.mxu0 0
  %7107 = vmatpush1.bf16.msra.mxu0 %v7057
  %7108 = vmatprep.subr.bf16.mxu0 0
  %7109 = vmatpush1.bf16.msra.mxu0 %v7058
  %7110 = vmatprep.subr.bf16.mxu0 0
  %7111 = vmatpush1.bf16.msra.mxu0 0
  %7112 = vmatprep.subr.bf16.mxu0 0
  %7113 = vmatpush1.bf16.msra.mxu0 0
  %7114 = vmatprep.subr.bf16.mxu0 0
  %7115 = vmatpush1.bf16.msra.mxu0 0
  %7116 = vmatprep.subr.bf16.mxu0 0
  %7117 = vmatpush1.bf16.msra.mxu0 0
  %7118 = vmatprep.subr.bf16.mxu0 0
  %7119 = vmatpush1.bf16.msra.mxu0 0
  %7120 = vmatprep.subr.bf16.mxu0 0
  %7121 = vmatpush1.bf16.msra.mxu0 0
  %7122 = vmatprep.subr.bf16.mxu0 0
  %7123 = vmatpush1.bf16.msra.mxu0 0
  %7124 = vmatprep.mubr.bf16.mxu0 %v7069
  %7125 = vmatmul.mubr.bf16.gmra.mrb[0].mxu0 %v6980
  %v7126 = vpop.f32.mrb[0].mxu0
  %v7127 = vadd.f32 0.0, %v7126
  %v7128 = vpop.f32.mrb[0].mxu0
  %v7129 = vpop.f32.mrb[0].mxu0
  %v7130 = vadd.f32 0.0, %v7129
  %v7131 = vpop.f32.mrb[0].mxu0
  %7132 = vmatprep.mubr.bf16.mxu0 %v7072
  %7133 = vmatmul.mubr.bf16.gmra.mrb[0].mxu0 %v6982
  %v7134 = vpop.f32.mrb[0].mxu0
  %v7135 = vadd.f32 0.0, %v7134
  %v7136 = vpop.f32.mrb[0].mxu0
  %v7137 = vpop.f32.mrb[0].mxu0
  %v7138 = vadd.f32 0.0, %v7137
  %v7139 = vpop.f32.mrb[0].mxu0
  %7140 = vmatprep.mubr.bf16.mxu0 %v7075
  %7141 = vmatmul.mubr.bf16.gmra.mrb[0].mxu0 %v6984
  %v7142 = vpop.f32.mrb[0].mxu0
  %v7143 = vadd.f32 0.0, %v7142
  %v7144 = vpop.f32.mrb[0].mxu0
  %v7145 = vpop.f32.mrb[0].mxu0
  %v7146 = vadd.f32 0.0, %v7145
  %v7147 = vpop.f32.mrb[0].mxu0
  %7148 = vmatprep.mubr.bf16.mxu0 %v7078
  %7149 = vmatmul.mubr.bf16.gmra.mrb[0].mxu0 %v6986
  %v7150 = vpop.f32.mrb[0].mxu0
  %v7151 = vadd.f32 0.0, %v7150
  %v7152 = vpop.f32.mrb[0].mxu0
  %v7153 = vpop.f32.mrb[0].mxu0
  %v7154 = vadd.f32 0.0, %v7153
  %v7155 = vpop.f32.mrb[0].mxu0
  %7156 = vmatprep.mubr.bf16.mxu0 %v7081
  %7157 = vmatmul.mubr.bf16.gmra.mrb[0].mxu0 %v6988
  %v7158 = vpop.f32.mrb[0].mxu0
  %v7159 = vadd.f32 0.0, %v7158
  %v7160 = vpop.f32.mrb[0].mxu0
  %v7161 = vpop.f32.mrb[0].mxu0
  %v7162 = vadd.f32 0.0, %v7161
  %v7163 = vpop.f32.mrb[0].mxu0
  %7164 = vmatprep.mubr.bf16.mxu0 %v7084
  %7165 = vmatmul.mubr.bf16.gmra.mrb[0].mxu0 %v6990
  %v7166 = vpop.f32.mrb[0].mxu0
  %v7167 = vadd.f32 0.0, %v7166
  %v7168 = vpop.f32.mrb[0].mxu0
  %v7169 = vpop.f32.mrb[0].mxu0
  %v7170 = vadd.f32 0.0, %v7169
  %v7171 = vpop.f32.mrb[0].mxu0
  %7172 = vmatprep.mubr.bf16.mxu0 %v7087
  %7173 = vmatmul.mubr.bf16.gmra.mrb[0].mxu0 %v6992
  %v7174 = vpop.f32.mrb[0].mxu0
  %v7175 = vadd.f32 0.0, %v7174
  %v7176 = vpop.f32.mrb[0].mxu0
  %v7177 = vpop.f32.mrb[0].mxu0
  %v7178 = vadd.f32 0.0, %v7177
  %v7179 = vpop.f32.mrb[0].mxu0
  %7180 = vmatprep.mubr.bf16.mxu0 %v7090
  %7181 = vmatmul.mubr.bf16.gmra.mrb[0].mxu0 %v6994
  %v7182 = vpop.f32.mrb[0].mxu0
  %v7183 = vadd.f32 0.0, %v7182
  %v7184 = vpop.f32.mrb[0].mxu0
  %v7185 = vpop.f32.mrb[0].mxu0
  %v7186 = vadd.f32 0.0, %v7185
  %v7187 = vpop.f32.mrb[0].mxu0
  %7188 = vdwg.mxu0
  %vm7189 = vcmask 23552
  %v7190 = vsel %vm7189, %v7127, 0.0
  %v7191 = vsel %vm7189, %v7130, 0.0
  %v7192 = vadd.f32 %v7190, %v7191
  %v7193 = vsel %vm7189, %v7135, 0.0
  %v7194 = vadd.f32 %v7192, %v7193
  %v7195 = vsel %vm7189, %v7138, 0.0
  %v7196 = vadd.f32 %v7194, %v7195
  %v7197 = vsel %vm7189, %v7143, 0.0
  %v7198 = vadd.f32 %v7196, %v7197
  %v7199 = vsel %vm7189, %v7146, 0.0
  %v7200 = vadd.f32 %v7198, %v7199
  %v7201 = vsel %vm7189, %v7151, 0.0
  %v7202 = vadd.f32 %v7200, %v7201
  %v7203 = vsel %vm7189, %v7154, 0.0
  %v7204 = vadd.f32 %v7202, %v7203
  %v7205 = vsel %vm7189, %v7159, 0.0
  %v7206 = vadd.f32 %v7204, %v7205
  %v7207 = vsel %vm7189, %v7162, 0.0
  %v7208 = vadd.f32 %v7206, %v7207
  %v7209 = vsel %vm7189, %v7167, 0.0
  %v7210 = vadd.f32 %v7208, %v7209
  %v7211 = vsel %vm7189, %v7170, 0.0
  %v7212 = vadd.f32 %v7210, %v7211
  %v7213 = vsel %vm7189, %v7175, 0.0
  %v7214 = vadd.f32 %v7212, %v7213
  %v7215 = vsel %vm7189, %v7178, 0.0
  %v7216 = vadd.f32 %v7214, %v7215
  %v7217 = vsel %vm7189, %v7183, 0.0
  %v7218 = vadd.f32 %v7216, %v7217
  %v7219 = vsel %vm7189, %v7186, 0.0
  %v7220 = vadd.f32 %v7218, %v7219
  %v7221 = vrot.slane %v7220, 4
  %v7222 = vadd.f32 %v7220, %v7221
  %v7223 = vrot.slane %v7222, 2
  %v7224 = vadd.f32 %v7222, %v7223
  %v7225 = vrot.slane %v7224, 1
  %v7226 = vadd.f32 %v7224, %v7225
  %v7227 = vmul.f32 %v7226, %v1062
  %v7228 = vmul.f32 %v7127, %v7127
  %v7229 = vmul.f32 %v7130, %v7130
  %v7230 = vmul.f32 %v7135, %v7135
  %v7231 = vmul.f32 %v7138, %v7138
  %v7232 = vmul.f32 %v7143, %v7143
  %v7233 = vmul.f32 %v7146, %v7146
  %v7234 = vmul.f32 %v7151, %v7151
  %v7235 = vmul.f32 %v7154, %v7154
  %v7236 = vmul.f32 %v7159, %v7159
  %v7237 = vmul.f32 %v7162, %v7162
  %v7238 = vmul.f32 %v7167, %v7167
  %v7239 = vmul.f32 %v7170, %v7170
  %v7240 = vmul.f32 %v7175, %v7175
  %v7241 = vmul.f32 %v7178, %v7178
  %v7242 = vmul.f32 %v7183, %v7183
  %v7243 = vmul.f32 %v7186, %v7186
  %v7244 = vsel %vm7189, %v7228, 0.0
  %v7245 = vsel %vm7189, %v7229, 0.0
  %v7246 = vadd.f32 %v7244, %v7245
  %v7247 = vsel %vm7189, %v7230, 0.0
  %v7248 = vadd.f32 %v7246, %v7247
  %v7249 = vsel %vm7189, %v7231, 0.0
  %v7250 = vadd.f32 %v7248, %v7249
  %v7251 = vsel %vm7189, %v7232, 0.0
  %v7252 = vadd.f32 %v7250, %v7251
  %v7253 = vsel %vm7189, %v7233, 0.0
  %v7254 = vadd.f32 %v7252, %v7253
  %v7255 = vsel %vm7189, %v7234, 0.0
  %v7256 = vadd.f32 %v7254, %v7255
  %v7257 = vsel %vm7189, %v7235, 0.0
  %v7258 = vadd.f32 %v7256, %v7257
  %v7259 = vsel %vm7189, %v7236, 0.0
  %v7260 = vadd.f32 %v7258, %v7259
  %v7261 = vsel %vm7189, %v7237, 0.0
  %v7262 = vadd.f32 %v7260, %v7261
  %v7263 = vsel %vm7189, %v7238, 0.0
  %v7264 = vadd.f32 %v7262, %v7263
  %v7265 = vsel %vm7189, %v7239, 0.0
  %v7266 = vadd.f32 %v7264, %v7265
  %v7267 = vsel %vm7189, %v7240, 0.0
  %v7268 = vadd.f32 %v7266, %v7267
  %v7269 = vsel %vm7189, %v7241, 0.0
  %v7270 = vadd.f32 %v7268, %v7269
  %v7271 = vsel %vm7189, %v7242, 0.0
  %v7272 = vadd.f32 %v7270, %v7271
  %v7273 = vsel %vm7189, %v7243, 0.0
  %v7274 = vadd.f32 %v7272, %v7273
  %v7275 = vrot.slane %v7274, 4
  %v7276 = vadd.f32 %v7274, %v7275
  %v7277 = vrot.slane %v7276, 2
  %v7278 = vadd.f32 %v7276, %v7277
  %v7279 = vrot.slane %v7278, 1
  %v7280 = vadd.f32 %v7278, %v7279
  %v7281 = vmul.f32 %v7280, %v1062
  %v7282 = vmul.f32 %v7227, %v7227
  %v7283 = vsub.f32 %v7281, %v7282
  %v7284 = vmax.f32 %v7283, 0.0
  %v7285 = vld [vmem:[%s20] sm:$0x1]
  %v7286 = vadd.f32 %v7284, 1e-05
  %v7287 = vrsqrt.pop %v7286
  %v7288 = vmul.f32 %v7285, %v7287
  %v7290 = vlaneseq
  %v7291 = vshrl.u32 %v7290, 7
  %v7292 = vsub.s32 0, %v7291
  %v7293 = vrot.slane %v7288, %v7292
  %v7295 = vmul.f32 %v7127, %v7293
  %v7296 = vmul.f32 %v7130, %v7293
  %v7297 = vmul.f32 %v7135, %v7293
  %v7298 = vmul.f32 %v7138, %v7293
  %v7299 = vmul.f32 %v7143, %v7293
  %v7300 = vmul.f32 %v7146, %v7293
  %v7301 = vmul.f32 %v7151, %v7293
  %v7302 = vmul.f32 %v7154, %v7293
  %v7303 = vmul.f32 %v7159, %v7293
  %v7304 = vmul.f32 %v7162, %v7293
  %v7305 = vmul.f32 %v7167, %v7293
  %v7306 = vmul.f32 %v7170, %v7293
  %v7307 = vmul.f32 %v7175, %v7293
  %v7308 = vmul.f32 %v7178, %v7293
  %v7309 = vmul.f32 %v7183, %v7293
  %v7310 = vmul.f32 %v7186, %v7293
  %v7311 = vld [vmem:[%s21] sm:$0x1]
  %v7312 = vmul.f32 %v7227, %v7288
  %v7313 = vsub.f32 %v7311, %v7312
  %v7315 = vlaneseq
  %v7316 = vshrl.u32 %v7315, 7
  %v7317 = vsub.s32 0, %v7316
  %v7318 = vrot.slane %v7313, %v7317
  %v7320 = vadd.f32 %v7295, %v7318
  %v7321 = vadd.f32 %v7296, %v7318
  %v7322 = vadd.f32 %v7297, %v7318
  %v7323 = vadd.f32 %v7298, %v7318
  %v7324 = vadd.f32 %v7299, %v7318
  %v7325 = vadd.f32 %v7300, %v7318
  %v7326 = vadd.f32 %v7301, %v7318
  %v7327 = vadd.f32 %v7302, %v7318
  %v7328 = vadd.f32 %v7303, %v7318
  %v7329 = vadd.f32 %v7304, %v7318
  %v7330 = vadd.f32 %v7305, %v7318
  %v7331 = vadd.f32 %v7306, %v7318
  %v7332 = vadd.f32 %v7307, %v7318
  %v7333 = vadd.f32 %v7308, %v7318
  %v7334 = vadd.f32 %v7309, %v7318
  %v7335 = vadd.f32 %v7310, %v7318
  %v7336 = vmax.f32 %v7320, 0.0
  %v7337 = vmax.f32 %v7321, 0.0
  %v7338 = vmax.f32 %v7322, 0.0
  %v7339 = vmax.f32 %v7323, 0.0
  %v7340 = vmax.f32 %v7324, 0.0
  %v7341 = vmax.f32 %v7325, 0.0
  %v7342 = vmax.f32 %v7326, 0.0
  %v7343 = vmax.f32 %v7327, 0.0
  %v7344 = vmax.f32 %v7328, 0.0
  %v7345 = vmax.f32 %v7329, 0.0
  %v7346 = vmax.f32 %v7330, 0.0
  %v7347 = vmax.f32 %v7331, 0.0
  %v7348 = vmax.f32 %v7332, 0.0
  %v7349 = vmax.f32 %v7333, 0.0
  %v7350 = vmax.f32 %v7334, 0.0
  %v7351 = vmax.f32 %v7335, 0.0
  %7352 = vst.msk [vmem:[%s22] sm:$0xff] %vm6641, %v6788
  %7353 = vst.msk [vmem:[%s22 + $0x8] sm:$0xff] %vm6641, %v6789
  %7354 = vst.msk [vmem:[%s22 + $0x10] sm:$0xff] %vm6641, %v6790
  %7355 = vst.msk [vmem:[%s22 + $0x18] sm:$0xff] %vm6641, %v6791
  %7356 = vst.msk [vmem:[%s22 + $0x20] sm:$0xff] %vm6641, %v6792
  %7357 = vst.msk [vmem:[%s22 + $0x28] sm:$0xff] %vm6641, %v6793
  %7358 = vst.msk [vmem:[%s22 + $0x30] sm:$0xff] %vm6641, %v6794
  %7359 = vst.msk [vmem:[%s22 + $0x38] sm:$0xff] %vm6641, %v6795
  %7360 = vst.msk [vmem:[%s22 + $0x40] sm:$0xff] %vm6641, %v6796
  %7361 = vst.msk [vmem:[%s22 + $0x48] sm:$0xff] %vm6641, %v6797
  %7362 = vst.msk [vmem:[%s22 + $0x50] sm:$0xff] %vm6641, %v6798
  %7363 = vst.msk [vmem:[%s22 + $0x58] sm:$0xff] %vm6641, %v6799
  %7364 = vst.msk [vmem:[%s22 + $0x60] sm:$0xff] %vm6641, %v6800
  %7365 = vst.msk [vmem:[%s22 + $0x68] sm:$0xff] %vm6641, %v6801
  %7366 = vst.msk [vmem:[%s22 + $0x70] sm:$0xff] %vm6641, %v6802
  %7367 = vst.msk [vmem:[%s22 + $0x78] sm:$0xff] %vm6641, %v6803
  %7368 = vst.msk [vmem:[%s23] sm:$0xff] %vm7189, %v7336
  %7369 = vst.msk [vmem:[%s23 + $0x8] sm:$0xff] %vm7189, %v7337
  %7370 = vst.msk [vmem:[%s23 + $0x10] sm:$0xff] %vm7189, %v7338
  %7371 = vst.msk [vmem:[%s23 + $0x18] sm:$0xff] %vm7189, %v7339
  %7372 = vst.msk [vmem:[%s23 + $0x20] sm:$0xff] %vm7189, %v7340
  %7373 = vst.msk [vmem:[%s23 + $0x28] sm:$0xff] %vm7189, %v7341
  %7374 = vst.msk [vmem:[%s23 + $0x30] sm:$0xff] %vm7189, %v7342
  %7375 = vst.msk [vmem:[%s23 + $0x38] sm:$0xff] %vm7189, %v7343
  %7376 = vst.msk [vmem:[%s23 + $0x40] sm:$0xff] %vm7189, %v7344
  %7377 = vst.msk [vmem:[%s23 + $0x48] sm:$0xff] %vm7189, %v7345
  %7378 = vst.msk [vmem:[%s23 + $0x50] sm:$0xff] %vm7189, %v7346
  %7379 = vst.msk [vmem:[%s23 + $0x58] sm:$0xff] %vm7189, %v7347
  %7380 = vst.msk [vmem:[%s23 + $0x60] sm:$0xff] %vm7189, %v7348
  %7381 = vst.msk [vmem:[%s23 + $0x68] sm:$0xff] %vm7189, %v7349
  %7382 = vst.msk [vmem:[%s23 + $0x70] sm:$0xff] %vm7189, %v7350
  %7383 = vst.msk [vmem:[%s23 + $0x78] sm:$0xff] %vm7189, %v7351
  // Predicated region
  $region90: #{resnet_forward.2} parent=0 // pred_check
    _
  $region91: #{resnet_forward.2} parent=0 // pred_check_branch
    %7385 = sbr.rel (0) target = $region93
  $region92: #{resnet_forward.2} parent=0 // pred_region
    _
  $region93: #{resnet_forward.2} parent=0 // pred_fallthru
    _
  // Predicated region
  $region94: #{resnet_forward.2} parent=0 // pred_check
    _
  $region95: #{resnet_forward.2} parent=0 // pred_check_branch
    %7387 = sbr.rel (0) target = $region97
  $region96: #{resnet_forward.2} parent=0 // pred_region
    _
  $region97: #{resnet_forward.2} parent=0 // pred_fallthru
    _
  // Predicated region
  $region98: #{resnet_forward.2} parent=0 // pred_check
    _
  $region99: #{resnet_forward.2} parent=0 // pred_check_branch
    %7389 = sbr.rel (0) target = $region101
  $region100: #{resnet_forward.2} parent=0 // pred_region
    _
  $region101: #{resnet_forward.2} parent=0 // pred_fallthru
    _
  // Predicated region
  $region102: #{resnet_forward.2} parent=0 // pred_check
    _
  $region103: #{resnet_forward.2} parent=0 // pred_check_branch
    %7391 = sbr.rel (0) target = $region105
  $region104: #{resnet_forward.2} parent=0 // pred_region
    _
  $region105: #{resnet_forward.2} parent=0 // pred_fallthru
    _

</llo_original>
